<compile_context>
chip_gen: v5e
topology: v5e:2x2
jax: 0.10.0
libtpu: 0.0.40
codegen_flags: <defaults>
</compile_context>

<pallas_src>
import functools
import math

import jax
import jax.numpy as jnp
from jax import lax
from jax.experimental import pallas as pl
from jax.experimental.pallas import tpu as pltpu

# ---------------- small model config (structure matches the PyTorch module) --
STATE_DIM = 2
ACT_DIM = 4
EMBED_DIM = 32          # "hidden=32" small setting
NUM_HEADS = 4           # embed_dim % num_heads == 0  -> head_dim = 8
HEAD_DIM = EMBED_DIM // NUM_HEADS
MLP_RATIO = 4.0
MLP_HIDDEN = int(EMBED_DIM * MLP_RATIO)   # 128
NUM_LAYERS = 2
T_MAX = 4
MAX_EP_LEN = 64
MAX_LENGTH = 16
TAU = 2.0               # MultiStepLIFNode(tau=2.0)
V_TH = 1.0              # spikingjelly defaults: v_threshold=1.0, v_reset=0.0
LN_EPS = 1e-5           # torch.nn.LayerNorm default eps
_EM1 = math.e - 1.0     # exp(1) - 1, for closed-form softmax of binary spikes
OUT_PAD = 128           # lane-dense action-head output width


# ------------------------------- shared math --------------------------------
def _lif_step(v, x, thresh=V_TH):
    """One MultiStepLIFNode step (tau=2, decay_input=True, hard reset to 0)."""
    v = v + (x - v) * (1.0 / TAU)               # charge (v_reset = 0)
    spk = (v >= thresh).astype(jnp.float32)     # heaviside fire
    v = v * (1.0 - spk)                         # hard reset
    return v, spk


def _lif_const_spikes(x, T):
    """Exact spike train of the LIF neuron for an input constant over T steps.

    Starting from v=0, after k charge steps without a spike v = x*(1 - 2^-k),
    so the neuron fires with period k where k is the smallest step count with
    x >= V_TH * 2^k / (2^k - 1).  Spikes at step t are the union of the
    disjoint "period == k" intervals over divisors k of t: T independent
    threshold compares instead of a loop-carried v update.
    Returns a list of T float32 {0,1} maps.
    """
    ge = [(x >= V_TH * (2.0 ** k) / (2.0 ** k - 1.0)).astype(jnp.float32)
          for k in range(1, T + 1)]
    iv = [ge[0]] + [ge[k] - ge[k - 1] for k in range(1, T)]   # disjoint intervals
    spikes = []
    for t in range(1, T + 1):
        s = None
        for k in range(1, T + 1):
            if t % k == 0:
                s = iv[k - 1] if s is None else s + iv[k - 1]
        spikes.append(s)
    return spikes


def _layernorm(x, g, b):
    mu = jnp.mean(x, axis=-1, keepdims=True)
    var = jnp.mean((x - mu) ** 2, axis=-1, keepdims=True)
    return (x - mu) * lax.rsqrt(var + LN_EPS) * g + b


# --------------------------- fused Pallas kernel ------------------------------
def fused_forward_kernel(emb_ref, ng_ref, nb_ref,
                         n1g_ref, n1b_ref, wqkv_ref,
                         n2g_ref, n2b_ref, w1_ref, b1_ref, w2_ref, b2_ref,
                         whp_ref, bhp_ref, out_ref, *, batch, seq):
    """norm -> NUM_LAYERS SpikingTransformerBlocks -> action head (one batch tile)."""
    B, S, T, H, hd = batch, seq, T_MAX, NUM_HEADS, HEAD_DIM
    M = B * S
    C = EMBED_DIM
    inv_t = 1.0 / T
    # 1/sqrt(head_dim) score scale folded exactly into the score-LIF threshold.
    score_thresh = V_TH * math.sqrt(float(hd))

    # Per-head 0/1 channel masks (hoisted: built once, reused for every layer).
    lane = lax.broadcasted_iota(jnp.int32, (1, 1, C), 2)
    head_mask = [((lane >= h * hd) & (lane < (h + 1) * hd)).astype(jnp.float32)
                 for h in range(H)]

    # initial LayerNorm (nn.Dropout(0.1) -> identity, inference semantics)
    x = _layernorm(emb_ref[...], ng_ref[0], nb_ref[0])          # (M, C) f32

    for l in range(NUM_LAYERS):                                  # static layer loop
        # ---------------- x = x + attn(norm1(x)) ----------------
        hcur = _layernorm(x, n1g_ref[l], n1b_ref[l])
        # fused q/k/v projection: one (M,C)x(C,3C) matmul, 96/128 lanes used
        qkv = jnp.dot(hcur, wqkv_ref[l], preferred_element_type=jnp.float32)
        qkv_spk = _lif_const_spikes(qkv, T)                      # T x (M, 3C)

        # Build the (T*H*B, S, C) batched operands (leading dim ordered t,h,b).
        # Masking only K/V selects each head's 8 channels without lane slicing;
        # spikes/masks are 0/1 so the bf16 cast is lossless.
        q_pc, k_pc, v_pc = [], [], []
        for t in range(T):
            q3 = qkv_spk[t][:, :C].reshape(B, S, C)
            k3 = qkv_spk[t][:, C:2 * C].reshape(B, S, C)
            v3 = qkv_spk[t][:, 2 * C:].reshape(B, S, C)
            for h in range(H):
                q_pc.append(q3)
                k_pc.append(k3 * head_mask[h])
                v_pc.append(v3 * head_mask[h])
        q_all = jnp.concatenate(q_pc, axis=0).astype(jnp.bfloat16)
        k_all = jnp.concatenate(k_pc, axis=0).astype(jnp.bfloat16)
        v_all = jnp.concatenate(v_pc, axis=0).astype(jnp.bfloat16)

        # one batched MXU einsum for all heads / timesteps (scores are exact ints)
        scores = jnp.einsum('nsc,nkc->nsk', q_all, k_all,
                            preferred_element_type=jnp.float32)  # (T*H*B, S, S)

        # lif_out on (scores * scale): scale folded into the threshold (exact).
        G = H * B
        v_att = jnp.zeros((G, S, S), jnp.float32)
        spk_pc = []
        for t in range(T):                                       # sequential state
            v_att, sp = _lif_step(v_att, scores[t * G:(t + 1) * G], score_thresh)
            spk_pc.append(sp)
        a_spk = jnp.concatenate(spk_pc, axis=0)                  # (T*H*B, S, S)

        # exact closed-form softmax for binary inputs: exp(a) in {1, e}
        num = 1.0 + _EM1 * a_spk
        den = float(S) + _EM1 * jnp.sum(a_spk, axis=-1, keepdims=True)
        probs = (num * pl.reciprocal(den, approx=True)).astype(jnp.bfloat16)

        # one batched probs@V einsum; masked-V outputs sum to the head concat
        out_all = jnp.einsum('nsk,nkc->nsc', probs, v_all,
                             preferred_element_type=jnp.float32)  # (T*H*B, S, C)
        acc = jnp.zeros((B, S, C), jnp.float32)
        for g in range(T * H):                                    # sum heads + mean T
            acc = acc + out_all[g * B:(g + 1) * B]
        x = x + (acc * inv_t).reshape(M, C)

        # ---------------- x = x + mlp(norm2(x)) ----------------
        h2 = _layernorm(x, n2g_ref[l], n2b_ref[l])
        a1 = jnp.dot(h2, w1_ref[l], preferred_element_type=jnp.float32) + b1_ref[l]
        s1 = _lif_const_spikes(a1, T)                             # T x (M, hidden)
        # batch fc2 over T: one (T*M,128)x(128,C) bf16 matmul (spikes lossless)
        s1_all = jnp.concatenate(s1, axis=0).astype(jnp.bfloat16)
        a2_all = jnp.dot(s1_all, w2_ref[l].astype(jnp.bfloat16),
                         preferred_element_type=jnp.float32) + b2_ref[l]
        v2 = jnp.zeros((M, C), jnp.float32)
        acc2 = jnp.zeros((M, C), jnp.float32)
        for t in range(T):                                        # lif2: true state
            v2, s2 = _lif_step(v2, a2_all[t * M:(t + 1) * M])
            acc2 = acc2 + s2
        x = x + acc2 * inv_t

    # ---------------- action head (lane-dense padded output) ----------------
    out = jnp.dot(x, whp_ref[...], preferred_element_type=jnp.float32) + bhp_ref[0]
    out_ref[...] = out.astype(out_ref.dtype)


def spiking_transformer_pallas(emb, params):
    """Run norm + both spiking blocks + action head in one pallas_call."""
    B, S, C = emb.shape
    M = B * S
    emb_flat = emb.reshape(M, C)

    # lane packing of the q/k/v weights: (L, C, 3C)
    wqkv = jnp.concatenate([params["wq"], params["wk"], params["wv"]], axis=-1)
    # lane-dense action head: zero-pad (C, ACT_DIM) -> (C, 128)
    whp = jnp.zeros((C, OUT_PAD), jnp.float32).at[:, :ACT_DIM].set(params["w_head"])
    bhp = jnp.zeros((1, OUT_PAD), jnp.float32).at[:, :ACT_DIM].set(params["b_head"])

    # Row tiling over the batch: grid collapses to (1,) at toy sizes but shards
    # across v7x's 2 TensorCores ("parallel") and bounds VMEM once B*S grows.
    bt = B
    if B * S > 256:
        bt = max(1, 256 // S)
        while B % bt:
            bt -= 1
    grid = (B // bt,)

    inputs = (emb_flat, params["norm_g"], params["norm_b"],
              params["n1g"], params["n1b"], wqkv,
              params["n2g"], params["n2b"],
              params["w1"], params["b1"], params["w2"], params["b2"],
              whp, bhp)

    def full_spec(shape):
        nd = len(shape)
        return pl.BlockSpec(shape, lambda i, _nd=nd: (0,) * _nd)

    in_specs = [pl.BlockSpec((bt * S, C), lambda i: (i, 0))]
    in_specs += [full_spec(a.shape) for a in inputs[1:]]
    out_spec = pl.BlockSpec((bt * S, OUT_PAD), lambda i: (i, 0))

    # advisory cost estimate so XLA schedules this tiny call sensibly
    L, T, H, HID = NUM_LAYERS, T_MAX, NUM_HEADS, MLP_HIDDEN
    flops_layer = (2 * M * C * 3 * C
                   + 2 * (T * H * B) * S * S * C      # scores
                   + 2 * (T * H * B) * S * S * C      # probs @ v
                   + 2 * M * C * HID                  # fc1
                   + 2 * T * M * HID * C)             # fc2
    flops = L * flops_layer + 2 * M * C * OUT_PAD
    bytes_accessed = sum(int(a.size) * a.dtype.itemsize for a in inputs) \
        + M * OUT_PAD * 4
    cost = pl.CostEstimate(flops=int(flops),
                           transcendentals=int(L * T * H * B * S),
                           bytes_accessed=int(bytes_accessed))

    out = pl.pallas_call(
        functools.partial(fused_forward_kernel, batch=bt, seq=S),
        out_shape=jax.ShapeDtypeStruct((M, OUT_PAD), jnp.float32),
        grid=grid,
        in_specs=in_specs,
        out_specs=out_spec,
        compiler_params=pltpu.CompilerParams(
            dimension_semantics=("parallel",),
            vmem_limit_bytes=32 * 1024 * 1024),
        cost_estimate=cost,
    )(*inputs)
    return out[:, :ACT_DIM].reshape(B, S, ACT_DIM)


# ------------------------------ parameters -----------------------------------
def init_params(key):
    keys = iter(jax.random.split(key, 64))

    def lin(fan_in, fan_out):
        s = 1.0 / jnp.sqrt(jnp.float32(fan_in))
        w = jax.random.normal(next(keys), (fan_in, fan_out), jnp.float32) * s
        b = jax.random.normal(next(keys), (1, fan_out), jnp.float32) * s
        return w, b

    p = {}
    p["ws"], p["bs"] = lin(STATE_DIM, EMBED_DIM)            # embed_state
    p["wr"], p["br"] = lin(1, EMBED_DIM)                    # embed_return
    p["emb_act"] = jax.random.normal(next(keys), (ACT_DIM, EMBED_DIM),
                                     jnp.float32)           # embed_action
    p["emb_time"] = jax.random.normal(next(keys), (MAX_EP_LEN, EMBED_DIM),
                                      jnp.float32)          # embed_timestep
    p["pos"] = jax.random.normal(next(keys), (1, MAX_LENGTH, EMBED_DIM),
                                 jnp.float32) * 0.02        # pos_embedding
    p["norm_g"] = jnp.ones((1, EMBED_DIM), jnp.float32)
    p["norm_b"] = jnp.zeros((1, EMBED_DIM), jnp.float32)

    # Per-layer block weights stacked on a leading layer axis (fused kernel).
    L = NUM_LAYERS
    se = 1.0 / jnp.sqrt(jnp.float32(EMBED_DIM))
    sh = 1.0 / jnp.sqrt(jnp.float32(MLP_HIDDEN))
    p["n1g"] = jnp.ones((L, EMBED_DIM), jnp.float32)
    p["n1b"] = jnp.zeros((L, EMBED_DIM), jnp.float32)
    p["n2g"] = jnp.ones((L, EMBED_DIM), jnp.float32)
    p["n2b"] = jnp.zeros((L, EMBED_DIM), jnp.float32)
    p["wq"] = jax.random.normal(next(keys), (L, EMBED_DIM, EMBED_DIM)) * se
    p["wk"] = jax.random.normal(next(keys), (L, EMBED_DIM, EMBED_DIM)) * se
    p["wv"] = jax.random.normal(next(keys), (L, EMBED_DIM, EMBED_DIM)) * se
    p["w1"] = jax.random.normal(next(keys), (L, EMBED_DIM, MLP_HIDDEN)) * se
    p["b1"] = jax.random.normal(next(keys), (L, MLP_HIDDEN)) * se
    p["w2"] = jax.random.normal(next(keys), (L, MLP_HIDDEN, EMBED_DIM)) * sh
    p["b2"] = jax.random.normal(next(keys), (L, EMBED_DIM)) * sh

    p["w_head"], p["b_head"] = lin(EMBED_DIM, ACT_DIM)      # action_head
    return p


# ------------------------------- full forward --------------------------------
@jax.jit
def forward(params, states, actions, returns_to_go, timesteps):
    B, S, _ = states.shape
    state_emb = states @ params["ws"] + params["bs"]                   # (B,S,E)
    ret_emb = returns_to_go[..., None] @ params["wr"] + params["br"]   # (B,S,E)
    time_emb = params["emb_time"][timesteps]                           # (B,S,E)
    actions_input = jnp.concatenate(
        [jnp.zeros_like(actions[:, :1]), actions[:, :-1]], axis=1)     # shift
    act_emb = params["emb_act"][actions_input]                         # (B,S,E)

    emb = ret_emb + state_emb + act_emb + time_emb + params["pos"][:, :S, :]
    # TODO(synk): nn.Dropout(p=0.1) has no in-kernel RNG equivalent here;
    # implemented as identity (inference semantics).

    # norm + both spiking blocks + action head: one fused Pallas kernel.
    action_preds = spiking_transformer_pallas(emb, params)            # (B,S,A)
    return action_preds


# ---------------------------------- main --------------------------------------
if __name__ == "__main__":
    key = jax.random.PRNGKey(0)
    kp, ks, ka, kr = jax.random.split(key, 4)

    B, S = 2, 8
    params = init_params(kp)
    states = jax.random.normal(ks, (B, S, STATE_DIM), jnp.float32)
    actions = jax.random.randint(ka, (B, S), 0, ACT_DIM, dtype=jnp.int32)
    returns_to_go = jax.random.uniform(kr, (B, S), jnp.float32)
    timesteps = jnp.tile(jnp.arange(S, dtype=jnp.int32)[None, :], (B, 1))

    out = forward(params, states, actions, returns_to_go, timesteps)
    jax.block_until_ready(out)
    assert out.shape == (B, S, ACT_DIM) and out.dtype == jnp.float32
    print("KERNEL_OK")
</pallas_src>

<mosaic_0001>
module attributes {stable_mosaic.version = 11 : i64} {
  func.func @fused_forward_kernel(%arg0: i32, %arg1: memref<16x32xf32, #tpu.memory_space<vmem>>, %arg2: memref<1x32xf32, #tpu.memory_space<vmem>>, %arg3: memref<1x32xf32, #tpu.memory_space<vmem>>, %arg4: memref<2x32xf32, #tpu.memory_space<vmem>>, %arg5: memref<2x32xf32, #tpu.memory_space<vmem>>, %arg6: memref<2x32x96xf32, #tpu.memory_space<vmem>>, %arg7: memref<2x32xf32, #tpu.memory_space<vmem>>, %arg8: memref<2x32xf32, #tpu.memory_space<vmem>>, %arg9: memref<2x32x128xf32, #tpu.memory_space<vmem>>, %arg10: memref<2x128xf32, #tpu.memory_space<vmem>>, %arg11: memref<2x128x32xf32, #tpu.memory_space<vmem>>, %arg12: memref<2x32xf32, #tpu.memory_space<vmem>>, %arg13: memref<32x128xf32, #tpu.memory_space<vmem>>, %arg14: memref<1x128xf32, #tpu.memory_space<vmem>>, %arg15: memref<16x128xf32, #tpu.memory_space<vmem>>) attributes {dimension_semantics = [#tpu.dimension_semantics<parallel>], iteration_bounds = array<i64: 1>, scalar_prefetch = 0 : i64, scratch_operands = 0 : i64, tpu.core_type = #tpu.core_type<tc>, window_params = [{transform_indices = @transform_0, window_bounds = array<i64: 16, 32>}, {pipeline_mode = #tpu.pipeline_mode<synchronous>, transform_indices = @transform_1, window_bounds = array<i64: 1, 32>}, {pipeline_mode = #tpu.pipeline_mode<synchronous>, transform_indices = @transform_2, window_bounds = array<i64: 1, 32>}, {pipeline_mode = #tpu.pipeline_mode<synchronous>, transform_indices = @transform_3, window_bounds = array<i64: 2, 32>}, {pipeline_mode = #tpu.pipeline_mode<synchronous>, transform_indices = @transform_4, window_bounds = array<i64: 2, 32>}, {pipeline_mode = #tpu.pipeline_mode<synchronous>, transform_indices = @transform_5, window_bounds = array<i64: 2, 32, 96>}, {pipeline_mode = #tpu.pipeline_mode<synchronous>, transform_indices = @transform_6, window_bounds = array<i64: 2, 32>}, {pipeline_mode = #tpu.pipeline_mode<synchronous>, transform_indices = @transform_7, window_bounds = array<i64: 2, 32>}, {pipeline_mode = #tpu.pipeline_mode<synchronous>, transform_indices = @transform_8, window_bounds = array<i64: 2, 32, 128>}, {pipeline_mode = #tpu.pipeline_mode<synchronous>, transform_indices = @transform_9, window_bounds = array<i64: 2, 128>}, {pipeline_mode = #tpu.pipeline_mode<synchronous>, transform_indices = @transform_10, window_bounds = array<i64: 2, 128, 32>}, {pipeline_mode = #tpu.pipeline_mode<synchronous>, transform_indices = @transform_11, window_bounds = array<i64: 2, 32>}, {pipeline_mode = #tpu.pipeline_mode<synchronous>, transform_indices = @transform_12, window_bounds = array<i64: 32, 128>}, {pipeline_mode = #tpu.pipeline_mode<synchronous>, transform_indices = @transform_13, window_bounds = array<i64: 1, 128>}, {transform_indices = @transform_14, window_bounds = array<i64: 16, 128>}]} {
    %0 = tpu.iota {dimensions = array<i32: 2>} : vector<1x1x32xi32>
    %c0_i32 = arith.constant 0 : i32
    %1 = vector.broadcast %c0_i32 : i32 to vector<1x1x32xi32>
    %2 = arith.cmpi sge, %0, %1 : vector<1x1x32xi32>
    %c8_i32 = arith.constant 8 : i32
    %3 = vector.broadcast %c8_i32 : i32 to vector<1x1x32xi32>
    %4 = arith.cmpi slt, %0, %3 : vector<1x1x32xi32>
    %5 = arith.andi %2, %4 : vector<1x1x32xi1>
    %6 = arith.extui %5 : vector<1x1x32xi1> to vector<1x1x32xi32>
    %7 = arith.sitofp %6 : vector<1x1x32xi32> to vector<1x1x32xf32>
    %c8_i32_0 = arith.constant 8 : i32
    %8 = vector.broadcast %c8_i32_0 : i32 to vector<1x1x32xi32>
    %9 = arith.cmpi sge, %0, %8 : vector<1x1x32xi32>
    %c16_i32 = arith.constant 16 : i32
    %10 = vector.broadcast %c16_i32 : i32 to vector<1x1x32xi32>
    %11 = arith.cmpi slt, %0, %10 : vector<1x1x32xi32>
    %12 = arith.andi %9, %11 : vector<1x1x32xi1>
    %13 = arith.extui %12 : vector<1x1x32xi1> to vector<1x1x32xi32>
    %14 = arith.sitofp %13 : vector<1x1x32xi32> to vector<1x1x32xf32>
    %c16_i32_1 = arith.constant 16 : i32
    %15 = vector.broadcast %c16_i32_1 : i32 to vector<1x1x32xi32>
    %16 = arith.cmpi sge, %0, %15 : vector<1x1x32xi32>
    %c24_i32 = arith.constant 24 : i32
    %17 = vector.broadcast %c24_i32 : i32 to vector<1x1x32xi32>
    %18 = arith.cmpi slt, %0, %17 : vector<1x1x32xi32>
    %19 = arith.andi %16, %18 : vector<1x1x32xi1>
    %20 = arith.extui %19 : vector<1x1x32xi1> to vector<1x1x32xi32>
    %21 = arith.sitofp %20 : vector<1x1x32xi32> to vector<1x1x32xf32>
    %c24_i32_2 = arith.constant 24 : i32
    %22 = vector.broadcast %c24_i32_2 : i32 to vector<1x1x32xi32>
    %23 = arith.cmpi sge, %0, %22 : vector<1x1x32xi32>
    %c32_i32 = arith.constant 32 : i32
    %24 = vector.broadcast %c32_i32 : i32 to vector<1x1x32xi32>
    %25 = arith.cmpi slt, %0, %24 : vector<1x1x32xi32>
    %26 = arith.andi %23, %25 : vector<1x1x32xi1>
    %27 = arith.extui %26 : vector<1x1x32xi1> to vector<1x1x32xi32>
    %28 = arith.sitofp %27 : vector<1x1x32xi32> to vector<1x1x32xf32>
    %c0 = arith.constant 0 : index
    %c0_3 = arith.constant 0 : index
    %29 = vector.load %arg1[%c0, %c0_3] : memref<16x32xf32, #tpu.memory_space<vmem>>, vector<16x32xf32>
    %c0_4 = arith.constant 0 : index
    %c0_5 = arith.constant 0 : index
    %30 = vector.load %arg2[%c0_4, %c0_5] : memref<1x32xf32, #tpu.memory_space<vmem>>, vector<1x32xf32>
    %31 = vector.shape_cast %30 : vector<1x32xf32> to vector<32xf32>
    %c0_6 = arith.constant 0 : index
    %c0_7 = arith.constant 0 : index
    %32 = vector.load %arg3[%c0_6, %c0_7] : memref<1x32xf32, #tpu.memory_space<vmem>>, vector<1x32xf32>
    %33 = vector.shape_cast %32 : vector<1x32xf32> to vector<32xf32>
    %cst = arith.constant dense<0.000000e+00> : vector<16xf32>
    %34 = vector.multi_reduction <add>, %29, %cst [1] : vector<16x32xf32> to vector<16xf32>
    %35 = vector.shape_cast %34 : vector<16xf32> to vector<16x1xf32>
    %cst_8 = arith.constant 3.200000e+01 : f32
    %36 = vector.broadcast %cst_8 : f32 to vector<16x1xf32>
    %37 = arith.divf %35, %36 : vector<16x1xf32>
    %38 = vector.broadcast %37 : vector<16x1xf32> to vector<16x32xf32>
    %39 = arith.subf %29, %38 : vector<16x32xf32>
    %40 = arith.mulf %39, %39 : vector<16x32xf32>
    %cst_9 = arith.constant dense<0.000000e+00> : vector<16xf32>
    %41 = vector.multi_reduction <add>, %40, %cst_9 [1] : vector<16x32xf32> to vector<16xf32>
    %42 = vector.shape_cast %41 : vector<16xf32> to vector<16x1xf32>
    %cst_10 = arith.constant 3.200000e+01 : f32
    %43 = vector.broadcast %cst_10 : f32 to vector<16x1xf32>
    %44 = arith.divf %42, %43 : vector<16x1xf32>
    %45 = vector.broadcast %37 : vector<16x1xf32> to vector<16x32xf32>
    %46 = arith.subf %29, %45 : vector<16x32xf32>
    %cst_11 = arith.constant 9.99999974E-6 : f32
    %47 = vector.broadcast %cst_11 : f32 to vector<16x1xf32>
    %48 = arith.addf %44, %47 : vector<16x1xf32>
    %49 = math.rsqrt %48 : vector<16x1xf32>
    %50 = vector.broadcast %49 : vector<16x1xf32> to vector<16x32xf32>
    %51 = arith.mulf %46, %50 : vector<16x32xf32>
    %52 = vector.shape_cast %31 : vector<32xf32> to vector<1x32xf32>
    %53 = vector.broadcast %52 : vector<1x32xf32> to vector<16x32xf32>
    %54 = arith.mulf %51, %53 : vector<16x32xf32>
    %55 = vector.shape_cast %33 : vector<32xf32> to vector<1x32xf32>
    %56 = vector.broadcast %55 : vector<1x32xf32> to vector<16x32xf32>
    %57 = arith.addf %54, %56 : vector<16x32xf32>
    %c0_12 = arith.constant 0 : index
    %c0_13 = arith.constant 0 : index
    %58 = vector.load %arg4[%c0_12, %c0_13] : memref<2x32xf32, #tpu.memory_space<vmem>>, vector<1x32xf32>
    %59 = vector.shape_cast %58 : vector<1x32xf32> to vector<32xf32>
    %c0_14 = arith.constant 0 : index
    %c0_15 = arith.constant 0 : index
    %60 = vector.load %arg5[%c0_14, %c0_15] : memref<2x32xf32, #tpu.memory_space<vmem>>, vector<1x32xf32>
    %61 = vector.shape_cast %60 : vector<1x32xf32> to vector<32xf32>
    %cst_16 = arith.constant dense<0.000000e+00> : vector<16xf32>
    %62 = vector.multi_reduction <add>, %57, %cst_16 [1] : vector<16x32xf32> to vector<16xf32>
    %63 = vector.shape_cast %62 : vector<16xf32> to vector<16x1xf32>
    %cst_17 = arith.constant 3.200000e+01 : f32
    %64 = vector.broadcast %cst_17 : f32 to vector<16x1xf32>
    %65 = arith.divf %63, %64 : vector<16x1xf32>
    %66 = vector.broadcast %65 : vector<16x1xf32> to vector<16x32xf32>
    %67 = arith.subf %57, %66 : vector<16x32xf32>
    %68 = arith.mulf %67, %67 : vector<16x32xf32>
    %cst_18 = arith.constant dense<0.000000e+00> : vector<16xf32>
    %69 = vector.multi_reduction <add>, %68, %cst_18 [1] : vector<16x32xf32> to vector<16xf32>
    %70 = vector.shape_cast %69 : vector<16xf32> to vector<16x1xf32>
    %cst_19 = arith.constant 3.200000e+01 : f32
    %71 = vector.broadcast %cst_19 : f32 to vector<16x1xf32>
    %72 = arith.divf %70, %71 : vector<16x1xf32>
    %73 = vector.broadcast %65 : vector<16x1xf32> to vector<16x32xf32>
    %74 = arith.subf %57, %73 : vector<16x32xf32>
    %cst_20 = arith.constant 9.99999974E-6 : f32
    %75 = vector.broadcast %cst_20 : f32 to vector<16x1xf32>
    %76 = arith.addf %72, %75 : vector<16x1xf32>
    %77 = math.rsqrt %76 : vector<16x1xf32>
    %78 = vector.broadcast %77 : vector<16x1xf32> to vector<16x32xf32>
    %79 = arith.mulf %74, %78 : vector<16x32xf32>
    %80 = vector.shape_cast %59 : vector<32xf32> to vector<1x32xf32>
    %81 = vector.broadcast %80 : vector<1x32xf32> to vector<16x32xf32>
    %82 = arith.mulf %79, %81 : vector<16x32xf32>
    %83 = vector.shape_cast %61 : vector<32xf32> to vector<1x32xf32>
    %84 = vector.broadcast %83 : vector<1x32xf32> to vector<16x32xf32>
    %85 = arith.addf %82, %84 : vector<16x32xf32>
    %c0_21 = arith.constant 0 : index
    %c0_22 = arith.constant 0 : index
    %c0_23 = arith.constant 0 : index
    %86 = vector.load %arg6[%c0_21, %c0_22, %c0_23] : memref<2x32x96xf32, #tpu.memory_space<vmem>>, vector<1x32x96xf32>
    %87 = vector.shape_cast %86 : vector<1x32x96xf32> to vector<32x96xf32>
    %cst_24 = arith.constant dense<0.000000e+00> : vector<16x96xf32>
    %88 = tpu.matmul %85, %87, %cst_24 {dimension_numbers = #tpu.dot_dimension_numbers<[1], [0], [0], [1], [0, 0, 1, 1], [], []>} : vector<16x32xf32>, vector<32x96xf32>, vector<16x96xf32> -> vector<16x96xf32>
    %cst_25 = arith.constant 2.000000e+00 : f32
    %89 = vector.broadcast %cst_25 : f32 to vector<16x96xf32>
    %90 = arith.cmpf oge, %88, %89 : vector<16x96xf32>
    %91 = arith.extui %90 : vector<16x96xi1> to vector<16x96xi32>
    %92 = arith.sitofp %91 : vector<16x96xi32> to vector<16x96xf32>
    %cst_26 = arith.constant 1.33333337 : f32
    %93 = vector.broadcast %cst_26 : f32 to vector<16x96xf32>
    %94 = arith.cmpf oge, %88, %93 : vector<16x96xf32>
    %95 = arith.extui %94 : vector<16x96xi1> to vector<16x96xi32>
    %96 = arith.sitofp %95 : vector<16x96xi32> to vector<16x96xf32>
    %cst_27 = arith.constant 1.14285719 : f32
    %97 = vector.broadcast %cst_27 : f32 to vector<16x96xf32>
    %98 = arith.cmpf oge, %88, %97 : vector<16x96xf32>
    %99 = arith.extui %98 : vector<16x96xi1> to vector<16x96xi32>
    %100 = arith.sitofp %99 : vector<16x96xi32> to vector<16x96xf32>
    %cst_28 = arith.constant 1.06666672 : f32
    %101 = vector.broadcast %cst_28 : f32 to vector<16x96xf32>
    %102 = arith.cmpf oge, %88, %101 : vector<16x96xf32>
    %103 = arith.extui %102 : vector<16x96xi1> to vector<16x96xi32>
    %104 = arith.sitofp %103 : vector<16x96xi32> to vector<16x96xf32>
    %105 = arith.subf %96, %92 : vector<16x96xf32>
    %106 = arith.subf %100, %96 : vector<16x96xf32>
    %107 = arith.subf %104, %100 : vector<16x96xf32>
    %108 = arith.addf %92, %105 : vector<16x96xf32>
    %109 = arith.addf %92, %106 : vector<16x96xf32>
    %110 = arith.addf %92, %105 : vector<16x96xf32>
    %111 = arith.addf %110, %107 : vector<16x96xf32>
    %112 = vector.extract_strided_slice %92 {offsets = [0, 0], sizes = [16, 32], strides = [1, 1]} : vector<16x96xf32> to vector<16x32xf32>
    %113 = vector.shape_cast %112 : vector<16x32xf32> to vector<2x8x32xf32>
    %114 = vector.extract_strided_slice %92 {offsets = [0, 32], sizes = [16, 32], strides = [1, 1]} : vector<16x96xf32> to vector<16x32xf32>
    %115 = vector.shape_cast %114 : vector<16x32xf32> to vector<2x8x32xf32>
    %116 = vector.extract_strided_slice %92 {offsets = [0, 64], sizes = [16, 32], strides = [1, 1]} : vector<16x96xf32> to vector<16x32xf32>
    %117 = vector.shape_cast %116 : vector<16x32xf32> to vector<2x8x32xf32>
    %118 = vector.broadcast %7 : vector<1x1x32xf32> to vector<2x8x32xf32>
    %119 = arith.mulf %115, %118 : vector<2x8x32xf32>
    %120 = vector.broadcast %7 : vector<1x1x32xf32> to vector<2x8x32xf32>
    %121 = arith.mulf %117, %120 : vector<2x8x32xf32>
    %122 = vector.broadcast %14 : vector<1x1x32xf32> to vector<2x8x32xf32>
    %123 = arith.mulf %115, %122 : vector<2x8x32xf32>
    %124 = vector.broadcast %14 : vector<1x1x32xf32> to vector<2x8x32xf32>
    %125 = arith.mulf %117, %124 : vector<2x8x32xf32>
    %126 = vector.broadcast %21 : vector<1x1x32xf32> to vector<2x8x32xf32>
    %127 = arith.mulf %115, %126 : vector<2x8x32xf32>
    %128 = vector.broadcast %21 : vector<1x1x32xf32> to vector<2x8x32xf32>
    %129 = arith.mulf %117, %128 : vector<2x8x32xf32>
    %130 = vector.broadcast %28 : vector<1x1x32xf32> to vector<2x8x32xf32>
    %131 = arith.mulf %115, %130 : vector<2x8x32xf32>
    %132 = vector.broadcast %28 : vector<1x1x32xf32> to vector<2x8x32xf32>
    %133 = arith.mulf %117, %132 : vector<2x8x32xf32>
    %134 = vector.extract_strided_slice %108 {offsets = [0, 0], sizes = [16, 32], strides = [1, 1]} : vector<16x96xf32> to vector<16x32xf32>
    %135 = vector.shape_cast %134 : vector<16x32xf32> to vector<2x8x32xf32>
    %136 = vector.extract_strided_slice %108 {offsets = [0, 32], sizes = [16, 32], strides = [1, 1]} : vector<16x96xf32> to vector<16x32xf32>
    %137 = vector.shape_cast %136 : vector<16x32xf32> to vector<2x8x32xf32>
    %138 = vector.extract_strided_slice %108 {offsets = [0, 64], sizes = [16, 32], strides = [1, 1]} : vector<16x96xf32> to vector<16x32xf32>
    %139 = vector.shape_cast %138 : vector<16x32xf32> to vector<2x8x32xf32>
    %140 = vector.broadcast %7 : vector<1x1x32xf32> to vector<2x8x32xf32>
    %141 = arith.mulf %137, %140 : vector<2x8x32xf32>
    %142 = vector.broadcast %7 : vector<1x1x32xf32> to vector<2x8x32xf32>
    %143 = arith.mulf %139, %142 : vector<2x8x32xf32>
    %144 = vector.broadcast %14 : vector<1x1x32xf32> to vector<2x8x32xf32>
    %145 = arith.mulf %137, %144 : vector<2x8x32xf32>
    %146 = vector.broadcast %14 : vector<1x1x32xf32> to vector<2x8x32xf32>
    %147 = arith.mulf %139, %146 : vector<2x8x32xf32>
    %148 = vector.broadcast %21 : vector<1x1x32xf32> to vector<2x8x32xf32>
    %149 = arith.mulf %137, %148 : vector<2x8x32xf32>
    %150 = vector.broadcast %21 : vector<1x1x32xf32> to vector<2x8x32xf32>
    %151 = arith.mulf %139, %150 : vector<2x8x32xf32>
    %152 = vector.broadcast %28 : vector<1x1x32xf32> to vector<2x8x32xf32>
    %153 = arith.mulf %137, %152 : vector<2x8x32xf32>
    %154 = vector.broadcast %28 : vector<1x1x32xf32> to vector<2x8x32xf32>
    %155 = arith.mulf %139, %154 : vector<2x8x32xf32>
    %156 = vector.extract_strided_slice %109 {offsets = [0, 0], sizes = [16, 32], strides = [1, 1]} : vector<16x96xf32> to vector<16x32xf32>
    %157 = vector.shape_cast %156 : vector<16x32xf32> to vector<2x8x32xf32>
    %158 = vector.extract_strided_slice %109 {offsets = [0, 32], sizes = [16, 32], strides = [1, 1]} : vector<16x96xf32> to vector<16x32xf32>
    %159 = vector.shape_cast %158 : vector<16x32xf32> to vector<2x8x32xf32>
    %160 = vector.extract_strided_slice %109 {offsets = [0, 64], sizes = [16, 32], strides = [1, 1]} : vector<16x96xf32> to vector<16x32xf32>
    %161 = vector.shape_cast %160 : vector<16x32xf32> to vector<2x8x32xf32>
    %162 = vector.broadcast %7 : vector<1x1x32xf32> to vector<2x8x32xf32>
    %163 = arith.mulf %159, %162 : vector<2x8x32xf32>
    %164 = vector.broadcast %7 : vector<1x1x32xf32> to vector<2x8x32xf32>
    %165 = arith.mulf %161, %164 : vector<2x8x32xf32>
    %166 = vector.broadcast %14 : vector<1x1x32xf32> to vector<2x8x32xf32>
    %167 = arith.mulf %159, %166 : vector<2x8x32xf32>
    %168 = vector.broadcast %14 : vector<1x1x32xf32> to vector<2x8x32xf32>
    %169 = arith.mulf %161, %168 : vector<2x8x32xf32>
    %170 = vector.broadcast %21 : vector<1x1x32xf32> to vector<2x8x32xf32>
    %171 = arith.mulf %159, %170 : vector<2x8x32xf32>
    %172 = vector.broadcast %21 : vector<1x1x32xf32> to vector<2x8x32xf32>
    %173 = arith.mulf %161, %172 : vector<2x8x32xf32>
    %174 = vector.broadcast %28 : vector<1x1x32xf32> to vector<2x8x32xf32>
    %175 = arith.mulf %159, %174 : vector<2x8x32xf32>
    %176 = vector.broadcast %28 : vector<1x1x32xf32> to vector<2x8x32xf32>
    %177 = arith.mulf %161, %176 : vector<2x8x32xf32>
    %178 = vector.extract_strided_slice %111 {offsets = [0, 0], sizes = [16, 32], strides = [1, 1]} : vector<16x96xf32> to vector<16x32xf32>
    %179 = vector.shape_cast %178 : vector<16x32xf32> to vector<2x8x32xf32>
    %180 = vector.extract_strided_slice %111 {offsets = [0, 32], sizes = [16, 32], strides = [1, 1]} : vector<16x96xf32> to vector<16x32xf32>
    %181 = vector.shape_cast %180 : vector<16x32xf32> to vector<2x8x32xf32>
    %182 = vector.extract_strided_slice %111 {offsets = [0, 64], sizes = [16, 32], strides = [1, 1]} : vector<16x96xf32> to vector<16x32xf32>
    %183 = vector.shape_cast %182 : vector<16x32xf32> to vector<2x8x32xf32>
    %184 = vector.broadcast %7 : vector<1x1x32xf32> to vector<2x8x32xf32>
    %185 = arith.mulf %181, %184 : vector<2x8x32xf32>
    %186 = vector.broadcast %7 : vector<1x1x32xf32> to vector<2x8x32xf32>
    %187 = arith.mulf %183, %186 : vector<2x8x32xf32>
    %188 = vector.broadcast %14 : vector<1x1x32xf32> to vector<2x8x32xf32>
    %189 = arith.mulf %181, %188 : vector<2x8x32xf32>
    %190 = vector.broadcast %14 : vector<1x1x32xf32> to vector<2x8x32xf32>
    %191 = arith.mulf %183, %190 : vector<2x8x32xf32>
    %192 = vector.broadcast %21 : vector<1x1x32xf32> to vector<2x8x32xf32>
    %193 = arith.mulf %181, %192 : vector<2x8x32xf32>
    %194 = vector.broadcast %21 : vector<1x1x32xf32> to vector<2x8x32xf32>
    %195 = arith.mulf %183, %194 : vector<2x8x32xf32>
    %196 = vector.broadcast %28 : vector<1x1x32xf32> to vector<2x8x32xf32>
    %197 = arith.mulf %181, %196 : vector<2x8x32xf32>
    %198 = vector.broadcast %28 : vector<1x1x32xf32> to vector<2x8x32xf32>
    %199 = arith.mulf %183, %198 : vector<2x8x32xf32>
    %200 = tpu.concatenate %113, %113, %113, %113, %135, %135, %135, %135, %157, %157, %157, %157, %179, %179, %179, %179 in 0 : vector<2x8x32xf32>, vector<2x8x32xf32>, vector<2x8x32xf32>, vector<2x8x32xf32>, vector<2x8x32xf32>, vector<2x8x32xf32>, vector<2x8x32xf32>, vector<2x8x32xf32>, vector<2x8x32xf32>, vector<2x8x32xf32>, vector<2x8x32xf32>, vector<2x8x32xf32>, vector<2x8x32xf32>, vector<2x8x32xf32>, vector<2x8x32xf32>, vector<2x8x32xf32> -> vector<32x8x32xf32>
    %201 = arith.truncf %200 : vector<32x8x32xf32> to vector<32x8x32xbf16>
    %202 = tpu.concatenate %119, %123, %127, %131, %141, %145, %149, %153, %163, %167, %171, %175, %185, %189, %193, %197 in 0 : vector<2x8x32xf32>, vector<2x8x32xf32>, vector<2x8x32xf32>, vector<2x8x32xf32>, vector<2x8x32xf32>, vector<2x8x32xf32>, vector<2x8x32xf32>, vector<2x8x32xf32>, vector<2x8x32xf32>, vector<2x8x32xf32>, vector<2x8x32xf32>, vector<2x8x32xf32>, vector<2x8x32xf32>, vector<2x8x32xf32>, vector<2x8x32xf32>, vector<2x8x32xf32> -> vector<32x8x32xf32>
    %203 = arith.truncf %202 : vector<32x8x32xf32> to vector<32x8x32xbf16>
    %204 = tpu.concatenate %121, %125, %129, %133, %143, %147, %151, %155, %165, %169, %173, %177, %187, %191, %195, %199 in 0 : vector<2x8x32xf32>, vector<2x8x32xf32>, vector<2x8x32xf32>, vector<2x8x32xf32>, vector<2x8x32xf32>, vector<2x8x32xf32>, vector<2x8x32xf32>, vector<2x8x32xf32>, vector<2x8x32xf32>, vector<2x8x32xf32>, vector<2x8x32xf32>, vector<2x8x32xf32>, vector<2x8x32xf32>, vector<2x8x32xf32>, vector<2x8x32xf32>, vector<2x8x32xf32> -> vector<32x8x32xf32>
    %205 = arith.truncf %204 : vector<32x8x32xf32> to vector<32x8x32xbf16>
    "tpu.trace_start"() <{level = 10 : i32, message = "nsc,nkc->nsk"}> : () -> ()
    %cst_29 = arith.constant dense<0.000000e+00> : vector<32x8x8xf32>
    %206 = tpu.matmul %201, %203, %cst_29 {dimension_numbers = #tpu.dot_dimension_numbers<[2], [2], [1], [1], [0, 0, 0, 1, 1, 1], [0], [0]>} : vector<32x8x32xbf16>, vector<32x8x32xbf16>, vector<32x8x8xf32> -> vector<32x8x8xf32>
    %cst_30 = arith.constant 0.000000e+00 : f32
    "tpu.trace_stop"() : () -> ()
    %207 = vector.broadcast %cst_30 : f32 to vector<8x8x8xf32>
    %208 = vector.extract_strided_slice %206 {offsets = [0, 0, 0], sizes = [8, 8, 8], strides = [1, 1, 1]} : vector<32x8x8xf32> to vector<8x8x8xf32>
    %209 = arith.subf %208, %207 : vector<8x8x8xf32>
    %cst_31 = arith.constant 5.000000e-01 : f32
    %210 = vector.broadcast %cst_31 : f32 to vector<8x8x8xf32>
    %211 = arith.mulf %209, %210 : vector<8x8x8xf32>
    %212 = arith.addf %207, %211 : vector<8x8x8xf32>
    %cst_32 = arith.constant 2.82842708 : f32
    %213 = vector.broadcast %cst_32 : f32 to vector<8x8x8xf32>
    %214 = arith.cmpf oge, %212, %213 : vector<8x8x8xf32>
    %215 = arith.extui %214 : vector<8x8x8xi1> to vector<8x8x8xi32>
    %216 = arith.sitofp %215 : vector<8x8x8xi32> to vector<8x8x8xf32>
    %cst_33 = arith.constant 1.000000e+00 : f32
    %217 = vector.broadcast %cst_33 : f32 to vector<8x8x8xf32>
    %218 = arith.subf %217, %216 : vector<8x8x8xf32>
    %219 = arith.mulf %212, %218 : vector<8x8x8xf32>
    %220 = vector.extract_strided_slice %206 {offsets = [8, 0, 0], sizes = [8, 8, 8], strides = [1, 1, 1]} : vector<32x8x8xf32> to vector<8x8x8xf32>
    %221 = arith.subf %220, %219 : vector<8x8x8xf32>
    %cst_34 = arith.constant 5.000000e-01 : f32
    %222 = vector.broadcast %cst_34 : f32 to vector<8x8x8xf32>
    %223 = arith.mulf %221, %222 : vector<8x8x8xf32>
    %224 = arith.addf %219, %223 : vector<8x8x8xf32>
    %cst_35 = arith.constant 2.82842708 : f32
    %225 = vector.broadcast %cst_35 : f32 to vector<8x8x8xf32>
    %226 = arith.cmpf oge, %224, %225 : vector<8x8x8xf32>
    %227 = arith.extui %226 : vector<8x8x8xi1> to vector<8x8x8xi32>
    %228 = arith.sitofp %227 : vector<8x8x8xi32> to vector<8x8x8xf32>
    %cst_36 = arith.constant 1.000000e+00 : f32
    %229 = vector.broadcast %cst_36 : f32 to vector<8x8x8xf32>
    %230 = arith.subf %229, %228 : vector<8x8x8xf32>
    %231 = arith.mulf %224, %230 : vector<8x8x8xf32>
    %232 = vector.extract_strided_slice %206 {offsets = [16, 0, 0], sizes = [8, 8, 8], strides = [1, 1, 1]} : vector<32x8x8xf32> to vector<8x8x8xf32>
    %233 = arith.subf %232, %231 : vector<8x8x8xf32>
    %cst_37 = arith.constant 5.000000e-01 : f32
    %234 = vector.broadcast %cst_37 : f32 to vector<8x8x8xf32>
    %235 = arith.mulf %233, %234 : vector<8x8x8xf32>
    %236 = arith.addf %231, %235 : vector<8x8x8xf32>
    %cst_38 = arith.constant 2.82842708 : f32
    %237 = vector.broadcast %cst_38 : f32 to vector<8x8x8xf32>
    %238 = arith.cmpf oge, %236, %237 : vector<8x8x8xf32>
    %239 = arith.extui %238 : vector<8x8x8xi1> to vector<8x8x8xi32>
    %240 = arith.sitofp %239 : vector<8x8x8xi32> to vector<8x8x8xf32>
    %cst_39 = arith.constant 1.000000e+00 : f32
    %241 = vector.broadcast %cst_39 : f32 to vector<8x8x8xf32>
    %242 = arith.subf %241, %240 : vector<8x8x8xf32>
    %243 = arith.mulf %236, %242 : vector<8x8x8xf32>
    %244 = vector.extract_strided_slice %206 {offsets = [24, 0, 0], sizes = [8, 8, 8], strides = [1, 1, 1]} : vector<32x8x8xf32> to vector<8x8x8xf32>
    %245 = arith.subf %244, %243 : vector<8x8x8xf32>
    %cst_40 = arith.constant 5.000000e-01 : f32
    %246 = vector.broadcast %cst_40 : f32 to vector<8x8x8xf32>
    %247 = arith.mulf %245, %246 : vector<8x8x8xf32>
    %248 = arith.addf %243, %247 : vector<8x8x8xf32>
    %cst_41 = arith.constant 2.82842708 : f32
    %249 = vector.broadcast %cst_41 : f32 to vector<8x8x8xf32>
    %250 = arith.cmpf oge, %248, %249 : vector<8x8x8xf32>
    %251 = arith.extui %250 : vector<8x8x8xi1> to vector<8x8x8xi32>
    %252 = arith.sitofp %251 : vector<8x8x8xi32> to vector<8x8x8xf32>
    %253 = tpu.concatenate %216, %228, %240, %252 in 0 : vector<8x8x8xf32>, vector<8x8x8xf32>, vector<8x8x8xf32>, vector<8x8x8xf32> -> vector<32x8x8xf32>
    %cst_42 = arith.constant 1.71828187 : f32
    %254 = vector.broadcast %cst_42 : f32 to vector<32x8x8xf32>
    %255 = arith.mulf %254, %253 : vector<32x8x8xf32>
    %cst_43 = arith.constant 1.000000e+00 : f32
    %256 = vector.broadcast %cst_43 : f32 to vector<32x8x8xf32>
    %257 = arith.addf %256, %255 : vector<32x8x8xf32>
    %cst_44 = arith.constant dense<0.000000e+00> : vector<32x8xf32>
    %258 = vector.multi_reduction <add>, %253, %cst_44 [2] : vector<32x8x8xf32> to vector<32x8xf32>
    %259 = vector.shape_cast %258 : vector<32x8xf32> to vector<32x8x1xf32>
    %cst_45 = arith.constant 1.71828187 : f32
    %260 = vector.broadcast %cst_45 : f32 to vector<32x8x1xf32>
    %261 = arith.mulf %260, %259 : vector<32x8x1xf32>
    %cst_46 = arith.constant 8.000000e+00 : f32
    %262 = vector.broadcast %cst_46 : f32 to vector<32x8x1xf32>
    %263 = arith.addf %262, %261 : vector<32x8x1xf32>
    %264 = tpu.reciprocal %263 {approx = true} : vector<32x8x1xf32> -> vector<32x8x1xf32>
    %265 = vector.broadcast %264 : vector<32x8x1xf32> to vector<32x8x8xf32>
    %266 = arith.mulf %257, %265 : vector<32x8x8xf32>
    %267 = arith.truncf %266 : vector<32x8x8xf32> to vector<32x8x8xbf16>
    "tpu.trace_start"() <{level = 10 : i32, message = "nsk,nkc->nsc"}> : () -> ()
    %cst_47 = arith.constant dense<0.000000e+00> : vector<32x8x32xf32>
    %268 = tpu.matmul %267, %205, %cst_47 {dimension_numbers = #tpu.dot_dimension_numbers<[2], [1], [1], [2], [0, 0, 0, 1, 1, 2], [0], [0]>} : vector<32x8x8xbf16>, vector<32x8x32xbf16>, vector<32x8x32xf32> -> vector<32x8x32xf32>
    %cst_48 = arith.constant 0.000000e+00 : f32
    "tpu.trace_stop"() : () -> ()
    %269 = vector.broadcast %cst_48 : f32 to vector<2x8x32xf32>
    %270 = vector.extract_strided_slice %268 {offsets = [0, 0, 0], sizes = [2, 8, 32], strides = [1, 1, 1]} : vector<32x8x32xf32> to vector<2x8x32xf32>
    %271 = arith.addf %269, %270 : vector<2x8x32xf32>
    %272 = vector.extract_strided_slice %268 {offsets = [2, 0, 0], sizes = [2, 8, 32], strides = [1, 1, 1]} : vector<32x8x32xf32> to vector<2x8x32xf32>
    %273 = arith.addf %271, %272 : vector<2x8x32xf32>
    %274 = vector.extract_strided_slice %268 {offsets = [4, 0, 0], sizes = [2, 8, 32], strides = [1, 1, 1]} : vector<32x8x32xf32> to vector<2x8x32xf32>
    %275 = arith.addf %273, %274 : vector<2x8x32xf32>
    %276 = vector.extract_strided_slice %268 {offsets = [6, 0, 0], sizes = [2, 8, 32], strides = [1, 1, 1]} : vector<32x8x32xf32> to vector<2x8x32xf32>
    %277 = arith.addf %275, %276 : vector<2x8x32xf32>
    %278 = vector.extract_strided_slice %268 {offsets = [8, 0, 0], sizes = [2, 8, 32], strides = [1, 1, 1]} : vector<32x8x32xf32> to vector<2x8x32xf32>
    %279 = arith.addf %277, %278 : vector<2x8x32xf32>
    %280 = vector.extract_strided_slice %268 {offsets = [10, 0, 0], sizes = [2, 8, 32], strides = [1, 1, 1]} : vector<32x8x32xf32> to vector<2x8x32xf32>
    %281 = arith.addf %279, %280 : vector<2x8x32xf32>
    %282 = vector.extract_strided_slice %268 {offsets = [12, 0, 0], sizes = [2, 8, 32], strides = [1, 1, 1]} : vector<32x8x32xf32> to vector<2x8x32xf32>
    %283 = arith.addf %281, %282 : vector<2x8x32xf32>
    %284 = vector.extract_strided_slice %268 {offsets = [14, 0, 0], sizes = [2, 8, 32], strides = [1, 1, 1]} : vector<32x8x32xf32> to vector<2x8x32xf32>
    %285 = arith.addf %283, %284 : vector<2x8x32xf32>
    %286 = vector.extract_strided_slice %268 {offsets = [16, 0, 0], sizes = [2, 8, 32], strides = [1, 1, 1]} : vector<32x8x32xf32> to vector<2x8x32xf32>
    %287 = arith.addf %285, %286 : vector<2x8x32xf32>
    %288 = vector.extract_strided_slice %268 {offsets = [18, 0, 0], sizes = [2, 8, 32], strides = [1, 1, 1]} : vector<32x8x32xf32> to vector<2x8x32xf32>
    %289 = arith.addf %287, %288 : vector<2x8x32xf32>
    %290 = vector.extract_strided_slice %268 {offsets = [20, 0, 0], sizes = [2, 8, 32], strides = [1, 1, 1]} : vector<32x8x32xf32> to vector<2x8x32xf32>
    %291 = arith.addf %289, %290 : vector<2x8x32xf32>
    %292 = vector.extract_strided_slice %268 {offsets = [22, 0, 0], sizes = [2, 8, 32], strides = [1, 1, 1]} : vector<32x8x32xf32> to vector<2x8x32xf32>
    %293 = arith.addf %291, %292 : vector<2x8x32xf32>
    %294 = vector.extract_strided_slice %268 {offsets = [24, 0, 0], sizes = [2, 8, 32], strides = [1, 1, 1]} : vector<32x8x32xf32> to vector<2x8x32xf32>
    %295 = arith.addf %293, %294 : vector<2x8x32xf32>
    %296 = vector.extract_strided_slice %268 {offsets = [26, 0, 0], sizes = [2, 8, 32], strides = [1, 1, 1]} : vector<32x8x32xf32> to vector<2x8x32xf32>
    %297 = arith.addf %295, %296 : vector<2x8x32xf32>
    %298 = vector.extract_strided_slice %268 {offsets = [28, 0, 0], sizes = [2, 8, 32], strides = [1, 1, 1]} : vector<32x8x32xf32> to vector<2x8x32xf32>
    %299 = arith.addf %297, %298 : vector<2x8x32xf32>
    %300 = vector.extract_strided_slice %268 {offsets = [30, 0, 0], sizes = [2, 8, 32], strides = [1, 1, 1]} : vector<32x8x32xf32> to vector<2x8x32xf32>
    %301 = arith.addf %299, %300 : vector<2x8x32xf32>
    %cst_49 = arith.constant 2.500000e-01 : f32
    %302 = vector.broadcast %cst_49 : f32 to vector<2x8x32xf32>
    %303 = arith.mulf %301, %302 : vector<2x8x32xf32>
    %304 = vector.shape_cast %303 : vector<2x8x32xf32> to vector<16x32xf32>
    %305 = arith.addf %57, %304 : vector<16x32xf32>
    %c0_50 = arith.constant 0 : index
    %c0_51 = arith.constant 0 : index
    %306 = vector.load %arg7[%c0_50, %c0_51] : memref<2x32xf32, #tpu.memory_space<vmem>>, vector<1x32xf32>
    %307 = vector.shape_cast %306 : vector<1x32xf32> to vector<32xf32>
    %c0_52 = arith.constant 0 : index
    %c0_53 = arith.constant 0 : index
    %308 = vector.load %arg8[%c0_52, %c0_53] : memref<2x32xf32, #tpu.memory_space<vmem>>, vector<1x32xf32>
    %309 = vector.shape_cast %308 : vector<1x32xf32> to vector<32xf32>
    %cst_54 = arith.constant dense<0.000000e+00> : vector<16xf32>
    %310 = vector.multi_reduction <add>, %305, %cst_54 [1] : vector<16x32xf32> to vector<16xf32>
    %311 = vector.shape_cast %310 : vector<16xf32> to vector<16x1xf32>
    %cst_55 = arith.constant 3.200000e+01 : f32
    %312 = vector.broadcast %cst_55 : f32 to vector<16x1xf32>
    %313 = arith.divf %311, %312 : vector<16x1xf32>
    %314 = vector.broadcast %313 : vector<16x1xf32> to vector<16x32xf32>
    %315 = arith.subf %305, %314 : vector<16x32xf32>
    %316 = arith.mulf %315, %315 : vector<16x32xf32>
    %cst_56 = arith.constant dense<0.000000e+00> : vector<16xf32>
    %317 = vector.multi_reduction <add>, %316, %cst_56 [1] : vector<16x32xf32> to vector<16xf32>
    %318 = vector.shape_cast %317 : vector<16xf32> to vector<16x1xf32>
    %cst_57 = arith.constant 3.200000e+01 : f32
    %319 = vector.broadcast %cst_57 : f32 to vector<16x1xf32>
    %320 = arith.divf %318, %319 : vector<16x1xf32>
    %321 = vector.broadcast %313 : vector<16x1xf32> to vector<16x32xf32>
    %322 = arith.subf %305, %321 : vector<16x32xf32>
    %cst_58 = arith.constant 9.99999974E-6 : f32
    %323 = vector.broadcast %cst_58 : f32 to vector<16x1xf32>
    %324 = arith.addf %320, %323 : vector<16x1xf32>
    %325 = math.rsqrt %324 : vector<16x1xf32>
    %326 = vector.broadcast %325 : vector<16x1xf32> to vector<16x32xf32>
    %327 = arith.mulf %322, %326 : vector<16x32xf32>
    %328 = vector.shape_cast %307 : vector<32xf32> to vector<1x32xf32>
    %329 = vector.broadcast %328 : vector<1x32xf32> to vector<16x32xf32>
    %330 = arith.mulf %327, %329 : vector<16x32xf32>
    %331 = vector.shape_cast %309 : vector<32xf32> to vector<1x32xf32>
    %332 = vector.broadcast %331 : vector<1x32xf32> to vector<16x32xf32>
    %333 = arith.addf %330, %332 : vector<16x32xf32>
    %c0_59 = arith.constant 0 : index
    %c0_60 = arith.constant 0 : index
    %c0_61 = arith.constant 0 : index
    %334 = vector.load %arg9[%c0_59, %c0_60, %c0_61] : memref<2x32x128xf32, #tpu.memory_space<vmem>>, vector<1x32x128xf32>
    %335 = vector.shape_cast %334 : vector<1x32x128xf32> to vector<32x128xf32>
    %cst_62 = arith.constant dense<0.000000e+00> : vector<16x128xf32>
    %336 = tpu.matmul %333, %335, %cst_62 {dimension_numbers = #tpu.dot_dimension_numbers<[1], [0], [0], [1], [0, 0, 1, 1], [], []>} : vector<16x32xf32>, vector<32x128xf32>, vector<16x128xf32> -> vector<16x128xf32>
    %c0_63 = arith.constant 0 : index
    %c0_64 = arith.constant 0 : index
    %337 = vector.load %arg10[%c0_63, %c0_64] : memref<2x128xf32, #tpu.memory_space<vmem>>, vector<1x128xf32>
    %338 = vector.shape_cast %337 : vector<1x128xf32> to vector<128xf32>
    %339 = vector.shape_cast %338 : vector<128xf32> to vector<1x128xf32>
    %340 = vector.broadcast %339 : vector<1x128xf32> to vector<16x128xf32>
    %341 = arith.addf %336, %340 : vector<16x128xf32>
    %cst_65 = arith.constant 2.000000e+00 : f32
    %342 = vector.broadcast %cst_65 : f32 to vector<16x128xf32>
    %343 = arith.cmpf oge, %341, %342 : vector<16x128xf32>
    %344 = arith.extui %343 : vector<16x128xi1> to vector<16x128xi32>
    %345 = arith.sitofp %344 : vector<16x128xi32> to vector<16x128xf32>
    %cst_66 = arith.constant 1.33333337 : f32
    %346 = vector.broadcast %cst_66 : f32 to vector<16x128xf32>
    %347 = arith.cmpf oge, %341, %346 : vector<16x128xf32>
    %348 = arith.extui %347 : vector<16x128xi1> to vector<16x128xi32>
    %349 = arith.sitofp %348 : vector<16x128xi32> to vector<16x128xf32>
    %cst_67 = arith.constant 1.14285719 : f32
    %350 = vector.broadcast %cst_67 : f32 to vector<16x128xf32>
    %351 = arith.cmpf oge, %341, %350 : vector<16x128xf32>
    %352 = arith.extui %351 : vector<16x128xi1> to vector<16x128xi32>
    %353 = arith.sitofp %352 : vector<16x128xi32> to vector<16x128xf32>
    %cst_68 = arith.constant 1.06666672 : f32
    %354 = vector.broadcast %cst_68 : f32 to vector<16x128xf32>
    %355 = arith.cmpf oge, %341, %354 : vector<16x128xf32>
    %356 = arith.extui %355 : vector<16x128xi1> to vector<16x128xi32>
    %357 = arith.sitofp %356 : vector<16x128xi32> to vector<16x128xf32>
    %358 = arith.subf %349, %345 : vector<16x128xf32>
    %359 = arith.subf %353, %349 : vector<16x128xf32>
    %360 = arith.subf %357, %353 : vector<16x128xf32>
    %361 = arith.addf %345, %358 : vector<16x128xf32>
    %362 = arith.addf %345, %359 : vector<16x128xf32>
    %363 = arith.addf %345, %358 : vector<16x128xf32>
    %364 = arith.addf %363, %360 : vector<16x128xf32>
    %365 = tpu.concatenate %345, %361, %362, %364 in 0 : vector<16x128xf32>, vector<16x128xf32>, vector<16x128xf32>, vector<16x128xf32> -> vector<64x128xf32>
    %366 = arith.truncf %365 : vector<64x128xf32> to vector<64x128xbf16>
    %c0_69 = arith.constant 0 : index
    %c0_70 = arith.constant 0 : index
    %c0_71 = arith.constant 0 : index
    %367 = vector.load %arg11[%c0_69, %c0_70, %c0_71] : memref<2x128x32xf32, #tpu.memory_space<vmem>>, vector<1x128x32xf32>
    %368 = vector.shape_cast %367 : vector<1x128x32xf32> to vector<128x32xf32>
    %369 = arith.truncf %368 : vector<128x32xf32> to vector<128x32xbf16>
    %cst_72 = arith.constant dense<0.000000e+00> : vector<64x32xf32>
    %370 = tpu.matmul %366, %369, %cst_72 {dimension_numbers = #tpu.dot_dimension_numbers<[1], [0], [0], [1], [0, 0, 1, 1], [], []>} : vector<64x128xbf16>, vector<128x32xbf16>, vector<64x32xf32> -> vector<64x32xf32>
    %c0_73 = arith.constant 0 : index
    %c0_74 = arith.constant 0 : index
    %371 = vector.load %arg12[%c0_73, %c0_74] : memref<2x32xf32, #tpu.memory_space<vmem>>, vector<1x32xf32>
    %372 = vector.shape_cast %371 : vector<1x32xf32> to vector<32xf32>
    %373 = vector.shape_cast %372 : vector<32xf32> to vector<1x32xf32>
    %374 = vector.broadcast %373 : vector<1x32xf32> to vector<64x32xf32>
    %375 = arith.addf %370, %374 : vector<64x32xf32>
    %cst_75 = arith.constant 0.000000e+00 : f32
    %376 = vector.broadcast %cst_75 : f32 to vector<16x32xf32>
    %cst_76 = arith.constant 0.000000e+00 : f32
    %377 = vector.broadcast %cst_76 : f32 to vector<16x32xf32>
    %378 = vector.extract_strided_slice %375 {offsets = [0, 0], sizes = [16, 32], strides = [1, 1]} : vector<64x32xf32> to vector<16x32xf32>
    %379 = arith.subf %378, %376 : vector<16x32xf32>
    %cst_77 = arith.constant 5.000000e-01 : f32
    %380 = vector.broadcast %cst_77 : f32 to vector<16x32xf32>
    %381 = arith.mulf %379, %380 : vector<16x32xf32>
    %382 = arith.addf %376, %381 : vector<16x32xf32>
    %cst_78 = arith.constant 1.000000e+00 : f32
    %383 = vector.broadcast %cst_78 : f32 to vector<16x32xf32>
    %384 = arith.cmpf oge, %382, %383 : vector<16x32xf32>
    %385 = arith.extui %384 : vector<16x32xi1> to vector<16x32xi32>
    %386 = arith.sitofp %385 : vector<16x32xi32> to vector<16x32xf32>
    %cst_79 = arith.constant 1.000000e+00 : f32
    %387 = vector.broadcast %cst_79 : f32 to vector<16x32xf32>
    %388 = arith.subf %387, %386 : vector<16x32xf32>
    %389 = arith.mulf %382, %388 : vector<16x32xf32>
    %390 = arith.addf %377, %386 : vector<16x32xf32>
    %391 = vector.extract_strided_slice %375 {offsets = [16, 0], sizes = [16, 32], strides = [1, 1]} : vector<64x32xf32> to vector<16x32xf32>
    %392 = arith.subf %391, %389 : vector<16x32xf32>
    %cst_80 = arith.constant 5.000000e-01 : f32
    %393 = vector.broadcast %cst_80 : f32 to vector<16x32xf32>
    %394 = arith.mulf %392, %393 : vector<16x32xf32>
    %395 = arith.addf %389, %394 : vector<16x32xf32>
    %cst_81 = arith.constant 1.000000e+00 : f32
    %396 = vector.broadcast %cst_81 : f32 to vector<16x32xf32>
    %397 = arith.cmpf oge, %395, %396 : vector<16x32xf32>
    %398 = arith.extui %397 : vector<16x32xi1> to vector<16x32xi32>
    %399 = arith.sitofp %398 : vector<16x32xi32> to vector<16x32xf32>
    %cst_82 = arith.constant 1.000000e+00 : f32
    %400 = vector.broadcast %cst_82 : f32 to vector<16x32xf32>
    %401 = arith.subf %400, %399 : vector<16x32xf32>
    %402 = arith.mulf %395, %401 : vector<16x32xf32>
    %403 = arith.addf %390, %399 : vector<16x32xf32>
    %404 = vector.extract_strided_slice %375 {offsets = [32, 0], sizes = [16, 32], strides = [1, 1]} : vector<64x32xf32> to vector<16x32xf32>
    %405 = arith.subf %404, %402 : vector<16x32xf32>
    %cst_83 = arith.constant 5.000000e-01 : f32
    %406 = vector.broadcast %cst_83 : f32 to vector<16x32xf32>
    %407 = arith.mulf %405, %406 : vector<16x32xf32>
    %408 = arith.addf %402, %407 : vector<16x32xf32>
    %cst_84 = arith.constant 1.000000e+00 : f32
    %409 = vector.broadcast %cst_84 : f32 to vector<16x32xf32>
    %410 = arith.cmpf oge, %408, %409 : vector<16x32xf32>
    %411 = arith.extui %410 : vector<16x32xi1> to vector<16x32xi32>
    %412 = arith.sitofp %411 : vector<16x32xi32> to vector<16x32xf32>
    %cst_85 = arith.constant 1.000000e+00 : f32
    %413 = vector.broadcast %cst_85 : f32 to vector<16x32xf32>
    %414 = arith.subf %413, %412 : vector<16x32xf32>
    %415 = arith.mulf %408, %414 : vector<16x32xf32>
    %416 = arith.addf %403, %412 : vector<16x32xf32>
    %417 = vector.extract_strided_slice %375 {offsets = [48, 0], sizes = [16, 32], strides = [1, 1]} : vector<64x32xf32> to vector<16x32xf32>
    %418 = arith.subf %417, %415 : vector<16x32xf32>
    %cst_86 = arith.constant 5.000000e-01 : f32
    %419 = vector.broadcast %cst_86 : f32 to vector<16x32xf32>
    %420 = arith.mulf %418, %419 : vector<16x32xf32>
    %421 = arith.addf %415, %420 : vector<16x32xf32>
    %cst_87 = arith.constant 1.000000e+00 : f32
    %422 = vector.broadcast %cst_87 : f32 to vector<16x32xf32>
    %423 = arith.cmpf oge, %421, %422 : vector<16x32xf32>
    %424 = arith.extui %423 : vector<16x32xi1> to vector<16x32xi32>
    %425 = arith.sitofp %424 : vector<16x32xi32> to vector<16x32xf32>
    %426 = arith.addf %416, %425 : vector<16x32xf32>
    %cst_88 = arith.constant 2.500000e-01 : f32
    %427 = vector.broadcast %cst_88 : f32 to vector<16x32xf32>
    %428 = arith.mulf %426, %427 : vector<16x32xf32>
    %429 = arith.addf %305, %428 : vector<16x32xf32>
    %c1 = arith.constant 1 : index
    %c0_89 = arith.constant 0 : index
    %430 = vector.load %arg4[%c1, %c0_89] : memref<2x32xf32, #tpu.memory_space<vmem>>, vector<1x32xf32>
    %431 = vector.shape_cast %430 : vector<1x32xf32> to vector<32xf32>
    %c1_90 = arith.constant 1 : index
    %c0_91 = arith.constant 0 : index
    %432 = vector.load %arg5[%c1_90, %c0_91] : memref<2x32xf32, #tpu.memory_space<vmem>>, vector<1x32xf32>
    %433 = vector.shape_cast %432 : vector<1x32xf32> to vector<32xf32>
    %cst_92 = arith.constant dense<0.000000e+00> : vector<16xf32>
    %434 = vector.multi_reduction <add>, %429, %cst_92 [1] : vector<16x32xf32> to vector<16xf32>
    %435 = vector.shape_cast %434 : vector<16xf32> to vector<16x1xf32>
    %cst_93 = arith.constant 3.200000e+01 : f32
    %436 = vector.broadcast %cst_93 : f32 to vector<16x1xf32>
    %437 = arith.divf %435, %436 : vector<16x1xf32>
    %438 = vector.broadcast %437 : vector<16x1xf32> to vector<16x32xf32>
    %439 = arith.subf %429, %438 : vector<16x32xf32>
    %440 = arith.mulf %439, %439 : vector<16x32xf32>
    %cst_94 = arith.constant dense<0.000000e+00> : vector<16xf32>
    %441 = vector.multi_reduction <add>, %440, %cst_94 [1] : vector<16x32xf32> to vector<16xf32>
    %442 = vector.shape_cast %441 : vector<16xf32> to vector<16x1xf32>
    %cst_95 = arith.constant 3.200000e+01 : f32
    %443 = vector.broadcast %cst_95 : f32 to vector<16x1xf32>
    %444 = arith.divf %442, %443 : vector<16x1xf32>
    %445 = vector.broadcast %437 : vector<16x1xf32> to vector<16x32xf32>
    %446 = arith.subf %429, %445 : vector<16x32xf32>
    %cst_96 = arith.constant 9.99999974E-6 : f32
    %447 = vector.broadcast %cst_96 : f32 to vector<16x1xf32>
    %448 = arith.addf %444, %447 : vector<16x1xf32>
    %449 = math.rsqrt %448 : vector<16x1xf32>
    %450 = vector.broadcast %449 : vector<16x1xf32> to vector<16x32xf32>
    %451 = arith.mulf %446, %450 : vector<16x32xf32>
    %452 = vector.shape_cast %431 : vector<32xf32> to vector<1x32xf32>
    %453 = vector.broadcast %452 : vector<1x32xf32> to vector<16x32xf32>
    %454 = arith.mulf %451, %453 : vector<16x32xf32>
    %455 = vector.shape_cast %433 : vector<32xf32> to vector<1x32xf32>
    %456 = vector.broadcast %455 : vector<1x32xf32> to vector<16x32xf32>
    %457 = arith.addf %454, %456 : vector<16x32xf32>
    %c1_97 = arith.constant 1 : index
    %c0_98 = arith.constant 0 : index
    %c0_99 = arith.constant 0 : index
    %458 = vector.load %arg6[%c1_97, %c0_98, %c0_99] : memref<2x32x96xf32, #tpu.memory_space<vmem>>, vector<1x32x96xf32>
    %459 = vector.shape_cast %458 : vector<1x32x96xf32> to vector<32x96xf32>
    %cst_100 = arith.constant dense<0.000000e+00> : vector<16x96xf32>
    %460 = tpu.matmul %457, %459, %cst_100 {dimension_numbers = #tpu.dot_dimension_numbers<[1], [0], [0], [1], [0, 0, 1, 1], [], []>} : vector<16x32xf32>, vector<32x96xf32>, vector<16x96xf32> -> vector<16x96xf32>
    %cst_101 = arith.constant 2.000000e+00 : f32
    %461 = vector.broadcast %cst_101 : f32 to vector<16x96xf32>
    %462 = arith.cmpf oge, %460, %461 : vector<16x96xf32>
    %463 = arith.extui %462 : vector<16x96xi1> to vector<16x96xi32>
    %464 = arith.sitofp %463 : vector<16x96xi32> to vector<16x96xf32>
    %cst_102 = arith.constant 1.33333337 : f32
    %465 = vector.broadcast %cst_102 : f32 to vector<16x96xf32>
    %466 = arith.cmpf oge, %460, %465 : vector<16x96xf32>
    %467 = arith.extui %466 : vector<16x96xi1> to vector<16x96xi32>
    %468 = arith.sitofp %467 : vector<16x96xi32> to vector<16x96xf32>
    %cst_103 = arith.constant 1.14285719 : f32
    %469 = vector.broadcast %cst_103 : f32 to vector<16x96xf32>
    %470 = arith.cmpf oge, %460, %469 : vector<16x96xf32>
    %471 = arith.extui %470 : vector<16x96xi1> to vector<16x96xi32>
    %472 = arith.sitofp %471 : vector<16x96xi32> to vector<16x96xf32>
    %cst_104 = arith.constant 1.06666672 : f32
    %473 = vector.broadcast %cst_104 : f32 to vector<16x96xf32>
    %474 = arith.cmpf oge, %460, %473 : vector<16x96xf32>
    %475 = arith.extui %474 : vector<16x96xi1> to vector<16x96xi32>
    %476 = arith.sitofp %475 : vector<16x96xi32> to vector<16x96xf32>
    %477 = arith.subf %468, %464 : vector<16x96xf32>
    %478 = arith.subf %472, %468 : vector<16x96xf32>
    %479 = arith.subf %476, %472 : vector<16x96xf32>
    %480 = arith.addf %464, %477 : vector<16x96xf32>
    %481 = arith.addf %464, %478 : vector<16x96xf32>
    %482 = arith.addf %464, %477 : vector<16x96xf32>
    %483 = arith.addf %482, %479 : vector<16x96xf32>
    %484 = vector.extract_strided_slice %464 {offsets = [0, 0], sizes = [16, 32], strides = [1, 1]} : vector<16x96xf32> to vector<16x32xf32>
    %485 = vector.shape_cast %484 : vector<16x32xf32> to vector<2x8x32xf32>
    %486 = vector.extract_strided_slice %464 {offsets = [0, 32], sizes = [16, 32], strides = [1, 1]} : vector<16x96xf32> to vector<16x32xf32>
    %487 = vector.shape_cast %486 : vector<16x32xf32> to vector<2x8x32xf32>
    %488 = vector.extract_strided_slice %464 {offsets = [0, 64], sizes = [16, 32], strides = [1, 1]} : vector<16x96xf32> to vector<16x32xf32>
    %489 = vector.shape_cast %488 : vector<16x32xf32> to vector<2x8x32xf32>
    %490 = vector.broadcast %7 : vector<1x1x32xf32> to vector<2x8x32xf32>
    %491 = arith.mulf %487, %490 : vector<2x8x32xf32>
    %492 = vector.broadcast %7 : vector<1x1x32xf32> to vector<2x8x32xf32>
    %493 = arith.mulf %489, %492 : vector<2x8x32xf32>
    %494 = vector.broadcast %14 : vector<1x1x32xf32> to vector<2x8x32xf32>
    %495 = arith.mulf %487, %494 : vector<2x8x32xf32>
    %496 = vector.broadcast %14 : vector<1x1x32xf32> to vector<2x8x32xf32>
    %497 = arith.mulf %489, %496 : vector<2x8x32xf32>
    %498 = vector.broadcast %21 : vector<1x1x32xf32> to vector<2x8x32xf32>
    %499 = arith.mulf %487, %498 : vector<2x8x32xf32>
    %500 = vector.broadcast %21 : vector<1x1x32xf32> to vector<2x8x32xf32>
    %501 = arith.mulf %489, %500 : vector<2x8x32xf32>
    %502 = vector.broadcast %28 : vector<1x1x32xf32> to vector<2x8x32xf32>
    %503 = arith.mulf %487, %502 : vector<2x8x32xf32>
    %504 = vector.broadcast %28 : vector<1x1x32xf32> to vector<2x8x32xf32>
    %505 = arith.mulf %489, %504 : vector<2x8x32xf32>
    %506 = vector.extract_strided_slice %480 {offsets = [0, 0], sizes = [16, 32], strides = [1, 1]} : vector<16x96xf32> to vector<16x32xf32>
    %507 = vector.shape_cast %506 : vector<16x32xf32> to vector<2x8x32xf32>
    %508 = vector.extract_strided_slice %480 {offsets = [0, 32], sizes = [16, 32], strides = [1, 1]} : vector<16x96xf32> to vector<16x32xf32>
    %509 = vector.shape_cast %508 : vector<16x32xf32> to vector<2x8x32xf32>
    %510 = vector.extract_strided_slice %480 {offsets = [0, 64], sizes = [16, 32], strides = [1, 1]} : vector<16x96xf32> to vector<16x32xf32>
    %511 = vector.shape_cast %510 : vector<16x32xf32> to vector<2x8x32xf32>
    %512 = vector.broadcast %7 : vector<1x1x32xf32> to vector<2x8x32xf32>
    %513 = arith.mulf %509, %512 : vector<2x8x32xf32>
    %514 = vector.broadcast %7 : vector<1x1x32xf32> to vector<2x8x32xf32>
    %515 = arith.mulf %511, %514 : vector<2x8x32xf32>
    %516 = vector.broadcast %14 : vector<1x1x32xf32> to vector<2x8x32xf32>
    %517 = arith.mulf %509, %516 : vector<2x8x32xf32>
    %518 = vector.broadcast %14 : vector<1x1x32xf32> to vector<2x8x32xf32>
    %519 = arith.mulf %511, %518 : vector<2x8x32xf32>
    %520 = vector.broadcast %21 : vector<1x1x32xf32> to vector<2x8x32xf32>
    %521 = arith.mulf %509, %520 : vector<2x8x32xf32>
    %522 = vector.broadcast %21 : vector<1x1x32xf32> to vector<2x8x32xf32>
    %523 = arith.mulf %511, %522 : vector<2x8x32xf32>
    %524 = vector.broadcast %28 : vector<1x1x32xf32> to vector<2x8x32xf32>
    %525 = arith.mulf %509, %524 : vector<2x8x32xf32>
    %526 = vector.broadcast %28 : vector<1x1x32xf32> to vector<2x8x32xf32>
    %527 = arith.mulf %511, %526 : vector<2x8x32xf32>
    %528 = vector.extract_strided_slice %481 {offsets = [0, 0], sizes = [16, 32], strides = [1, 1]} : vector<16x96xf32> to vector<16x32xf32>
    %529 = vector.shape_cast %528 : vector<16x32xf32> to vector<2x8x32xf32>
    %530 = vector.extract_strided_slice %481 {offsets = [0, 32], sizes = [16, 32], strides = [1, 1]} : vector<16x96xf32> to vector<16x32xf32>
    %531 = vector.shape_cast %530 : vector<16x32xf32> to vector<2x8x32xf32>
    %532 = vector.extract_strided_slice %481 {offsets = [0, 64], sizes = [16, 32], strides = [1, 1]} : vector<16x96xf32> to vector<16x32xf32>
    %533 = vector.shape_cast %532 : vector<16x32xf32> to vector<2x8x32xf32>
    %534 = vector.broadcast %7 : vector<1x1x32xf32> to vector<2x8x32xf32>
    %535 = arith.mulf %531, %534 : vector<2x8x32xf32>
    %536 = vector.broadcast %7 : vector<1x1x32xf32> to vector<2x8x32xf32>
    %537 = arith.mulf %533, %536 : vector<2x8x32xf32>
    %538 = vector.broadcast %14 : vector<1x1x32xf32> to vector<2x8x32xf32>
    %539 = arith.mulf %531, %538 : vector<2x8x32xf32>
    %540 = vector.broadcast %14 : vector<1x1x32xf32> to vector<2x8x32xf32>
    %541 = arith.mulf %533, %540 : vector<2x8x32xf32>
    %542 = vector.broadcast %21 : vector<1x1x32xf32> to vector<2x8x32xf32>
    %543 = arith.mulf %531, %542 : vector<2x8x32xf32>
    %544 = vector.broadcast %21 : vector<1x1x32xf32> to vector<2x8x32xf32>
    %545 = arith.mulf %533, %544 : vector<2x8x32xf32>
    %546 = vector.broadcast %28 : vector<1x1x32xf32> to vector<2x8x32xf32>
    %547 = arith.mulf %531, %546 : vector<2x8x32xf32>
    %548 = vector.broadcast %28 : vector<1x1x32xf32> to vector<2x8x32xf32>
    %549 = arith.mulf %533, %548 : vector<2x8x32xf32>
    %550 = vector.extract_strided_slice %483 {offsets = [0, 0], sizes = [16, 32], strides = [1, 1]} : vector<16x96xf32> to vector<16x32xf32>
    %551 = vector.shape_cast %550 : vector<16x32xf32> to vector<2x8x32xf32>
    %552 = vector.extract_strided_slice %483 {offsets = [0, 32], sizes = [16, 32], strides = [1, 1]} : vector<16x96xf32> to vector<16x32xf32>
    %553 = vector.shape_cast %552 : vector<16x32xf32> to vector<2x8x32xf32>
    %554 = vector.extract_strided_slice %483 {offsets = [0, 64], sizes = [16, 32], strides = [1, 1]} : vector<16x96xf32> to vector<16x32xf32>
    %555 = vector.shape_cast %554 : vector<16x32xf32> to vector<2x8x32xf32>
    %556 = vector.broadcast %7 : vector<1x1x32xf32> to vector<2x8x32xf32>
    %557 = arith.mulf %553, %556 : vector<2x8x32xf32>
    %558 = vector.broadcast %7 : vector<1x1x32xf32> to vector<2x8x32xf32>
    %559 = arith.mulf %555, %558 : vector<2x8x32xf32>
    %560 = vector.broadcast %14 : vector<1x1x32xf32> to vector<2x8x32xf32>
    %561 = arith.mulf %553, %560 : vector<2x8x32xf32>
    %562 = vector.broadcast %14 : vector<1x1x32xf32> to vector<2x8x32xf32>
    %563 = arith.mulf %555, %562 : vector<2x8x32xf32>
    %564 = vector.broadcast %21 : vector<1x1x32xf32> to vector<2x8x32xf32>
    %565 = arith.mulf %553, %564 : vector<2x8x32xf32>
    %566 = vector.broadcast %21 : vector<1x1x32xf32> to vector<2x8x32xf32>
    %567 = arith.mulf %555, %566 : vector<2x8x32xf32>
    %568 = vector.broadcast %28 : vector<1x1x32xf32> to vector<2x8x32xf32>
    %569 = arith.mulf %553, %568 : vector<2x8x32xf32>
    %570 = vector.broadcast %28 : vector<1x1x32xf32> to vector<2x8x32xf32>
    %571 = arith.mulf %555, %570 : vector<2x8x32xf32>
    %572 = tpu.concatenate %485, %485, %485, %485, %507, %507, %507, %507, %529, %529, %529, %529, %551, %551, %551, %551 in 0 : vector<2x8x32xf32>, vector<2x8x32xf32>, vector<2x8x32xf32>, vector<2x8x32xf32>, vector<2x8x32xf32>, vector<2x8x32xf32>, vector<2x8x32xf32>, vector<2x8x32xf32>, vector<2x8x32xf32>, vector<2x8x32xf32>, vector<2x8x32xf32>, vector<2x8x32xf32>, vector<2x8x32xf32>, vector<2x8x32xf32>, vector<2x8x32xf32>, vector<2x8x32xf32> -> vector<32x8x32xf32>
    %573 = arith.truncf %572 : vector<32x8x32xf32> to vector<32x8x32xbf16>
    %574 = tpu.concatenate %491, %495, %499, %503, %513, %517, %521, %525, %535, %539, %543, %547, %557, %561, %565, %569 in 0 : vector<2x8x32xf32>, vector<2x8x32xf32>, vector<2x8x32xf32>, vector<2x8x32xf32>, vector<2x8x32xf32>, vector<2x8x32xf32>, vector<2x8x32xf32>, vector<2x8x32xf32>, vector<2x8x32xf32>, vector<2x8x32xf32>, vector<2x8x32xf32>, vector<2x8x32xf32>, vector<2x8x32xf32>, vector<2x8x32xf32>, vector<2x8x32xf32>, vector<2x8x32xf32> -> vector<32x8x32xf32>
    %575 = arith.truncf %574 : vector<32x8x32xf32> to vector<32x8x32xbf16>
    %576 = tpu.concatenate %493, %497, %501, %505, %515, %519, %523, %527, %537, %541, %545, %549, %559, %563, %567, %571 in 0 : vector<2x8x32xf32>, vector<2x8x32xf32>, vector<2x8x32xf32>, vector<2x8x32xf32>, vector<2x8x32xf32>, vector<2x8x32xf32>, vector<2x8x32xf32>, vector<2x8x32xf32>, vector<2x8x32xf32>, vector<2x8x32xf32>, vector<2x8x32xf32>, vector<2x8x32xf32>, vector<2x8x32xf32>, vector<2x8x32xf32>, vector<2x8x32xf32>, vector<2x8x32xf32> -> vector<32x8x32xf32>
    %577 = arith.truncf %576 : vector<32x8x32xf32> to vector<32x8x32xbf16>
    "tpu.trace_start"() <{level = 10 : i32, message = "nsc,nkc->nsk"}> : () -> ()
    %cst_105 = arith.constant dense<0.000000e+00> : vector<32x8x8xf32>
    %578 = tpu.matmul %573, %575, %cst_105 {dimension_numbers = #tpu.dot_dimension_numbers<[2], [2], [1], [1], [0, 0, 0, 1, 1, 1], [0], [0]>} : vector<32x8x32xbf16>, vector<32x8x32xbf16>, vector<32x8x8xf32> -> vector<32x8x8xf32>
    %cst_106 = arith.constant 0.000000e+00 : f32
    "tpu.trace_stop"() : () -> ()
    %579 = vector.broadcast %cst_106 : f32 to vector<8x8x8xf32>
    %580 = vector.extract_strided_slice %578 {offsets = [0, 0, 0], sizes = [8, 8, 8], strides = [1, 1, 1]} : vector<32x8x8xf32> to vector<8x8x8xf32>
    %581 = arith.subf %580, %579 : vector<8x8x8xf32>
    %cst_107 = arith.constant 5.000000e-01 : f32
    %582 = vector.broadcast %cst_107 : f32 to vector<8x8x8xf32>
    %583 = arith.mulf %581, %582 : vector<8x8x8xf32>
    %584 = arith.addf %579, %583 : vector<8x8x8xf32>
    %cst_108 = arith.constant 2.82842708 : f32
    %585 = vector.broadcast %cst_108 : f32 to vector<8x8x8xf32>
    %586 = arith.cmpf oge, %584, %585 : vector<8x8x8xf32>
    %587 = arith.extui %586 : vector<8x8x8xi1> to vector<8x8x8xi32>
    %588 = arith.sitofp %587 : vector<8x8x8xi32> to vector<8x8x8xf32>
    %cst_109 = arith.constant 1.000000e+00 : f32
    %589 = vector.broadcast %cst_109 : f32 to vector<8x8x8xf32>
    %590 = arith.subf %589, %588 : vector<8x8x8xf32>
    %591 = arith.mulf %584, %590 : vector<8x8x8xf32>
    %592 = vector.extract_strided_slice %578 {offsets = [8, 0, 0], sizes = [8, 8, 8], strides = [1, 1, 1]} : vector<32x8x8xf32> to vector<8x8x8xf32>
    %593 = arith.subf %592, %591 : vector<8x8x8xf32>
    %cst_110 = arith.constant 5.000000e-01 : f32
    %594 = vector.broadcast %cst_110 : f32 to vector<8x8x8xf32>
    %595 = arith.mulf %593, %594 : vector<8x8x8xf32>
    %596 = arith.addf %591, %595 : vector<8x8x8xf32>
    %cst_111 = arith.constant 2.82842708 : f32
    %597 = vector.broadcast %cst_111 : f32 to vector<8x8x8xf32>
    %598 = arith.cmpf oge, %596, %597 : vector<8x8x8xf32>
    %599 = arith.extui %598 : vector<8x8x8xi1> to vector<8x8x8xi32>
    %600 = arith.sitofp %599 : vector<8x8x8xi32> to vector<8x8x8xf32>
    %cst_112 = arith.constant 1.000000e+00 : f32
    %601 = vector.broadcast %cst_112 : f32 to vector<8x8x8xf32>
    %602 = arith.subf %601, %600 : vector<8x8x8xf32>
    %603 = arith.mulf %596, %602 : vector<8x8x8xf32>
    %604 = vector.extract_strided_slice %578 {offsets = [16, 0, 0], sizes = [8, 8, 8], strides = [1, 1, 1]} : vector<32x8x8xf32> to vector<8x8x8xf32>
    %605 = arith.subf %604, %603 : vector<8x8x8xf32>
    %cst_113 = arith.constant 5.000000e-01 : f32
    %606 = vector.broadcast %cst_113 : f32 to vector<8x8x8xf32>
    %607 = arith.mulf %605, %606 : vector<8x8x8xf32>
    %608 = arith.addf %603, %607 : vector<8x8x8xf32>
    %cst_114 = arith.constant 2.82842708 : f32
    %609 = vector.broadcast %cst_114 : f32 to vector<8x8x8xf32>
    %610 = arith.cmpf oge, %608, %609 : vector<8x8x8xf32>
    %611 = arith.extui %610 : vector<8x8x8xi1> to vector<8x8x8xi32>
    %612 = arith.sitofp %611 : vector<8x8x8xi32> to vector<8x8x8xf32>
    %cst_115 = arith.constant 1.000000e+00 : f32
    %613 = vector.broadcast %cst_115 : f32 to vector<8x8x8xf32>
    %614 = arith.subf %613, %612 : vector<8x8x8xf32>
    %615 = arith.mulf %608, %614 : vector<8x8x8xf32>
    %616 = vector.extract_strided_slice %578 {offsets = [24, 0, 0], sizes = [8, 8, 8], strides = [1, 1, 1]} : vector<32x8x8xf32> to vector<8x8x8xf32>
    %617 = arith.subf %616, %615 : vector<8x8x8xf32>
    %cst_116 = arith.constant 5.000000e-01 : f32
    %618 = vector.broadcast %cst_116 : f32 to vector<8x8x8xf32>
    %619 = arith.mulf %617, %618 : vector<8x8x8xf32>
    %620 = arith.addf %615, %619 : vector<8x8x8xf32>
    %cst_117 = arith.constant 2.82842708 : f32
    %621 = vector.broadcast %cst_117 : f32 to vector<8x8x8xf32>
    %622 = arith.cmpf oge, %620, %621 : vector<8x8x8xf32>
    %623 = arith.extui %622 : vector<8x8x8xi1> to vector<8x8x8xi32>
    %624 = arith.sitofp %623 : vector<8x8x8xi32> to vector<8x8x8xf32>
    %625 = tpu.concatenate %588, %600, %612, %624 in 0 : vector<8x8x8xf32>, vector<8x8x8xf32>, vector<8x8x8xf32>, vector<8x8x8xf32> -> vector<32x8x8xf32>
    %cst_118 = arith.constant 1.71828187 : f32
    %626 = vector.broadcast %cst_118 : f32 to vector<32x8x8xf32>
    %627 = arith.mulf %626, %625 : vector<32x8x8xf32>
    %cst_119 = arith.constant 1.000000e+00 : f32
    %628 = vector.broadcast %cst_119 : f32 to vector<32x8x8xf32>
    %629 = arith.addf %628, %627 : vector<32x8x8xf32>
    %cst_120 = arith.constant dense<0.000000e+00> : vector<32x8xf32>
    %630 = vector.multi_reduction <add>, %625, %cst_120 [2] : vector<32x8x8xf32> to vector<32x8xf32>
    %631 = vector.shape_cast %630 : vector<32x8xf32> to vector<32x8x1xf32>
    %cst_121 = arith.constant 1.71828187 : f32
    %632 = vector.broadcast %cst_121 : f32 to vector<32x8x1xf32>
    %633 = arith.mulf %632, %631 : vector<32x8x1xf32>
    %cst_122 = arith.constant 8.000000e+00 : f32
    %634 = vector.broadcast %cst_122 : f32 to vector<32x8x1xf32>
    %635 = arith.addf %634, %633 : vector<32x8x1xf32>
    %636 = tpu.reciprocal %635 {approx = true} : vector<32x8x1xf32> -> vector<32x8x1xf32>
    %637 = vector.broadcast %636 : vector<32x8x1xf32> to vector<32x8x8xf32>
    %638 = arith.mulf %629, %637 : vector<32x8x8xf32>
    %639 = arith.truncf %638 : vector<32x8x8xf32> to vector<32x8x8xbf16>
    "tpu.trace_start"() <{level = 10 : i32, message = "nsk,nkc->nsc"}> : () -> ()
    %cst_123 = arith.constant dense<0.000000e+00> : vector<32x8x32xf32>
    %640 = tpu.matmul %639, %577, %cst_123 {dimension_numbers = #tpu.dot_dimension_numbers<[2], [1], [1], [2], [0, 0, 0, 1, 1, 2], [0], [0]>} : vector<32x8x8xbf16>, vector<32x8x32xbf16>, vector<32x8x32xf32> -> vector<32x8x32xf32>
    %cst_124 = arith.constant 0.000000e+00 : f32
    "tpu.trace_stop"() : () -> ()
    %641 = vector.broadcast %cst_124 : f32 to vector<2x8x32xf32>
    %642 = vector.extract_strided_slice %640 {offsets = [0, 0, 0], sizes = [2, 8, 32], strides = [1, 1, 1]} : vector<32x8x32xf32> to vector<2x8x32xf32>
    %643 = arith.addf %641, %642 : vector<2x8x32xf32>
    %644 = vector.extract_strided_slice %640 {offsets = [2, 0, 0], sizes = [2, 8, 32], strides = [1, 1, 1]} : vector<32x8x32xf32> to vector<2x8x32xf32>
    %645 = arith.addf %643, %644 : vector<2x8x32xf32>
    %646 = vector.extract_strided_slice %640 {offsets = [4, 0, 0], sizes = [2, 8, 32], strides = [1, 1, 1]} : vector<32x8x32xf32> to vector<2x8x32xf32>
    %647 = arith.addf %645, %646 : vector<2x8x32xf32>
    %648 = vector.extract_strided_slice %640 {offsets = [6, 0, 0], sizes = [2, 8, 32], strides = [1, 1, 1]} : vector<32x8x32xf32> to vector<2x8x32xf32>
    %649 = arith.addf %647, %648 : vector<2x8x32xf32>
    %650 = vector.extract_strided_slice %640 {offsets = [8, 0, 0], sizes = [2, 8, 32], strides = [1, 1, 1]} : vector<32x8x32xf32> to vector<2x8x32xf32>
    %651 = arith.addf %649, %650 : vector<2x8x32xf32>
    %652 = vector.extract_strided_slice %640 {offsets = [10, 0, 0], sizes = [2, 8, 32], strides = [1, 1, 1]} : vector<32x8x32xf32> to vector<2x8x32xf32>
    %653 = arith.addf %651, %652 : vector<2x8x32xf32>
    %654 = vector.extract_strided_slice %640 {offsets = [12, 0, 0], sizes = [2, 8, 32], strides = [1, 1, 1]} : vector<32x8x32xf32> to vector<2x8x32xf32>
    %655 = arith.addf %653, %654 : vector<2x8x32xf32>
    %656 = vector.extract_strided_slice %640 {offsets = [14, 0, 0], sizes = [2, 8, 32], strides = [1, 1, 1]} : vector<32x8x32xf32> to vector<2x8x32xf32>
    %657 = arith.addf %655, %656 : vector<2x8x32xf32>
    %658 = vector.extract_strided_slice %640 {offsets = [16, 0, 0], sizes = [2, 8, 32], strides = [1, 1, 1]} : vector<32x8x32xf32> to vector<2x8x32xf32>
    %659 = arith.addf %657, %658 : vector<2x8x32xf32>
    %660 = vector.extract_strided_slice %640 {offsets = [18, 0, 0], sizes = [2, 8, 32], strides = [1, 1, 1]} : vector<32x8x32xf32> to vector<2x8x32xf32>
    %661 = arith.addf %659, %660 : vector<2x8x32xf32>
    %662 = vector.extract_strided_slice %640 {offsets = [20, 0, 0], sizes = [2, 8, 32], strides = [1, 1, 1]} : vector<32x8x32xf32> to vector<2x8x32xf32>
    %663 = arith.addf %661, %662 : vector<2x8x32xf32>
    %664 = vector.extract_strided_slice %640 {offsets = [22, 0, 0], sizes = [2, 8, 32], strides = [1, 1, 1]} : vector<32x8x32xf32> to vector<2x8x32xf32>
    %665 = arith.addf %663, %664 : vector<2x8x32xf32>
    %666 = vector.extract_strided_slice %640 {offsets = [24, 0, 0], sizes = [2, 8, 32], strides = [1, 1, 1]} : vector<32x8x32xf32> to vector<2x8x32xf32>
    %667 = arith.addf %665, %666 : vector<2x8x32xf32>
    %668 = vector.extract_strided_slice %640 {offsets = [26, 0, 0], sizes = [2, 8, 32], strides = [1, 1, 1]} : vector<32x8x32xf32> to vector<2x8x32xf32>
    %669 = arith.addf %667, %668 : vector<2x8x32xf32>
    %670 = vector.extract_strided_slice %640 {offsets = [28, 0, 0], sizes = [2, 8, 32], strides = [1, 1, 1]} : vector<32x8x32xf32> to vector<2x8x32xf32>
    %671 = arith.addf %669, %670 : vector<2x8x32xf32>
    %672 = vector.extract_strided_slice %640 {offsets = [30, 0, 0], sizes = [2, 8, 32], strides = [1, 1, 1]} : vector<32x8x32xf32> to vector<2x8x32xf32>
    %673 = arith.addf %671, %672 : vector<2x8x32xf32>
    %cst_125 = arith.constant 2.500000e-01 : f32
    %674 = vector.broadcast %cst_125 : f32 to vector<2x8x32xf32>
    %675 = arith.mulf %673, %674 : vector<2x8x32xf32>
    %676 = vector.shape_cast %675 : vector<2x8x32xf32> to vector<16x32xf32>
    %677 = arith.addf %429, %676 : vector<16x32xf32>
    %c1_126 = arith.constant 1 : index
    %c0_127 = arith.constant 0 : index
    %678 = vector.load %arg7[%c1_126, %c0_127] : memref<2x32xf32, #tpu.memory_space<vmem>>, vector<1x32xf32>
    %679 = vector.shape_cast %678 : vector<1x32xf32> to vector<32xf32>
    %c1_128 = arith.constant 1 : index
    %c0_129 = arith.constant 0 : index
    %680 = vector.load %arg8[%c1_128, %c0_129] : memref<2x32xf32, #tpu.memory_space<vmem>>, vector<1x32xf32>
    %681 = vector.shape_cast %680 : vector<1x32xf32> to vector<32xf32>
    %cst_130 = arith.constant dense<0.000000e+00> : vector<16xf32>
    %682 = vector.multi_reduction <add>, %677, %cst_130 [1] : vector<16x32xf32> to vector<16xf32>
    %683 = vector.shape_cast %682 : vector<16xf32> to vector<16x1xf32>
    %cst_131 = arith.constant 3.200000e+01 : f32
    %684 = vector.broadcast %cst_131 : f32 to vector<16x1xf32>
    %685 = arith.divf %683, %684 : vector<16x1xf32>
    %686 = vector.broadcast %685 : vector<16x1xf32> to vector<16x32xf32>
    %687 = arith.subf %677, %686 : vector<16x32xf32>
    %688 = arith.mulf %687, %687 : vector<16x32xf32>
    %cst_132 = arith.constant dense<0.000000e+00> : vector<16xf32>
    %689 = vector.multi_reduction <add>, %688, %cst_132 [1] : vector<16x32xf32> to vector<16xf32>
    %690 = vector.shape_cast %689 : vector<16xf32> to vector<16x1xf32>
    %cst_133 = arith.constant 3.200000e+01 : f32
    %691 = vector.broadcast %cst_133 : f32 to vector<16x1xf32>
    %692 = arith.divf %690, %691 : vector<16x1xf32>
    %693 = vector.broadcast %685 : vector<16x1xf32> to vector<16x32xf32>
    %694 = arith.subf %677, %693 : vector<16x32xf32>
    %cst_134 = arith.constant 9.99999974E-6 : f32
    %695 = vector.broadcast %cst_134 : f32 to vector<16x1xf32>
    %696 = arith.addf %692, %695 : vector<16x1xf32>
    %697 = math.rsqrt %696 : vector<16x1xf32>
    %698 = vector.broadcast %697 : vector<16x1xf32> to vector<16x32xf32>
    %699 = arith.mulf %694, %698 : vector<16x32xf32>
    %700 = vector.shape_cast %679 : vector<32xf32> to vector<1x32xf32>
    %701 = vector.broadcast %700 : vector<1x32xf32> to vector<16x32xf32>
    %702 = arith.mulf %699, %701 : vector<16x32xf32>
    %703 = vector.shape_cast %681 : vector<32xf32> to vector<1x32xf32>
    %704 = vector.broadcast %703 : vector<1x32xf32> to vector<16x32xf32>
    %705 = arith.addf %702, %704 : vector<16x32xf32>
    %c1_135 = arith.constant 1 : index
    %c0_136 = arith.constant 0 : index
    %c0_137 = arith.constant 0 : index
    %706 = vector.load %arg9[%c1_135, %c0_136, %c0_137] : memref<2x32x128xf32, #tpu.memory_space<vmem>>, vector<1x32x128xf32>
    %707 = vector.shape_cast %706 : vector<1x32x128xf32> to vector<32x128xf32>
    %cst_138 = arith.constant dense<0.000000e+00> : vector<16x128xf32>
    %708 = tpu.matmul %705, %707, %cst_138 {dimension_numbers = #tpu.dot_dimension_numbers<[1], [0], [0], [1], [0, 0, 1, 1], [], []>} : vector<16x32xf32>, vector<32x128xf32>, vector<16x128xf32> -> vector<16x128xf32>
    %c1_139 = arith.constant 1 : index
    %c0_140 = arith.constant 0 : index
    %709 = vector.load %arg10[%c1_139, %c0_140] : memref<2x128xf32, #tpu.memory_space<vmem>>, vector<1x128xf32>
    %710 = vector.shape_cast %709 : vector<1x128xf32> to vector<128xf32>
    %711 = vector.shape_cast %710 : vector<128xf32> to vector<1x128xf32>
    %712 = vector.broadcast %711 : vector<1x128xf32> to vector<16x128xf32>
    %713 = arith.addf %708, %712 : vector<16x128xf32>
    %cst_141 = arith.constant 2.000000e+00 : f32
    %714 = vector.broadcast %cst_141 : f32 to vector<16x128xf32>
    %715 = arith.cmpf oge, %713, %714 : vector<16x128xf32>
    %716 = arith.extui %715 : vector<16x128xi1> to vector<16x128xi32>
    %717 = arith.sitofp %716 : vector<16x128xi32> to vector<16x128xf32>
    %cst_142 = arith.constant 1.33333337 : f32
    %718 = vector.broadcast %cst_142 : f32 to vector<16x128xf32>
    %719 = arith.cmpf oge, %713, %718 : vector<16x128xf32>
    %720 = arith.extui %719 : vector<16x128xi1> to vector<16x128xi32>
    %721 = arith.sitofp %720 : vector<16x128xi32> to vector<16x128xf32>
    %cst_143 = arith.constant 1.14285719 : f32
    %722 = vector.broadcast %cst_143 : f32 to vector<16x128xf32>
    %723 = arith.cmpf oge, %713, %722 : vector<16x128xf32>
    %724 = arith.extui %723 : vector<16x128xi1> to vector<16x128xi32>
    %725 = arith.sitofp %724 : vector<16x128xi32> to vector<16x128xf32>
    %cst_144 = arith.constant 1.06666672 : f32
    %726 = vector.broadcast %cst_144 : f32 to vector<16x128xf32>
    %727 = arith.cmpf oge, %713, %726 : vector<16x128xf32>
    %728 = arith.extui %727 : vector<16x128xi1> to vector<16x128xi32>
    %729 = arith.sitofp %728 : vector<16x128xi32> to vector<16x128xf32>
    %730 = arith.subf %721, %717 : vector<16x128xf32>
    %731 = arith.subf %725, %721 : vector<16x128xf32>
    %732 = arith.subf %729, %725 : vector<16x128xf32>
    %733 = arith.addf %717, %730 : vector<16x128xf32>
    %734 = arith.addf %717, %731 : vector<16x128xf32>
    %735 = arith.addf %717, %730 : vector<16x128xf32>
    %736 = arith.addf %735, %732 : vector<16x128xf32>
    %737 = tpu.concatenate %717, %733, %734, %736 in 0 : vector<16x128xf32>, vector<16x128xf32>, vector<16x128xf32>, vector<16x128xf32> -> vector<64x128xf32>
    %738 = arith.truncf %737 : vector<64x128xf32> to vector<64x128xbf16>
    %c1_145 = arith.constant 1 : index
    %c0_146 = arith.constant 0 : index
    %c0_147 = arith.constant 0 : index
    %739 = vector.load %arg11[%c1_145, %c0_146, %c0_147] : memref<2x128x32xf32, #tpu.memory_space<vmem>>, vector<1x128x32xf32>
    %740 = vector.shape_cast %739 : vector<1x128x32xf32> to vector<128x32xf32>
    %741 = arith.truncf %740 : vector<128x32xf32> to vector<128x32xbf16>
    %cst_148 = arith.constant dense<0.000000e+00> : vector<64x32xf32>
    %742 = tpu.matmul %738, %741, %cst_148 {dimension_numbers = #tpu.dot_dimension_numbers<[1], [0], [0], [1], [0, 0, 1, 1], [], []>} : vector<64x128xbf16>, vector<128x32xbf16>, vector<64x32xf32> -> vector<64x32xf32>
    %c1_149 = arith.constant 1 : index
    %c0_150 = arith.constant 0 : index
    %743 = vector.load %arg12[%c1_149, %c0_150] : memref<2x32xf32, #tpu.memory_space<vmem>>, vector<1x32xf32>
    %744 = vector.shape_cast %743 : vector<1x32xf32> to vector<32xf32>
    %745 = vector.shape_cast %744 : vector<32xf32> to vector<1x32xf32>
    %746 = vector.broadcast %745 : vector<1x32xf32> to vector<64x32xf32>
    %747 = arith.addf %742, %746 : vector<64x32xf32>
    %cst_151 = arith.constant 0.000000e+00 : f32
    %748 = vector.broadcast %cst_151 : f32 to vector<16x32xf32>
    %cst_152 = arith.constant 0.000000e+00 : f32
    %749 = vector.broadcast %cst_152 : f32 to vector<16x32xf32>
    %750 = vector.extract_strided_slice %747 {offsets = [0, 0], sizes = [16, 32], strides = [1, 1]} : vector<64x32xf32> to vector<16x32xf32>
    %751 = arith.subf %750, %748 : vector<16x32xf32>
    %cst_153 = arith.constant 5.000000e-01 : f32
    %752 = vector.broadcast %cst_153 : f32 to vector<16x32xf32>
    %753 = arith.mulf %751, %752 : vector<16x32xf32>
    %754 = arith.addf %748, %753 : vector<16x32xf32>
    %cst_154 = arith.constant 1.000000e+00 : f32
    %755 = vector.broadcast %cst_154 : f32 to vector<16x32xf32>
    %756 = arith.cmpf oge, %754, %755 : vector<16x32xf32>
    %757 = arith.extui %756 : vector<16x32xi1> to vector<16x32xi32>
    %758 = arith.sitofp %757 : vector<16x32xi32> to vector<16x32xf32>
    %cst_155 = arith.constant 1.000000e+00 : f32
    %759 = vector.broadcast %cst_155 : f32 to vector<16x32xf32>
    %760 = arith.subf %759, %758 : vector<16x32xf32>
    %761 = arith.mulf %754, %760 : vector<16x32xf32>
    %762 = arith.addf %749, %758 : vector<16x32xf32>
    %763 = vector.extract_strided_slice %747 {offsets = [16, 0], sizes = [16, 32], strides = [1, 1]} : vector<64x32xf32> to vector<16x32xf32>
    %764 = arith.subf %763, %761 : vector<16x32xf32>
    %cst_156 = arith.constant 5.000000e-01 : f32
    %765 = vector.broadcast %cst_156 : f32 to vector<16x32xf32>
    %766 = arith.mulf %764, %765 : vector<16x32xf32>
    %767 = arith.addf %761, %766 : vector<16x32xf32>
    %cst_157 = arith.constant 1.000000e+00 : f32
    %768 = vector.broadcast %cst_157 : f32 to vector<16x32xf32>
    %769 = arith.cmpf oge, %767, %768 : vector<16x32xf32>
    %770 = arith.extui %769 : vector<16x32xi1> to vector<16x32xi32>
    %771 = arith.sitofp %770 : vector<16x32xi32> to vector<16x32xf32>
    %cst_158 = arith.constant 1.000000e+00 : f32
    %772 = vector.broadcast %cst_158 : f32 to vector<16x32xf32>
    %773 = arith.subf %772, %771 : vector<16x32xf32>
    %774 = arith.mulf %767, %773 : vector<16x32xf32>
    %775 = arith.addf %762, %771 : vector<16x32xf32>
    %776 = vector.extract_strided_slice %747 {offsets = [32, 0], sizes = [16, 32], strides = [1, 1]} : vector<64x32xf32> to vector<16x32xf32>
    %777 = arith.subf %776, %774 : vector<16x32xf32>
    %cst_159 = arith.constant 5.000000e-01 : f32
    %778 = vector.broadcast %cst_159 : f32 to vector<16x32xf32>
    %779 = arith.mulf %777, %778 : vector<16x32xf32>
    %780 = arith.addf %774, %779 : vector<16x32xf32>
    %cst_160 = arith.constant 1.000000e+00 : f32
    %781 = vector.broadcast %cst_160 : f32 to vector<16x32xf32>
    %782 = arith.cmpf oge, %780, %781 : vector<16x32xf32>
    %783 = arith.extui %782 : vector<16x32xi1> to vector<16x32xi32>
    %784 = arith.sitofp %783 : vector<16x32xi32> to vector<16x32xf32>
    %cst_161 = arith.constant 1.000000e+00 : f32
    %785 = vector.broadcast %cst_161 : f32 to vector<16x32xf32>
    %786 = arith.subf %785, %784 : vector<16x32xf32>
    %787 = arith.mulf %780, %786 : vector<16x32xf32>
    %788 = arith.addf %775, %784 : vector<16x32xf32>
    %789 = vector.extract_strided_slice %747 {offsets = [48, 0], sizes = [16, 32], strides = [1, 1]} : vector<64x32xf32> to vector<16x32xf32>
    %790 = arith.subf %789, %787 : vector<16x32xf32>
    %cst_162 = arith.constant 5.000000e-01 : f32
    %791 = vector.broadcast %cst_162 : f32 to vector<16x32xf32>
    %792 = arith.mulf %790, %791 : vector<16x32xf32>
    %793 = arith.addf %787, %792 : vector<16x32xf32>
    %cst_163 = arith.constant 1.000000e+00 : f32
    %794 = vector.broadcast %cst_163 : f32 to vector<16x32xf32>
    %795 = arith.cmpf oge, %793, %794 : vector<16x32xf32>
    %796 = arith.extui %795 : vector<16x32xi1> to vector<16x32xi32>
    %797 = arith.sitofp %796 : vector<16x32xi32> to vector<16x32xf32>
    %798 = arith.addf %788, %797 : vector<16x32xf32>
    %cst_164 = arith.constant 2.500000e-01 : f32
    %799 = vector.broadcast %cst_164 : f32 to vector<16x32xf32>
    %800 = arith.mulf %798, %799 : vector<16x32xf32>
    %801 = arith.addf %677, %800 : vector<16x32xf32>
    %c0_165 = arith.constant 0 : index
    %c0_166 = arith.constant 0 : index
    %802 = vector.load %arg13[%c0_165, %c0_166] : memref<32x128xf32, #tpu.memory_space<vmem>>, vector<32x128xf32>
    %cst_167 = arith.constant dense<0.000000e+00> : vector<16x128xf32>
    %803 = tpu.matmul %801, %802, %cst_167 {dimension_numbers = #tpu.dot_dimension_numbers<[1], [0], [0], [1], [0, 0, 1, 1], [], []>} : vector<16x32xf32>, vector<32x128xf32>, vector<16x128xf32> -> vector<16x128xf32>
    %c0_168 = arith.constant 0 : index
    %c0_169 = arith.constant 0 : index
    %804 = vector.load %arg14[%c0_168, %c0_169] : memref<1x128xf32, #tpu.memory_space<vmem>>, vector<1x128xf32>
    %805 = vector.shape_cast %804 : vector<1x128xf32> to vector<128xf32>
    %806 = vector.shape_cast %805 : vector<128xf32> to vector<1x128xf32>
    %807 = vector.broadcast %806 : vector<1x128xf32> to vector<16x128xf32>
    %808 = arith.addf %803, %807 : vector<16x128xf32>
    %c0_170 = arith.constant 0 : index
    %c0_171 = arith.constant 0 : index
    %809 = vector.load %arg15[%c0_170, %c0_171] : memref<16x128xf32, #tpu.memory_space<vmem>>, vector<16x128xf32>
    tpu.vector_store %arg15[%c0_170, %c0_171], %808 {strides = array<i32>} : memref<16x128xf32, #tpu.memory_space<vmem>>, vector<16x128xf32>,
    return
  }
  func.func @transform_0(%arg0: i32) -> (i32, i32) {
    %c0_i32 = arith.constant 0 : i32
    %c0_i32_0 = arith.constant 0 : i32
    return %arg0, %c0_i32 : i32, i32
  }
  func.func @transform_1(%arg0: i32) -> (i32, i32) {
    %c0_i32 = arith.constant 0 : i32
    %c0_i32_0 = arith.constant 0 : i32
    %c0_i32_1 = arith.constant 0 : i32
    return %c0_i32, %c0_i32_0 : i32, i32
  }
  func.func @transform_2(%arg0: i32) -> (i32, i32) {
    %c0_i32 = arith.constant 0 : i32
    %c0_i32_0 = arith.constant 0 : i32
    %c0_i32_1 = arith.constant 0 : i32
    return %c0_i32, %c0_i32_0 : i32, i32
  }
  func.func @transform_3(%arg0: i32) -> (i32, i32) {
    %c0_i32 = arith.constant 0 : i32
    %c0_i32_0 = arith.constant 0 : i32
    %c0_i32_1 = arith.constant 0 : i32
    return %c0_i32, %c0_i32_0 : i32, i32
  }
  func.func @transform_4(%arg0: i32) -> (i32, i32) {
    %c0_i32 = arith.constant 0 : i32
    %c0_i32_0 = arith.constant 0 : i32
    %c0_i32_1 = arith.constant 0 : i32
    return %c0_i32, %c0_i32_0 : i32, i32
  }
  func.func @transform_5(%arg0: i32) -> (i32, i32, i32) {
    %c0_i32 = arith.constant 0 : i32
    %c0_i32_0 = arith.constant 0 : i32
    %c0_i32_1 = arith.constant 0 : i32
    %c0_i32_2 = arith.constant 0 : i32
    return %c0_i32, %c0_i32_0, %c0_i32_1 : i32, i32, i32
  }
  func.func @transform_6(%arg0: i32) -> (i32, i32) {
    %c0_i32 = arith.constant 0 : i32
    %c0_i32_0 = arith.constant 0 : i32
    %c0_i32_1 = arith.constant 0 : i32
    return %c0_i32, %c0_i32_0 : i32, i32
  }
  func.func @transform_7(%arg0: i32) -> (i32, i32) {
    %c0_i32 = arith.constant 0 : i32
    %c0_i32_0 = arith.constant 0 : i32
    %c0_i32_1 = arith.constant 0 : i32
    return %c0_i32, %c0_i32_0 : i32, i32
  }
  func.func @transform_8(%arg0: i32) -> (i32, i32, i32) {
    %c0_i32 = arith.constant 0 : i32
    %c0_i32_0 = arith.constant 0 : i32
    %c0_i32_1 = arith.constant 0 : i32
    %c0_i32_2 = arith.constant 0 : i32
    return %c0_i32, %c0_i32_0, %c0_i32_1 : i32, i32, i32
  }
  func.func @transform_9(%arg0: i32) -> (i32, i32) {
    %c0_i32 = arith.constant 0 : i32
    %c0_i32_0 = arith.constant 0 : i32
    %c0_i32_1 = arith.constant 0 : i32
    return %c0_i32, %c0_i32_0 : i32, i32
  }
  func.func @transform_10(%arg0: i32) -> (i32, i32, i32) {
    %c0_i32 = arith.constant 0 : i32
    %c0_i32_0 = arith.constant 0 : i32
    %c0_i32_1 = arith.constant 0 : i32
    %c0_i32_2 = arith.constant 0 : i32
    return %c0_i32, %c0_i32_0, %c0_i32_1 : i32, i32, i32
  }
  func.func @transform_11(%arg0: i32) -> (i32, i32) {
    %c0_i32 = arith.constant 0 : i32
    %c0_i32_0 = arith.constant 0 : i32
    %c0_i32_1 = arith.constant 0 : i32
    return %c0_i32, %c0_i32_0 : i32, i32
  }
  func.func @transform_12(%arg0: i32) -> (i32, i32) {
    %c0_i32 = arith.constant 0 : i32
    %c0_i32_0 = arith.constant 0 : i32
    %c0_i32_1 = arith.constant 0 : i32
    return %c0_i32, %c0_i32_0 : i32, i32
  }
  func.func @transform_13(%arg0: i32) -> (i32, i32) {
    %c0_i32 = arith.constant 0 : i32
    %c0_i32_0 = arith.constant 0 : i32
    %c0_i32_1 = arith.constant 0 : i32
    return %c0_i32, %c0_i32_0 : i32, i32
  }
  func.func @transform_14(%arg0: i32) -> (i32, i32) {
    %c0_i32 = arith.constant 0 : i32
    %c0_i32_0 = arith.constant 0 : i32
    return %arg0, %c0_i32 : i32, i32
  }
}

</mosaic_0001>

<llo_original>
// kernel: forward.1
$region0: #{forward.1}
  #allocation0 [shape = 'u32[]', space=smem, size = 0x4, offset = 0x4, fixed_abs, tag = 'smem constant byte address 0x4 - core index']
  #allocation1 [shape = 'u32[72,128]{1,0:T(1,128)}', space=vmem, size = 0x9000, scoped, tag = 'internal scratch']
  %s0 = inlined_call_operand.vmem [shape: f32[16,32], index: 0, kind: input, shape index: {}]
  %s1 = inlined_call_operand.vmem [shape: f32[1,32], index: 1, kind: input, shape index: {}]
  %s2 = inlined_call_operand.vmem [shape: f32[1,32], index: 2, kind: input, shape index: {}]
  %s3 = inlined_call_operand.vmem [shape: f32[2,32], index: 3, kind: input, shape index: {}]
  %s4 = inlined_call_operand.vmem [shape: f32[2,32], index: 4, kind: input, shape index: {}]
  %s5 = inlined_call_operand.vmem [shape: f32[2,32,96], index: 5, kind: input, shape index: {}]
  %s6 = inlined_call_operand.vmem [shape: f32[2,32], index: 6, kind: input, shape index: {}]
  %s7 = inlined_call_operand.vmem [shape: f32[2,32], index: 7, kind: input, shape index: {}]
  %s8 = inlined_call_operand.vmem [shape: f32[2,32,128], index: 8, kind: input, shape index: {}]
  %s9 = inlined_call_operand.vmem [shape: f32[2,128], index: 9, kind: input, shape index: {}]
  %s10 = inlined_call_operand.vmem [shape: f32[2,128,32], index: 10, kind: input, shape index: {}]
  %s11 = inlined_call_operand.vmem [shape: f32[2,32], index: 11, kind: input, shape index: {}]
  %s12 = inlined_call_operand.vmem [shape: f32[32,128], index: 12, kind: input, shape index: {}]
  %s13 = inlined_call_operand.vmem [shape: f32[1,128], index: 13, kind: input, shape index: {}]
  %s14 = inlined_call_operand.vmem [shape: f32[16,128], index: 14, kind: output, shape index: {}]
  %s15 = sld [smem:[#allocation0]]
  $region66: #{forward.1} parent=0
    _
  %s17 = ssub.s32 1, %s15
  %s18 = scalar_select 0, %s17, %s15
  // Predicated region
  $region2: #{forward.1} parent=0 // pred_check
    _
  $region3: #{forward.1} parent=0 // pred_check_branch
    %20 = sbr.rel (0) target = $region5
  $region4: #{forward.1} parent=0 // pred_region
    _
  $region5: #{forward.1} parent=0 // pred_fallthru
    _
  // Predicated region
  $region6: #{forward.1} parent=0 // pred_check
    _
  $region7: #{forward.1} parent=0 // pred_check_branch
    %22 = sbr.rel (0) target = $region9
  $region8: #{forward.1} parent=0 // pred_region
    _
  $region9: #{forward.1} parent=0 // pred_fallthru
    _
  // Predicated region
  $region10: #{forward.1} parent=0 // pred_check
    _
  $region11: #{forward.1} parent=0 // pred_check_branch
    %24 = sbr.rel (0) target = $region13
  $region12: #{forward.1} parent=0 // pred_region
    _
  $region13: #{forward.1} parent=0 // pred_fallthru
    _
  // Predicated region
  $region14: #{forward.1} parent=0 // pred_check
    _
  $region15: #{forward.1} parent=0 // pred_check_branch
    %26 = sbr.rel (0) target = $region17
  $region16: #{forward.1} parent=0 // pred_region
    _
  $region17: #{forward.1} parent=0 // pred_fallthru
    _
  // Predicated region
  $region18: #{forward.1} parent=0 // pred_check
    _
  $region19: #{forward.1} parent=0 // pred_check_branch
    %28 = sbr.rel (0) target = $region21
  $region20: #{forward.1} parent=0 // pred_region
    _
  $region21: #{forward.1} parent=0 // pred_fallthru
    _
  // Predicated region
  $region22: #{forward.1} parent=0 // pred_check
    _
  $region23: #{forward.1} parent=0 // pred_check_branch
    %30 = sbr.rel (0) target = $region25
  $region24: #{forward.1} parent=0 // pred_region
    _
  $region25: #{forward.1} parent=0 // pred_fallthru
    _
  // Predicated region
  $region26: #{forward.1} parent=0 // pred_check
    _
  $region27: #{forward.1} parent=0 // pred_check_branch
    %32 = sbr.rel (0) target = $region29
  $region28: #{forward.1} parent=0 // pred_region
    _
  $region29: #{forward.1} parent=0 // pred_fallthru
    _
  // Predicated region
  $region30: #{forward.1} parent=0 // pred_check
    _
  $region31: #{forward.1} parent=0 // pred_check_branch
    %34 = sbr.rel (0) target = $region33
  $region32: #{forward.1} parent=0 // pred_region
    _
  $region33: #{forward.1} parent=0 // pred_fallthru
    _
  // Predicated region
  $region34: #{forward.1} parent=0 // pred_check
    _
  $region35: #{forward.1} parent=0 // pred_check_branch
    %36 = sbr.rel (0) target = $region37
  $region36: #{forward.1} parent=0 // pred_region
    _
  $region37: #{forward.1} parent=0 // pred_fallthru
    _
  // Predicated region
  $region38: #{forward.1} parent=0 // pred_check
    _
  $region39: #{forward.1} parent=0 // pred_check_branch
    %38 = sbr.rel (0) target = $region41
  $region40: #{forward.1} parent=0 // pred_region
    _
  $region41: #{forward.1} parent=0 // pred_fallthru
    _
  // Predicated region
  $region42: #{forward.1} parent=0 // pred_check
    _
  $region43: #{forward.1} parent=0 // pred_check_branch
    %40 = sbr.rel (0) target = $region45
  $region44: #{forward.1} parent=0 // pred_region
    _
  $region45: #{forward.1} parent=0 // pred_fallthru
    _
  // Predicated region
  $region46: #{forward.1} parent=0 // pred_check
    _
  $region47: #{forward.1} parent=0 // pred_check_branch
    %42 = sbr.rel (0) target = $region49
  $region48: #{forward.1} parent=0 // pred_region
    _
  $region49: #{forward.1} parent=0 // pred_fallthru
    _
  // Predicated region
  $region50: #{forward.1} parent=0 // pred_check
    _
  $region51: #{forward.1} parent=0 // pred_check_branch
    %44 = sbr.rel (0) target = $region53
  $region52: #{forward.1} parent=0 // pred_region
    _
  $region53: #{forward.1} parent=0 // pred_fallthru
    _
  // Predicated region
  $region54: #{forward.1} parent=0 // pred_check
    _
  $region55: #{forward.1} parent=0 // pred_check_branch
    %46 = sbr.rel (0) target = $region57
  $region56: #{forward.1} parent=0 // pred_region
    _
  $region57: #{forward.1} parent=0 // pred_fallthru
    _
  %v48 = vlaneseq
  %v49 = vand.u32 %v48, 127
  %vm50 = vcmp.ge.s32.totalorder %v49, 0
  %vm51 = vcmp.lt.s32.totalorder %v49, 8
  %vm52 = vmand %vm50, %vm51
  %v53 = vsel %vm52, 1, 0
  %v54 = vcvt.s32.f32 %v53
  %vm55 = vcmp.ge.s32.totalorder %v49, 8
  %vm56 = vcmp.lt.s32.totalorder %v49, 16
  %vm57 = vmand %vm55, %vm56
  %v58 = vsel %vm57, 1, 0
  %v59 = vcvt.s32.f32 %v58
  %vm60 = vcmp.ge.s32.totalorder %v49, 16
  %vm61 = vcmp.lt.s32.totalorder %v49, 24
  %vm62 = vmand %vm60, %vm61
  %v63 = vsel %vm62, 1, 0
  %v64 = vcvt.s32.f32 %v63
  %vm65 = vcmp.ge.s32.totalorder %v49, 24
  %vm66 = vcmp.lt.s32.totalorder %v49, 32
  %vm67 = vmand %vm65, %vm66
  %v68 = vsel %vm67, 1, 0
  %v69 = vcvt.s32.f32 %v68
  %v70 = vld [vmem:[%s0] sm:$0xff]
  %v71 = vld [vmem:[%s0 + $0x8] sm:$0xff]
  %v72 = vld [vmem:[%s1] sm:$0x1]
  %v73 = vld [vmem:[%s2] sm:$0x1]
  %vm74 = vcmask 261120
  %v75 = vsel %vm74, %v70, 0.0
  %76 = vadd.xlane.f32.xlu0 %v75
  %v77 = vpop.xlane.xlu0 %76
  %v78 = vsel %vm74, %v71, 0.0
  %79 = vadd.xlane.f32.xlu0 %v78
  %v80 = vpop.xlane.xlu0 %79
  %v81 = vrcp.pop 32.0
  %v82 = vmul.f32 32.0, %v81
  %v83 = vsub.f32 1.0, %v82
  %v84 = vmul.f32 %v81, %v83
  %v85 = vadd.f32 %v81, %v84
  %vm86 = vweird.f32 %v81
  %v87 = vsel %vm86, %v81, %v85
  %v88 = vmul.f32 %v77, %v87
  %v89 = vmul.f32 %v80, %v87
  %v90 = vsub.f32 %v70, %v88
  %v91 = vsub.f32 %v71, %v89
  %v92 = vmul.f32 %v90, %v90
  %v93 = vmul.f32 %v91, %v91
  %v94 = vsel %vm74, %v92, 0.0
  %95 = vadd.xlane.f32.xlu0 %v94
  %v96 = vpop.xlane.xlu0 %95
  %v97 = vsel %vm74, %v93, 0.0
  %98 = vadd.xlane.f32.xlu0 %v97
  %v99 = vpop.xlane.xlu0 %98
  %v100 = vmul.f32 %v96, %v87
  %v101 = vmul.f32 %v99, %v87
  %v102 = vadd.f32 %v100, 1e-05
  %v103 = vadd.f32 %v101, 1e-05
  %v104 = vrsqrt.pop %v102
  %v105 = vmul.f32 %v104, %v102
  %v106 = vmul.f32 %v105, %v104
  %v107 = vmul.f32 0.5, %v106
  %v108 = vsub.f32 1.5, %v107
  %v109 = vmul.f32 %v104, %v108
  %vm110 = vweird.f32 %v102
  %vm111 = vweird.f32 %v104
  %vm112 = vmor %vm110, %vm111
  %v113 = vsel %vm112, %v104, %v109
  %v114 = vrsqrt.pop %v103
  %v115 = vmul.f32 %v114, %v103
  %v116 = vmul.f32 %v115, %v114
  %v117 = vmul.f32 0.5, %v116
  %v118 = vsub.f32 1.5, %v117
  %v119 = vmul.f32 %v114, %v118
  %vm120 = vweird.f32 %v103
  %vm121 = vweird.f32 %v114
  %vm122 = vmor %vm120, %vm121
  %v123 = vsel %vm122, %v114, %v119
  %v124 = vmul.f32 %v90, %v113
  %v125 = vmul.f32 %v91, %v123
  %v127 = vperm.slane %v72, 0
  %v129 = vmul.f32 %v124, %v127
  %v130 = vmul.f32 %v125, %v127
  %v132 = vperm.slane %v73, 0
  %v134 = vadd.f32 %v129, %v132
  %v135 = vadd.f32 %v130, %v132
  %v136 = vld [vmem:[%s3] sm:$0x1]
  %v137 = vld [vmem:[%s4] sm:$0x1]
  %v138 = vsel %vm74, %v134, 0.0
  %139 = vadd.xlane.f32.xlu0 %v138
  %v140 = vpop.xlane.xlu0 %139
  %v141 = vsel %vm74, %v135, 0.0
  %142 = vadd.xlane.f32.xlu0 %v141
  %v143 = vpop.xlane.xlu0 %142
  %v144 = vmul.f32 %v140, %v87
  %v145 = vmul.f32 %v143, %v87
  %v146 = vsub.f32 %v134, %v144
  %v147 = vsub.f32 %v135, %v145
  %v148 = vmul.f32 %v146, %v146
  %v149 = vmul.f32 %v147, %v147
  %v150 = vsel %vm74, %v148, 0.0
  %151 = vadd.xlane.f32.xlu0 %v150
  %v152 = vpop.xlane.xlu0 %151
  %v153 = vsel %vm74, %v149, 0.0
  %154 = vadd.xlane.f32.xlu0 %v153
  %v155 = vpop.xlane.xlu0 %154
  %v156 = vmul.f32 %v152, %v87
  %v157 = vmul.f32 %v155, %v87
  %v158 = vadd.f32 %v156, 1e-05
  %v159 = vadd.f32 %v157, 1e-05
  %v160 = vrsqrt.pop %v158
  %v161 = vmul.f32 %v160, %v158
  %v162 = vmul.f32 %v161, %v160
  %v163 = vmul.f32 0.5, %v162
  %v164 = vsub.f32 1.5, %v163
  %v165 = vmul.f32 %v160, %v164
  %vm166 = vweird.f32 %v158
  %vm167 = vweird.f32 %v160
  %vm168 = vmor %vm166, %vm167
  %v169 = vsel %vm168, %v160, %v165
  %v170 = vrsqrt.pop %v159
  %v171 = vmul.f32 %v170, %v159
  %v172 = vmul.f32 %v171, %v170
  %v173 = vmul.f32 0.5, %v172
  %v174 = vsub.f32 1.5, %v173
  %v175 = vmul.f32 %v170, %v174
  %vm176 = vweird.f32 %v159
  %vm177 = vweird.f32 %v170
  %vm178 = vmor %vm176, %vm177
  %v179 = vsel %vm178, %v170, %v175
  %v180 = vmul.f32 %v146, %v169
  %v181 = vmul.f32 %v147, %v179
  %v182 = vperm.slane %v136, 0
  %v183 = vmul.f32 %v180, %v182
  %v184 = vmul.f32 %v181, %v182
  %v185 = vperm.slane %v137, 0
  %v186 = vadd.f32 %v183, %v185
  %v187 = vadd.f32 %v184, %v185
  %v188 = vld [vmem:[%s5] sm:$0xff]
  %v189 = vld [vmem:[%s5 + $0x8] sm:$0xff]
  %v190 = vld [vmem:[%s5 + $0x10] sm:$0xff]
  %v191 = vld [vmem:[%s5 + $0x18] sm:$0xff]
  %v193 = vsel %vm74, %v186, 0
  %v196 = vsel %vm74, %v187, 0
  %198 = vmatpush.msra.mxu0 0.0
  %199 = vmatpush.msra.mxu0 0.0
  %200 = vmatpush.msra.mxu0 0.0
  %201 = vmatpush.msra.mxu0 0.0
  %202 = vmatpush.msra.mxu0 0.0
  %203 = vmatpush.msra.mxu0 0.0
  %204 = vmatpush.msra.mxu0 0.0
  %205 = vmatpush.msra.mxu0 0.0
  %206 = vmatpush.msra.mxu0 0.0
  %207 = vmatpush.msra.mxu0 0.0
  %208 = vmatpush.msra.mxu0 0.0
  %209 = vmatpush.msra.mxu0 0.0
  %210 = vmatpush.msra.mxu0 %v191
  %211 = vmatpush.msra.mxu0 %v190
  %212 = vmatpush.msra.mxu0 %v189
  %213 = vmatpush.msra.mxu0 %v188
  %214 = vmatmul.f32.gmra.mxu0 %v193
  %v215 = vpop.f32.mrf.mxu0
  %v216 = vadd.f32 0.0, %v215
  %217 = vmatmul.f32.gmra.mxu0 %v196
  %v218 = vpop.f32.mrf.mxu0
  %v219 = vadd.f32 0.0, %v218
  %220 = vdwg.mxu0
  %vm221 = vcmp.ge.f32.partialorder %v216, 2.0
  %vm222 = vcmp.ge.f32.partialorder %v219, 2.0
  %v223 = vsel %vm221, 1, 0
  %v224 = vsel %vm222, 1, 0
  %v225 = vcvt.s32.f32 %v223
  %v226 = vcvt.s32.f32 %v224
  %vm227 = vcmp.ge.f32.partialorder %v216, 1.3333334
  %vm228 = vcmp.ge.f32.partialorder %v219, 1.3333334
  %v229 = vsel %vm227, 1, 0
  %v230 = vsel %vm228, 1, 0
  %v231 = vcvt.s32.f32 %v229
  %v232 = vcvt.s32.f32 %v230
  %vm233 = vcmp.ge.f32.partialorder %v216, 1.1428572
  %vm234 = vcmp.ge.f32.partialorder %v219, 1.1428572
  %v235 = vsel %vm233, 1, 0
  %v236 = vsel %vm234, 1, 0
  %v237 = vcvt.s32.f32 %v235
  %v238 = vcvt.s32.f32 %v236
  %vm239 = vcmp.ge.f32.partialorder %v216, 1.0666667
  %vm240 = vcmp.ge.f32.partialorder %v219, 1.0666667
  %v241 = vsel %vm239, 1, 0
  %v242 = vsel %vm240, 1, 0
  %v243 = vcvt.s32.f32 %v241
  %v244 = vcvt.s32.f32 %v242
  %v245 = vsub.f32 %v231, %v225
  %v246 = vsub.f32 %v232, %v226
  %v247 = vsub.f32 %v237, %v231
  %v248 = vsub.f32 %v238, %v232
  %v249 = vsub.f32 %v243, %v237
  %v250 = vsub.f32 %v244, %v238
  %v251 = vadd.f32 %v225, %v245
  %v252 = vadd.f32 %v226, %v246
  %v253 = vadd.f32 %v225, %v247
  %v254 = vadd.f32 %v226, %v248
  %v255 = vadd.f32 %v251, %v249
  %v256 = vadd.f32 %v252, %v250
  %258 = vrot.lane.b32.xlu0 %v54, 32
  %v259 = vpop.permute.xlu0 %258
  %v261 = vmul.f32 %v225, %v259
  %v262 = vmul.f32 %v226, %v259
  %263 = vrot.lane.b32.xlu0 %v54, 64
  %v264 = vpop.permute.xlu0 %263
  %v266 = vmul.f32 %v225, %v264
  %v267 = vmul.f32 %v226, %v264
  %269 = vrot.lane.b32.xlu0 %v59, 32
  %v270 = vpop.permute.xlu0 %269
  %v272 = vmul.f32 %v225, %v270
  %v273 = vmul.f32 %v226, %v270
  %274 = vrot.lane.b32.xlu0 %v59, 64
  %v275 = vpop.permute.xlu0 %274
  %v277 = vmul.f32 %v225, %v275
  %v278 = vmul.f32 %v226, %v275
  %280 = vrot.lane.b32.xlu0 %v64, 32
  %v281 = vpop.permute.xlu0 %280
  %v283 = vmul.f32 %v225, %v281
  %v284 = vmul.f32 %v226, %v281
  %285 = vrot.lane.b32.xlu0 %v64, 64
  %v286 = vpop.permute.xlu0 %285
  %v288 = vmul.f32 %v225, %v286
  %v289 = vmul.f32 %v226, %v286
  %291 = vrot.lane.b32.xlu0 %v69, 32
  %v292 = vpop.permute.xlu0 %291
  %v294 = vmul.f32 %v225, %v292
  %v295 = vmul.f32 %v226, %v292
  %296 = vrot.lane.b32.xlu0 %v69, 64
  %v297 = vpop.permute.xlu0 %296
  %v299 = vmul.f32 %v225, %v297
  %v300 = vmul.f32 %v226, %v297
  %v301 = vmul.f32 %v251, %v259
  %v302 = vmul.f32 %v252, %v259
  %v303 = vmul.f32 %v251, %v264
  %v304 = vmul.f32 %v252, %v264
  %v305 = vmul.f32 %v251, %v270
  %v306 = vmul.f32 %v252, %v270
  %v307 = vmul.f32 %v251, %v275
  %v308 = vmul.f32 %v252, %v275
  %v309 = vmul.f32 %v251, %v281
  %v310 = vmul.f32 %v252, %v281
  %v311 = vmul.f32 %v251, %v286
  %v312 = vmul.f32 %v252, %v286
  %v313 = vmul.f32 %v251, %v292
  %v314 = vmul.f32 %v252, %v292
  %v315 = vmul.f32 %v251, %v297
  %v316 = vmul.f32 %v252, %v297
  %v317 = vmul.f32 %v253, %v259
  %v318 = vmul.f32 %v254, %v259
  %v319 = vmul.f32 %v253, %v264
  %v320 = vmul.f32 %v254, %v264
  %v321 = vmul.f32 %v253, %v270
  %v322 = vmul.f32 %v254, %v270
  %v323 = vmul.f32 %v253, %v275
  %v324 = vmul.f32 %v254, %v275
  %v325 = vmul.f32 %v253, %v281
  %v326 = vmul.f32 %v254, %v281
  %v327 = vmul.f32 %v253, %v286
  %v328 = vmul.f32 %v254, %v286
  %v329 = vmul.f32 %v253, %v292
  %v330 = vmul.f32 %v254, %v292
  %v331 = vmul.f32 %v253, %v297
  %v332 = vmul.f32 %v254, %v297
  %v333 = vmul.f32 %v255, %v259
  %v334 = vmul.f32 %v256, %v259
  %v335 = vmul.f32 %v255, %v264
  %v336 = vmul.f32 %v256, %v264
  %v337 = vmul.f32 %v255, %v270
  %v338 = vmul.f32 %v256, %v270
  %v339 = vmul.f32 %v255, %v275
  %v340 = vmul.f32 %v256, %v275
  %v341 = vmul.f32 %v255, %v281
  %v342 = vmul.f32 %v256, %v281
  %v343 = vmul.f32 %v255, %v286
  %v344 = vmul.f32 %v256, %v286
  %v345 = vmul.f32 %v255, %v292
  %v346 = vmul.f32 %v256, %v292
  %v347 = vmul.f32 %v255, %v297
  %v348 = vmul.f32 %v256, %v297
  %v349 = vpack.c.bf16 %v225, %v225
  %v350 = vpack.c.bf16 %v226, %v226
  %v351 = vpack.c.bf16 %v251, %v251
  %v352 = vpack.c.bf16 %v252, %v252
  %v353 = vpack.c.bf16 %v253, %v253
  %v354 = vpack.c.bf16 %v254, %v254
  %v355 = vpack.c.bf16 %v255, %v255
  %v356 = vpack.c.bf16 %v256, %v256
  %v357 = vpack.c.bf16 %v261, %v261
  %v358 = vpack.c.bf16 %v262, %v262
  %v359 = vpack.c.bf16 %v272, %v272
  %v360 = vpack.c.bf16 %v273, %v273
  %v361 = vpack.c.bf16 %v283, %v283
  %v362 = vpack.c.bf16 %v284, %v284
  %v363 = vpack.c.bf16 %v294, %v294
  %v364 = vpack.c.bf16 %v295, %v295
  %v365 = vpack.c.bf16 %v301, %v301
  %v366 = vpack.c.bf16 %v302, %v302
  %v367 = vpack.c.bf16 %v305, %v305
  %v368 = vpack.c.bf16 %v306, %v306
  %v369 = vpack.c.bf16 %v309, %v309
  %v370 = vpack.c.bf16 %v310, %v310
  %v371 = vpack.c.bf16 %v313, %v313
  %v372 = vpack.c.bf16 %v314, %v314
  %v373 = vpack.c.bf16 %v317, %v317
  %v374 = vpack.c.bf16 %v318, %v318
  %v375 = vpack.c.bf16 %v321, %v321
  %v376 = vpack.c.bf16 %v322, %v322
  %v377 = vpack.c.bf16 %v325, %v325
  %v378 = vpack.c.bf16 %v326, %v326
  %v379 = vpack.c.bf16 %v329, %v329
  %v380 = vpack.c.bf16 %v330, %v330
  %v381 = vpack.c.bf16 %v333, %v333
  %v382 = vpack.c.bf16 %v334, %v334
  %v383 = vpack.c.bf16 %v337, %v337
  %v384 = vpack.c.bf16 %v338, %v338
  %v385 = vpack.c.bf16 %v341, %v341
  %v386 = vpack.c.bf16 %v342, %v342
  %v387 = vpack.c.bf16 %v345, %v345
  %v388 = vpack.c.bf16 %v346, %v346
  %v389 = vpack.c.bf16 %v266, %v266
  %v390 = vpack.c.bf16 %v267, %v267
  %v391 = vpack.c.bf16 %v277, %v277
  %v392 = vpack.c.bf16 %v278, %v278
  %v393 = vpack.c.bf16 %v288, %v288
  %v394 = vpack.c.bf16 %v289, %v289
  %v395 = vpack.c.bf16 %v299, %v299
  %v396 = vpack.c.bf16 %v300, %v300
  %v397 = vpack.c.bf16 %v303, %v303
  %v398 = vpack.c.bf16 %v304, %v304
  %v399 = vpack.c.bf16 %v307, %v307
  %v400 = vpack.c.bf16 %v308, %v308
  %v401 = vpack.c.bf16 %v311, %v311
  %v402 = vpack.c.bf16 %v312, %v312
  %v403 = vpack.c.bf16 %v315, %v315
  %v404 = vpack.c.bf16 %v316, %v316
  %v405 = vpack.c.bf16 %v319, %v319
  %v406 = vpack.c.bf16 %v320, %v320
  %v407 = vpack.c.bf16 %v323, %v323
  %v408 = vpack.c.bf16 %v324, %v324
  %v409 = vpack.c.bf16 %v327, %v327
  %v410 = vpack.c.bf16 %v328, %v328
  %v411 = vpack.c.bf16 %v331, %v331
  %v412 = vpack.c.bf16 %v332, %v332
  %v413 = vpack.c.bf16 %v335, %v335
  %v414 = vpack.c.bf16 %v336, %v336
  %v415 = vpack.c.bf16 %v339, %v339
  %v416 = vpack.c.bf16 %v340, %v340
  %v417 = vpack.c.bf16 %v343, %v343
  %v418 = vpack.c.bf16 %v344, %v344
  %v419 = vpack.c.bf16 %v347, %v347
  %v420 = vpack.c.bf16 %v348, %v348
  %v422 = vunpack.c.l.b16 %v357
  %v423 = vpack.c.b16 %v422, %v422
  %424 = vrot.lane.b32.xlu0 %v423, 96
  %v425 = vpop.permute.xlu0 %424
  %v427 = vsel %vm74, %v349, 0
  %v430 = vsel %vm74, %v425, 0
  %432 = vmatpush.bf16.xpose.msra.mxu0 0
  %433 = vmatpush.bf16.xpose.msra.mxu0 0
  %434 = vmatpush.bf16.xpose.msra.mxu0 0
  %435 = vmatpush.bf16.xpose.msra.mxu0 0
  %436 = vmatpush.bf16.xpose.msra.mxu0 0
  %437 = vmatpush.bf16.xpose.msra.mxu0 0
  %438 = vmatpush.bf16.xpose.msra.mxu0 0
  %439 = vmatpush.bf16.xpose.msra.mxu0 %v430
  %440 = vmatmul.bf16.gmra.mxu0 %v427
  %v441 = vpop.f32.mrf.mxu0
  %v442 = vadd.f32 0.0, %v441
  %v443 = vpop.f32.mrf.mxu0
  %444 = vdwg.mxu0
  %v446 = vunpack.c.l.b16 %v358
  %v447 = vpack.c.b16 %v446, %v446
  %448 = vrot.lane.b32.xlu0 %v447, 96
  %v449 = vpop.permute.xlu0 %448
  %v451 = vsel %vm74, %v350, 0
  %v454 = vsel %vm74, %v449, 0
  %456 = vmatpush.bf16.xpose.msra.mxu0 0
  %457 = vmatpush.bf16.xpose.msra.mxu0 0
  %458 = vmatpush.bf16.xpose.msra.mxu0 0
  %459 = vmatpush.bf16.xpose.msra.mxu0 0
  %460 = vmatpush.bf16.xpose.msra.mxu0 0
  %461 = vmatpush.bf16.xpose.msra.mxu0 0
  %462 = vmatpush.bf16.xpose.msra.mxu0 0
  %463 = vmatpush.bf16.xpose.msra.mxu0 %v454
  %464 = vmatmul.bf16.gmra.mxu0 %v451
  %v465 = vpop.f32.mrf.mxu0
  %v466 = vadd.f32 0.0, %v465
  %v467 = vpop.f32.mrf.mxu0
  %468 = vdwg.mxu0
  %v470 = vunpack.c.l.b16 %v359
  %v471 = vpack.c.b16 %v470, %v470
  %472 = vrot.lane.b32.xlu0 %v471, 96
  %v473 = vpop.permute.xlu0 %472
  %v475 = vsel %vm74, %v473, 0
  %477 = vmatpush.bf16.xpose.msra.mxu0 0
  %478 = vmatpush.bf16.xpose.msra.mxu0 0
  %479 = vmatpush.bf16.xpose.msra.mxu0 0
  %480 = vmatpush.bf16.xpose.msra.mxu0 0
  %481 = vmatpush.bf16.xpose.msra.mxu0 0
  %482 = vmatpush.bf16.xpose.msra.mxu0 0
  %483 = vmatpush.bf16.xpose.msra.mxu0 0
  %484 = vmatpush.bf16.xpose.msra.mxu0 %v475
  %485 = vmatmul.bf16.gmra.mxu0 %v427
  %v486 = vpop.f32.mrf.mxu0
  %v487 = vadd.f32 0.0, %v486
  %v488 = vpop.f32.mrf.mxu0
  %489 = vdwg.mxu0
  %v491 = vunpack.c.l.b16 %v360
  %v492 = vpack.c.b16 %v491, %v491
  %493 = vrot.lane.b32.xlu0 %v492, 96
  %v494 = vpop.permute.xlu0 %493
  %v496 = vsel %vm74, %v494, 0
  %498 = vmatpush.bf16.xpose.msra.mxu0 0
  %499 = vmatpush.bf16.xpose.msra.mxu0 0
  %500 = vmatpush.bf16.xpose.msra.mxu0 0
  %501 = vmatpush.bf16.xpose.msra.mxu0 0
  %502 = vmatpush.bf16.xpose.msra.mxu0 0
  %503 = vmatpush.bf16.xpose.msra.mxu0 0
  %504 = vmatpush.bf16.xpose.msra.mxu0 0
  %505 = vmatpush.bf16.xpose.msra.mxu0 %v496
  %506 = vmatmul.bf16.gmra.mxu0 %v451
  %v507 = vpop.f32.mrf.mxu0
  %v508 = vadd.f32 0.0, %v507
  %v509 = vpop.f32.mrf.mxu0
  %510 = vdwg.mxu0
  %v512 = vunpack.c.l.b16 %v361
  %v513 = vpack.c.b16 %v512, %v512
  %514 = vrot.lane.b32.xlu0 %v513, 96
  %v515 = vpop.permute.xlu0 %514
  %v517 = vsel %vm74, %v515, 0
  %519 = vmatpush.bf16.xpose.msra.mxu0 0
  %520 = vmatpush.bf16.xpose.msra.mxu0 0
  %521 = vmatpush.bf16.xpose.msra.mxu0 0
  %522 = vmatpush.bf16.xpose.msra.mxu0 0
  %523 = vmatpush.bf16.xpose.msra.mxu0 0
  %524 = vmatpush.bf16.xpose.msra.mxu0 0
  %525 = vmatpush.bf16.xpose.msra.mxu0 0
  %526 = vmatpush.bf16.xpose.msra.mxu0 %v517
  %527 = vmatmul.bf16.gmra.mxu0 %v427
  %v528 = vpop.f32.mrf.mxu0
  %v529 = vadd.f32 0.0, %v528
  %v530 = vpop.f32.mrf.mxu0
  %531 = vdwg.mxu0
  %v533 = vunpack.c.l.b16 %v362
  %v534 = vpack.c.b16 %v533, %v533
  %535 = vrot.lane.b32.xlu0 %v534, 96
  %v536 = vpop.permute.xlu0 %535
  %v538 = vsel %vm74, %v536, 0
  %540 = vmatpush.bf16.xpose.msra.mxu0 0
  %541 = vmatpush.bf16.xpose.msra.mxu0 0
  %542 = vmatpush.bf16.xpose.msra.mxu0 0
  %543 = vmatpush.bf16.xpose.msra.mxu0 0
  %544 = vmatpush.bf16.xpose.msra.mxu0 0
  %545 = vmatpush.bf16.xpose.msra.mxu0 0
  %546 = vmatpush.bf16.xpose.msra.mxu0 0
  %547 = vmatpush.bf16.xpose.msra.mxu0 %v538
  %548 = vmatmul.bf16.gmra.mxu0 %v451
  %v549 = vpop.f32.mrf.mxu0
  %v550 = vadd.f32 0.0, %v549
  %v551 = vpop.f32.mrf.mxu0
  %552 = vdwg.mxu0
  %v554 = vunpack.c.l.b16 %v363
  %v555 = vpack.c.b16 %v554, %v554
  %556 = vrot.lane.b32.xlu0 %v555, 96
  %v557 = vpop.permute.xlu0 %556
  %v559 = vsel %vm74, %v557, 0
  %561 = vmatpush.bf16.xpose.msra.mxu0 0
  %562 = vmatpush.bf16.xpose.msra.mxu0 0
  %563 = vmatpush.bf16.xpose.msra.mxu0 0
  %564 = vmatpush.bf16.xpose.msra.mxu0 0
  %565 = vmatpush.bf16.xpose.msra.mxu0 0
  %566 = vmatpush.bf16.xpose.msra.mxu0 0
  %567 = vmatpush.bf16.xpose.msra.mxu0 0
  %568 = vmatpush.bf16.xpose.msra.mxu0 %v559
  %569 = vmatmul.bf16.gmra.mxu0 %v427
  %v570 = vpop.f32.mrf.mxu0
  %v571 = vadd.f32 0.0, %v570
  %v572 = vpop.f32.mrf.mxu0
  %573 = vdwg.mxu0
  %v575 = vunpack.c.l.b16 %v364
  %v576 = vpack.c.b16 %v575, %v575
  %577 = vrot.lane.b32.xlu0 %v576, 96
  %v578 = vpop.permute.xlu0 %577
  %v580 = vsel %vm74, %v578, 0
  %582 = vmatpush.bf16.xpose.msra.mxu0 0
  %583 = vmatpush.bf16.xpose.msra.mxu0 0
  %584 = vmatpush.bf16.xpose.msra.mxu0 0
  %585 = vmatpush.bf16.xpose.msra.mxu0 0
  %586 = vmatpush.bf16.xpose.msra.mxu0 0
  %587 = vmatpush.bf16.xpose.msra.mxu0 0
  %588 = vmatpush.bf16.xpose.msra.mxu0 0
  %589 = vmatpush.bf16.xpose.msra.mxu0 %v580
  %590 = vmatmul.bf16.gmra.mxu0 %v451
  %v591 = vpop.f32.mrf.mxu0
  %v592 = vadd.f32 0.0, %v591
  %v593 = vpop.f32.mrf.mxu0
  %594 = vdwg.mxu0
  %v596 = vunpack.c.l.b16 %v365
  %v597 = vpack.c.b16 %v596, %v596
  %598 = vrot.lane.b32.xlu0 %v597, 96
  %v599 = vpop.permute.xlu0 %598
  %v601 = vsel %vm74, %v351, 0
  %v604 = vsel %vm74, %v599, 0
  %606 = vmatpush.bf16.xpose.msra.mxu0 0
  %607 = vmatpush.bf16.xpose.msra.mxu0 0
  %608 = vmatpush.bf16.xpose.msra.mxu0 0
  %609 = vmatpush.bf16.xpose.msra.mxu0 0
  %610 = vmatpush.bf16.xpose.msra.mxu0 0
  %611 = vmatpush.bf16.xpose.msra.mxu0 0
  %612 = vmatpush.bf16.xpose.msra.mxu0 0
  %613 = vmatpush.bf16.xpose.msra.mxu0 %v604
  %614 = vmatmul.bf16.gmra.mxu0 %v601
  %v615 = vpop.f32.mrf.mxu0
  %v616 = vadd.f32 0.0, %v615
  %v617 = vpop.f32.mrf.mxu0
  %618 = vdwg.mxu0
  %v620 = vunpack.c.l.b16 %v366
  %v621 = vpack.c.b16 %v620, %v620
  %622 = vrot.lane.b32.xlu0 %v621, 96
  %v623 = vpop.permute.xlu0 %622
  %v625 = vsel %vm74, %v352, 0
  %v628 = vsel %vm74, %v623, 0
  %630 = vmatpush.bf16.xpose.msra.mxu0 0
  %631 = vmatpush.bf16.xpose.msra.mxu0 0
  %632 = vmatpush.bf16.xpose.msra.mxu0 0
  %633 = vmatpush.bf16.xpose.msra.mxu0 0
  %634 = vmatpush.bf16.xpose.msra.mxu0 0
  %635 = vmatpush.bf16.xpose.msra.mxu0 0
  %636 = vmatpush.bf16.xpose.msra.mxu0 0
  %637 = vmatpush.bf16.xpose.msra.mxu0 %v628
  %638 = vmatmul.bf16.gmra.mxu0 %v625
  %v639 = vpop.f32.mrf.mxu0
  %v640 = vadd.f32 0.0, %v639
  %v641 = vpop.f32.mrf.mxu0
  %642 = vdwg.mxu0
  %v644 = vunpack.c.l.b16 %v367
  %v645 = vpack.c.b16 %v644, %v644
  %646 = vrot.lane.b32.xlu0 %v645, 96
  %v647 = vpop.permute.xlu0 %646
  %v649 = vsel %vm74, %v647, 0
  %651 = vmatpush.bf16.xpose.msra.mxu0 0
  %652 = vmatpush.bf16.xpose.msra.mxu0 0
  %653 = vmatpush.bf16.xpose.msra.mxu0 0
  %654 = vmatpush.bf16.xpose.msra.mxu0 0
  %655 = vmatpush.bf16.xpose.msra.mxu0 0
  %656 = vmatpush.bf16.xpose.msra.mxu0 0
  %657 = vmatpush.bf16.xpose.msra.mxu0 0
  %658 = vmatpush.bf16.xpose.msra.mxu0 %v649
  %659 = vmatmul.bf16.gmra.mxu0 %v601
  %v660 = vpop.f32.mrf.mxu0
  %v661 = vadd.f32 0.0, %v660
  %v662 = vpop.f32.mrf.mxu0
  %663 = vdwg.mxu0
  %v665 = vunpack.c.l.b16 %v368
  %v666 = vpack.c.b16 %v665, %v665
  %667 = vrot.lane.b32.xlu0 %v666, 96
  %v668 = vpop.permute.xlu0 %667
  %v670 = vsel %vm74, %v668, 0
  %672 = vmatpush.bf16.xpose.msra.mxu0 0
  %673 = vmatpush.bf16.xpose.msra.mxu0 0
  %674 = vmatpush.bf16.xpose.msra.mxu0 0
  %675 = vmatpush.bf16.xpose.msra.mxu0 0
  %676 = vmatpush.bf16.xpose.msra.mxu0 0
  %677 = vmatpush.bf16.xpose.msra.mxu0 0
  %678 = vmatpush.bf16.xpose.msra.mxu0 0
  %679 = vmatpush.bf16.xpose.msra.mxu0 %v670
  %680 = vmatmul.bf16.gmra.mxu0 %v625
  %v681 = vpop.f32.mrf.mxu0
  %v682 = vadd.f32 0.0, %v681
  %v683 = vpop.f32.mrf.mxu0
  %684 = vdwg.mxu0
  %v686 = vunpack.c.l.b16 %v369
  %v687 = vpack.c.b16 %v686, %v686
  %688 = vrot.lane.b32.xlu0 %v687, 96
  %v689 = vpop.permute.xlu0 %688
  %v691 = vsel %vm74, %v689, 0
  %693 = vmatpush.bf16.xpose.msra.mxu0 0
  %694 = vmatpush.bf16.xpose.msra.mxu0 0
  %695 = vmatpush.bf16.xpose.msra.mxu0 0
  %696 = vmatpush.bf16.xpose.msra.mxu0 0
  %697 = vmatpush.bf16.xpose.msra.mxu0 0
  %698 = vmatpush.bf16.xpose.msra.mxu0 0
  %699 = vmatpush.bf16.xpose.msra.mxu0 0
  %700 = vmatpush.bf16.xpose.msra.mxu0 %v691
  %701 = vmatmul.bf16.gmra.mxu0 %v601
  %v702 = vpop.f32.mrf.mxu0
  %v703 = vadd.f32 0.0, %v702
  %v704 = vpop.f32.mrf.mxu0
  %705 = vdwg.mxu0
  %v707 = vunpack.c.l.b16 %v370
  %v708 = vpack.c.b16 %v707, %v707
  %709 = vrot.lane.b32.xlu0 %v708, 96
  %v710 = vpop.permute.xlu0 %709
  %v712 = vsel %vm74, %v710, 0
  %714 = vmatpush.bf16.xpose.msra.mxu0 0
  %715 = vmatpush.bf16.xpose.msra.mxu0 0
  %716 = vmatpush.bf16.xpose.msra.mxu0 0
  %717 = vmatpush.bf16.xpose.msra.mxu0 0
  %718 = vmatpush.bf16.xpose.msra.mxu0 0
  %719 = vmatpush.bf16.xpose.msra.mxu0 0
  %720 = vmatpush.bf16.xpose.msra.mxu0 0
  %721 = vmatpush.bf16.xpose.msra.mxu0 %v712
  %722 = vmatmul.bf16.gmra.mxu0 %v625
  %v723 = vpop.f32.mrf.mxu0
  %v724 = vadd.f32 0.0, %v723
  %v725 = vpop.f32.mrf.mxu0
  %726 = vdwg.mxu0
  %v728 = vunpack.c.l.b16 %v371
  %v729 = vpack.c.b16 %v728, %v728
  %730 = vrot.lane.b32.xlu0 %v729, 96
  %v731 = vpop.permute.xlu0 %730
  %v733 = vsel %vm74, %v731, 0
  %735 = vmatpush.bf16.xpose.msra.mxu0 0
  %736 = vmatpush.bf16.xpose.msra.mxu0 0
  %737 = vmatpush.bf16.xpose.msra.mxu0 0
  %738 = vmatpush.bf16.xpose.msra.mxu0 0
  %739 = vmatpush.bf16.xpose.msra.mxu0 0
  %740 = vmatpush.bf16.xpose.msra.mxu0 0
  %741 = vmatpush.bf16.xpose.msra.mxu0 0
  %742 = vmatpush.bf16.xpose.msra.mxu0 %v733
  %743 = vmatmul.bf16.gmra.mxu0 %v601
  %v744 = vpop.f32.mrf.mxu0
  %v745 = vadd.f32 0.0, %v744
  %v746 = vpop.f32.mrf.mxu0
  %747 = vdwg.mxu0
  %v749 = vunpack.c.l.b16 %v372
  %v750 = vpack.c.b16 %v749, %v749
  %751 = vrot.lane.b32.xlu0 %v750, 96
  %v752 = vpop.permute.xlu0 %751
  %v754 = vsel %vm74, %v752, 0
  %756 = vmatpush.bf16.xpose.msra.mxu0 0
  %757 = vmatpush.bf16.xpose.msra.mxu0 0
  %758 = vmatpush.bf16.xpose.msra.mxu0 0
  %759 = vmatpush.bf16.xpose.msra.mxu0 0
  %760 = vmatpush.bf16.xpose.msra.mxu0 0
  %761 = vmatpush.bf16.xpose.msra.mxu0 0
  %762 = vmatpush.bf16.xpose.msra.mxu0 0
  %763 = vmatpush.bf16.xpose.msra.mxu0 %v754
  %764 = vmatmul.bf16.gmra.mxu0 %v625
  %v765 = vpop.f32.mrf.mxu0
  %v766 = vadd.f32 0.0, %v765
  %v767 = vpop.f32.mrf.mxu0
  %768 = vdwg.mxu0
  %v770 = vunpack.c.l.b16 %v373
  %v771 = vpack.c.b16 %v770, %v770
  %772 = vrot.lane.b32.xlu0 %v771, 96
  %v773 = vpop.permute.xlu0 %772
  %v775 = vsel %vm74, %v353, 0
  %v778 = vsel %vm74, %v773, 0
  %780 = vmatpush.bf16.xpose.msra.mxu0 0
  %781 = vmatpush.bf16.xpose.msra.mxu0 0
  %782 = vmatpush.bf16.xpose.msra.mxu0 0
  %783 = vmatpush.bf16.xpose.msra.mxu0 0
  %784 = vmatpush.bf16.xpose.msra.mxu0 0
  %785 = vmatpush.bf16.xpose.msra.mxu0 0
  %786 = vmatpush.bf16.xpose.msra.mxu0 0
  %787 = vmatpush.bf16.xpose.msra.mxu0 %v778
  %788 = vmatmul.bf16.gmra.mxu0 %v775
  %v789 = vpop.f32.mrf.mxu0
  %v790 = vadd.f32 0.0, %v789
  %v791 = vpop.f32.mrf.mxu0
  %792 = vdwg.mxu0
  %v794 = vunpack.c.l.b16 %v374
  %v795 = vpack.c.b16 %v794, %v794
  %796 = vrot.lane.b32.xlu0 %v795, 96
  %v797 = vpop.permute.xlu0 %796
  %v799 = vsel %vm74, %v354, 0
  %v802 = vsel %vm74, %v797, 0
  %804 = vmatpush.bf16.xpose.msra.mxu0 0
  %805 = vmatpush.bf16.xpose.msra.mxu0 0
  %806 = vmatpush.bf16.xpose.msra.mxu0 0
  %807 = vmatpush.bf16.xpose.msra.mxu0 0
  %808 = vmatpush.bf16.xpose.msra.mxu0 0
  %809 = vmatpush.bf16.xpose.msra.mxu0 0
  %810 = vmatpush.bf16.xpose.msra.mxu0 0
  %811 = vmatpush.bf16.xpose.msra.mxu0 %v802
  %812 = vmatmul.bf16.gmra.mxu0 %v799
  %v813 = vpop.f32.mrf.mxu0
  %v814 = vadd.f32 0.0, %v813
  %v815 = vpop.f32.mrf.mxu0
  %816 = vdwg.mxu0
  %v818 = vunpack.c.l.b16 %v375
  %v819 = vpack.c.b16 %v818, %v818
  %820 = vrot.lane.b32.xlu0 %v819, 96
  %v821 = vpop.permute.xlu0 %820
  %v823 = vsel %vm74, %v821, 0
  %825 = vmatpush.bf16.xpose.msra.mxu0 0
  %826 = vmatpush.bf16.xpose.msra.mxu0 0
  %827 = vmatpush.bf16.xpose.msra.mxu0 0
  %828 = vmatpush.bf16.xpose.msra.mxu0 0
  %829 = vmatpush.bf16.xpose.msra.mxu0 0
  %830 = vmatpush.bf16.xpose.msra.mxu0 0
  %831 = vmatpush.bf16.xpose.msra.mxu0 0
  %832 = vmatpush.bf16.xpose.msra.mxu0 %v823
  %833 = vmatmul.bf16.gmra.mxu0 %v775
  %v834 = vpop.f32.mrf.mxu0
  %v835 = vadd.f32 0.0, %v834
  %v836 = vpop.f32.mrf.mxu0
  %837 = vdwg.mxu0
  %v839 = vunpack.c.l.b16 %v376
  %v840 = vpack.c.b16 %v839, %v839
  %841 = vrot.lane.b32.xlu0 %v840, 96
  %v842 = vpop.permute.xlu0 %841
  %v844 = vsel %vm74, %v842, 0
  %846 = vmatpush.bf16.xpose.msra.mxu0 0
  %847 = vmatpush.bf16.xpose.msra.mxu0 0
  %848 = vmatpush.bf16.xpose.msra.mxu0 0
  %849 = vmatpush.bf16.xpose.msra.mxu0 0
  %850 = vmatpush.bf16.xpose.msra.mxu0 0
  %851 = vmatpush.bf16.xpose.msra.mxu0 0
  %852 = vmatpush.bf16.xpose.msra.mxu0 0
  %853 = vmatpush.bf16.xpose.msra.mxu0 %v844
  %854 = vmatmul.bf16.gmra.mxu0 %v799
  %v855 = vpop.f32.mrf.mxu0
  %v856 = vadd.f32 0.0, %v855
  %v857 = vpop.f32.mrf.mxu0
  %858 = vdwg.mxu0
  %v860 = vunpack.c.l.b16 %v377
  %v861 = vpack.c.b16 %v860, %v860
  %862 = vrot.lane.b32.xlu0 %v861, 96
  %v863 = vpop.permute.xlu0 %862
  %v865 = vsel %vm74, %v863, 0
  %867 = vmatpush.bf16.xpose.msra.mxu0 0
  %868 = vmatpush.bf16.xpose.msra.mxu0 0
  %869 = vmatpush.bf16.xpose.msra.mxu0 0
  %870 = vmatpush.bf16.xpose.msra.mxu0 0
  %871 = vmatpush.bf16.xpose.msra.mxu0 0
  %872 = vmatpush.bf16.xpose.msra.mxu0 0
  %873 = vmatpush.bf16.xpose.msra.mxu0 0
  %874 = vmatpush.bf16.xpose.msra.mxu0 %v865
  %875 = vmatmul.bf16.gmra.mxu0 %v775
  %v876 = vpop.f32.mrf.mxu0
  %v877 = vadd.f32 0.0, %v876
  %v878 = vpop.f32.mrf.mxu0
  %879 = vdwg.mxu0
  %v881 = vunpack.c.l.b16 %v378
  %v882 = vpack.c.b16 %v881, %v881
  %883 = vrot.lane.b32.xlu0 %v882, 96
  %v884 = vpop.permute.xlu0 %883
  %v886 = vsel %vm74, %v884, 0
  %888 = vmatpush.bf16.xpose.msra.mxu0 0
  %889 = vmatpush.bf16.xpose.msra.mxu0 0
  %890 = vmatpush.bf16.xpose.msra.mxu0 0
  %891 = vmatpush.bf16.xpose.msra.mxu0 0
  %892 = vmatpush.bf16.xpose.msra.mxu0 0
  %893 = vmatpush.bf16.xpose.msra.mxu0 0
  %894 = vmatpush.bf16.xpose.msra.mxu0 0
  %895 = vmatpush.bf16.xpose.msra.mxu0 %v886
  %896 = vmatmul.bf16.gmra.mxu0 %v799
  %v897 = vpop.f32.mrf.mxu0
  %v898 = vadd.f32 0.0, %v897
  %v899 = vpop.f32.mrf.mxu0
  %900 = vdwg.mxu0
  %v902 = vunpack.c.l.b16 %v379
  %v903 = vpack.c.b16 %v902, %v902
  %904 = vrot.lane.b32.xlu0 %v903, 96
  %v905 = vpop.permute.xlu0 %904
  %v907 = vsel %vm74, %v905, 0
  %909 = vmatpush.bf16.xpose.msra.mxu0 0
  %910 = vmatpush.bf16.xpose.msra.mxu0 0
  %911 = vmatpush.bf16.xpose.msra.mxu0 0
  %912 = vmatpush.bf16.xpose.msra.mxu0 0
  %913 = vmatpush.bf16.xpose.msra.mxu0 0
  %914 = vmatpush.bf16.xpose.msra.mxu0 0
  %915 = vmatpush.bf16.xpose.msra.mxu0 0
  %916 = vmatpush.bf16.xpose.msra.mxu0 %v907
  %917 = vmatmul.bf16.gmra.mxu0 %v775
  %v918 = vpop.f32.mrf.mxu0
  %v919 = vadd.f32 0.0, %v918
  %v920 = vpop.f32.mrf.mxu0
  %921 = vdwg.mxu0
  %v923 = vunpack.c.l.b16 %v380
  %v924 = vpack.c.b16 %v923, %v923
  %925 = vrot.lane.b32.xlu0 %v924, 96
  %v926 = vpop.permute.xlu0 %925
  %v928 = vsel %vm74, %v926, 0
  %930 = vmatpush.bf16.xpose.msra.mxu0 0
  %931 = vmatpush.bf16.xpose.msra.mxu0 0
  %932 = vmatpush.bf16.xpose.msra.mxu0 0
  %933 = vmatpush.bf16.xpose.msra.mxu0 0
  %934 = vmatpush.bf16.xpose.msra.mxu0 0
  %935 = vmatpush.bf16.xpose.msra.mxu0 0
  %936 = vmatpush.bf16.xpose.msra.mxu0 0
  %937 = vmatpush.bf16.xpose.msra.mxu0 %v928
  %938 = vmatmul.bf16.gmra.mxu0 %v799
  %v939 = vpop.f32.mrf.mxu0
  %v940 = vadd.f32 0.0, %v939
  %v941 = vpop.f32.mrf.mxu0
  %942 = vdwg.mxu0
  %v944 = vunpack.c.l.b16 %v381
  %v945 = vpack.c.b16 %v944, %v944
  %946 = vrot.lane.b32.xlu0 %v945, 96
  %v947 = vpop.permute.xlu0 %946
  %v949 = vsel %vm74, %v355, 0
  %v952 = vsel %vm74, %v947, 0
  %954 = vmatpush.bf16.xpose.msra.mxu0 0
  %955 = vmatpush.bf16.xpose.msra.mxu0 0
  %956 = vmatpush.bf16.xpose.msra.mxu0 0
  %957 = vmatpush.bf16.xpose.msra.mxu0 0
  %958 = vmatpush.bf16.xpose.msra.mxu0 0
  %959 = vmatpush.bf16.xpose.msra.mxu0 0
  %960 = vmatpush.bf16.xpose.msra.mxu0 0
  %961 = vmatpush.bf16.xpose.msra.mxu0 %v952
  %962 = vmatmul.bf16.gmra.mxu0 %v949
  %v963 = vpop.f32.mrf.mxu0
  %v964 = vadd.f32 0.0, %v963
  %v965 = vpop.f32.mrf.mxu0
  %966 = vdwg.mxu0
  %v968 = vunpack.c.l.b16 %v382
  %v969 = vpack.c.b16 %v968, %v968
  %970 = vrot.lane.b32.xlu0 %v969, 96
  %v971 = vpop.permute.xlu0 %970
  %v973 = vsel %vm74, %v356, 0
  %v976 = vsel %vm74, %v971, 0
  %978 = vmatpush.bf16.xpose.msra.mxu0 0
  %979 = vmatpush.bf16.xpose.msra.mxu0 0
  %980 = vmatpush.bf16.xpose.msra.mxu0 0
  %981 = vmatpush.bf16.xpose.msra.mxu0 0
  %982 = vmatpush.bf16.xpose.msra.mxu0 0
  %983 = vmatpush.bf16.xpose.msra.mxu0 0
  %984 = vmatpush.bf16.xpose.msra.mxu0 0
  %985 = vmatpush.bf16.xpose.msra.mxu0 %v976
  %986 = vmatmul.bf16.gmra.mxu0 %v973
  %v987 = vpop.f32.mrf.mxu0
  %v988 = vadd.f32 0.0, %v987
  %v989 = vpop.f32.mrf.mxu0
  %990 = vdwg.mxu0
  %v992 = vunpack.c.l.b16 %v383
  %v993 = vpack.c.b16 %v992, %v992
  %994 = vrot.lane.b32.xlu0 %v993, 96
  %v995 = vpop.permute.xlu0 %994
  %v997 = vsel %vm74, %v995, 0
  %999 = vmatpush.bf16.xpose.msra.mxu0 0
  %1000 = vmatpush.bf16.xpose.msra.mxu0 0
  %1001 = vmatpush.bf16.xpose.msra.mxu0 0
  %1002 = vmatpush.bf16.xpose.msra.mxu0 0
  %1003 = vmatpush.bf16.xpose.msra.mxu0 0
  %1004 = vmatpush.bf16.xpose.msra.mxu0 0
  %1005 = vmatpush.bf16.xpose.msra.mxu0 0
  %1006 = vmatpush.bf16.xpose.msra.mxu0 %v997
  %1007 = vmatmul.bf16.gmra.mxu0 %v949
  %v1008 = vpop.f32.mrf.mxu0
  %v1009 = vadd.f32 0.0, %v1008
  %v1010 = vpop.f32.mrf.mxu0
  %1011 = vdwg.mxu0
  %v1013 = vunpack.c.l.b16 %v384
  %v1014 = vpack.c.b16 %v1013, %v1013
  %1015 = vrot.lane.b32.xlu0 %v1014, 96
  %v1016 = vpop.permute.xlu0 %1015
  %v1018 = vsel %vm74, %v1016, 0
  %1020 = vmatpush.bf16.xpose.msra.mxu0 0
  %1021 = vmatpush.bf16.xpose.msra.mxu0 0
  %1022 = vmatpush.bf16.xpose.msra.mxu0 0
  %1023 = vmatpush.bf16.xpose.msra.mxu0 0
  %1024 = vmatpush.bf16.xpose.msra.mxu0 0
  %1025 = vmatpush.bf16.xpose.msra.mxu0 0
  %1026 = vmatpush.bf16.xpose.msra.mxu0 0
  %1027 = vmatpush.bf16.xpose.msra.mxu0 %v1018
  %1028 = vmatmul.bf16.gmra.mxu0 %v973
  %v1029 = vpop.f32.mrf.mxu0
  %v1030 = vadd.f32 0.0, %v1029
  %v1031 = vpop.f32.mrf.mxu0
  %1032 = vdwg.mxu0
  %v1034 = vunpack.c.l.b16 %v385
  %v1035 = vpack.c.b16 %v1034, %v1034
  %1036 = vrot.lane.b32.xlu0 %v1035, 96
  %v1037 = vpop.permute.xlu0 %1036
  %v1039 = vsel %vm74, %v1037, 0
  %1041 = vmatpush.bf16.xpose.msra.mxu0 0
  %1042 = vmatpush.bf16.xpose.msra.mxu0 0
  %1043 = vmatpush.bf16.xpose.msra.mxu0 0
  %1044 = vmatpush.bf16.xpose.msra.mxu0 0
  %1045 = vmatpush.bf16.xpose.msra.mxu0 0
  %1046 = vmatpush.bf16.xpose.msra.mxu0 0
  %1047 = vmatpush.bf16.xpose.msra.mxu0 0
  %1048 = vmatpush.bf16.xpose.msra.mxu0 %v1039
  %1049 = vmatmul.bf16.gmra.mxu0 %v949
  %v1050 = vpop.f32.mrf.mxu0
  %v1051 = vadd.f32 0.0, %v1050
  %v1052 = vpop.f32.mrf.mxu0
  %1053 = vdwg.mxu0
  %v1055 = vunpack.c.l.b16 %v386
  %v1056 = vpack.c.b16 %v1055, %v1055
  %1057 = vrot.lane.b32.xlu0 %v1056, 96
  %v1058 = vpop.permute.xlu0 %1057
  %v1060 = vsel %vm74, %v1058, 0
  %1062 = vmatpush.bf16.xpose.msra.mxu0 0
  %1063 = vmatpush.bf16.xpose.msra.mxu0 0
  %1064 = vmatpush.bf16.xpose.msra.mxu0 0
  %1065 = vmatpush.bf16.xpose.msra.mxu0 0
  %1066 = vmatpush.bf16.xpose.msra.mxu0 0
  %1067 = vmatpush.bf16.xpose.msra.mxu0 0
  %1068 = vmatpush.bf16.xpose.msra.mxu0 0
  %1069 = vmatpush.bf16.xpose.msra.mxu0 %v1060
  %1070 = vmatmul.bf16.gmra.mxu0 %v973
  %v1071 = vpop.f32.mrf.mxu0
  %v1072 = vadd.f32 0.0, %v1071
  %v1073 = vpop.f32.mrf.mxu0
  %1074 = vdwg.mxu0
  %v1076 = vunpack.c.l.b16 %v387
  %v1077 = vpack.c.b16 %v1076, %v1076
  %1078 = vrot.lane.b32.xlu0 %v1077, 96
  %v1079 = vpop.permute.xlu0 %1078
  %v1081 = vsel %vm74, %v1079, 0
  %1083 = vmatpush.bf16.xpose.msra.mxu0 0
  %1084 = vmatpush.bf16.xpose.msra.mxu0 0
  %1085 = vmatpush.bf16.xpose.msra.mxu0 0
  %1086 = vmatpush.bf16.xpose.msra.mxu0 0
  %1087 = vmatpush.bf16.xpose.msra.mxu0 0
  %1088 = vmatpush.bf16.xpose.msra.mxu0 0
  %1089 = vmatpush.bf16.xpose.msra.mxu0 0
  %1090 = vmatpush.bf16.xpose.msra.mxu0 %v1081
  %1091 = vmatmul.bf16.gmra.mxu0 %v949
  %v1092 = vpop.f32.mrf.mxu0
  %v1093 = vadd.f32 0.0, %v1092
  %v1094 = vpop.f32.mrf.mxu0
  %1095 = vdwg.mxu0
  %v1097 = vunpack.c.l.b16 %v388
  %v1098 = vpack.c.b16 %v1097, %v1097
  %1099 = vrot.lane.b32.xlu0 %v1098, 96
  %v1100 = vpop.permute.xlu0 %1099
  %v1102 = vsel %vm74, %v1100, 0
  %1104 = vmatpush.bf16.xpose.msra.mxu0 0
  %1105 = vmatpush.bf16.xpose.msra.mxu0 0
  %1106 = vmatpush.bf16.xpose.msra.mxu0 0
  %1107 = vmatpush.bf16.xpose.msra.mxu0 0
  %1108 = vmatpush.bf16.xpose.msra.mxu0 0
  %1109 = vmatpush.bf16.xpose.msra.mxu0 0
  %1110 = vmatpush.bf16.xpose.msra.mxu0 0
  %1111 = vmatpush.bf16.xpose.msra.mxu0 %v1102
  %1112 = vmatmul.bf16.gmra.mxu0 %v973
  %v1113 = vpop.f32.mrf.mxu0
  %v1114 = vadd.f32 0.0, %v1113
  %v1115 = vpop.f32.mrf.mxu0
  %1116 = vdwg.mxu0
  %v1117 = vmul.f32 %v442, 0.5
  %v1118 = vmul.f32 %v466, 0.5
  %v1119 = vmul.f32 %v487, 0.5
  %v1120 = vmul.f32 %v508, 0.5
  %v1121 = vmul.f32 %v529, 0.5
  %v1122 = vmul.f32 %v550, 0.5
  %v1123 = vmul.f32 %v571, 0.5
  %v1124 = vmul.f32 %v592, 0.5
  %v1125 = vadd.f32 %v1117, 0.0
  %v1126 = vadd.f32 %v1118, 0.0
  %v1127 = vadd.f32 %v1119, 0.0
  %v1128 = vadd.f32 %v1120, 0.0
  %v1129 = vadd.f32 %v1121, 0.0
  %v1130 = vadd.f32 %v1122, 0.0
  %v1131 = vadd.f32 %v1123, 0.0
  %v1132 = vadd.f32 %v1124, 0.0
  %vm1133 = vcmp.ge.f32.partialorder %v1125, 2.828427
  %vm1134 = vcmp.ge.f32.partialorder %v1126, 2.828427
  %vm1135 = vcmp.ge.f32.partialorder %v1127, 2.828427
  %vm1136 = vcmp.ge.f32.partialorder %v1128, 2.828427
  %vm1137 = vcmp.ge.f32.partialorder %v1129, 2.828427
  %vm1138 = vcmp.ge.f32.partialorder %v1130, 2.828427
  %vm1139 = vcmp.ge.f32.partialorder %v1131, 2.828427
  %vm1140 = vcmp.ge.f32.partialorder %v1132, 2.828427
  %v1141 = vsel %vm1133, 1, 0
  %v1142 = vsel %vm1134, 1, 0
  %v1143 = vsel %vm1135, 1, 0
  %v1144 = vsel %vm1136, 1, 0
  %v1145 = vsel %vm1137, 1, 0
  %v1146 = vsel %vm1138, 1, 0
  %v1147 = vsel %vm1139, 1, 0
  %v1148 = vsel %vm1140, 1, 0
  %v1149 = vcvt.s32.f32 %v1141
  %v1150 = vcvt.s32.f32 %v1142
  %v1151 = vcvt.s32.f32 %v1143
  %v1152 = vcvt.s32.f32 %v1144
  %v1153 = vcvt.s32.f32 %v1145
  %v1154 = vcvt.s32.f32 %v1146
  %v1155 = vcvt.s32.f32 %v1147
  %v1156 = vcvt.s32.f32 %v1148
  %v1157 = vsub.f32 1.0, %v1149
  %v1158 = vsub.f32 1.0, %v1150
  %v1159 = vsub.f32 1.0, %v1151
  %v1160 = vsub.f32 1.0, %v1152
  %v1161 = vsub.f32 1.0, %v1153
  %v1162 = vsub.f32 1.0, %v1154
  %v1163 = vsub.f32 1.0, %v1155
  %v1164 = vsub.f32 1.0, %v1156
  %v1165 = vmul.f32 %v1125, %v1157
  %v1166 = vmul.f32 %v1126, %v1158
  %v1167 = vmul.f32 %v1127, %v1159
  %v1168 = vmul.f32 %v1128, %v1160
  %v1169 = vmul.f32 %v1129, %v1161
  %v1170 = vmul.f32 %v1130, %v1162
  %v1171 = vmul.f32 %v1131, %v1163
  %v1172 = vmul.f32 %v1132, %v1164
  %v1173 = vsub.f32 %v616, %v1165
  %v1174 = vsub.f32 %v640, %v1166
  %v1175 = vsub.f32 %v661, %v1167
  %v1176 = vsub.f32 %v682, %v1168
  %v1177 = vsub.f32 %v703, %v1169
  %v1178 = vsub.f32 %v724, %v1170
  %v1179 = vsub.f32 %v745, %v1171
  %v1180 = vsub.f32 %v766, %v1172
  %v1181 = vmul.f32 %v1173, 0.5
  %v1182 = vmul.f32 %v1174, 0.5
  %v1183 = vmul.f32 %v1175, 0.5
  %v1184 = vmul.f32 %v1176, 0.5
  %v1185 = vmul.f32 %v1177, 0.5
  %v1186 = vmul.f32 %v1178, 0.5
  %v1187 = vmul.f32 %v1179, 0.5
  %v1188 = vmul.f32 %v1180, 0.5
  %v1189 = vadd.f32 %v1165, %v1181
  %v1190 = vadd.f32 %v1166, %v1182
  %v1191 = vadd.f32 %v1167, %v1183
  %v1192 = vadd.f32 %v1168, %v1184
  %v1193 = vadd.f32 %v1169, %v1185
  %v1194 = vadd.f32 %v1170, %v1186
  %v1195 = vadd.f32 %v1171, %v1187
  %v1196 = vadd.f32 %v1172, %v1188
  %vm1197 = vcmp.ge.f32.partialorder %v1189, 2.828427
  %vm1198 = vcmp.ge.f32.partialorder %v1190, 2.828427
  %vm1199 = vcmp.ge.f32.partialorder %v1191, 2.828427
  %vm1200 = vcmp.ge.f32.partialorder %v1192, 2.828427
  %vm1201 = vcmp.ge.f32.partialorder %v1193, 2.828427
  %vm1202 = vcmp.ge.f32.partialorder %v1194, 2.828427
  %vm1203 = vcmp.ge.f32.partialorder %v1195, 2.828427
  %vm1204 = vcmp.ge.f32.partialorder %v1196, 2.828427
  %v1205 = vsel %vm1197, 1, 0
  %v1206 = vsel %vm1198, 1, 0
  %v1207 = vsel %vm1199, 1, 0
  %v1208 = vsel %vm1200, 1, 0
  %v1209 = vsel %vm1201, 1, 0
  %v1210 = vsel %vm1202, 1, 0
  %v1211 = vsel %vm1203, 1, 0
  %v1212 = vsel %vm1204, 1, 0
  %v1213 = vcvt.s32.f32 %v1205
  %v1214 = vcvt.s32.f32 %v1206
  %v1215 = vcvt.s32.f32 %v1207
  %v1216 = vcvt.s32.f32 %v1208
  %v1217 = vcvt.s32.f32 %v1209
  %v1218 = vcvt.s32.f32 %v1210
  %v1219 = vcvt.s32.f32 %v1211
  %v1220 = vcvt.s32.f32 %v1212
  %v1221 = vsub.f32 1.0, %v1213
  %v1222 = vsub.f32 1.0, %v1214
  %v1223 = vsub.f32 1.0, %v1215
  %v1224 = vsub.f32 1.0, %v1216
  %v1225 = vsub.f32 1.0, %v1217
  %v1226 = vsub.f32 1.0, %v1218
  %v1227 = vsub.f32 1.0, %v1219
  %v1228 = vsub.f32 1.0, %v1220
  %v1229 = vmul.f32 %v1189, %v1221
  %v1230 = vmul.f32 %v1190, %v1222
  %v1231 = vmul.f32 %v1191, %v1223
  %v1232 = vmul.f32 %v1192, %v1224
  %v1233 = vmul.f32 %v1193, %v1225
  %v1234 = vmul.f32 %v1194, %v1226
  %v1235 = vmul.f32 %v1195, %v1227
  %v1236 = vmul.f32 %v1196, %v1228
  %v1237 = vsub.f32 %v790, %v1229
  %v1238 = vsub.f32 %v814, %v1230
  %v1239 = vsub.f32 %v835, %v1231
  %v1240 = vsub.f32 %v856, %v1232
  %v1241 = vsub.f32 %v877, %v1233
  %v1242 = vsub.f32 %v898, %v1234
  %v1243 = vsub.f32 %v919, %v1235
  %v1244 = vsub.f32 %v940, %v1236
  %v1245 = vmul.f32 %v1237, 0.5
  %v1246 = vmul.f32 %v1238, 0.5
  %v1247 = vmul.f32 %v1239, 0.5
  %v1248 = vmul.f32 %v1240, 0.5
  %v1249 = vmul.f32 %v1241, 0.5
  %v1250 = vmul.f32 %v1242, 0.5
  %v1251 = vmul.f32 %v1243, 0.5
  %v1252 = vmul.f32 %v1244, 0.5
  %v1253 = vadd.f32 %v1229, %v1245
  %v1254 = vadd.f32 %v1230, %v1246
  %v1255 = vadd.f32 %v1231, %v1247
  %v1256 = vadd.f32 %v1232, %v1248
  %v1257 = vadd.f32 %v1233, %v1249
  %v1258 = vadd.f32 %v1234, %v1250
  %v1259 = vadd.f32 %v1235, %v1251
  %v1260 = vadd.f32 %v1236, %v1252
  %vm1261 = vcmp.ge.f32.partialorder %v1253, 2.828427
  %vm1262 = vcmp.ge.f32.partialorder %v1254, 2.828427
  %vm1263 = vcmp.ge.f32.partialorder %v1255, 2.828427
  %vm1264 = vcmp.ge.f32.partialorder %v1256, 2.828427
  %vm1265 = vcmp.ge.f32.partialorder %v1257, 2.828427
  %vm1266 = vcmp.ge.f32.partialorder %v1258, 2.828427
  %vm1267 = vcmp.ge.f32.partialorder %v1259, 2.828427
  %vm1268 = vcmp.ge.f32.partialorder %v1260, 2.828427
  %v1269 = vsel %vm1261, 1, 0
  %v1270 = vsel %vm1262, 1, 0
  %v1271 = vsel %vm1263, 1, 0
  %v1272 = vsel %vm1264, 1, 0
  %v1273 = vsel %vm1265, 1, 0
  %v1274 = vsel %vm1266, 1, 0
  %v1275 = vsel %vm1267, 1, 0
  %v1276 = vsel %vm1268, 1, 0
  %v1277 = vcvt.s32.f32 %v1269
  %v1278 = vcvt.s32.f32 %v1270
  %v1279 = vcvt.s32.f32 %v1271
  %v1280 = vcvt.s32.f32 %v1272
  %v1281 = vcvt.s32.f32 %v1273
  %v1282 = vcvt.s32.f32 %v1274
  %v1283 = vcvt.s32.f32 %v1275
  %v1284 = vcvt.s32.f32 %v1276
  %v1285 = vsub.f32 1.0, %v1277
  %v1286 = vsub.f32 1.0, %v1278
  %v1287 = vsub.f32 1.0, %v1279
  %v1288 = vsub.f32 1.0, %v1280
  %v1289 = vsub.f32 1.0, %v1281
  %v1290 = vsub.f32 1.0, %v1282
  %v1291 = vsub.f32 1.0, %v1283
  %v1292 = vsub.f32 1.0, %v1284
  %v1293 = vmul.f32 %v1253, %v1285
  %v1294 = vmul.f32 %v1254, %v1286
  %v1295 = vmul.f32 %v1255, %v1287
  %v1296 = vmul.f32 %v1256, %v1288
  %v1297 = vmul.f32 %v1257, %v1289
  %v1298 = vmul.f32 %v1258, %v1290
  %v1299 = vmul.f32 %v1259, %v1291
  %v1300 = vmul.f32 %v1260, %v1292
  %v1301 = vsub.f32 %v964, %v1293
  %v1302 = vsub.f32 %v988, %v1294
  %v1303 = vsub.f32 %v1009, %v1295
  %v1304 = vsub.f32 %v1030, %v1296
  %v1305 = vsub.f32 %v1051, %v1297
  %v1306 = vsub.f32 %v1072, %v1298
  %v1307 = vsub.f32 %v1093, %v1299
  %v1308 = vsub.f32 %v1114, %v1300
  %v1309 = vmul.f32 %v1301, 0.5
  %v1310 = vmul.f32 %v1302, 0.5
  %v1311 = vmul.f32 %v1303, 0.5
  %v1312 = vmul.f32 %v1304, 0.5
  %v1313 = vmul.f32 %v1305, 0.5
  %v1314 = vmul.f32 %v1306, 0.5
  %v1315 = vmul.f32 %v1307, 0.5
  %v1316 = vmul.f32 %v1308, 0.5
  %v1317 = vadd.f32 %v1293, %v1309
  %v1318 = vadd.f32 %v1294, %v1310
  %v1319 = vadd.f32 %v1295, %v1311
  %v1320 = vadd.f32 %v1296, %v1312
  %v1321 = vadd.f32 %v1297, %v1313
  %v1322 = vadd.f32 %v1298, %v1314
  %v1323 = vadd.f32 %v1299, %v1315
  %v1324 = vadd.f32 %v1300, %v1316
  %vm1325 = vcmp.ge.f32.partialorder %v1317, 2.828427
  %vm1326 = vcmp.ge.f32.partialorder %v1318, 2.828427
  %vm1327 = vcmp.ge.f32.partialorder %v1319, 2.828427
  %vm1328 = vcmp.ge.f32.partialorder %v1320, 2.828427
  %vm1329 = vcmp.ge.f32.partialorder %v1321, 2.828427
  %vm1330 = vcmp.ge.f32.partialorder %v1322, 2.828427
  %vm1331 = vcmp.ge.f32.partialorder %v1323, 2.828427
  %vm1332 = vcmp.ge.f32.partialorder %v1324, 2.828427
  %v1333 = vsel %vm1325, 1, 0
  %v1334 = vsel %vm1326, 1, 0
  %v1335 = vsel %vm1327, 1, 0
  %v1336 = vsel %vm1328, 1, 0
  %v1337 = vsel %vm1329, 1, 0
  %v1338 = vsel %vm1330, 1, 0
  %v1339 = vsel %vm1331, 1, 0
  %v1340 = vsel %vm1332, 1, 0
  %v1341 = vcvt.s32.f32 %v1333
  %v1342 = vcvt.s32.f32 %v1334
  %v1343 = vcvt.s32.f32 %v1335
  %v1344 = vcvt.s32.f32 %v1336
  %v1345 = vcvt.s32.f32 %v1337
  %v1346 = vcvt.s32.f32 %v1338
  %v1347 = vcvt.s32.f32 %v1339
  %v1348 = vcvt.s32.f32 %v1340
  %v1349 = vmul.f32 %v1149, 1.7182819
  %v1350 = vmul.f32 %v1150, 1.7182819
  %v1351 = vmul.f32 %v1151, 1.7182819
  %v1352 = vmul.f32 %v1152, 1.7182819
  %v1353 = vmul.f32 %v1153, 1.7182819
  %v1354 = vmul.f32 %v1154, 1.7182819
  %v1355 = vmul.f32 %v1155, 1.7182819
  %v1356 = vmul.f32 %v1156, 1.7182819
  %v1357 = vmul.f32 %v1213, 1.7182819
  %v1358 = vmul.f32 %v1214, 1.7182819
  %v1359 = vmul.f32 %v1215, 1.7182819
  %v1360 = vmul.f32 %v1216, 1.7182819
  %v1361 = vmul.f32 %v1217, 1.7182819
  %v1362 = vmul.f32 %v1218, 1.7182819
  %v1363 = vmul.f32 %v1219, 1.7182819
  %v1364 = vmul.f32 %v1220, 1.7182819
  %v1365 = vmul.f32 %v1277, 1.7182819
  %v1366 = vmul.f32 %v1278, 1.7182819
  %v1367 = vmul.f32 %v1279, 1.7182819
  %v1368 = vmul.f32 %v1280, 1.7182819
  %v1369 = vmul.f32 %v1281, 1.7182819
  %v1370 = vmul.f32 %v1282, 1.7182819
  %v1371 = vmul.f32 %v1283, 1.7182819
  %v1372 = vmul.f32 %v1284, 1.7182819
  %v1373 = vmul.f32 %v1341, 1.7182819
  %v1374 = vmul.f32 %v1342, 1.7182819
  %v1375 = vmul.f32 %v1343, 1.7182819
  %v1376 = vmul.f32 %v1344, 1.7182819
  %v1377 = vmul.f32 %v1345, 1.7182819
  %v1378 = vmul.f32 %v1346, 1.7182819
  %v1379 = vmul.f32 %v1347, 1.7182819
  %v1380 = vmul.f32 %v1348, 1.7182819
  %v1381 = vadd.f32 %v1349, 1.0
  %v1382 = vadd.f32 %v1350, 1.0
  %v1383 = vadd.f32 %v1351, 1.0
  %v1384 = vadd.f32 %v1352, 1.0
  %v1385 = vadd.f32 %v1353, 1.0
  %v1386 = vadd.f32 %v1354, 1.0
  %v1387 = vadd.f32 %v1355, 1.0
  %v1388 = vadd.f32 %v1356, 1.0
  %v1389 = vadd.f32 %v1357, 1.0
  %v1390 = vadd.f32 %v1358, 1.0
  %v1391 = vadd.f32 %v1359, 1.0
  %v1392 = vadd.f32 %v1360, 1.0
  %v1393 = vadd.f32 %v1361, 1.0
  %v1394 = vadd.f32 %v1362, 1.0
  %v1395 = vadd.f32 %v1363, 1.0
  %v1396 = vadd.f32 %v1364, 1.0
  %v1397 = vadd.f32 %v1365, 1.0
  %v1398 = vadd.f32 %v1366, 1.0
  %v1399 = vadd.f32 %v1367, 1.0
  %v1400 = vadd.f32 %v1368, 1.0
  %v1401 = vadd.f32 %v1369, 1.0
  %v1402 = vadd.f32 %v1370, 1.0
  %v1403 = vadd.f32 %v1371, 1.0
  %v1404 = vadd.f32 %v1372, 1.0
  %v1405 = vadd.f32 %v1373, 1.0
  %v1406 = vadd.f32 %v1374, 1.0
  %v1407 = vadd.f32 %v1375, 1.0
  %v1408 = vadd.f32 %v1376, 1.0
  %v1409 = vadd.f32 %v1377, 1.0
  %v1410 = vadd.f32 %v1378, 1.0
  %v1411 = vadd.f32 %v1379, 1.0
  %v1412 = vadd.f32 %v1380, 1.0
  %vm1413 = vcmask 64512
  %v1414 = vsel %vm1413, %v1149, 0.0
  %1415 = vadd.xlane.f32.xlu0 %v1414
  %v1416 = vpop.xlane.xlu0 %1415
  %v1417 = vsel %vm1413, %v1150, 0.0
  %1418 = vadd.xlane.f32.xlu0 %v1417
  %v1419 = vpop.xlane.xlu0 %1418
  %v1420 = vsel %vm1413, %v1151, 0.0
  %1421 = vadd.xlane.f32.xlu0 %v1420
  %v1422 = vpop.xlane.xlu0 %1421
  %v1423 = vsel %vm1413, %v1152, 0.0
  %1424 = vadd.xlane.f32.xlu0 %v1423
  %v1425 = vpop.xlane.xlu0 %1424
  %v1426 = vsel %vm1413, %v1153, 0.0
  %1427 = vadd.xlane.f32.xlu0 %v1426
  %v1428 = vpop.xlane.xlu0 %1427
  %v1429 = vsel %vm1413, %v1154, 0.0
  %1430 = vadd.xlane.f32.xlu0 %v1429
  %v1431 = vpop.xlane.xlu0 %1430
  %v1432 = vsel %vm1413, %v1155, 0.0
  %1433 = vadd.xlane.f32.xlu0 %v1432
  %v1434 = vpop.xlane.xlu0 %1433
  %v1435 = vsel %vm1413, %v1156, 0.0
  %1436 = vadd.xlane.f32.xlu0 %v1435
  %v1437 = vpop.xlane.xlu0 %1436
  %v1438 = vsel %vm1413, %v1213, 0.0
  %1439 = vadd.xlane.f32.xlu0 %v1438
  %v1440 = vpop.xlane.xlu0 %1439
  %v1441 = vsel %vm1413, %v1214, 0.0
  %1442 = vadd.xlane.f32.xlu0 %v1441
  %v1443 = vpop.xlane.xlu0 %1442
  %v1444 = vsel %vm1413, %v1215, 0.0
  %1445 = vadd.xlane.f32.xlu0 %v1444
  %v1446 = vpop.xlane.xlu0 %1445
  %v1447 = vsel %vm1413, %v1216, 0.0
  %1448 = vadd.xlane.f32.xlu0 %v1447
  %v1449 = vpop.xlane.xlu0 %1448
  %v1450 = vsel %vm1413, %v1217, 0.0
  %1451 = vadd.xlane.f32.xlu0 %v1450
  %v1452 = vpop.xlane.xlu0 %1451
  %v1453 = vsel %vm1413, %v1218, 0.0
  %1454 = vadd.xlane.f32.xlu0 %v1453
  %v1455 = vpop.xlane.xlu0 %1454
  %v1456 = vsel %vm1413, %v1219, 0.0
  %1457 = vadd.xlane.f32.xlu0 %v1456
  %v1458 = vpop.xlane.xlu0 %1457
  %v1459 = vsel %vm1413, %v1220, 0.0
  %1460 = vadd.xlane.f32.xlu0 %v1459
  %v1461 = vpop.xlane.xlu0 %1460
  %v1462 = vsel %vm1413, %v1277, 0.0
  %1463 = vadd.xlane.f32.xlu0 %v1462
  %v1464 = vpop.xlane.xlu0 %1463
  %v1465 = vsel %vm1413, %v1278, 0.0
  %1466 = vadd.xlane.f32.xlu0 %v1465
  %v1467 = vpop.xlane.xlu0 %1466
  %v1468 = vsel %vm1413, %v1279, 0.0
  %1469 = vadd.xlane.f32.xlu0 %v1468
  %v1470 = vpop.xlane.xlu0 %1469
  %v1471 = vsel %vm1413, %v1280, 0.0
  %1472 = vadd.xlane.f32.xlu0 %v1471
  %v1473 = vpop.xlane.xlu0 %1472
  %v1474 = vsel %vm1413, %v1281, 0.0
  %1475 = vadd.xlane.f32.xlu0 %v1474
  %v1476 = vpop.xlane.xlu0 %1475
  %v1477 = vsel %vm1413, %v1282, 0.0
  %1478 = vadd.xlane.f32.xlu0 %v1477
  %v1479 = vpop.xlane.xlu0 %1478
  %v1480 = vsel %vm1413, %v1283, 0.0
  %1481 = vadd.xlane.f32.xlu0 %v1480
  %v1482 = vpop.xlane.xlu0 %1481
  %v1483 = vsel %vm1413, %v1284, 0.0
  %1484 = vadd.xlane.f32.xlu0 %v1483
  %v1485 = vpop.xlane.xlu0 %1484
  %v1486 = vsel %vm1413, %v1341, 0.0
  %1487 = vadd.xlane.f32.xlu0 %v1486
  %v1488 = vpop.xlane.xlu0 %1487
  %v1489 = vsel %vm1413, %v1342, 0.0
  %1490 = vadd.xlane.f32.xlu0 %v1489
  %v1491 = vpop.xlane.xlu0 %1490
  %v1492 = vsel %vm1413, %v1343, 0.0
  %1493 = vadd.xlane.f32.xlu0 %v1492
  %v1494 = vpop.xlane.xlu0 %1493
  %v1495 = vsel %vm1413, %v1344, 0.0
  %1496 = vadd.xlane.f32.xlu0 %v1495
  %v1497 = vpop.xlane.xlu0 %1496
  %v1498 = vsel %vm1413, %v1345, 0.0
  %1499 = vadd.xlane.f32.xlu0 %v1498
  %v1500 = vpop.xlane.xlu0 %1499
  %v1501 = vsel %vm1413, %v1346, 0.0
  %1502 = vadd.xlane.f32.xlu0 %v1501
  %v1503 = vpop.xlane.xlu0 %1502
  %v1504 = vsel %vm1413, %v1347, 0.0
  %1505 = vadd.xlane.f32.xlu0 %v1504
  %v1506 = vpop.xlane.xlu0 %1505
  %v1507 = vsel %vm1413, %v1348, 0.0
  %1508 = vadd.xlane.f32.xlu0 %v1507
  %v1509 = vpop.xlane.xlu0 %1508
  %v1510 = vmul.f32 %v1416, 1.7182819
  %v1511 = vmul.f32 %v1419, 1.7182819
  %v1512 = vmul.f32 %v1422, 1.7182819
  %v1513 = vmul.f32 %v1425, 1.7182819
  %v1514 = vmul.f32 %v1428, 1.7182819
  %v1515 = vmul.f32 %v1431, 1.7182819
  %v1516 = vmul.f32 %v1434, 1.7182819
  %v1517 = vmul.f32 %v1437, 1.7182819
  %v1518 = vmul.f32 %v1440, 1.7182819
  %v1519 = vmul.f32 %v1443, 1.7182819
  %v1520 = vmul.f32 %v1446, 1.7182819
  %v1521 = vmul.f32 %v1449, 1.7182819
  %v1522 = vmul.f32 %v1452, 1.7182819
  %v1523 = vmul.f32 %v1455, 1.7182819
  %v1524 = vmul.f32 %v1458, 1.7182819
  %v1525 = vmul.f32 %v1461, 1.7182819
  %v1526 = vmul.f32 %v1464, 1.7182819
  %v1527 = vmul.f32 %v1467, 1.7182819
  %v1528 = vmul.f32 %v1470, 1.7182819
  %v1529 = vmul.f32 %v1473, 1.7182819
  %v1530 = vmul.f32 %v1476, 1.7182819
  %v1531 = vmul.f32 %v1479, 1.7182819
  %v1532 = vmul.f32 %v1482, 1.7182819
  %v1533 = vmul.f32 %v1485, 1.7182819
  %v1534 = vmul.f32 %v1488, 1.7182819
  %v1535 = vmul.f32 %v1491, 1.7182819
  %v1536 = vmul.f32 %v1494, 1.7182819
  %v1537 = vmul.f32 %v1497, 1.7182819
  %v1538 = vmul.f32 %v1500, 1.7182819
  %v1539 = vmul.f32 %v1503, 1.7182819
  %v1540 = vmul.f32 %v1506, 1.7182819
  %v1541 = vmul.f32 %v1509, 1.7182819
  %v1542 = vadd.f32 %v1510, 8.0
  %v1543 = vadd.f32 %v1511, 8.0
  %v1544 = vadd.f32 %v1512, 8.0
  %v1545 = vadd.f32 %v1513, 8.0
  %v1546 = vadd.f32 %v1514, 8.0
  %v1547 = vadd.f32 %v1515, 8.0
  %v1548 = vadd.f32 %v1516, 8.0
  %v1549 = vadd.f32 %v1517, 8.0
  %v1550 = vadd.f32 %v1518, 8.0
  %v1551 = vadd.f32 %v1519, 8.0
  %v1552 = vadd.f32 %v1520, 8.0
  %v1553 = vadd.f32 %v1521, 8.0
  %v1554 = vadd.f32 %v1522, 8.0
  %v1555 = vadd.f32 %v1523, 8.0
  %v1556 = vadd.f32 %v1524, 8.0
  %v1557 = vadd.f32 %v1525, 8.0
  %v1558 = vadd.f32 %v1526, 8.0
  %v1559 = vadd.f32 %v1527, 8.0
  %v1560 = vadd.f32 %v1528, 8.0
  %v1561 = vadd.f32 %v1529, 8.0
  %v1562 = vadd.f32 %v1530, 8.0
  %v1563 = vadd.f32 %v1531, 8.0
  %v1564 = vadd.f32 %v1532, 8.0
  %v1565 = vadd.f32 %v1533, 8.0
  %v1566 = vadd.f32 %v1534, 8.0
  %v1567 = vadd.f32 %v1535, 8.0
  %v1568 = vadd.f32 %v1536, 8.0
  %v1569 = vadd.f32 %v1537, 8.0
  %v1570 = vadd.f32 %v1538, 8.0
  %v1571 = vadd.f32 %v1539, 8.0
  %v1572 = vadd.f32 %v1540, 8.0
  %v1573 = vadd.f32 %v1541, 8.0
  %v1574 = vrcp.pop %v1542
  %v1575 = vrcp.pop %v1543
  %v1576 = vrcp.pop %v1544
  %v1577 = vrcp.pop %v1545
  %v1578 = vrcp.pop %v1546
  %v1579 = vrcp.pop %v1547
  %v1580 = vrcp.pop %v1548
  %v1581 = vrcp.pop %v1549
  %v1582 = vrcp.pop %v1550
  %v1583 = vrcp.pop %v1551
  %v1584 = vrcp.pop %v1552
  %v1585 = vrcp.pop %v1553
  %v1586 = vrcp.pop %v1554
  %v1587 = vrcp.pop %v1555
  %v1588 = vrcp.pop %v1556
  %v1589 = vrcp.pop %v1557
  %v1590 = vrcp.pop %v1558
  %v1591 = vrcp.pop %v1559
  %v1592 = vrcp.pop %v1560
  %v1593 = vrcp.pop %v1561
  %v1594 = vrcp.pop %v1562
  %v1595 = vrcp.pop %v1563
  %v1596 = vrcp.pop %v1564
  %v1597 = vrcp.pop %v1565
  %v1598 = vrcp.pop %v1566
  %v1599 = vrcp.pop %v1567
  %v1600 = vrcp.pop %v1568
  %v1601 = vrcp.pop %v1569
  %v1602 = vrcp.pop %v1570
  %v1603 = vrcp.pop %v1571
  %v1604 = vrcp.pop %v1572
  %v1605 = vrcp.pop %v1573
  %v1606 = vmul.f32 %v1381, %v1574
  %v1607 = vmul.f32 %v1382, %v1575
  %v1608 = vmul.f32 %v1383, %v1576
  %v1609 = vmul.f32 %v1384, %v1577
  %v1610 = vmul.f32 %v1385, %v1578
  %v1611 = vmul.f32 %v1386, %v1579
  %v1612 = vmul.f32 %v1387, %v1580
  %v1613 = vmul.f32 %v1388, %v1581
  %v1614 = vmul.f32 %v1389, %v1582
  %v1615 = vmul.f32 %v1390, %v1583
  %v1616 = vmul.f32 %v1391, %v1584
  %v1617 = vmul.f32 %v1392, %v1585
  %v1618 = vmul.f32 %v1393, %v1586
  %v1619 = vmul.f32 %v1394, %v1587
  %v1620 = vmul.f32 %v1395, %v1588
  %v1621 = vmul.f32 %v1396, %v1589
  %v1622 = vmul.f32 %v1397, %v1590
  %v1623 = vmul.f32 %v1398, %v1591
  %v1624 = vmul.f32 %v1399, %v1592
  %v1625 = vmul.f32 %v1400, %v1593
  %v1626 = vmul.f32 %v1401, %v1594
  %v1627 = vmul.f32 %v1402, %v1595
  %v1628 = vmul.f32 %v1403, %v1596
  %v1629 = vmul.f32 %v1404, %v1597
  %v1630 = vmul.f32 %v1405, %v1598
  %v1631 = vmul.f32 %v1406, %v1599
  %v1632 = vmul.f32 %v1407, %v1600
  %v1633 = vmul.f32 %v1408, %v1601
  %v1634 = vmul.f32 %v1409, %v1602
  %v1635 = vmul.f32 %v1410, %v1603
  %v1636 = vmul.f32 %v1411, %v1604
  %v1637 = vmul.f32 %v1412, %v1605
  %v1638 = vpack.c.bf16 %v1606, %v1606
  %v1639 = vpack.c.bf16 %v1607, %v1607
  %v1640 = vpack.c.bf16 %v1608, %v1608
  %v1641 = vpack.c.bf16 %v1609, %v1609
  %v1642 = vpack.c.bf16 %v1610, %v1610
  %v1643 = vpack.c.bf16 %v1611, %v1611
  %v1644 = vpack.c.bf16 %v1612, %v1612
  %v1645 = vpack.c.bf16 %v1613, %v1613
  %v1646 = vpack.c.bf16 %v1614, %v1614
  %v1647 = vpack.c.bf16 %v1615, %v1615
  %v1648 = vpack.c.bf16 %v1616, %v1616
  %v1649 = vpack.c.bf16 %v1617, %v1617
  %v1650 = vpack.c.bf16 %v1618, %v1618
  %v1651 = vpack.c.bf16 %v1619, %v1619
  %v1652 = vpack.c.bf16 %v1620, %v1620
  %v1653 = vpack.c.bf16 %v1621, %v1621
  %v1654 = vpack.c.bf16 %v1622, %v1622
  %v1655 = vpack.c.bf16 %v1623, %v1623
  %v1656 = vpack.c.bf16 %v1624, %v1624
  %v1657 = vpack.c.bf16 %v1625, %v1625
  %v1658 = vpack.c.bf16 %v1626, %v1626
  %v1659 = vpack.c.bf16 %v1627, %v1627
  %v1660 = vpack.c.bf16 %v1628, %v1628
  %v1661 = vpack.c.bf16 %v1629, %v1629
  %v1662 = vpack.c.bf16 %v1630, %v1630
  %v1663 = vpack.c.bf16 %v1631, %v1631
  %v1664 = vpack.c.bf16 %v1632, %v1632
  %v1665 = vpack.c.bf16 %v1633, %v1633
  %v1666 = vpack.c.bf16 %v1634, %v1634
  %v1667 = vpack.c.bf16 %v1635, %v1635
  %v1668 = vpack.c.bf16 %v1636, %v1636
  %v1669 = vpack.c.bf16 %v1637, %v1637
  %v1671 = vunpack.c.l.b16 %v389
  %v1672 = vpack.c.b16 %v1671, %v1671
  %1673 = vrot.lane.b32.xlu0 %v1672, 64
  %v1674 = vpop.permute.xlu0 %1673
  %v1676 = vsel %vm1413, %v1638, 0
  %vm1678 = vcmask 1043456
  %v1680 = vsel %vm1678, %v1674, 0
  %1682 = vmatpush.bf16.msra.mxu0 0
  %1683 = vmatpush.bf16.msra.mxu0 0
  %1684 = vmatpush.bf16.msra.mxu0 0
  %1685 = vmatpush.bf16.msra.mxu0 0
  %1686 = vmatpush.bf16.msra.mxu0 0
  %1687 = vmatpush.bf16.msra.mxu0 0
  %1688 = vmatpush.bf16.msra.mxu0 0
  %1689 = vmatpush.bf16.msra.mxu0 %v1680
  %1690 = vmatmul.bf16.gmra.mxu0 %v1676
  %v1691 = vpop.f32.mrf.mxu0
  %v1692 = vadd.f32 0.0, %v1691
  %v1693 = vpop.f32.mrf.mxu0
  %1694 = vdwg.mxu0
  %v1696 = vunpack.c.l.b16 %v390
  %v1697 = vpack.c.b16 %v1696, %v1696
  %1698 = vrot.lane.b32.xlu0 %v1697, 64
  %v1699 = vpop.permute.xlu0 %1698
  %v1701 = vsel %vm1413, %v1639, 0
  %v1704 = vsel %vm1678, %v1699, 0
  %1706 = vmatpush.bf16.msra.mxu0 0
  %1707 = vmatpush.bf16.msra.mxu0 0
  %1708 = vmatpush.bf16.msra.mxu0 0
  %1709 = vmatpush.bf16.msra.mxu0 0
  %1710 = vmatpush.bf16.msra.mxu0 0
  %1711 = vmatpush.bf16.msra.mxu0 0
  %1712 = vmatpush.bf16.msra.mxu0 0
  %1713 = vmatpush.bf16.msra.mxu0 %v1704
  %1714 = vmatmul.bf16.gmra.mxu0 %v1701
  %v1715 = vpop.f32.mrf.mxu0
  %v1716 = vadd.f32 0.0, %v1715
  %v1717 = vpop.f32.mrf.mxu0
  %1718 = vdwg.mxu0
  %v1720 = vunpack.c.l.b16 %v391
  %v1721 = vpack.c.b16 %v1720, %v1720
  %1722 = vrot.lane.b32.xlu0 %v1721, 64
  %v1723 = vpop.permute.xlu0 %1722
  %v1725 = vsel %vm1413, %v1640, 0
  %v1728 = vsel %vm1678, %v1723, 0
  %1730 = vmatpush.bf16.msra.mxu0 0
  %1731 = vmatpush.bf16.msra.mxu0 0
  %1732 = vmatpush.bf16.msra.mxu0 0
  %1733 = vmatpush.bf16.msra.mxu0 0
  %1734 = vmatpush.bf16.msra.mxu0 0
  %1735 = vmatpush.bf16.msra.mxu0 0
  %1736 = vmatpush.bf16.msra.mxu0 0
  %1737 = vmatpush.bf16.msra.mxu0 %v1728
  %1738 = vmatmul.bf16.gmra.mxu0 %v1725
  %v1739 = vpop.f32.mrf.mxu0
  %v1740 = vadd.f32 0.0, %v1739
  %v1741 = vpop.f32.mrf.mxu0
  %1742 = vdwg.mxu0
  %v1744 = vunpack.c.l.b16 %v392
  %v1745 = vpack.c.b16 %v1744, %v1744
  %1746 = vrot.lane.b32.xlu0 %v1745, 64
  %v1747 = vpop.permute.xlu0 %1746
  %v1749 = vsel %vm1413, %v1641, 0
  %v1752 = vsel %vm1678, %v1747, 0
  %1754 = vmatpush.bf16.msra.mxu0 0
  %1755 = vmatpush.bf16.msra.mxu0 0
  %1756 = vmatpush.bf16.msra.mxu0 0
  %1757 = vmatpush.bf16.msra.mxu0 0
  %1758 = vmatpush.bf16.msra.mxu0 0
  %1759 = vmatpush.bf16.msra.mxu0 0
  %1760 = vmatpush.bf16.msra.mxu0 0
  %1761 = vmatpush.bf16.msra.mxu0 %v1752
  %1762 = vmatmul.bf16.gmra.mxu0 %v1749
  %v1763 = vpop.f32.mrf.mxu0
  %v1764 = vadd.f32 0.0, %v1763
  %v1765 = vpop.f32.mrf.mxu0
  %1766 = vdwg.mxu0
  %v1768 = vunpack.c.l.b16 %v393
  %v1769 = vpack.c.b16 %v1768, %v1768
  %1770 = vrot.lane.b32.xlu0 %v1769, 64
  %v1771 = vpop.permute.xlu0 %1770
  %v1773 = vsel %vm1413, %v1642, 0
  %v1776 = vsel %vm1678, %v1771, 0
  %1778 = vmatpush.bf16.msra.mxu0 0
  %1779 = vmatpush.bf16.msra.mxu0 0
  %1780 = vmatpush.bf16.msra.mxu0 0
  %1781 = vmatpush.bf16.msra.mxu0 0
  %1782 = vmatpush.bf16.msra.mxu0 0
  %1783 = vmatpush.bf16.msra.mxu0 0
  %1784 = vmatpush.bf16.msra.mxu0 0
  %1785 = vmatpush.bf16.msra.mxu0 %v1776
  %1786 = vmatmul.bf16.gmra.mxu0 %v1773
  %v1787 = vpop.f32.mrf.mxu0
  %v1788 = vadd.f32 0.0, %v1787
  %v1789 = vpop.f32.mrf.mxu0
  %1790 = vdwg.mxu0
  %v1792 = vunpack.c.l.b16 %v394
  %v1793 = vpack.c.b16 %v1792, %v1792
  %1794 = vrot.lane.b32.xlu0 %v1793, 64
  %v1795 = vpop.permute.xlu0 %1794
  %v1797 = vsel %vm1413, %v1643, 0
  %v1800 = vsel %vm1678, %v1795, 0
  %1802 = vmatpush.bf16.msra.mxu0 0
  %1803 = vmatpush.bf16.msra.mxu0 0
  %1804 = vmatpush.bf16.msra.mxu0 0
  %1805 = vmatpush.bf16.msra.mxu0 0
  %1806 = vmatpush.bf16.msra.mxu0 0
  %1807 = vmatpush.bf16.msra.mxu0 0
  %1808 = vmatpush.bf16.msra.mxu0 0
  %1809 = vmatpush.bf16.msra.mxu0 %v1800
  %1810 = vmatmul.bf16.gmra.mxu0 %v1797
  %v1811 = vpop.f32.mrf.mxu0
  %v1812 = vadd.f32 0.0, %v1811
  %v1813 = vpop.f32.mrf.mxu0
  %1814 = vdwg.mxu0
  %v1816 = vunpack.c.l.b16 %v395
  %v1817 = vpack.c.b16 %v1816, %v1816
  %1818 = vrot.lane.b32.xlu0 %v1817, 64
  %v1819 = vpop.permute.xlu0 %1818
  %v1821 = vsel %vm1413, %v1644, 0
  %v1824 = vsel %vm1678, %v1819, 0
  %1826 = vmatpush.bf16.msra.mxu0 0
  %1827 = vmatpush.bf16.msra.mxu0 0
  %1828 = vmatpush.bf16.msra.mxu0 0
  %1829 = vmatpush.bf16.msra.mxu0 0
  %1830 = vmatpush.bf16.msra.mxu0 0
  %1831 = vmatpush.bf16.msra.mxu0 0
  %1832 = vmatpush.bf16.msra.mxu0 0
  %1833 = vmatpush.bf16.msra.mxu0 %v1824
  %1834 = vmatmul.bf16.gmra.mxu0 %v1821
  %v1835 = vpop.f32.mrf.mxu0
  %v1836 = vadd.f32 0.0, %v1835
  %v1837 = vpop.f32.mrf.mxu0
  %1838 = vdwg.mxu0
  %v1840 = vunpack.c.l.b16 %v396
  %v1841 = vpack.c.b16 %v1840, %v1840
  %1842 = vrot.lane.b32.xlu0 %v1841, 64
  %v1843 = vpop.permute.xlu0 %1842
  %v1845 = vsel %vm1413, %v1645, 0
  %v1848 = vsel %vm1678, %v1843, 0
  %1850 = vmatpush.bf16.msra.mxu0 0
  %1851 = vmatpush.bf16.msra.mxu0 0
  %1852 = vmatpush.bf16.msra.mxu0 0
  %1853 = vmatpush.bf16.msra.mxu0 0
  %1854 = vmatpush.bf16.msra.mxu0 0
  %1855 = vmatpush.bf16.msra.mxu0 0
  %1856 = vmatpush.bf16.msra.mxu0 0
  %1857 = vmatpush.bf16.msra.mxu0 %v1848
  %1858 = vmatmul.bf16.gmra.mxu0 %v1845
  %v1859 = vpop.f32.mrf.mxu0
  %v1860 = vadd.f32 0.0, %v1859
  %v1861 = vpop.f32.mrf.mxu0
  %1862 = vdwg.mxu0
  %v1864 = vunpack.c.l.b16 %v397
  %v1865 = vpack.c.b16 %v1864, %v1864
  %1866 = vrot.lane.b32.xlu0 %v1865, 64
  %v1867 = vpop.permute.xlu0 %1866
  %v1869 = vsel %vm1413, %v1646, 0
  %v1872 = vsel %vm1678, %v1867, 0
  %1874 = vmatpush.bf16.msra.mxu0 0
  %1875 = vmatpush.bf16.msra.mxu0 0
  %1876 = vmatpush.bf16.msra.mxu0 0
  %1877 = vmatpush.bf16.msra.mxu0 0
  %1878 = vmatpush.bf16.msra.mxu0 0
  %1879 = vmatpush.bf16.msra.mxu0 0
  %1880 = vmatpush.bf16.msra.mxu0 0
  %1881 = vmatpush.bf16.msra.mxu0 %v1872
  %1882 = vmatmul.bf16.gmra.mxu0 %v1869
  %v1883 = vpop.f32.mrf.mxu0
  %v1884 = vadd.f32 0.0, %v1883
  %v1885 = vpop.f32.mrf.mxu0
  %1886 = vdwg.mxu0
  %v1888 = vunpack.c.l.b16 %v398
  %v1889 = vpack.c.b16 %v1888, %v1888
  %1890 = vrot.lane.b32.xlu0 %v1889, 64
  %v1891 = vpop.permute.xlu0 %1890
  %v1893 = vsel %vm1413, %v1647, 0
  %v1896 = vsel %vm1678, %v1891, 0
  %1898 = vmatpush.bf16.msra.mxu0 0
  %1899 = vmatpush.bf16.msra.mxu0 0
  %1900 = vmatpush.bf16.msra.mxu0 0
  %1901 = vmatpush.bf16.msra.mxu0 0
  %1902 = vmatpush.bf16.msra.mxu0 0
  %1903 = vmatpush.bf16.msra.mxu0 0
  %1904 = vmatpush.bf16.msra.mxu0 0
  %1905 = vmatpush.bf16.msra.mxu0 %v1896
  %1906 = vmatmul.bf16.gmra.mxu0 %v1893
  %v1907 = vpop.f32.mrf.mxu0
  %v1908 = vadd.f32 0.0, %v1907
  %v1909 = vpop.f32.mrf.mxu0
  %1910 = vdwg.mxu0
  %v1912 = vunpack.c.l.b16 %v399
  %v1913 = vpack.c.b16 %v1912, %v1912
  %1914 = vrot.lane.b32.xlu0 %v1913, 64
  %v1915 = vpop.permute.xlu0 %1914
  %v1917 = vsel %vm1413, %v1648, 0
  %v1920 = vsel %vm1678, %v1915, 0
  %1922 = vmatpush.bf16.msra.mxu0 0
  %1923 = vmatpush.bf16.msra.mxu0 0
  %1924 = vmatpush.bf16.msra.mxu0 0
  %1925 = vmatpush.bf16.msra.mxu0 0
  %1926 = vmatpush.bf16.msra.mxu0 0
  %1927 = vmatpush.bf16.msra.mxu0 0
  %1928 = vmatpush.bf16.msra.mxu0 0
  %1929 = vmatpush.bf16.msra.mxu0 %v1920
  %1930 = vmatmul.bf16.gmra.mxu0 %v1917
  %v1931 = vpop.f32.mrf.mxu0
  %v1932 = vadd.f32 0.0, %v1931
  %v1933 = vpop.f32.mrf.mxu0
  %1934 = vdwg.mxu0
  %v1936 = vunpack.c.l.b16 %v400
  %v1937 = vpack.c.b16 %v1936, %v1936
  %1938 = vrot.lane.b32.xlu0 %v1937, 64
  %v1939 = vpop.permute.xlu0 %1938
  %v1941 = vsel %vm1413, %v1649, 0
  %v1944 = vsel %vm1678, %v1939, 0
  %1946 = vmatpush.bf16.msra.mxu0 0
  %1947 = vmatpush.bf16.msra.mxu0 0
  %1948 = vmatpush.bf16.msra.mxu0 0
  %1949 = vmatpush.bf16.msra.mxu0 0
  %1950 = vmatpush.bf16.msra.mxu0 0
  %1951 = vmatpush.bf16.msra.mxu0 0
  %1952 = vmatpush.bf16.msra.mxu0 0
  %1953 = vmatpush.bf16.msra.mxu0 %v1944
  %1954 = vmatmul.bf16.gmra.mxu0 %v1941
  %v1955 = vpop.f32.mrf.mxu0
  %v1956 = vadd.f32 0.0, %v1955
  %v1957 = vpop.f32.mrf.mxu0
  %1958 = vdwg.mxu0
  %v1960 = vunpack.c.l.b16 %v401
  %v1961 = vpack.c.b16 %v1960, %v1960
  %1962 = vrot.lane.b32.xlu0 %v1961, 64
  %v1963 = vpop.permute.xlu0 %1962
  %v1965 = vsel %vm1413, %v1650, 0
  %v1968 = vsel %vm1678, %v1963, 0
  %1970 = vmatpush.bf16.msra.mxu0 0
  %1971 = vmatpush.bf16.msra.mxu0 0
  %1972 = vmatpush.bf16.msra.mxu0 0
  %1973 = vmatpush.bf16.msra.mxu0 0
  %1974 = vmatpush.bf16.msra.mxu0 0
  %1975 = vmatpush.bf16.msra.mxu0 0
  %1976 = vmatpush.bf16.msra.mxu0 0
  %1977 = vmatpush.bf16.msra.mxu0 %v1968
  %1978 = vmatmul.bf16.gmra.mxu0 %v1965
  %v1979 = vpop.f32.mrf.mxu0
  %v1980 = vadd.f32 0.0, %v1979
  %v1981 = vpop.f32.mrf.mxu0
  %1982 = vdwg.mxu0
  %v1984 = vunpack.c.l.b16 %v402
  %v1985 = vpack.c.b16 %v1984, %v1984
  %1986 = vrot.lane.b32.xlu0 %v1985, 64
  %v1987 = vpop.permute.xlu0 %1986
  %v1989 = vsel %vm1413, %v1651, 0
  %v1992 = vsel %vm1678, %v1987, 0
  %1994 = vmatpush.bf16.msra.mxu0 0
  %1995 = vmatpush.bf16.msra.mxu0 0
  %1996 = vmatpush.bf16.msra.mxu0 0
  %1997 = vmatpush.bf16.msra.mxu0 0
  %1998 = vmatpush.bf16.msra.mxu0 0
  %1999 = vmatpush.bf16.msra.mxu0 0
  %2000 = vmatpush.bf16.msra.mxu0 0
  %2001 = vmatpush.bf16.msra.mxu0 %v1992
  %2002 = vmatmul.bf16.gmra.mxu0 %v1989
  %v2003 = vpop.f32.mrf.mxu0
  %v2004 = vadd.f32 0.0, %v2003
  %v2005 = vpop.f32.mrf.mxu0
  %2006 = vdwg.mxu0
  %v2008 = vunpack.c.l.b16 %v403
  %v2009 = vpack.c.b16 %v2008, %v2008
  %2010 = vrot.lane.b32.xlu0 %v2009, 64
  %v2011 = vpop.permute.xlu0 %2010
  %v2013 = vsel %vm1413, %v1652, 0
  %v2016 = vsel %vm1678, %v2011, 0
  %2018 = vmatpush.bf16.msra.mxu0 0
  %2019 = vmatpush.bf16.msra.mxu0 0
  %2020 = vmatpush.bf16.msra.mxu0 0
  %2021 = vmatpush.bf16.msra.mxu0 0
  %2022 = vmatpush.bf16.msra.mxu0 0
  %2023 = vmatpush.bf16.msra.mxu0 0
  %2024 = vmatpush.bf16.msra.mxu0 0
  %2025 = vmatpush.bf16.msra.mxu0 %v2016
  %2026 = vmatmul.bf16.gmra.mxu0 %v2013
  %v2027 = vpop.f32.mrf.mxu0
  %v2028 = vadd.f32 0.0, %v2027
  %v2029 = vpop.f32.mrf.mxu0
  %2030 = vdwg.mxu0
  %v2032 = vunpack.c.l.b16 %v404
  %v2033 = vpack.c.b16 %v2032, %v2032
  %2034 = vrot.lane.b32.xlu0 %v2033, 64
  %v2035 = vpop.permute.xlu0 %2034
  %v2037 = vsel %vm1413, %v1653, 0
  %v2040 = vsel %vm1678, %v2035, 0
  %2042 = vmatpush.bf16.msra.mxu0 0
  %2043 = vmatpush.bf16.msra.mxu0 0
  %2044 = vmatpush.bf16.msra.mxu0 0
  %2045 = vmatpush.bf16.msra.mxu0 0
  %2046 = vmatpush.bf16.msra.mxu0 0
  %2047 = vmatpush.bf16.msra.mxu0 0
  %2048 = vmatpush.bf16.msra.mxu0 0
  %2049 = vmatpush.bf16.msra.mxu0 %v2040
  %2050 = vmatmul.bf16.gmra.mxu0 %v2037
  %v2051 = vpop.f32.mrf.mxu0
  %v2052 = vadd.f32 0.0, %v2051
  %v2053 = vpop.f32.mrf.mxu0
  %2054 = vdwg.mxu0
  %v2056 = vunpack.c.l.b16 %v405
  %v2057 = vpack.c.b16 %v2056, %v2056
  %2058 = vrot.lane.b32.xlu0 %v2057, 64
  %v2059 = vpop.permute.xlu0 %2058
  %v2061 = vsel %vm1413, %v1654, 0
  %v2064 = vsel %vm1678, %v2059, 0
  %2066 = vmatpush.bf16.msra.mxu0 0
  %2067 = vmatpush.bf16.msra.mxu0 0
  %2068 = vmatpush.bf16.msra.mxu0 0
  %2069 = vmatpush.bf16.msra.mxu0 0
  %2070 = vmatpush.bf16.msra.mxu0 0
  %2071 = vmatpush.bf16.msra.mxu0 0
  %2072 = vmatpush.bf16.msra.mxu0 0
  %2073 = vmatpush.bf16.msra.mxu0 %v2064
  %2074 = vmatmul.bf16.gmra.mxu0 %v2061
  %v2075 = vpop.f32.mrf.mxu0
  %v2076 = vadd.f32 0.0, %v2075
  %v2077 = vpop.f32.mrf.mxu0
  %2078 = vdwg.mxu0
  %v2080 = vunpack.c.l.b16 %v406
  %v2081 = vpack.c.b16 %v2080, %v2080
  %2082 = vrot.lane.b32.xlu0 %v2081, 64
  %v2083 = vpop.permute.xlu0 %2082
  %v2085 = vsel %vm1413, %v1655, 0
  %v2088 = vsel %vm1678, %v2083, 0
  %2090 = vmatpush.bf16.msra.mxu0 0
  %2091 = vmatpush.bf16.msra.mxu0 0
  %2092 = vmatpush.bf16.msra.mxu0 0
  %2093 = vmatpush.bf16.msra.mxu0 0
  %2094 = vmatpush.bf16.msra.mxu0 0
  %2095 = vmatpush.bf16.msra.mxu0 0
  %2096 = vmatpush.bf16.msra.mxu0 0
  %2097 = vmatpush.bf16.msra.mxu0 %v2088
  %2098 = vmatmul.bf16.gmra.mxu0 %v2085
  %v2099 = vpop.f32.mrf.mxu0
  %v2100 = vadd.f32 0.0, %v2099
  %v2101 = vpop.f32.mrf.mxu0
  %2102 = vdwg.mxu0
  %v2104 = vunpack.c.l.b16 %v407
  %v2105 = vpack.c.b16 %v2104, %v2104
  %2106 = vrot.lane.b32.xlu0 %v2105, 64
  %v2107 = vpop.permute.xlu0 %2106
  %v2109 = vsel %vm1413, %v1656, 0
  %v2112 = vsel %vm1678, %v2107, 0
  %2114 = vmatpush.bf16.msra.mxu0 0
  %2115 = vmatpush.bf16.msra.mxu0 0
  %2116 = vmatpush.bf16.msra.mxu0 0
  %2117 = vmatpush.bf16.msra.mxu0 0
  %2118 = vmatpush.bf16.msra.mxu0 0
  %2119 = vmatpush.bf16.msra.mxu0 0
  %2120 = vmatpush.bf16.msra.mxu0 0
  %2121 = vmatpush.bf16.msra.mxu0 %v2112
  %2122 = vmatmul.bf16.gmra.mxu0 %v2109
  %v2123 = vpop.f32.mrf.mxu0
  %v2124 = vadd.f32 0.0, %v2123
  %v2125 = vpop.f32.mrf.mxu0
  %2126 = vdwg.mxu0
  %v2128 = vunpack.c.l.b16 %v408
  %v2129 = vpack.c.b16 %v2128, %v2128
  %2130 = vrot.lane.b32.xlu0 %v2129, 64
  %v2131 = vpop.permute.xlu0 %2130
  %v2133 = vsel %vm1413, %v1657, 0
  %v2136 = vsel %vm1678, %v2131, 0
  %2138 = vmatpush.bf16.msra.mxu0 0
  %2139 = vmatpush.bf16.msra.mxu0 0
  %2140 = vmatpush.bf16.msra.mxu0 0
  %2141 = vmatpush.bf16.msra.mxu0 0
  %2142 = vmatpush.bf16.msra.mxu0 0
  %2143 = vmatpush.bf16.msra.mxu0 0
  %2144 = vmatpush.bf16.msra.mxu0 0
  %2145 = vmatpush.bf16.msra.mxu0 %v2136
  %2146 = vmatmul.bf16.gmra.mxu0 %v2133
  %v2147 = vpop.f32.mrf.mxu0
  %v2148 = vadd.f32 0.0, %v2147
  %v2149 = vpop.f32.mrf.mxu0
  %2150 = vdwg.mxu0
  %v2152 = vunpack.c.l.b16 %v409
  %v2153 = vpack.c.b16 %v2152, %v2152
  %2154 = vrot.lane.b32.xlu0 %v2153, 64
  %v2155 = vpop.permute.xlu0 %2154
  %v2157 = vsel %vm1413, %v1658, 0
  %v2160 = vsel %vm1678, %v2155, 0
  %2162 = vmatpush.bf16.msra.mxu0 0
  %2163 = vmatpush.bf16.msra.mxu0 0
  %2164 = vmatpush.bf16.msra.mxu0 0
  %2165 = vmatpush.bf16.msra.mxu0 0
  %2166 = vmatpush.bf16.msra.mxu0 0
  %2167 = vmatpush.bf16.msra.mxu0 0
  %2168 = vmatpush.bf16.msra.mxu0 0
  %2169 = vmatpush.bf16.msra.mxu0 %v2160
  %2170 = vmatmul.bf16.gmra.mxu0 %v2157
  %v2171 = vpop.f32.mrf.mxu0
  %v2172 = vadd.f32 0.0, %v2171
  %v2173 = vpop.f32.mrf.mxu0
  %2174 = vdwg.mxu0
  %v2176 = vunpack.c.l.b16 %v410
  %v2177 = vpack.c.b16 %v2176, %v2176
  %2178 = vrot.lane.b32.xlu0 %v2177, 64
  %v2179 = vpop.permute.xlu0 %2178
  %v2181 = vsel %vm1413, %v1659, 0
  %v2184 = vsel %vm1678, %v2179, 0
  %2186 = vmatpush.bf16.msra.mxu0 0
  %2187 = vmatpush.bf16.msra.mxu0 0
  %2188 = vmatpush.bf16.msra.mxu0 0
  %2189 = vmatpush.bf16.msra.mxu0 0
  %2190 = vmatpush.bf16.msra.mxu0 0
  %2191 = vmatpush.bf16.msra.mxu0 0
  %2192 = vmatpush.bf16.msra.mxu0 0
  %2193 = vmatpush.bf16.msra.mxu0 %v2184
  %2194 = vmatmul.bf16.gmra.mxu0 %v2181
  %v2195 = vpop.f32.mrf.mxu0
  %v2196 = vadd.f32 0.0, %v2195
  %v2197 = vpop.f32.mrf.mxu0
  %2198 = vdwg.mxu0
  %v2200 = vunpack.c.l.b16 %v411
  %v2201 = vpack.c.b16 %v2200, %v2200
  %2202 = vrot.lane.b32.xlu0 %v2201, 64
  %v2203 = vpop.permute.xlu0 %2202
  %v2205 = vsel %vm1413, %v1660, 0
  %v2208 = vsel %vm1678, %v2203, 0
  %2210 = vmatpush.bf16.msra.mxu0 0
  %2211 = vmatpush.bf16.msra.mxu0 0
  %2212 = vmatpush.bf16.msra.mxu0 0
  %2213 = vmatpush.bf16.msra.mxu0 0
  %2214 = vmatpush.bf16.msra.mxu0 0
  %2215 = vmatpush.bf16.msra.mxu0 0
  %2216 = vmatpush.bf16.msra.mxu0 0
  %2217 = vmatpush.bf16.msra.mxu0 %v2208
  %2218 = vmatmul.bf16.gmra.mxu0 %v2205
  %v2219 = vpop.f32.mrf.mxu0
  %v2220 = vadd.f32 0.0, %v2219
  %v2221 = vpop.f32.mrf.mxu0
  %2222 = vdwg.mxu0
  %v2224 = vunpack.c.l.b16 %v412
  %v2225 = vpack.c.b16 %v2224, %v2224
  %2226 = vrot.lane.b32.xlu0 %v2225, 64
  %v2227 = vpop.permute.xlu0 %2226
  %v2229 = vsel %vm1413, %v1661, 0
  %v2232 = vsel %vm1678, %v2227, 0
  %2234 = vmatpush.bf16.msra.mxu0 0
  %2235 = vmatpush.bf16.msra.mxu0 0
  %2236 = vmatpush.bf16.msra.mxu0 0
  %2237 = vmatpush.bf16.msra.mxu0 0
  %2238 = vmatpush.bf16.msra.mxu0 0
  %2239 = vmatpush.bf16.msra.mxu0 0
  %2240 = vmatpush.bf16.msra.mxu0 0
  %2241 = vmatpush.bf16.msra.mxu0 %v2232
  %2242 = vmatmul.bf16.gmra.mxu0 %v2229
  %v2243 = vpop.f32.mrf.mxu0
  %v2244 = vadd.f32 0.0, %v2243
  %v2245 = vpop.f32.mrf.mxu0
  %2246 = vdwg.mxu0
  %v2248 = vunpack.c.l.b16 %v413
  %v2249 = vpack.c.b16 %v2248, %v2248
  %2250 = vrot.lane.b32.xlu0 %v2249, 64
  %v2251 = vpop.permute.xlu0 %2250
  %v2253 = vsel %vm1413, %v1662, 0
  %v2256 = vsel %vm1678, %v2251, 0
  %2258 = vmatpush.bf16.msra.mxu0 0
  %2259 = vmatpush.bf16.msra.mxu0 0
  %2260 = vmatpush.bf16.msra.mxu0 0
  %2261 = vmatpush.bf16.msra.mxu0 0
  %2262 = vmatpush.bf16.msra.mxu0 0
  %2263 = vmatpush.bf16.msra.mxu0 0
  %2264 = vmatpush.bf16.msra.mxu0 0
  %2265 = vmatpush.bf16.msra.mxu0 %v2256
  %2266 = vmatmul.bf16.gmra.mxu0 %v2253
  %v2267 = vpop.f32.mrf.mxu0
  %v2268 = vadd.f32 0.0, %v2267
  %v2269 = vpop.f32.mrf.mxu0
  %2270 = vdwg.mxu0
  %v2272 = vunpack.c.l.b16 %v414
  %v2273 = vpack.c.b16 %v2272, %v2272
  %2274 = vrot.lane.b32.xlu0 %v2273, 64
  %v2275 = vpop.permute.xlu0 %2274
  %v2277 = vsel %vm1413, %v1663, 0
  %v2280 = vsel %vm1678, %v2275, 0
  %2282 = vmatpush.bf16.msra.mxu0 0
  %2283 = vmatpush.bf16.msra.mxu0 0
  %2284 = vmatpush.bf16.msra.mxu0 0
  %2285 = vmatpush.bf16.msra.mxu0 0
  %2286 = vmatpush.bf16.msra.mxu0 0
  %2287 = vmatpush.bf16.msra.mxu0 0
  %2288 = vmatpush.bf16.msra.mxu0 0
  %2289 = vmatpush.bf16.msra.mxu0 %v2280
  %2290 = vmatmul.bf16.gmra.mxu0 %v2277
  %v2291 = vpop.f32.mrf.mxu0
  %v2292 = vadd.f32 0.0, %v2291
  %v2293 = vpop.f32.mrf.mxu0
  %2294 = vdwg.mxu0
  %v2296 = vunpack.c.l.b16 %v415
  %v2297 = vpack.c.b16 %v2296, %v2296
  %2298 = vrot.lane.b32.xlu0 %v2297, 64
  %v2299 = vpop.permute.xlu0 %2298
  %v2301 = vsel %vm1413, %v1664, 0
  %v2304 = vsel %vm1678, %v2299, 0
  %2306 = vmatpush.bf16.msra.mxu0 0
  %2307 = vmatpush.bf16.msra.mxu0 0
  %2308 = vmatpush.bf16.msra.mxu0 0
  %2309 = vmatpush.bf16.msra.mxu0 0
  %2310 = vmatpush.bf16.msra.mxu0 0
  %2311 = vmatpush.bf16.msra.mxu0 0
  %2312 = vmatpush.bf16.msra.mxu0 0
  %2313 = vmatpush.bf16.msra.mxu0 %v2304
  %2314 = vmatmul.bf16.gmra.mxu0 %v2301
  %v2315 = vpop.f32.mrf.mxu0
  %v2316 = vadd.f32 0.0, %v2315
  %v2317 = vpop.f32.mrf.mxu0
  %2318 = vdwg.mxu0
  %v2320 = vunpack.c.l.b16 %v416
  %v2321 = vpack.c.b16 %v2320, %v2320
  %2322 = vrot.lane.b32.xlu0 %v2321, 64
  %v2323 = vpop.permute.xlu0 %2322
  %v2325 = vsel %vm1413, %v1665, 0
  %v2328 = vsel %vm1678, %v2323, 0
  %2330 = vmatpush.bf16.msra.mxu0 0
  %2331 = vmatpush.bf16.msra.mxu0 0
  %2332 = vmatpush.bf16.msra.mxu0 0
  %2333 = vmatpush.bf16.msra.mxu0 0
  %2334 = vmatpush.bf16.msra.mxu0 0
  %2335 = vmatpush.bf16.msra.mxu0 0
  %2336 = vmatpush.bf16.msra.mxu0 0
  %2337 = vmatpush.bf16.msra.mxu0 %v2328
  %2338 = vmatmul.bf16.gmra.mxu0 %v2325
  %v2339 = vpop.f32.mrf.mxu0
  %v2340 = vadd.f32 0.0, %v2339
  %v2341 = vpop.f32.mrf.mxu0
  %2342 = vdwg.mxu0
  %v2344 = vunpack.c.l.b16 %v417
  %v2345 = vpack.c.b16 %v2344, %v2344
  %2346 = vrot.lane.b32.xlu0 %v2345, 64
  %v2347 = vpop.permute.xlu0 %2346
  %v2349 = vsel %vm1413, %v1666, 0
  %v2352 = vsel %vm1678, %v2347, 0
  %2354 = vmatpush.bf16.msra.mxu0 0
  %2355 = vmatpush.bf16.msra.mxu0 0
  %2356 = vmatpush.bf16.msra.mxu0 0
  %2357 = vmatpush.bf16.msra.mxu0 0
  %2358 = vmatpush.bf16.msra.mxu0 0
  %2359 = vmatpush.bf16.msra.mxu0 0
  %2360 = vmatpush.bf16.msra.mxu0 0
  %2361 = vmatpush.bf16.msra.mxu0 %v2352
  %2362 = vmatmul.bf16.gmra.mxu0 %v2349
  %v2363 = vpop.f32.mrf.mxu0
  %v2364 = vadd.f32 0.0, %v2363
  %v2365 = vpop.f32.mrf.mxu0
  %2366 = vdwg.mxu0
  %v2368 = vunpack.c.l.b16 %v418
  %v2369 = vpack.c.b16 %v2368, %v2368
  %2370 = vrot.lane.b32.xlu0 %v2369, 64
  %v2371 = vpop.permute.xlu0 %2370
  %v2373 = vsel %vm1413, %v1667, 0
  %v2376 = vsel %vm1678, %v2371, 0
  %2378 = vmatpush.bf16.msra.mxu0 0
  %2379 = vmatpush.bf16.msra.mxu0 0
  %2380 = vmatpush.bf16.msra.mxu0 0
  %2381 = vmatpush.bf16.msra.mxu0 0
  %2382 = vmatpush.bf16.msra.mxu0 0
  %2383 = vmatpush.bf16.msra.mxu0 0
  %2384 = vmatpush.bf16.msra.mxu0 0
  %2385 = vmatpush.bf16.msra.mxu0 %v2376
  %2386 = vmatmul.bf16.gmra.mxu0 %v2373
  %v2387 = vpop.f32.mrf.mxu0
  %v2388 = vadd.f32 0.0, %v2387
  %v2389 = vpop.f32.mrf.mxu0
  %2390 = vdwg.mxu0
  %v2392 = vunpack.c.l.b16 %v419
  %v2393 = vpack.c.b16 %v2392, %v2392
  %2394 = vrot.lane.b32.xlu0 %v2393, 64
  %v2395 = vpop.permute.xlu0 %2394
  %v2397 = vsel %vm1413, %v1668, 0
  %v2400 = vsel %vm1678, %v2395, 0
  %2402 = vmatpush.bf16.msra.mxu0 0
  %2403 = vmatpush.bf16.msra.mxu0 0
  %2404 = vmatpush.bf16.msra.mxu0 0
  %2405 = vmatpush.bf16.msra.mxu0 0
  %2406 = vmatpush.bf16.msra.mxu0 0
  %2407 = vmatpush.bf16.msra.mxu0 0
  %2408 = vmatpush.bf16.msra.mxu0 0
  %2409 = vmatpush.bf16.msra.mxu0 %v2400
  %2410 = vmatmul.bf16.gmra.mxu0 %v2397
  %v2411 = vpop.f32.mrf.mxu0
  %v2412 = vadd.f32 0.0, %v2411
  %v2413 = vpop.f32.mrf.mxu0
  %2414 = vdwg.mxu0
  %v2416 = vunpack.c.l.b16 %v420
  %v2417 = vpack.c.b16 %v2416, %v2416
  %2418 = vrot.lane.b32.xlu0 %v2417, 64
  %v2419 = vpop.permute.xlu0 %2418
  %v2421 = vsel %vm1413, %v1669, 0
  %v2424 = vsel %vm1678, %v2419, 0
  %2426 = vmatpush.bf16.msra.mxu0 0
  %2427 = vmatpush.bf16.msra.mxu0 0
  %2428 = vmatpush.bf16.msra.mxu0 0
  %2429 = vmatpush.bf16.msra.mxu0 0
  %2430 = vmatpush.bf16.msra.mxu0 0
  %2431 = vmatpush.bf16.msra.mxu0 0
  %2432 = vmatpush.bf16.msra.mxu0 0
  %2433 = vmatpush.bf16.msra.mxu0 %v2424
  %2434 = vmatmul.bf16.gmra.mxu0 %v2421
  %v2435 = vpop.f32.mrf.mxu0
  %v2436 = vadd.f32 0.0, %v2435
  %v2437 = vpop.f32.mrf.mxu0
  %2438 = vdwg.mxu0
  %v2439 = vadd.f32 %v1692, 0.0
  %v2440 = vadd.f32 %v1716, 0.0
  %v2441 = vadd.f32 %v2439, %v1740
  %v2442 = vadd.f32 %v2440, %v1764
  %v2443 = vadd.f32 %v2441, %v1788
  %v2444 = vadd.f32 %v2442, %v1812
  %v2445 = vadd.f32 %v2443, %v1836
  %v2446 = vadd.f32 %v2444, %v1860
  %v2447 = vadd.f32 %v2445, %v1884
  %v2448 = vadd.f32 %v2446, %v1908
  %v2449 = vadd.f32 %v2447, %v1932
  %v2450 = vadd.f32 %v2448, %v1956
  %v2451 = vadd.f32 %v2449, %v1980
  %v2452 = vadd.f32 %v2450, %v2004
  %v2453 = vadd.f32 %v2451, %v2028
  %v2454 = vadd.f32 %v2452, %v2052
  %v2455 = vadd.f32 %v2453, %v2076
  %v2456 = vadd.f32 %v2454, %v2100
  %v2457 = vadd.f32 %v2455, %v2124
  %v2458 = vadd.f32 %v2456, %v2148
  %v2459 = vadd.f32 %v2457, %v2172
  %v2460 = vadd.f32 %v2458, %v2196
  %v2461 = vadd.f32 %v2459, %v2220
  %v2462 = vadd.f32 %v2460, %v2244
  %v2463 = vadd.f32 %v2461, %v2268
  %v2464 = vadd.f32 %v2462, %v2292
  %v2465 = vadd.f32 %v2463, %v2316
  %v2466 = vadd.f32 %v2464, %v2340
  %v2467 = vadd.f32 %v2465, %v2364
  %v2468 = vadd.f32 %v2466, %v2388
  %v2469 = vadd.f32 %v2467, %v2412
  %v2470 = vadd.f32 %v2468, %v2436
  %v2471 = vmul.f32 %v2469, 0.25
  %v2472 = vmul.f32 %v2470, 0.25
  %v2473 = vadd.f32 %v134, %v2471
  %v2474 = vadd.f32 %v135, %v2472
  %v2475 = vld [vmem:[%s6] sm:$0x1]
  %v2476 = vld [vmem:[%s7] sm:$0x1]
  %v2477 = vsel %vm74, %v2473, 0.0
  %2478 = vadd.xlane.f32.xlu0 %v2477
  %v2479 = vpop.xlane.xlu0 %2478
  %v2480 = vsel %vm74, %v2474, 0.0
  %2481 = vadd.xlane.f32.xlu0 %v2480
  %v2482 = vpop.xlane.xlu0 %2481
  %v2483 = vmul.f32 %v2479, %v87
  %v2484 = vmul.f32 %v2482, %v87
  %v2485 = vsub.f32 %v2473, %v2483
  %v2486 = vsub.f32 %v2474, %v2484
  %v2487 = vmul.f32 %v2485, %v2485
  %v2488 = vmul.f32 %v2486, %v2486
  %v2489 = vsel %vm74, %v2487, 0.0
  %2490 = vadd.xlane.f32.xlu0 %v2489
  %v2491 = vpop.xlane.xlu0 %2490
  %v2492 = vsel %vm74, %v2488, 0.0
  %2493 = vadd.xlane.f32.xlu0 %v2492
  %v2494 = vpop.xlane.xlu0 %2493
  %v2495 = vmul.f32 %v2491, %v87
  %v2496 = vmul.f32 %v2494, %v87
  %v2497 = vadd.f32 %v2495, 1e-05
  %v2498 = vadd.f32 %v2496, 1e-05
  %v2499 = vrsqrt.pop %v2497
  %v2500 = vmul.f32 %v2499, %v2497
  %v2501 = vmul.f32 %v2500, %v2499
  %v2502 = vmul.f32 0.5, %v2501
  %v2503 = vsub.f32 1.5, %v2502
  %v2504 = vmul.f32 %v2499, %v2503
  %vm2505 = vweird.f32 %v2497
  %vm2506 = vweird.f32 %v2499
  %vm2507 = vmor %vm2505, %vm2506
  %v2508 = vsel %vm2507, %v2499, %v2504
  %v2509 = vrsqrt.pop %v2498
  %v2510 = vmul.f32 %v2509, %v2498
  %v2511 = vmul.f32 %v2510, %v2509
  %v2512 = vmul.f32 0.5, %v2511
  %v2513 = vsub.f32 1.5, %v2512
  %v2514 = vmul.f32 %v2509, %v2513
  %vm2515 = vweird.f32 %v2498
  %vm2516 = vweird.f32 %v2509
  %vm2517 = vmor %vm2515, %vm2516
  %v2518 = vsel %vm2517, %v2509, %v2514
  %v2519 = vmul.f32 %v2485, %v2508
  %v2520 = vmul.f32 %v2486, %v2518
  %v2521 = vperm.slane %v2475, 0
  %v2522 = vmul.f32 %v2519, %v2521
  %v2523 = vmul.f32 %v2520, %v2521
  %v2524 = vperm.slane %v2476, 0
  %v2525 = vadd.f32 %v2522, %v2524
  %v2526 = vadd.f32 %v2523, %v2524
  %v2527 = vld [vmem:[%s8] sm:$0xff]
  %v2528 = vld [vmem:[%s8 + $0x8] sm:$0xff]
  %v2529 = vld [vmem:[%s8 + $0x10] sm:$0xff]
  %v2530 = vld [vmem:[%s8 + $0x18] sm:$0xff]
  %v2531 = vld [vmem:[%s9] sm:$0x1]
  %v2532 = vperm.slane %v2531, 0
  %v2534 = vsel %vm74, %v2525, 0
  %v2537 = vsel %vm74, %v2526, 0
  %2539 = vmatpush.msra.mxu0 0.0
  %2540 = vmatpush.msra.mxu0 0.0
  %2541 = vmatpush.msra.mxu0 0.0
  %2542 = vmatpush.msra.mxu0 0.0
  %2543 = vmatpush.msra.mxu0 0.0
  %2544 = vmatpush.msra.mxu0 0.0
  %2545 = vmatpush.msra.mxu0 0.0
  %2546 = vmatpush.msra.mxu0 0.0
  %2547 = vmatpush.msra.mxu0 0.0
  %2548 = vmatpush.msra.mxu0 0.0
  %2549 = vmatpush.msra.mxu0 0.0
  %2550 = vmatpush.msra.mxu0 0.0
  %2551 = vmatpush.msra.mxu0 %v2530
  %2552 = vmatpush.msra.mxu0 %v2529
  %2553 = vmatpush.msra.mxu0 %v2528
  %2554 = vmatpush.msra.mxu0 %v2527
  %2555 = vmatmul.f32.gmra.mxu0 %v2534
  %v2556 = vpop.f32.mrf.mxu0
  %v2557 = vadd.f32 %v2532, %v2556
  %2558 = vmatmul.f32.gmra.mxu0 %v2537
  %v2559 = vpop.f32.mrf.mxu0
  %v2560 = vadd.f32 %v2532, %v2559
  %2561 = vdwg.mxu0
  %vm2562 = vcmp.ge.f32.partialorder %v2557, 2.0
  %vm2563 = vcmp.ge.f32.partialorder %v2560, 2.0
  %v2564 = vsel %vm2562, 1, 0
  %v2565 = vsel %vm2563, 1, 0
  %v2566 = vcvt.s32.f32 %v2564
  %v2567 = vcvt.s32.f32 %v2565
  %vm2568 = vcmp.ge.f32.partialorder %v2557, 1.3333334
  %vm2569 = vcmp.ge.f32.partialorder %v2560, 1.3333334
  %v2570 = vsel %vm2568, 1, 0
  %v2571 = vsel %vm2569, 1, 0
  %v2572 = vcvt.s32.f32 %v2570
  %v2573 = vcvt.s32.f32 %v2571
  %vm2574 = vcmp.ge.f32.partialorder %v2557, 1.1428572
  %vm2575 = vcmp.ge.f32.partialorder %v2560, 1.1428572
  %v2576 = vsel %vm2574, 1, 0
  %v2577 = vsel %vm2575, 1, 0
  %v2578 = vcvt.s32.f32 %v2576
  %v2579 = vcvt.s32.f32 %v2577
  %vm2580 = vcmp.ge.f32.partialorder %v2557, 1.0666667
  %vm2581 = vcmp.ge.f32.partialorder %v2560, 1.0666667
  %v2582 = vsel %vm2580, 1, 0
  %v2583 = vsel %vm2581, 1, 0
  %v2584 = vcvt.s32.f32 %v2582
  %v2585 = vcvt.s32.f32 %v2583
  %v2586 = vsub.f32 %v2572, %v2566
  %v2587 = vsub.f32 %v2573, %v2567
  %v2588 = vsub.f32 %v2578, %v2572
  %v2589 = vsub.f32 %v2579, %v2573
  %v2590 = vsub.f32 %v2584, %v2578
  %v2591 = vsub.f32 %v2585, %v2579
  %v2592 = vadd.f32 %v2566, %v2586
  %v2593 = vadd.f32 %v2567, %v2587
  %v2594 = vadd.f32 %v2566, %v2588
  %v2595 = vadd.f32 %v2567, %v2589
  %v2596 = vadd.f32 %v2592, %v2590
  %v2597 = vadd.f32 %v2593, %v2591
  %v2598 = vpack.c.bf16 %v2567, %v2566
  %v2599 = vpack.c.bf16 %v2593, %v2592
  %v2600 = vpack.c.bf16 %v2595, %v2594
  %v2601 = vpack.c.bf16 %v2597, %v2596
  %v2602 = vld [vmem:[%s10] sm:$0xff]
  %v2603 = vld [vmem:[%s10 + $0x8] sm:$0xff]
  %v2604 = vld [vmem:[%s10 + $0x10] sm:$0xff]
  %v2605 = vld [vmem:[%s10 + $0x18] sm:$0xff]
  %v2606 = vld [vmem:[%s10 + $0x20] sm:$0xff]
  %v2607 = vld [vmem:[%s10 + $0x28] sm:$0xff]
  %v2608 = vld [vmem:[%s10 + $0x30] sm:$0xff]
  %v2609 = vld [vmem:[%s10 + $0x38] sm:$0xff]
  %v2610 = vld [vmem:[%s10 + $0x40] sm:$0xff]
  %v2611 = vld [vmem:[%s10 + $0x48] sm:$0xff]
  %v2612 = vld [vmem:[%s10 + $0x50] sm:$0xff]
  %v2613 = vld [vmem:[%s10 + $0x58] sm:$0xff]
  %v2614 = vld [vmem:[%s10 + $0x60] sm:$0xff]
  %v2615 = vld [vmem:[%s10 + $0x68] sm:$0xff]
  %v2616 = vld [vmem:[%s10 + $0x70] sm:$0xff]
  %v2617 = vld [vmem:[%s10 + $0x78] sm:$0xff]
  %v2618 = vpack.c.bf16 %v2603, %v2602
  %v2619 = vpack.c.bf16 %v2605, %v2604
  %v2620 = vpack.c.bf16 %v2607, %v2606
  %v2621 = vpack.c.bf16 %v2609, %v2608
  %v2622 = vpack.c.bf16 %v2611, %v2610
  %v2623 = vpack.c.bf16 %v2613, %v2612
  %v2624 = vpack.c.bf16 %v2615, %v2614
  %v2625 = vpack.c.bf16 %v2617, %v2616
  %v2626 = vld [vmem:[%s11] sm:$0x1]
  %v2627 = vperm.slane %v2626, 0
  %2628 = vmatpush.bf16.msra.mxu0 %v2625
  %2629 = vmatpush.bf16.msra.mxu0 %v2624
  %2630 = vmatpush.bf16.msra.mxu0 %v2623
  %2631 = vmatpush.bf16.msra.mxu0 %v2622
  %2632 = vmatpush.bf16.msra.mxu0 %v2621
  %2633 = vmatpush.bf16.msra.mxu0 %v2620
  %2634 = vmatpush.bf16.msra.mxu0 %v2619
  %2635 = vmatpush.bf16.msra.mxu0 %v2618
  %2636 = vmatmul.bf16.gmra.mxu0 %v2598
  %v2637 = vpop.f32.mrf.mxu0
  %v2638 = vadd.f32 %v2627, %v2637
  %v2639 = vpop.f32.mrf.mxu0
  %v2640 = vadd.f32 %v2627, %v2639
  %2641 = vmatmul.bf16.gmra.mxu0 %v2599
  %v2642 = vpop.f32.mrf.mxu0
  %v2643 = vadd.f32 %v2627, %v2642
  %v2644 = vpop.f32.mrf.mxu0
  %v2645 = vadd.f32 %v2627, %v2644
  %2646 = vmatmul.bf16.gmra.mxu0 %v2600
  %v2647 = vpop.f32.mrf.mxu0
  %v2648 = vadd.f32 %v2627, %v2647
  %v2649 = vpop.f32.mrf.mxu0
  %v2650 = vadd.f32 %v2627, %v2649
  %2651 = vmatmul.bf16.gmra.mxu0 %v2601
  %v2652 = vpop.f32.mrf.mxu0
  %v2653 = vadd.f32 %v2627, %v2652
  %v2654 = vpop.f32.mrf.mxu0
  %v2655 = vadd.f32 %v2627, %v2654
  %2656 = vdwg.mxu0
  %v2657 = vmul.f32 %v2638, 0.5
  %v2658 = vmul.f32 %v2640, 0.5
  %v2659 = vadd.f32 %v2657, 0.0
  %v2660 = vadd.f32 %v2658, 0.0
  %vm2661 = vcmp.ge.f32.partialorder %v2659, 1.0
  %vm2662 = vcmp.ge.f32.partialorder %v2660, 1.0
  %v2663 = vsel %vm2661, 1, 0
  %v2664 = vsel %vm2662, 1, 0
  %v2665 = vcvt.s32.f32 %v2663
  %v2666 = vcvt.s32.f32 %v2664
  %v2667 = vsub.f32 1.0, %v2665
  %v2668 = vsub.f32 1.0, %v2666
  %v2669 = vmul.f32 %v2659, %v2667
  %v2670 = vmul.f32 %v2660, %v2668
  %v2671 = vadd.f32 %v2665, 0.0
  %v2672 = vadd.f32 %v2666, 0.0
  %v2673 = vsub.f32 %v2643, %v2669
  %v2674 = vsub.f32 %v2645, %v2670
  %v2675 = vmul.f32 %v2673, 0.5
  %v2676 = vmul.f32 %v2674, 0.5
  %v2677 = vadd.f32 %v2669, %v2675
  %v2678 = vadd.f32 %v2670, %v2676
  %vm2679 = vcmp.ge.f32.partialorder %v2677, 1.0
  %vm2680 = vcmp.ge.f32.partialorder %v2678, 1.0
  %v2681 = vsel %vm2679, 1, 0
  %v2682 = vsel %vm2680, 1, 0
  %v2683 = vcvt.s32.f32 %v2681
  %v2684 = vcvt.s32.f32 %v2682
  %v2685 = vsub.f32 1.0, %v2683
  %v2686 = vsub.f32 1.0, %v2684
  %v2687 = vmul.f32 %v2677, %v2685
  %v2688 = vmul.f32 %v2678, %v2686
  %v2689 = vadd.f32 %v2671, %v2683
  %v2690 = vadd.f32 %v2672, %v2684
  %v2691 = vsub.f32 %v2648, %v2687
  %v2692 = vsub.f32 %v2650, %v2688
  %v2693 = vmul.f32 %v2691, 0.5
  %v2694 = vmul.f32 %v2692, 0.5
  %v2695 = vadd.f32 %v2687, %v2693
  %v2696 = vadd.f32 %v2688, %v2694
  %vm2697 = vcmp.ge.f32.partialorder %v2695, 1.0
  %vm2698 = vcmp.ge.f32.partialorder %v2696, 1.0
  %v2699 = vsel %vm2697, 1, 0
  %v2700 = vsel %vm2698, 1, 0
  %v2701 = vcvt.s32.f32 %v2699
  %v2702 = vcvt.s32.f32 %v2700
  %v2703 = vsub.f32 1.0, %v2701
  %v2704 = vsub.f32 1.0, %v2702
  %v2705 = vmul.f32 %v2695, %v2703
  %v2706 = vmul.f32 %v2696, %v2704
  %v2707 = vadd.f32 %v2689, %v2701
  %v2708 = vadd.f32 %v2690, %v2702
  %v2709 = vsub.f32 %v2653, %v2705
  %v2710 = vsub.f32 %v2655, %v2706
  %v2711 = vmul.f32 %v2709, 0.5
  %v2712 = vmul.f32 %v2710, 0.5
  %v2713 = vadd.f32 %v2705, %v2711
  %v2714 = vadd.f32 %v2706, %v2712
  %vm2715 = vcmp.ge.f32.partialorder %v2713, 1.0
  %vm2716 = vcmp.ge.f32.partialorder %v2714, 1.0
  %v2717 = vsel %vm2715, 1, 0
  %v2718 = vsel %vm2716, 1, 0
  %v2719 = vcvt.s32.f32 %v2717
  %v2720 = vcvt.s32.f32 %v2718
  %v2721 = vadd.f32 %v2707, %v2719
  %v2722 = vadd.f32 %v2708, %v2720
  %v2723 = vmul.f32 %v2721, 0.25
  %v2724 = vmul.f32 %v2722, 0.25
  %v2725 = vadd.f32 %v2473, %v2723
  %v2726 = vadd.f32 %v2474, %v2724
  %v2727 = vld [vmem:[%s3 + $0x1] sm:$0x1]
  %v2728 = vld [vmem:[%s4 + $0x1] sm:$0x1]
  %v2729 = vsel %vm74, %v2725, 0.0
  %2730 = vadd.xlane.f32.xlu0 %v2729
  %v2731 = vpop.xlane.xlu0 %2730
  %v2732 = vsel %vm74, %v2726, 0.0
  %2733 = vadd.xlane.f32.xlu0 %v2732
  %v2734 = vpop.xlane.xlu0 %2733
  %v2735 = vmul.f32 %v2731, %v87
  %v2736 = vmul.f32 %v2734, %v87
  %v2737 = vsub.f32 %v2725, %v2735
  %v2738 = vsub.f32 %v2726, %v2736
  %v2739 = vmul.f32 %v2737, %v2737
  %v2740 = vmul.f32 %v2738, %v2738
  %v2741 = vsel %vm74, %v2739, 0.0
  %2742 = vadd.xlane.f32.xlu0 %v2741
  %v2743 = vpop.xlane.xlu0 %2742
  %v2744 = vsel %vm74, %v2740, 0.0
  %2745 = vadd.xlane.f32.xlu0 %v2744
  %v2746 = vpop.xlane.xlu0 %2745
  %v2747 = vmul.f32 %v2743, %v87
  %v2748 = vmul.f32 %v2746, %v87
  %v2749 = vadd.f32 %v2747, 1e-05
  %v2750 = vadd.f32 %v2748, 1e-05
  %v2751 = vrsqrt.pop %v2749
  %v2752 = vmul.f32 %v2751, %v2749
  %v2753 = vmul.f32 %v2752, %v2751
  %v2754 = vmul.f32 0.5, %v2753
  %v2755 = vsub.f32 1.5, %v2754
  %v2756 = vmul.f32 %v2751, %v2755
  %vm2757 = vweird.f32 %v2749
  %vm2758 = vweird.f32 %v2751
  %vm2759 = vmor %vm2757, %vm2758
  %v2760 = vsel %vm2759, %v2751, %v2756
  %v2761 = vrsqrt.pop %v2750
  %v2762 = vmul.f32 %v2761, %v2750
  %v2763 = vmul.f32 %v2762, %v2761
  %v2764 = vmul.f32 0.5, %v2763
  %v2765 = vsub.f32 1.5, %v2764
  %v2766 = vmul.f32 %v2761, %v2765
  %vm2767 = vweird.f32 %v2750
  %vm2768 = vweird.f32 %v2761
  %vm2769 = vmor %vm2767, %vm2768
  %v2770 = vsel %vm2769, %v2761, %v2766
  %v2771 = vmul.f32 %v2737, %v2760
  %v2772 = vmul.f32 %v2738, %v2770
  %v2773 = vperm.slane %v2727, 0
  %v2774 = vmul.f32 %v2771, %v2773
  %v2775 = vmul.f32 %v2772, %v2773
  %v2776 = vperm.slane %v2728, 0
  %v2777 = vadd.f32 %v2774, %v2776
  %v2778 = vadd.f32 %v2775, %v2776
  %s2779 = scalar_lea.vmem %s5, 32
  %v2780 = vld [vmem:[%s2779] sm:$0xff]
  %v2781 = vld [vmem:[%s2779 + $0x8] sm:$0xff]
  %v2782 = vld [vmem:[%s2779 + $0x10] sm:$0xff]
  %v2783 = vld [vmem:[%s2779 + $0x18] sm:$0xff]
  %v2785 = vsel %vm74, %v2777, 0
  %v2788 = vsel %vm74, %v2778, 0
  %2790 = vmatpush.msra.mxu0 0.0
  %2791 = vmatpush.msra.mxu0 0.0
  %2792 = vmatpush.msra.mxu0 0.0
  %2793 = vmatpush.msra.mxu0 0.0
  %2794 = vmatpush.msra.mxu0 0.0
  %2795 = vmatpush.msra.mxu0 0.0
  %2796 = vmatpush.msra.mxu0 0.0
  %2797 = vmatpush.msra.mxu0 0.0
  %2798 = vmatpush.msra.mxu0 0.0
  %2799 = vmatpush.msra.mxu0 0.0
  %2800 = vmatpush.msra.mxu0 0.0
  %2801 = vmatpush.msra.mxu0 0.0
  %2802 = vmatpush.msra.mxu0 %v2783
  %2803 = vmatpush.msra.mxu0 %v2782
  %2804 = vmatpush.msra.mxu0 %v2781
  %2805 = vmatpush.msra.mxu0 %v2780
  %2806 = vmatmul.f32.gmra.mxu0 %v2785
  %v2807 = vpop.f32.mrf.mxu0
  %v2808 = vadd.f32 0.0, %v2807
  %2809 = vmatmul.f32.gmra.mxu0 %v2788
  %v2810 = vpop.f32.mrf.mxu0
  %v2811 = vadd.f32 0.0, %v2810
  %2812 = vdwg.mxu0
  %vm2813 = vcmp.ge.f32.partialorder %v2808, 2.0
  %vm2814 = vcmp.ge.f32.partialorder %v2811, 2.0
  %v2815 = vsel %vm2813, 1, 0
  %v2816 = vsel %vm2814, 1, 0
  %v2817 = vcvt.s32.f32 %v2815
  %v2818 = vcvt.s32.f32 %v2816
  %vm2819 = vcmp.ge.f32.partialorder %v2808, 1.3333334
  %vm2820 = vcmp.ge.f32.partialorder %v2811, 1.3333334
  %v2821 = vsel %vm2819, 1, 0
  %v2822 = vsel %vm2820, 1, 0
  %v2823 = vcvt.s32.f32 %v2821
  %v2824 = vcvt.s32.f32 %v2822
  %vm2825 = vcmp.ge.f32.partialorder %v2808, 1.1428572
  %vm2826 = vcmp.ge.f32.partialorder %v2811, 1.1428572
  %v2827 = vsel %vm2825, 1, 0
  %v2828 = vsel %vm2826, 1, 0
  %v2829 = vcvt.s32.f32 %v2827
  %v2830 = vcvt.s32.f32 %v2828
  %vm2831 = vcmp.ge.f32.partialorder %v2808, 1.0666667
  %vm2832 = vcmp.ge.f32.partialorder %v2811, 1.0666667
  %v2833 = vsel %vm2831, 1, 0
  %v2834 = vsel %vm2832, 1, 0
  %v2835 = vcvt.s32.f32 %v2833
  %v2836 = vcvt.s32.f32 %v2834
  %v2837 = vsub.f32 %v2823, %v2817
  %v2838 = vsub.f32 %v2824, %v2818
  %v2839 = vsub.f32 %v2829, %v2823
  %v2840 = vsub.f32 %v2830, %v2824
  %v2841 = vsub.f32 %v2835, %v2829
  %v2842 = vsub.f32 %v2836, %v2830
  %v2843 = vadd.f32 %v2817, %v2837
  %v2844 = vadd.f32 %v2818, %v2838
  %v2845 = vadd.f32 %v2817, %v2839
  %v2846 = vadd.f32 %v2818, %v2840
  %v2847 = vadd.f32 %v2843, %v2841
  %v2848 = vadd.f32 %v2844, %v2842
  %v2849 = vmul.f32 %v2817, %v259
  %v2850 = vmul.f32 %v2818, %v259
  %v2851 = vmul.f32 %v2817, %v264
  %v2852 = vmul.f32 %v2818, %v264
  %v2853 = vmul.f32 %v2817, %v270
  %v2854 = vmul.f32 %v2818, %v270
  %v2855 = vmul.f32 %v2817, %v275
  %v2856 = vmul.f32 %v2818, %v275
  %v2857 = vmul.f32 %v2817, %v281
  %v2858 = vmul.f32 %v2818, %v281
  %v2859 = vmul.f32 %v2817, %v286
  %v2860 = vmul.f32 %v2818, %v286
  %v2861 = vmul.f32 %v2817, %v292
  %v2862 = vmul.f32 %v2818, %v292
  %v2863 = vmul.f32 %v2817, %v297
  %v2864 = vmul.f32 %v2818, %v297
  %v2865 = vmul.f32 %v2843, %v259
  %v2866 = vmul.f32 %v2844, %v259
  %v2867 = vmul.f32 %v2843, %v264
  %v2868 = vmul.f32 %v2844, %v264
  %v2869 = vmul.f32 %v2843, %v270
  %v2870 = vmul.f32 %v2844, %v270
  %v2871 = vmul.f32 %v2843, %v275
  %v2872 = vmul.f32 %v2844, %v275
  %v2873 = vmul.f32 %v2843, %v281
  %v2874 = vmul.f32 %v2844, %v281
  %v2875 = vmul.f32 %v2843, %v286
  %v2876 = vmul.f32 %v2844, %v286
  %v2877 = vmul.f32 %v2843, %v292
  %v2878 = vmul.f32 %v2844, %v292
  %v2879 = vmul.f32 %v2843, %v297
  %v2880 = vmul.f32 %v2844, %v297
  %v2881 = vmul.f32 %v2845, %v259
  %v2882 = vmul.f32 %v2846, %v259
  %v2883 = vmul.f32 %v2845, %v264
  %v2884 = vmul.f32 %v2846, %v264
  %v2885 = vmul.f32 %v2845, %v270
  %v2886 = vmul.f32 %v2846, %v270
  %v2887 = vmul.f32 %v2845, %v275
  %v2888 = vmul.f32 %v2846, %v275
  %v2889 = vmul.f32 %v2845, %v281
  %v2890 = vmul.f32 %v2846, %v281
  %v2891 = vmul.f32 %v2845, %v286
  %v2892 = vmul.f32 %v2846, %v286
  %v2893 = vmul.f32 %v2845, %v292
  %v2894 = vmul.f32 %v2846, %v292
  %v2895 = vmul.f32 %v2845, %v297
  %v2896 = vmul.f32 %v2846, %v297
  %v2897 = vmul.f32 %v2847, %v259
  %v2898 = vmul.f32 %v2848, %v259
  %v2899 = vmul.f32 %v2847, %v264
  %v2900 = vmul.f32 %v2848, %v264
  %v2901 = vmul.f32 %v2847, %v270
  %v2902 = vmul.f32 %v2848, %v270
  %v2903 = vmul.f32 %v2847, %v275
  %v2904 = vmul.f32 %v2848, %v275
  %v2905 = vmul.f32 %v2847, %v281
  %v2906 = vmul.f32 %v2848, %v281
  %v2907 = vmul.f32 %v2847, %v286
  %v2908 = vmul.f32 %v2848, %v286
  %v2909 = vmul.f32 %v2847, %v292
  %v2910 = vmul.f32 %v2848, %v292
  %v2911 = vmul.f32 %v2847, %v297
  %v2912 = vmul.f32 %v2848, %v297
  %v2913 = vpack.c.bf16 %v2817, %v2817
  %v2914 = vpack.c.bf16 %v2818, %v2818
  %v2915 = vpack.c.bf16 %v2843, %v2843
  %v2916 = vpack.c.bf16 %v2844, %v2844
  %v2917 = vpack.c.bf16 %v2845, %v2845
  %v2918 = vpack.c.bf16 %v2846, %v2846
  %v2919 = vpack.c.bf16 %v2847, %v2847
  %v2920 = vpack.c.bf16 %v2848, %v2848
  %v2921 = vpack.c.bf16 %v2849, %v2849
  %v2922 = vpack.c.bf16 %v2850, %v2850
  %v2923 = vpack.c.bf16 %v2853, %v2853
  %v2924 = vpack.c.bf16 %v2854, %v2854
  %v2925 = vpack.c.bf16 %v2857, %v2857
  %v2926 = vpack.c.bf16 %v2858, %v2858
  %v2927 = vpack.c.bf16 %v2861, %v2861
  %v2928 = vpack.c.bf16 %v2862, %v2862
  %v2929 = vpack.c.bf16 %v2865, %v2865
  %v2930 = vpack.c.bf16 %v2866, %v2866
  %v2931 = vpack.c.bf16 %v2869, %v2869
  %v2932 = vpack.c.bf16 %v2870, %v2870
  %v2933 = vpack.c.bf16 %v2873, %v2873
  %v2934 = vpack.c.bf16 %v2874, %v2874
  %v2935 = vpack.c.bf16 %v2877, %v2877
  %v2936 = vpack.c.bf16 %v2878, %v2878
  %v2937 = vpack.c.bf16 %v2881, %v2881
  %v2938 = vpack.c.bf16 %v2882, %v2882
  %v2939 = vpack.c.bf16 %v2885, %v2885
  %v2940 = vpack.c.bf16 %v2886, %v2886
  %v2941 = vpack.c.bf16 %v2889, %v2889
  %v2942 = vpack.c.bf16 %v2890, %v2890
  %v2943 = vpack.c.bf16 %v2893, %v2893
  %v2944 = vpack.c.bf16 %v2894, %v2894
  %v2945 = vpack.c.bf16 %v2897, %v2897
  %v2946 = vpack.c.bf16 %v2898, %v2898
  %v2947 = vpack.c.bf16 %v2901, %v2901
  %v2948 = vpack.c.bf16 %v2902, %v2902
  %v2949 = vpack.c.bf16 %v2905, %v2905
  %v2950 = vpack.c.bf16 %v2906, %v2906
  %v2951 = vpack.c.bf16 %v2909, %v2909
  %v2952 = vpack.c.bf16 %v2910, %v2910
  %v2953 = vpack.c.bf16 %v2851, %v2851
  %v2954 = vpack.c.bf16 %v2852, %v2852
  %v2955 = vpack.c.bf16 %v2855, %v2855
  %v2956 = vpack.c.bf16 %v2856, %v2856
  %v2957 = vpack.c.bf16 %v2859, %v2859
  %v2958 = vpack.c.bf16 %v2860, %v2860
  %v2959 = vpack.c.bf16 %v2863, %v2863
  %v2960 = vpack.c.bf16 %v2864, %v2864
  %v2961 = vpack.c.bf16 %v2867, %v2867
  %v2962 = vpack.c.bf16 %v2868, %v2868
  %v2963 = vpack.c.bf16 %v2871, %v2871
  %v2964 = vpack.c.bf16 %v2872, %v2872
  %v2965 = vpack.c.bf16 %v2875, %v2875
  %v2966 = vpack.c.bf16 %v2876, %v2876
  %v2967 = vpack.c.bf16 %v2879, %v2879
  %v2968 = vpack.c.bf16 %v2880, %v2880
  %v2969 = vpack.c.bf16 %v2883, %v2883
  %v2970 = vpack.c.bf16 %v2884, %v2884
  %v2971 = vpack.c.bf16 %v2887, %v2887
  %v2972 = vpack.c.bf16 %v2888, %v2888
  %v2973 = vpack.c.bf16 %v2891, %v2891
  %v2974 = vpack.c.bf16 %v2892, %v2892
  %v2975 = vpack.c.bf16 %v2895, %v2895
  %v2976 = vpack.c.bf16 %v2896, %v2896
  %v2977 = vpack.c.bf16 %v2899, %v2899
  %v2978 = vpack.c.bf16 %v2900, %v2900
  %v2979 = vpack.c.bf16 %v2903, %v2903
  %v2980 = vpack.c.bf16 %v2904, %v2904
  %v2981 = vpack.c.bf16 %v2907, %v2907
  %v2982 = vpack.c.bf16 %v2908, %v2908
  %v2983 = vpack.c.bf16 %v2911, %v2911
  %v2984 = vpack.c.bf16 %v2912, %v2912
  %v2986 = vunpack.c.l.b16 %v2921
  %v2987 = vpack.c.b16 %v2986, %v2986
  %2988 = vrot.lane.b32.xlu0 %v2987, 96
  %v2989 = vpop.permute.xlu0 %2988
  %v2991 = vsel %vm74, %v2913, 0
  %v2994 = vsel %vm74, %v2989, 0
  %2996 = vmatpush.bf16.xpose.msra.mxu0 0
  %2997 = vmatpush.bf16.xpose.msra.mxu0 0
  %2998 = vmatpush.bf16.xpose.msra.mxu0 0
  %2999 = vmatpush.bf16.xpose.msra.mxu0 0
  %3000 = vmatpush.bf16.xpose.msra.mxu0 0
  %3001 = vmatpush.bf16.xpose.msra.mxu0 0
  %3002 = vmatpush.bf16.xpose.msra.mxu0 0
  %3003 = vmatpush.bf16.xpose.msra.mxu0 %v2994
  %3004 = vmatmul.bf16.gmra.mxu0 %v2991
  %v3005 = vpop.f32.mrf.mxu0
  %v3006 = vadd.f32 0.0, %v3005
  %v3007 = vpop.f32.mrf.mxu0
  %3008 = vdwg.mxu0
  %v3010 = vunpack.c.l.b16 %v2922
  %v3011 = vpack.c.b16 %v3010, %v3010
  %3012 = vrot.lane.b32.xlu0 %v3011, 96
  %v3013 = vpop.permute.xlu0 %3012
  %v3015 = vsel %vm74, %v2914, 0
  %v3018 = vsel %vm74, %v3013, 0
  %3020 = vmatpush.bf16.xpose.msra.mxu0 0
  %3021 = vmatpush.bf16.xpose.msra.mxu0 0
  %3022 = vmatpush.bf16.xpose.msra.mxu0 0
  %3023 = vmatpush.bf16.xpose.msra.mxu0 0
  %3024 = vmatpush.bf16.xpose.msra.mxu0 0
  %3025 = vmatpush.bf16.xpose.msra.mxu0 0
  %3026 = vmatpush.bf16.xpose.msra.mxu0 0
  %3027 = vmatpush.bf16.xpose.msra.mxu0 %v3018
  %3028 = vmatmul.bf16.gmra.mxu0 %v3015
  %v3029 = vpop.f32.mrf.mxu0
  %v3030 = vadd.f32 0.0, %v3029
  %v3031 = vpop.f32.mrf.mxu0
  %3032 = vdwg.mxu0
  %v3034 = vunpack.c.l.b16 %v2923
  %v3035 = vpack.c.b16 %v3034, %v3034
  %3036 = vrot.lane.b32.xlu0 %v3035, 96
  %v3037 = vpop.permute.xlu0 %3036
  %v3039 = vsel %vm74, %v3037, 0
  %3041 = vmatpush.bf16.xpose.msra.mxu0 0
  %3042 = vmatpush.bf16.xpose.msra.mxu0 0
  %3043 = vmatpush.bf16.xpose.msra.mxu0 0
  %3044 = vmatpush.bf16.xpose.msra.mxu0 0
  %3045 = vmatpush.bf16.xpose.msra.mxu0 0
  %3046 = vmatpush.bf16.xpose.msra.mxu0 0
  %3047 = vmatpush.bf16.xpose.msra.mxu0 0
  %3048 = vmatpush.bf16.xpose.msra.mxu0 %v3039
  %3049 = vmatmul.bf16.gmra.mxu0 %v2991
  %v3050 = vpop.f32.mrf.mxu0
  %v3051 = vadd.f32 0.0, %v3050
  %v3052 = vpop.f32.mrf.mxu0
  %3053 = vdwg.mxu0
  %v3055 = vunpack.c.l.b16 %v2924
  %v3056 = vpack.c.b16 %v3055, %v3055
  %3057 = vrot.lane.b32.xlu0 %v3056, 96
  %v3058 = vpop.permute.xlu0 %3057
  %v3060 = vsel %vm74, %v3058, 0
  %3062 = vmatpush.bf16.xpose.msra.mxu0 0
  %3063 = vmatpush.bf16.xpose.msra.mxu0 0
  %3064 = vmatpush.bf16.xpose.msra.mxu0 0
  %3065 = vmatpush.bf16.xpose.msra.mxu0 0
  %3066 = vmatpush.bf16.xpose.msra.mxu0 0
  %3067 = vmatpush.bf16.xpose.msra.mxu0 0
  %3068 = vmatpush.bf16.xpose.msra.mxu0 0
  %3069 = vmatpush.bf16.xpose.msra.mxu0 %v3060
  %3070 = vmatmul.bf16.gmra.mxu0 %v3015
  %v3071 = vpop.f32.mrf.mxu0
  %v3072 = vadd.f32 0.0, %v3071
  %v3073 = vpop.f32.mrf.mxu0
  %3074 = vdwg.mxu0
  %v3076 = vunpack.c.l.b16 %v2925
  %v3077 = vpack.c.b16 %v3076, %v3076
  %3078 = vrot.lane.b32.xlu0 %v3077, 96
  %v3079 = vpop.permute.xlu0 %3078
  %v3081 = vsel %vm74, %v3079, 0
  %3083 = vmatpush.bf16.xpose.msra.mxu0 0
  %3084 = vmatpush.bf16.xpose.msra.mxu0 0
  %3085 = vmatpush.bf16.xpose.msra.mxu0 0
  %3086 = vmatpush.bf16.xpose.msra.mxu0 0
  %3087 = vmatpush.bf16.xpose.msra.mxu0 0
  %3088 = vmatpush.bf16.xpose.msra.mxu0 0
  %3089 = vmatpush.bf16.xpose.msra.mxu0 0
  %3090 = vmatpush.bf16.xpose.msra.mxu0 %v3081
  %3091 = vmatmul.bf16.gmra.mxu0 %v2991
  %v3092 = vpop.f32.mrf.mxu0
  %v3093 = vadd.f32 0.0, %v3092
  %v3094 = vpop.f32.mrf.mxu0
  %3095 = vdwg.mxu0
  %v3097 = vunpack.c.l.b16 %v2926
  %v3098 = vpack.c.b16 %v3097, %v3097
  %3099 = vrot.lane.b32.xlu0 %v3098, 96
  %v3100 = vpop.permute.xlu0 %3099
  %v3102 = vsel %vm74, %v3100, 0
  %3104 = vmatpush.bf16.xpose.msra.mxu0 0
  %3105 = vmatpush.bf16.xpose.msra.mxu0 0
  %3106 = vmatpush.bf16.xpose.msra.mxu0 0
  %3107 = vmatpush.bf16.xpose.msra.mxu0 0
  %3108 = vmatpush.bf16.xpose.msra.mxu0 0
  %3109 = vmatpush.bf16.xpose.msra.mxu0 0
  %3110 = vmatpush.bf16.xpose.msra.mxu0 0
  %3111 = vmatpush.bf16.xpose.msra.mxu0 %v3102
  %3112 = vmatmul.bf16.gmra.mxu0 %v3015
  %v3113 = vpop.f32.mrf.mxu0
  %v3114 = vadd.f32 0.0, %v3113
  %v3115 = vpop.f32.mrf.mxu0
  %3116 = vdwg.mxu0
  %v3118 = vunpack.c.l.b16 %v2927
  %v3119 = vpack.c.b16 %v3118, %v3118
  %3120 = vrot.lane.b32.xlu0 %v3119, 96
  %v3121 = vpop.permute.xlu0 %3120
  %v3123 = vsel %vm74, %v3121, 0
  %3125 = vmatpush.bf16.xpose.msra.mxu0 0
  %3126 = vmatpush.bf16.xpose.msra.mxu0 0
  %3127 = vmatpush.bf16.xpose.msra.mxu0 0
  %3128 = vmatpush.bf16.xpose.msra.mxu0 0
  %3129 = vmatpush.bf16.xpose.msra.mxu0 0
  %3130 = vmatpush.bf16.xpose.msra.mxu0 0
  %3131 = vmatpush.bf16.xpose.msra.mxu0 0
  %3132 = vmatpush.bf16.xpose.msra.mxu0 %v3123
  %3133 = vmatmul.bf16.gmra.mxu0 %v2991
  %v3134 = vpop.f32.mrf.mxu0
  %v3135 = vadd.f32 0.0, %v3134
  %v3136 = vpop.f32.mrf.mxu0
  %3137 = vdwg.mxu0
  %v3139 = vunpack.c.l.b16 %v2928
  %v3140 = vpack.c.b16 %v3139, %v3139
  %3141 = vrot.lane.b32.xlu0 %v3140, 96
  %v3142 = vpop.permute.xlu0 %3141
  %v3144 = vsel %vm74, %v3142, 0
  %3146 = vmatpush.bf16.xpose.msra.mxu0 0
  %3147 = vmatpush.bf16.xpose.msra.mxu0 0
  %3148 = vmatpush.bf16.xpose.msra.mxu0 0
  %3149 = vmatpush.bf16.xpose.msra.mxu0 0
  %3150 = vmatpush.bf16.xpose.msra.mxu0 0
  %3151 = vmatpush.bf16.xpose.msra.mxu0 0
  %3152 = vmatpush.bf16.xpose.msra.mxu0 0
  %3153 = vmatpush.bf16.xpose.msra.mxu0 %v3144
  %3154 = vmatmul.bf16.gmra.mxu0 %v3015
  %v3155 = vpop.f32.mrf.mxu0
  %v3156 = vadd.f32 0.0, %v3155
  %v3157 = vpop.f32.mrf.mxu0
  %3158 = vdwg.mxu0
  %v3160 = vunpack.c.l.b16 %v2929
  %v3161 = vpack.c.b16 %v3160, %v3160
  %3162 = vrot.lane.b32.xlu0 %v3161, 96
  %v3163 = vpop.permute.xlu0 %3162
  %v3165 = vsel %vm74, %v2915, 0
  %v3168 = vsel %vm74, %v3163, 0
  %3170 = vmatpush.bf16.xpose.msra.mxu0 0
  %3171 = vmatpush.bf16.xpose.msra.mxu0 0
  %3172 = vmatpush.bf16.xpose.msra.mxu0 0
  %3173 = vmatpush.bf16.xpose.msra.mxu0 0
  %3174 = vmatpush.bf16.xpose.msra.mxu0 0
  %3175 = vmatpush.bf16.xpose.msra.mxu0 0
  %3176 = vmatpush.bf16.xpose.msra.mxu0 0
  %3177 = vmatpush.bf16.xpose.msra.mxu0 %v3168
  %3178 = vmatmul.bf16.gmra.mxu0 %v3165
  %v3179 = vpop.f32.mrf.mxu0
  %v3180 = vadd.f32 0.0, %v3179
  %v3181 = vpop.f32.mrf.mxu0
  %3182 = vdwg.mxu0
  %v3184 = vunpack.c.l.b16 %v2930
  %v3185 = vpack.c.b16 %v3184, %v3184
  %3186 = vrot.lane.b32.xlu0 %v3185, 96
  %v3187 = vpop.permute.xlu0 %3186
  %v3189 = vsel %vm74, %v2916, 0
  %v3192 = vsel %vm74, %v3187, 0
  %3194 = vmatpush.bf16.xpose.msra.mxu0 0
  %3195 = vmatpush.bf16.xpose.msra.mxu0 0
  %3196 = vmatpush.bf16.xpose.msra.mxu0 0
  %3197 = vmatpush.bf16.xpose.msra.mxu0 0
  %3198 = vmatpush.bf16.xpose.msra.mxu0 0
  %3199 = vmatpush.bf16.xpose.msra.mxu0 0
  %3200 = vmatpush.bf16.xpose.msra.mxu0 0
  %3201 = vmatpush.bf16.xpose.msra.mxu0 %v3192
  %3202 = vmatmul.bf16.gmra.mxu0 %v3189
  %v3203 = vpop.f32.mrf.mxu0
  %v3204 = vadd.f32 0.0, %v3203
  %v3205 = vpop.f32.mrf.mxu0
  %3206 = vdwg.mxu0
  %v3208 = vunpack.c.l.b16 %v2931
  %v3209 = vpack.c.b16 %v3208, %v3208
  %3210 = vrot.lane.b32.xlu0 %v3209, 96
  %v3211 = vpop.permute.xlu0 %3210
  %v3213 = vsel %vm74, %v3211, 0
  %3215 = vmatpush.bf16.xpose.msra.mxu0 0
  %3216 = vmatpush.bf16.xpose.msra.mxu0 0
  %3217 = vmatpush.bf16.xpose.msra.mxu0 0
  %3218 = vmatpush.bf16.xpose.msra.mxu0 0
  %3219 = vmatpush.bf16.xpose.msra.mxu0 0
  %3220 = vmatpush.bf16.xpose.msra.mxu0 0
  %3221 = vmatpush.bf16.xpose.msra.mxu0 0
  %3222 = vmatpush.bf16.xpose.msra.mxu0 %v3213
  %3223 = vmatmul.bf16.gmra.mxu0 %v3165
  %v3224 = vpop.f32.mrf.mxu0
  %v3225 = vadd.f32 0.0, %v3224
  %v3226 = vpop.f32.mrf.mxu0
  %3227 = vdwg.mxu0
  %v3229 = vunpack.c.l.b16 %v2932
  %v3230 = vpack.c.b16 %v3229, %v3229
  %3231 = vrot.lane.b32.xlu0 %v3230, 96
  %v3232 = vpop.permute.xlu0 %3231
  %v3234 = vsel %vm74, %v3232, 0
  %3236 = vmatpush.bf16.xpose.msra.mxu0 0
  %3237 = vmatpush.bf16.xpose.msra.mxu0 0
  %3238 = vmatpush.bf16.xpose.msra.mxu0 0
  %3239 = vmatpush.bf16.xpose.msra.mxu0 0
  %3240 = vmatpush.bf16.xpose.msra.mxu0 0
  %3241 = vmatpush.bf16.xpose.msra.mxu0 0
  %3242 = vmatpush.bf16.xpose.msra.mxu0 0
  %3243 = vmatpush.bf16.xpose.msra.mxu0 %v3234
  %3244 = vmatmul.bf16.gmra.mxu0 %v3189
  %v3245 = vpop.f32.mrf.mxu0
  %v3246 = vadd.f32 0.0, %v3245
  %v3247 = vpop.f32.mrf.mxu0
  %3248 = vdwg.mxu0
  %v3250 = vunpack.c.l.b16 %v2933
  %v3251 = vpack.c.b16 %v3250, %v3250
  %3252 = vrot.lane.b32.xlu0 %v3251, 96
  %v3253 = vpop.permute.xlu0 %3252
  %v3255 = vsel %vm74, %v3253, 0
  %3257 = vmatpush.bf16.xpose.msra.mxu0 0
  %3258 = vmatpush.bf16.xpose.msra.mxu0 0
  %3259 = vmatpush.bf16.xpose.msra.mxu0 0
  %3260 = vmatpush.bf16.xpose.msra.mxu0 0
  %3261 = vmatpush.bf16.xpose.msra.mxu0 0
  %3262 = vmatpush.bf16.xpose.msra.mxu0 0
  %3263 = vmatpush.bf16.xpose.msra.mxu0 0
  %3264 = vmatpush.bf16.xpose.msra.mxu0 %v3255
  %3265 = vmatmul.bf16.gmra.mxu0 %v3165
  %v3266 = vpop.f32.mrf.mxu0
  %v3267 = vadd.f32 0.0, %v3266
  %v3268 = vpop.f32.mrf.mxu0
  %3269 = vdwg.mxu0
  %v3271 = vunpack.c.l.b16 %v2934
  %v3272 = vpack.c.b16 %v3271, %v3271
  %3273 = vrot.lane.b32.xlu0 %v3272, 96
  %v3274 = vpop.permute.xlu0 %3273
  %v3276 = vsel %vm74, %v3274, 0
  %3278 = vmatpush.bf16.xpose.msra.mxu0 0
  %3279 = vmatpush.bf16.xpose.msra.mxu0 0
  %3280 = vmatpush.bf16.xpose.msra.mxu0 0
  %3281 = vmatpush.bf16.xpose.msra.mxu0 0
  %3282 = vmatpush.bf16.xpose.msra.mxu0 0
  %3283 = vmatpush.bf16.xpose.msra.mxu0 0
  %3284 = vmatpush.bf16.xpose.msra.mxu0 0
  %3285 = vmatpush.bf16.xpose.msra.mxu0 %v3276
  %3286 = vmatmul.bf16.gmra.mxu0 %v3189
  %v3287 = vpop.f32.mrf.mxu0
  %v3288 = vadd.f32 0.0, %v3287
  %v3289 = vpop.f32.mrf.mxu0
  %3290 = vdwg.mxu0
  %v3292 = vunpack.c.l.b16 %v2935
  %v3293 = vpack.c.b16 %v3292, %v3292
  %3294 = vrot.lane.b32.xlu0 %v3293, 96
  %v3295 = vpop.permute.xlu0 %3294
  %v3297 = vsel %vm74, %v3295, 0
  %3299 = vmatpush.bf16.xpose.msra.mxu0 0
  %3300 = vmatpush.bf16.xpose.msra.mxu0 0
  %3301 = vmatpush.bf16.xpose.msra.mxu0 0
  %3302 = vmatpush.bf16.xpose.msra.mxu0 0
  %3303 = vmatpush.bf16.xpose.msra.mxu0 0
  %3304 = vmatpush.bf16.xpose.msra.mxu0 0
  %3305 = vmatpush.bf16.xpose.msra.mxu0 0
  %3306 = vmatpush.bf16.xpose.msra.mxu0 %v3297
  %3307 = vmatmul.bf16.gmra.mxu0 %v3165
  %v3308 = vpop.f32.mrf.mxu0
  %v3309 = vadd.f32 0.0, %v3308
  %v3310 = vpop.f32.mrf.mxu0
  %3311 = vdwg.mxu0
  %v3313 = vunpack.c.l.b16 %v2936
  %v3314 = vpack.c.b16 %v3313, %v3313
  %3315 = vrot.lane.b32.xlu0 %v3314, 96
  %v3316 = vpop.permute.xlu0 %3315
  %v3318 = vsel %vm74, %v3316, 0
  %3320 = vmatpush.bf16.xpose.msra.mxu0 0
  %3321 = vmatpush.bf16.xpose.msra.mxu0 0
  %3322 = vmatpush.bf16.xpose.msra.mxu0 0
  %3323 = vmatpush.bf16.xpose.msra.mxu0 0
  %3324 = vmatpush.bf16.xpose.msra.mxu0 0
  %3325 = vmatpush.bf16.xpose.msra.mxu0 0
  %3326 = vmatpush.bf16.xpose.msra.mxu0 0
  %3327 = vmatpush.bf16.xpose.msra.mxu0 %v3318
  %3328 = vmatmul.bf16.gmra.mxu0 %v3189
  %v3329 = vpop.f32.mrf.mxu0
  %v3330 = vadd.f32 0.0, %v3329
  %v3331 = vpop.f32.mrf.mxu0
  %3332 = vdwg.mxu0
  %v3334 = vunpack.c.l.b16 %v2937
  %v3335 = vpack.c.b16 %v3334, %v3334
  %3336 = vrot.lane.b32.xlu0 %v3335, 96
  %v3337 = vpop.permute.xlu0 %3336
  %v3339 = vsel %vm74, %v2917, 0
  %v3342 = vsel %vm74, %v3337, 0
  %3344 = vmatpush.bf16.xpose.msra.mxu0 0
  %3345 = vmatpush.bf16.xpose.msra.mxu0 0
  %3346 = vmatpush.bf16.xpose.msra.mxu0 0
  %3347 = vmatpush.bf16.xpose.msra.mxu0 0
  %3348 = vmatpush.bf16.xpose.msra.mxu0 0
  %3349 = vmatpush.bf16.xpose.msra.mxu0 0
  %3350 = vmatpush.bf16.xpose.msra.mxu0 0
  %3351 = vmatpush.bf16.xpose.msra.mxu0 %v3342
  %3352 = vmatmul.bf16.gmra.mxu0 %v3339
  %v3353 = vpop.f32.mrf.mxu0
  %v3354 = vadd.f32 0.0, %v3353
  %v3355 = vpop.f32.mrf.mxu0
  %3356 = vdwg.mxu0
  %v3358 = vunpack.c.l.b16 %v2938
  %v3359 = vpack.c.b16 %v3358, %v3358
  %3360 = vrot.lane.b32.xlu0 %v3359, 96
  %v3361 = vpop.permute.xlu0 %3360
  %v3363 = vsel %vm74, %v2918, 0
  %v3366 = vsel %vm74, %v3361, 0
  %3368 = vmatpush.bf16.xpose.msra.mxu0 0
  %3369 = vmatpush.bf16.xpose.msra.mxu0 0
  %3370 = vmatpush.bf16.xpose.msra.mxu0 0
  %3371 = vmatpush.bf16.xpose.msra.mxu0 0
  %3372 = vmatpush.bf16.xpose.msra.mxu0 0
  %3373 = vmatpush.bf16.xpose.msra.mxu0 0
  %3374 = vmatpush.bf16.xpose.msra.mxu0 0
  %3375 = vmatpush.bf16.xpose.msra.mxu0 %v3366
  %3376 = vmatmul.bf16.gmra.mxu0 %v3363
  %v3377 = vpop.f32.mrf.mxu0
  %v3378 = vadd.f32 0.0, %v3377
  %v3379 = vpop.f32.mrf.mxu0
  %3380 = vdwg.mxu0
  %v3382 = vunpack.c.l.b16 %v2939
  %v3383 = vpack.c.b16 %v3382, %v3382
  %3384 = vrot.lane.b32.xlu0 %v3383, 96
  %v3385 = vpop.permute.xlu0 %3384
  %v3387 = vsel %vm74, %v3385, 0
  %3389 = vmatpush.bf16.xpose.msra.mxu0 0
  %3390 = vmatpush.bf16.xpose.msra.mxu0 0
  %3391 = vmatpush.bf16.xpose.msra.mxu0 0
  %3392 = vmatpush.bf16.xpose.msra.mxu0 0
  %3393 = vmatpush.bf16.xpose.msra.mxu0 0
  %3394 = vmatpush.bf16.xpose.msra.mxu0 0
  %3395 = vmatpush.bf16.xpose.msra.mxu0 0
  %3396 = vmatpush.bf16.xpose.msra.mxu0 %v3387
  %3397 = vmatmul.bf16.gmra.mxu0 %v3339
  %v3398 = vpop.f32.mrf.mxu0
  %v3399 = vadd.f32 0.0, %v3398
  %v3400 = vpop.f32.mrf.mxu0
  %3401 = vdwg.mxu0
  %v3403 = vunpack.c.l.b16 %v2940
  %v3404 = vpack.c.b16 %v3403, %v3403
  %3405 = vrot.lane.b32.xlu0 %v3404, 96
  %v3406 = vpop.permute.xlu0 %3405
  %v3408 = vsel %vm74, %v3406, 0
  %3410 = vmatpush.bf16.xpose.msra.mxu0 0
  %3411 = vmatpush.bf16.xpose.msra.mxu0 0
  %3412 = vmatpush.bf16.xpose.msra.mxu0 0
  %3413 = vmatpush.bf16.xpose.msra.mxu0 0
  %3414 = vmatpush.bf16.xpose.msra.mxu0 0
  %3415 = vmatpush.bf16.xpose.msra.mxu0 0
  %3416 = vmatpush.bf16.xpose.msra.mxu0 0
  %3417 = vmatpush.bf16.xpose.msra.mxu0 %v3408
  %3418 = vmatmul.bf16.gmra.mxu0 %v3363
  %v3419 = vpop.f32.mrf.mxu0
  %v3420 = vadd.f32 0.0, %v3419
  %v3421 = vpop.f32.mrf.mxu0
  %3422 = vdwg.mxu0
  %v3424 = vunpack.c.l.b16 %v2941
  %v3425 = vpack.c.b16 %v3424, %v3424
  %3426 = vrot.lane.b32.xlu0 %v3425, 96
  %v3427 = vpop.permute.xlu0 %3426
  %v3429 = vsel %vm74, %v3427, 0
  %3431 = vmatpush.bf16.xpose.msra.mxu0 0
  %3432 = vmatpush.bf16.xpose.msra.mxu0 0
  %3433 = vmatpush.bf16.xpose.msra.mxu0 0
  %3434 = vmatpush.bf16.xpose.msra.mxu0 0
  %3435 = vmatpush.bf16.xpose.msra.mxu0 0
  %3436 = vmatpush.bf16.xpose.msra.mxu0 0
  %3437 = vmatpush.bf16.xpose.msra.mxu0 0
  %3438 = vmatpush.bf16.xpose.msra.mxu0 %v3429
  %3439 = vmatmul.bf16.gmra.mxu0 %v3339
  %v3440 = vpop.f32.mrf.mxu0
  %v3441 = vadd.f32 0.0, %v3440
  %v3442 = vpop.f32.mrf.mxu0
  %3443 = vdwg.mxu0
  %v3445 = vunpack.c.l.b16 %v2942
  %v3446 = vpack.c.b16 %v3445, %v3445
  %3447 = vrot.lane.b32.xlu0 %v3446, 96
  %v3448 = vpop.permute.xlu0 %3447
  %v3450 = vsel %vm74, %v3448, 0
  %3452 = vmatpush.bf16.xpose.msra.mxu0 0
  %3453 = vmatpush.bf16.xpose.msra.mxu0 0
  %3454 = vmatpush.bf16.xpose.msra.mxu0 0
  %3455 = vmatpush.bf16.xpose.msra.mxu0 0
  %3456 = vmatpush.bf16.xpose.msra.mxu0 0
  %3457 = vmatpush.bf16.xpose.msra.mxu0 0
  %3458 = vmatpush.bf16.xpose.msra.mxu0 0
  %3459 = vmatpush.bf16.xpose.msra.mxu0 %v3450
  %3460 = vmatmul.bf16.gmra.mxu0 %v3363
  %v3461 = vpop.f32.mrf.mxu0
  %v3462 = vadd.f32 0.0, %v3461
  %v3463 = vpop.f32.mrf.mxu0
  %3464 = vdwg.mxu0
  %v3466 = vunpack.c.l.b16 %v2943
  %v3467 = vpack.c.b16 %v3466, %v3466
  %3468 = vrot.lane.b32.xlu0 %v3467, 96
  %v3469 = vpop.permute.xlu0 %3468
  %v3471 = vsel %vm74, %v3469, 0
  %3473 = vmatpush.bf16.xpose.msra.mxu0 0
  %3474 = vmatpush.bf16.xpose.msra.mxu0 0
  %3475 = vmatpush.bf16.xpose.msra.mxu0 0
  %3476 = vmatpush.bf16.xpose.msra.mxu0 0
  %3477 = vmatpush.bf16.xpose.msra.mxu0 0
  %3478 = vmatpush.bf16.xpose.msra.mxu0 0
  %3479 = vmatpush.bf16.xpose.msra.mxu0 0
  %3480 = vmatpush.bf16.xpose.msra.mxu0 %v3471
  %3481 = vmatmul.bf16.gmra.mxu0 %v3339
  %v3482 = vpop.f32.mrf.mxu0
  %v3483 = vadd.f32 0.0, %v3482
  %v3484 = vpop.f32.mrf.mxu0
  %3485 = vdwg.mxu0
  %v3487 = vunpack.c.l.b16 %v2944
  %v3488 = vpack.c.b16 %v3487, %v3487
  %3489 = vrot.lane.b32.xlu0 %v3488, 96
  %v3490 = vpop.permute.xlu0 %3489
  %v3492 = vsel %vm74, %v3490, 0
  %3494 = vmatpush.bf16.xpose.msra.mxu0 0
  %3495 = vmatpush.bf16.xpose.msra.mxu0 0
  %3496 = vmatpush.bf16.xpose.msra.mxu0 0
  %3497 = vmatpush.bf16.xpose.msra.mxu0 0
  %3498 = vmatpush.bf16.xpose.msra.mxu0 0
  %3499 = vmatpush.bf16.xpose.msra.mxu0 0
  %3500 = vmatpush.bf16.xpose.msra.mxu0 0
  %3501 = vmatpush.bf16.xpose.msra.mxu0 %v3492
  %3502 = vmatmul.bf16.gmra.mxu0 %v3363
  %v3503 = vpop.f32.mrf.mxu0
  %v3504 = vadd.f32 0.0, %v3503
  %v3505 = vpop.f32.mrf.mxu0
  %3506 = vdwg.mxu0
  %v3508 = vunpack.c.l.b16 %v2945
  %v3509 = vpack.c.b16 %v3508, %v3508
  %3510 = vrot.lane.b32.xlu0 %v3509, 96
  %v3511 = vpop.permute.xlu0 %3510
  %v3513 = vsel %vm74, %v2919, 0
  %v3516 = vsel %vm74, %v3511, 0
  %3518 = vmatpush.bf16.xpose.msra.mxu0 0
  %3519 = vmatpush.bf16.xpose.msra.mxu0 0
  %3520 = vmatpush.bf16.xpose.msra.mxu0 0
  %3521 = vmatpush.bf16.xpose.msra.mxu0 0
  %3522 = vmatpush.bf16.xpose.msra.mxu0 0
  %3523 = vmatpush.bf16.xpose.msra.mxu0 0
  %3524 = vmatpush.bf16.xpose.msra.mxu0 0
  %3525 = vmatpush.bf16.xpose.msra.mxu0 %v3516
  %3526 = vmatmul.bf16.gmra.mxu0 %v3513
  %v3527 = vpop.f32.mrf.mxu0
  %v3528 = vadd.f32 0.0, %v3527
  %v3529 = vpop.f32.mrf.mxu0
  %3530 = vdwg.mxu0
  %v3532 = vunpack.c.l.b16 %v2946
  %v3533 = vpack.c.b16 %v3532, %v3532
  %3534 = vrot.lane.b32.xlu0 %v3533, 96
  %v3535 = vpop.permute.xlu0 %3534
  %v3537 = vsel %vm74, %v2920, 0
  %v3540 = vsel %vm74, %v3535, 0
  %3542 = vmatpush.bf16.xpose.msra.mxu0 0
  %3543 = vmatpush.bf16.xpose.msra.mxu0 0
  %3544 = vmatpush.bf16.xpose.msra.mxu0 0
  %3545 = vmatpush.bf16.xpose.msra.mxu0 0
  %3546 = vmatpush.bf16.xpose.msra.mxu0 0
  %3547 = vmatpush.bf16.xpose.msra.mxu0 0
  %3548 = vmatpush.bf16.xpose.msra.mxu0 0
  %3549 = vmatpush.bf16.xpose.msra.mxu0 %v3540
  %3550 = vmatmul.bf16.gmra.mxu0 %v3537
  %v3551 = vpop.f32.mrf.mxu0
  %v3552 = vadd.f32 0.0, %v3551
  %v3553 = vpop.f32.mrf.mxu0
  %3554 = vdwg.mxu0
  %v3556 = vunpack.c.l.b16 %v2947
  %v3557 = vpack.c.b16 %v3556, %v3556
  %3558 = vrot.lane.b32.xlu0 %v3557, 96
  %v3559 = vpop.permute.xlu0 %3558
  %v3561 = vsel %vm74, %v3559, 0
  %3563 = vmatpush.bf16.xpose.msra.mxu0 0
  %3564 = vmatpush.bf16.xpose.msra.mxu0 0
  %3565 = vmatpush.bf16.xpose.msra.mxu0 0
  %3566 = vmatpush.bf16.xpose.msra.mxu0 0
  %3567 = vmatpush.bf16.xpose.msra.mxu0 0
  %3568 = vmatpush.bf16.xpose.msra.mxu0 0
  %3569 = vmatpush.bf16.xpose.msra.mxu0 0
  %3570 = vmatpush.bf16.xpose.msra.mxu0 %v3561
  %3571 = vmatmul.bf16.gmra.mxu0 %v3513
  %v3572 = vpop.f32.mrf.mxu0
  %v3573 = vadd.f32 0.0, %v3572
  %v3574 = vpop.f32.mrf.mxu0
  %3575 = vdwg.mxu0
  %v3577 = vunpack.c.l.b16 %v2948
  %v3578 = vpack.c.b16 %v3577, %v3577
  %3579 = vrot.lane.b32.xlu0 %v3578, 96
  %v3580 = vpop.permute.xlu0 %3579
  %v3582 = vsel %vm74, %v3580, 0
  %3584 = vmatpush.bf16.xpose.msra.mxu0 0
  %3585 = vmatpush.bf16.xpose.msra.mxu0 0
  %3586 = vmatpush.bf16.xpose.msra.mxu0 0
  %3587 = vmatpush.bf16.xpose.msra.mxu0 0
  %3588 = vmatpush.bf16.xpose.msra.mxu0 0
  %3589 = vmatpush.bf16.xpose.msra.mxu0 0
  %3590 = vmatpush.bf16.xpose.msra.mxu0 0
  %3591 = vmatpush.bf16.xpose.msra.mxu0 %v3582
  %3592 = vmatmul.bf16.gmra.mxu0 %v3537
  %v3593 = vpop.f32.mrf.mxu0
  %v3594 = vadd.f32 0.0, %v3593
  %v3595 = vpop.f32.mrf.mxu0
  %3596 = vdwg.mxu0
  %v3598 = vunpack.c.l.b16 %v2949
  %v3599 = vpack.c.b16 %v3598, %v3598
  %3600 = vrot.lane.b32.xlu0 %v3599, 96
  %v3601 = vpop.permute.xlu0 %3600
  %v3603 = vsel %vm74, %v3601, 0
  %3605 = vmatpush.bf16.xpose.msra.mxu0 0
  %3606 = vmatpush.bf16.xpose.msra.mxu0 0
  %3607 = vmatpush.bf16.xpose.msra.mxu0 0
  %3608 = vmatpush.bf16.xpose.msra.mxu0 0
  %3609 = vmatpush.bf16.xpose.msra.mxu0 0
  %3610 = vmatpush.bf16.xpose.msra.mxu0 0
  %3611 = vmatpush.bf16.xpose.msra.mxu0 0
  %3612 = vmatpush.bf16.xpose.msra.mxu0 %v3603
  %3613 = vmatmul.bf16.gmra.mxu0 %v3513
  %v3614 = vpop.f32.mrf.mxu0
  %v3615 = vadd.f32 0.0, %v3614
  %v3616 = vpop.f32.mrf.mxu0
  %3617 = vdwg.mxu0
  %v3619 = vunpack.c.l.b16 %v2950
  %v3620 = vpack.c.b16 %v3619, %v3619
  %3621 = vrot.lane.b32.xlu0 %v3620, 96
  %v3622 = vpop.permute.xlu0 %3621
  %v3624 = vsel %vm74, %v3622, 0
  %3626 = vmatpush.bf16.xpose.msra.mxu0 0
  %3627 = vmatpush.bf16.xpose.msra.mxu0 0
  %3628 = vmatpush.bf16.xpose.msra.mxu0 0
  %3629 = vmatpush.bf16.xpose.msra.mxu0 0
  %3630 = vmatpush.bf16.xpose.msra.mxu0 0
  %3631 = vmatpush.bf16.xpose.msra.mxu0 0
  %3632 = vmatpush.bf16.xpose.msra.mxu0 0
  %3633 = vmatpush.bf16.xpose.msra.mxu0 %v3624
  %3634 = vmatmul.bf16.gmra.mxu0 %v3537
  %v3635 = vpop.f32.mrf.mxu0
  %v3636 = vadd.f32 0.0, %v3635
  %v3637 = vpop.f32.mrf.mxu0
  %3638 = vdwg.mxu0
  %v3640 = vunpack.c.l.b16 %v2951
  %v3641 = vpack.c.b16 %v3640, %v3640
  %3642 = vrot.lane.b32.xlu0 %v3641, 96
  %v3643 = vpop.permute.xlu0 %3642
  %v3645 = vsel %vm74, %v3643, 0
  %3647 = vmatpush.bf16.xpose.msra.mxu0 0
  %3648 = vmatpush.bf16.xpose.msra.mxu0 0
  %3649 = vmatpush.bf16.xpose.msra.mxu0 0
  %3650 = vmatpush.bf16.xpose.msra.mxu0 0
  %3651 = vmatpush.bf16.xpose.msra.mxu0 0
  %3652 = vmatpush.bf16.xpose.msra.mxu0 0
  %3653 = vmatpush.bf16.xpose.msra.mxu0 0
  %3654 = vmatpush.bf16.xpose.msra.mxu0 %v3645
  %3655 = vmatmul.bf16.gmra.mxu0 %v3513
  %v3656 = vpop.f32.mrf.mxu0
  %v3657 = vadd.f32 0.0, %v3656
  %v3658 = vpop.f32.mrf.mxu0
  %3659 = vdwg.mxu0
  %v3661 = vunpack.c.l.b16 %v2952
  %v3662 = vpack.c.b16 %v3661, %v3661
  %3663 = vrot.lane.b32.xlu0 %v3662, 96
  %v3664 = vpop.permute.xlu0 %3663
  %v3666 = vsel %vm74, %v3664, 0
  %3668 = vmatpush.bf16.xpose.msra.mxu0 0
  %3669 = vmatpush.bf16.xpose.msra.mxu0 0
  %3670 = vmatpush.bf16.xpose.msra.mxu0 0
  %3671 = vmatpush.bf16.xpose.msra.mxu0 0
  %3672 = vmatpush.bf16.xpose.msra.mxu0 0
  %3673 = vmatpush.bf16.xpose.msra.mxu0 0
  %3674 = vmatpush.bf16.xpose.msra.mxu0 0
  %3675 = vmatpush.bf16.xpose.msra.mxu0 %v3666
  %3676 = vmatmul.bf16.gmra.mxu0 %v3537
  %v3677 = vpop.f32.mrf.mxu0
  %v3678 = vadd.f32 0.0, %v3677
  %v3679 = vpop.f32.mrf.mxu0
  %3680 = vdwg.mxu0
  %v3681 = vmul.f32 %v3006, 0.5
  %v3682 = vmul.f32 %v3030, 0.5
  %v3683 = vmul.f32 %v3051, 0.5
  %v3684 = vmul.f32 %v3072, 0.5
  %v3685 = vmul.f32 %v3093, 0.5
  %v3686 = vmul.f32 %v3114, 0.5
  %v3687 = vmul.f32 %v3135, 0.5
  %v3688 = vmul.f32 %v3156, 0.5
  %v3689 = vadd.f32 %v3681, 0.0
  %v3690 = vadd.f32 %v3682, 0.0
  %v3691 = vadd.f32 %v3683, 0.0
  %v3692 = vadd.f32 %v3684, 0.0
  %v3693 = vadd.f32 %v3685, 0.0
  %v3694 = vadd.f32 %v3686, 0.0
  %v3695 = vadd.f32 %v3687, 0.0
  %v3696 = vadd.f32 %v3688, 0.0
  %vm3697 = vcmp.ge.f32.partialorder %v3689, 2.828427
  %vm3698 = vcmp.ge.f32.partialorder %v3690, 2.828427
  %vm3699 = vcmp.ge.f32.partialorder %v3691, 2.828427
  %vm3700 = vcmp.ge.f32.partialorder %v3692, 2.828427
  %vm3701 = vcmp.ge.f32.partialorder %v3693, 2.828427
  %vm3702 = vcmp.ge.f32.partialorder %v3694, 2.828427
  %vm3703 = vcmp.ge.f32.partialorder %v3695, 2.828427
  %vm3704 = vcmp.ge.f32.partialorder %v3696, 2.828427
  %v3705 = vsel %vm3697, 1, 0
  %v3706 = vsel %vm3698, 1, 0
  %v3707 = vsel %vm3699, 1, 0
  %v3708 = vsel %vm3700, 1, 0
  %v3709 = vsel %vm3701, 1, 0
  %v3710 = vsel %vm3702, 1, 0
  %v3711 = vsel %vm3703, 1, 0
  %v3712 = vsel %vm3704, 1, 0
  %v3713 = vcvt.s32.f32 %v3705
  %v3714 = vcvt.s32.f32 %v3706
  %v3715 = vcvt.s32.f32 %v3707
  %v3716 = vcvt.s32.f32 %v3708
  %v3717 = vcvt.s32.f32 %v3709
  %v3718 = vcvt.s32.f32 %v3710
  %v3719 = vcvt.s32.f32 %v3711
  %v3720 = vcvt.s32.f32 %v3712
  %v3721 = vsub.f32 1.0, %v3713
  %v3722 = vsub.f32 1.0, %v3714
  %v3723 = vsub.f32 1.0, %v3715
  %v3724 = vsub.f32 1.0, %v3716
  %v3725 = vsub.f32 1.0, %v3717
  %v3726 = vsub.f32 1.0, %v3718
  %v3727 = vsub.f32 1.0, %v3719
  %v3728 = vsub.f32 1.0, %v3720
  %v3729 = vmul.f32 %v3689, %v3721
  %v3730 = vmul.f32 %v3690, %v3722
  %v3731 = vmul.f32 %v3691, %v3723
  %v3732 = vmul.f32 %v3692, %v3724
  %v3733 = vmul.f32 %v3693, %v3725
  %v3734 = vmul.f32 %v3694, %v3726
  %v3735 = vmul.f32 %v3695, %v3727
  %v3736 = vmul.f32 %v3696, %v3728
  %v3737 = vsub.f32 %v3180, %v3729
  %v3738 = vsub.f32 %v3204, %v3730
  %v3739 = vsub.f32 %v3225, %v3731
  %v3740 = vsub.f32 %v3246, %v3732
  %v3741 = vsub.f32 %v3267, %v3733
  %v3742 = vsub.f32 %v3288, %v3734
  %v3743 = vsub.f32 %v3309, %v3735
  %v3744 = vsub.f32 %v3330, %v3736
  %v3745 = vmul.f32 %v3737, 0.5
  %v3746 = vmul.f32 %v3738, 0.5
  %v3747 = vmul.f32 %v3739, 0.5
  %v3748 = vmul.f32 %v3740, 0.5
  %v3749 = vmul.f32 %v3741, 0.5
  %v3750 = vmul.f32 %v3742, 0.5
  %v3751 = vmul.f32 %v3743, 0.5
  %v3752 = vmul.f32 %v3744, 0.5
  %v3753 = vadd.f32 %v3729, %v3745
  %v3754 = vadd.f32 %v3730, %v3746
  %v3755 = vadd.f32 %v3731, %v3747
  %v3756 = vadd.f32 %v3732, %v3748
  %v3757 = vadd.f32 %v3733, %v3749
  %v3758 = vadd.f32 %v3734, %v3750
  %v3759 = vadd.f32 %v3735, %v3751
  %v3760 = vadd.f32 %v3736, %v3752
  %vm3761 = vcmp.ge.f32.partialorder %v3753, 2.828427
  %vm3762 = vcmp.ge.f32.partialorder %v3754, 2.828427
  %vm3763 = vcmp.ge.f32.partialorder %v3755, 2.828427
  %vm3764 = vcmp.ge.f32.partialorder %v3756, 2.828427
  %vm3765 = vcmp.ge.f32.partialorder %v3757, 2.828427
  %vm3766 = vcmp.ge.f32.partialorder %v3758, 2.828427
  %vm3767 = vcmp.ge.f32.partialorder %v3759, 2.828427
  %vm3768 = vcmp.ge.f32.partialorder %v3760, 2.828427
  %v3769 = vsel %vm3761, 1, 0
  %v3770 = vsel %vm3762, 1, 0
  %v3771 = vsel %vm3763, 1, 0
  %v3772 = vsel %vm3764, 1, 0
  %v3773 = vsel %vm3765, 1, 0
  %v3774 = vsel %vm3766, 1, 0
  %v3775 = vsel %vm3767, 1, 0
  %v3776 = vsel %vm3768, 1, 0
  %v3777 = vcvt.s32.f32 %v3769
  %v3778 = vcvt.s32.f32 %v3770
  %v3779 = vcvt.s32.f32 %v3771
  %v3780 = vcvt.s32.f32 %v3772
  %v3781 = vcvt.s32.f32 %v3773
  %v3782 = vcvt.s32.f32 %v3774
  %v3783 = vcvt.s32.f32 %v3775
  %v3784 = vcvt.s32.f32 %v3776
  %v3785 = vsub.f32 1.0, %v3777
  %v3786 = vsub.f32 1.0, %v3778
  %v3787 = vsub.f32 1.0, %v3779
  %v3788 = vsub.f32 1.0, %v3780
  %v3789 = vsub.f32 1.0, %v3781
  %v3790 = vsub.f32 1.0, %v3782
  %v3791 = vsub.f32 1.0, %v3783
  %v3792 = vsub.f32 1.0, %v3784
  %v3793 = vmul.f32 %v3753, %v3785
  %v3794 = vmul.f32 %v3754, %v3786
  %v3795 = vmul.f32 %v3755, %v3787
  %v3796 = vmul.f32 %v3756, %v3788
  %v3797 = vmul.f32 %v3757, %v3789
  %v3798 = vmul.f32 %v3758, %v3790
  %v3799 = vmul.f32 %v3759, %v3791
  %v3800 = vmul.f32 %v3760, %v3792
  %v3801 = vsub.f32 %v3354, %v3793
  %v3802 = vsub.f32 %v3378, %v3794
  %v3803 = vsub.f32 %v3399, %v3795
  %v3804 = vsub.f32 %v3420, %v3796
  %v3805 = vsub.f32 %v3441, %v3797
  %v3806 = vsub.f32 %v3462, %v3798
  %v3807 = vsub.f32 %v3483, %v3799
  %v3808 = vsub.f32 %v3504, %v3800
  %v3809 = vmul.f32 %v3801, 0.5
  %v3810 = vmul.f32 %v3802, 0.5
  %v3811 = vmul.f32 %v3803, 0.5
  %v3812 = vmul.f32 %v3804, 0.5
  %v3813 = vmul.f32 %v3805, 0.5
  %v3814 = vmul.f32 %v3806, 0.5
  %v3815 = vmul.f32 %v3807, 0.5
  %v3816 = vmul.f32 %v3808, 0.5
  %v3817 = vadd.f32 %v3793, %v3809
  %v3818 = vadd.f32 %v3794, %v3810
  %v3819 = vadd.f32 %v3795, %v3811
  %v3820 = vadd.f32 %v3796, %v3812
  %v3821 = vadd.f32 %v3797, %v3813
  %v3822 = vadd.f32 %v3798, %v3814
  %v3823 = vadd.f32 %v3799, %v3815
  %v3824 = vadd.f32 %v3800, %v3816
  %vm3825 = vcmp.ge.f32.partialorder %v3817, 2.828427
  %vm3826 = vcmp.ge.f32.partialorder %v3818, 2.828427
  %vm3827 = vcmp.ge.f32.partialorder %v3819, 2.828427
  %vm3828 = vcmp.ge.f32.partialorder %v3820, 2.828427
  %vm3829 = vcmp.ge.f32.partialorder %v3821, 2.828427
  %vm3830 = vcmp.ge.f32.partialorder %v3822, 2.828427
  %vm3831 = vcmp.ge.f32.partialorder %v3823, 2.828427
  %vm3832 = vcmp.ge.f32.partialorder %v3824, 2.828427
  %v3833 = vsel %vm3825, 1, 0
  %v3834 = vsel %vm3826, 1, 0
  %v3835 = vsel %vm3827, 1, 0
  %v3836 = vsel %vm3828, 1, 0
  %v3837 = vsel %vm3829, 1, 0
  %v3838 = vsel %vm3830, 1, 0
  %v3839 = vsel %vm3831, 1, 0
  %v3840 = vsel %vm3832, 1, 0
  %v3841 = vcvt.s32.f32 %v3833
  %v3842 = vcvt.s32.f32 %v3834
  %v3843 = vcvt.s32.f32 %v3835
  %v3844 = vcvt.s32.f32 %v3836
  %v3845 = vcvt.s32.f32 %v3837
  %v3846 = vcvt.s32.f32 %v3838
  %v3847 = vcvt.s32.f32 %v3839
  %v3848 = vcvt.s32.f32 %v3840
  %v3849 = vsub.f32 1.0, %v3841
  %v3850 = vsub.f32 1.0, %v3842
  %v3851 = vsub.f32 1.0, %v3843
  %v3852 = vsub.f32 1.0, %v3844
  %v3853 = vsub.f32 1.0, %v3845
  %v3854 = vsub.f32 1.0, %v3846
  %v3855 = vsub.f32 1.0, %v3847
  %v3856 = vsub.f32 1.0, %v3848
  %v3857 = vmul.f32 %v3817, %v3849
  %v3858 = vmul.f32 %v3818, %v3850
  %v3859 = vmul.f32 %v3819, %v3851
  %v3860 = vmul.f32 %v3820, %v3852
  %v3861 = vmul.f32 %v3821, %v3853
  %v3862 = vmul.f32 %v3822, %v3854
  %v3863 = vmul.f32 %v3823, %v3855
  %v3864 = vmul.f32 %v3824, %v3856
  %v3865 = vsub.f32 %v3528, %v3857
  %v3866 = vsub.f32 %v3552, %v3858
  %v3867 = vsub.f32 %v3573, %v3859
  %v3868 = vsub.f32 %v3594, %v3860
  %v3869 = vsub.f32 %v3615, %v3861
  %v3870 = vsub.f32 %v3636, %v3862
  %v3871 = vsub.f32 %v3657, %v3863
  %v3872 = vsub.f32 %v3678, %v3864
  %v3873 = vmul.f32 %v3865, 0.5
  %v3874 = vmul.f32 %v3866, 0.5
  %v3875 = vmul.f32 %v3867, 0.5
  %v3876 = vmul.f32 %v3868, 0.5
  %v3877 = vmul.f32 %v3869, 0.5
  %v3878 = vmul.f32 %v3870, 0.5
  %v3879 = vmul.f32 %v3871, 0.5
  %v3880 = vmul.f32 %v3872, 0.5
  %v3881 = vadd.f32 %v3857, %v3873
  %v3882 = vadd.f32 %v3858, %v3874
  %v3883 = vadd.f32 %v3859, %v3875
  %v3884 = vadd.f32 %v3860, %v3876
  %v3885 = vadd.f32 %v3861, %v3877
  %v3886 = vadd.f32 %v3862, %v3878
  %v3887 = vadd.f32 %v3863, %v3879
  %v3888 = vadd.f32 %v3864, %v3880
  %vm3889 = vcmp.ge.f32.partialorder %v3881, 2.828427
  %vm3890 = vcmp.ge.f32.partialorder %v3882, 2.828427
  %vm3891 = vcmp.ge.f32.partialorder %v3883, 2.828427
  %vm3892 = vcmp.ge.f32.partialorder %v3884, 2.828427
  %vm3893 = vcmp.ge.f32.partialorder %v3885, 2.828427
  %vm3894 = vcmp.ge.f32.partialorder %v3886, 2.828427
  %vm3895 = vcmp.ge.f32.partialorder %v3887, 2.828427
  %vm3896 = vcmp.ge.f32.partialorder %v3888, 2.828427
  %v3897 = vsel %vm3889, 1, 0
  %v3898 = vsel %vm3890, 1, 0
  %v3899 = vsel %vm3891, 1, 0
  %v3900 = vsel %vm3892, 1, 0
  %v3901 = vsel %vm3893, 1, 0
  %v3902 = vsel %vm3894, 1, 0
  %v3903 = vsel %vm3895, 1, 0
  %v3904 = vsel %vm3896, 1, 0
  %v3905 = vcvt.s32.f32 %v3897
  %v3906 = vcvt.s32.f32 %v3898
  %v3907 = vcvt.s32.f32 %v3899
  %v3908 = vcvt.s32.f32 %v3900
  %v3909 = vcvt.s32.f32 %v3901
  %v3910 = vcvt.s32.f32 %v3902
  %v3911 = vcvt.s32.f32 %v3903
  %v3912 = vcvt.s32.f32 %v3904
  %v3913 = vmul.f32 %v3713, 1.7182819
  %v3914 = vmul.f32 %v3714, 1.7182819
  %v3915 = vmul.f32 %v3715, 1.7182819
  %v3916 = vmul.f32 %v3716, 1.7182819
  %v3917 = vmul.f32 %v3717, 1.7182819
  %v3918 = vmul.f32 %v3718, 1.7182819
  %v3919 = vmul.f32 %v3719, 1.7182819
  %v3920 = vmul.f32 %v3720, 1.7182819
  %v3921 = vmul.f32 %v3777, 1.7182819
  %v3922 = vmul.f32 %v3778, 1.7182819
  %v3923 = vmul.f32 %v3779, 1.7182819
  %v3924 = vmul.f32 %v3780, 1.7182819
  %v3925 = vmul.f32 %v3781, 1.7182819
  %v3926 = vmul.f32 %v3782, 1.7182819
  %v3927 = vmul.f32 %v3783, 1.7182819
  %v3928 = vmul.f32 %v3784, 1.7182819
  %v3929 = vmul.f32 %v3841, 1.7182819
  %v3930 = vmul.f32 %v3842, 1.7182819
  %v3931 = vmul.f32 %v3843, 1.7182819
  %v3932 = vmul.f32 %v3844, 1.7182819
  %v3933 = vmul.f32 %v3845, 1.7182819
  %v3934 = vmul.f32 %v3846, 1.7182819
  %v3935 = vmul.f32 %v3847, 1.7182819
  %v3936 = vmul.f32 %v3848, 1.7182819
  %v3937 = vmul.f32 %v3905, 1.7182819
  %v3938 = vmul.f32 %v3906, 1.7182819
  %v3939 = vmul.f32 %v3907, 1.7182819
  %v3940 = vmul.f32 %v3908, 1.7182819
  %v3941 = vmul.f32 %v3909, 1.7182819
  %v3942 = vmul.f32 %v3910, 1.7182819
  %v3943 = vmul.f32 %v3911, 1.7182819
  %v3944 = vmul.f32 %v3912, 1.7182819
  %v3945 = vadd.f32 %v3913, 1.0
  %v3946 = vadd.f32 %v3914, 1.0
  %v3947 = vadd.f32 %v3915, 1.0
  %v3948 = vadd.f32 %v3916, 1.0
  %v3949 = vadd.f32 %v3917, 1.0
  %v3950 = vadd.f32 %v3918, 1.0
  %v3951 = vadd.f32 %v3919, 1.0
  %v3952 = vadd.f32 %v3920, 1.0
  %v3953 = vadd.f32 %v3921, 1.0
  %v3954 = vadd.f32 %v3922, 1.0
  %v3955 = vadd.f32 %v3923, 1.0
  %v3956 = vadd.f32 %v3924, 1.0
  %v3957 = vadd.f32 %v3925, 1.0
  %v3958 = vadd.f32 %v3926, 1.0
  %v3959 = vadd.f32 %v3927, 1.0
  %v3960 = vadd.f32 %v3928, 1.0
  %v3961 = vadd.f32 %v3929, 1.0
  %v3962 = vadd.f32 %v3930, 1.0
  %v3963 = vadd.f32 %v3931, 1.0
  %v3964 = vadd.f32 %v3932, 1.0
  %v3965 = vadd.f32 %v3933, 1.0
  %v3966 = vadd.f32 %v3934, 1.0
  %v3967 = vadd.f32 %v3935, 1.0
  %v3968 = vadd.f32 %v3936, 1.0
  %v3969 = vadd.f32 %v3937, 1.0
  %v3970 = vadd.f32 %v3938, 1.0
  %v3971 = vadd.f32 %v3939, 1.0
  %v3972 = vadd.f32 %v3940, 1.0
  %v3973 = vadd.f32 %v3941, 1.0
  %v3974 = vadd.f32 %v3942, 1.0
  %v3975 = vadd.f32 %v3943, 1.0
  %v3976 = vadd.f32 %v3944, 1.0
  %v3977 = vsel %vm1413, %v3713, 0.0
  %3978 = vadd.xlane.f32.xlu0 %v3977
  %v3979 = vpop.xlane.xlu0 %3978
  %v3980 = vsel %vm1413, %v3714, 0.0
  %3981 = vadd.xlane.f32.xlu0 %v3980
  %v3982 = vpop.xlane.xlu0 %3981
  %v3983 = vsel %vm1413, %v3715, 0.0
  %3984 = vadd.xlane.f32.xlu0 %v3983
  %v3985 = vpop.xlane.xlu0 %3984
  %v3986 = vsel %vm1413, %v3716, 0.0
  %3987 = vadd.xlane.f32.xlu0 %v3986
  %v3988 = vpop.xlane.xlu0 %3987
  %v3989 = vsel %vm1413, %v3717, 0.0
  %3990 = vadd.xlane.f32.xlu0 %v3989
  %v3991 = vpop.xlane.xlu0 %3990
  %v3992 = vsel %vm1413, %v3718, 0.0
  %3993 = vadd.xlane.f32.xlu0 %v3992
  %v3994 = vpop.xlane.xlu0 %3993
  %v3995 = vsel %vm1413, %v3719, 0.0
  %3996 = vadd.xlane.f32.xlu0 %v3995
  %v3997 = vpop.xlane.xlu0 %3996
  %v3998 = vsel %vm1413, %v3720, 0.0
  %3999 = vadd.xlane.f32.xlu0 %v3998
  %v4000 = vpop.xlane.xlu0 %3999
  %v4001 = vsel %vm1413, %v3777, 0.0
  %4002 = vadd.xlane.f32.xlu0 %v4001
  %v4003 = vpop.xlane.xlu0 %4002
  %v4004 = vsel %vm1413, %v3778, 0.0
  %4005 = vadd.xlane.f32.xlu0 %v4004
  %v4006 = vpop.xlane.xlu0 %4005
  %v4007 = vsel %vm1413, %v3779, 0.0
  %4008 = vadd.xlane.f32.xlu0 %v4007
  %v4009 = vpop.xlane.xlu0 %4008
  %v4010 = vsel %vm1413, %v3780, 0.0
  %4011 = vadd.xlane.f32.xlu0 %v4010
  %v4012 = vpop.xlane.xlu0 %4011
  %v4013 = vsel %vm1413, %v3781, 0.0
  %4014 = vadd.xlane.f32.xlu0 %v4013
  %v4015 = vpop.xlane.xlu0 %4014
  %v4016 = vsel %vm1413, %v3782, 0.0
  %4017 = vadd.xlane.f32.xlu0 %v4016
  %v4018 = vpop.xlane.xlu0 %4017
  %v4019 = vsel %vm1413, %v3783, 0.0
  %4020 = vadd.xlane.f32.xlu0 %v4019
  %v4021 = vpop.xlane.xlu0 %4020
  %v4022 = vsel %vm1413, %v3784, 0.0
  %4023 = vadd.xlane.f32.xlu0 %v4022
  %v4024 = vpop.xlane.xlu0 %4023
  %v4025 = vsel %vm1413, %v3841, 0.0
  %4026 = vadd.xlane.f32.xlu0 %v4025
  %v4027 = vpop.xlane.xlu0 %4026
  %v4028 = vsel %vm1413, %v3842, 0.0
  %4029 = vadd.xlane.f32.xlu0 %v4028
  %v4030 = vpop.xlane.xlu0 %4029
  %v4031 = vsel %vm1413, %v3843, 0.0
  %4032 = vadd.xlane.f32.xlu0 %v4031
  %v4033 = vpop.xlane.xlu0 %4032
  %v4034 = vsel %vm1413, %v3844, 0.0
  %4035 = vadd.xlane.f32.xlu0 %v4034
  %v4036 = vpop.xlane.xlu0 %4035
  %v4037 = vsel %vm1413, %v3845, 0.0
  %4038 = vadd.xlane.f32.xlu0 %v4037
  %v4039 = vpop.xlane.xlu0 %4038
  %v4040 = vsel %vm1413, %v3846, 0.0
  %4041 = vadd.xlane.f32.xlu0 %v4040
  %v4042 = vpop.xlane.xlu0 %4041
  %v4043 = vsel %vm1413, %v3847, 0.0
  %4044 = vadd.xlane.f32.xlu0 %v4043
  %v4045 = vpop.xlane.xlu0 %4044
  %v4046 = vsel %vm1413, %v3848, 0.0
  %4047 = vadd.xlane.f32.xlu0 %v4046
  %v4048 = vpop.xlane.xlu0 %4047
  %v4049 = vsel %vm1413, %v3905, 0.0
  %4050 = vadd.xlane.f32.xlu0 %v4049
  %v4051 = vpop.xlane.xlu0 %4050
  %v4052 = vsel %vm1413, %v3906, 0.0
  %4053 = vadd.xlane.f32.xlu0 %v4052
  %v4054 = vpop.xlane.xlu0 %4053
  %v4055 = vsel %vm1413, %v3907, 0.0
  %4056 = vadd.xlane.f32.xlu0 %v4055
  %v4057 = vpop.xlane.xlu0 %4056
  %v4058 = vsel %vm1413, %v3908, 0.0
  %4059 = vadd.xlane.f32.xlu0 %v4058
  %v4060 = vpop.xlane.xlu0 %4059
  %v4061 = vsel %vm1413, %v3909, 0.0
  %4062 = vadd.xlane.f32.xlu0 %v4061
  %v4063 = vpop.xlane.xlu0 %4062
  %v4064 = vsel %vm1413, %v3910, 0.0
  %4065 = vadd.xlane.f32.xlu0 %v4064
  %v4066 = vpop.xlane.xlu0 %4065
  %v4067 = vsel %vm1413, %v3911, 0.0
  %4068 = vadd.xlane.f32.xlu0 %v4067
  %v4069 = vpop.xlane.xlu0 %4068
  %v4070 = vsel %vm1413, %v3912, 0.0
  %4071 = vadd.xlane.f32.xlu0 %v4070
  %v4072 = vpop.xlane.xlu0 %4071
  %v4073 = vmul.f32 %v3979, 1.7182819
  %v4074 = vmul.f32 %v3982, 1.7182819
  %v4075 = vmul.f32 %v3985, 1.7182819
  %v4076 = vmul.f32 %v3988, 1.7182819
  %v4077 = vmul.f32 %v3991, 1.7182819
  %v4078 = vmul.f32 %v3994, 1.7182819
  %v4079 = vmul.f32 %v3997, 1.7182819
  %v4080 = vmul.f32 %v4000, 1.7182819
  %v4081 = vmul.f32 %v4003, 1.7182819
  %v4082 = vmul.f32 %v4006, 1.7182819
  %v4083 = vmul.f32 %v4009, 1.7182819
  %v4084 = vmul.f32 %v4012, 1.7182819
  %v4085 = vmul.f32 %v4015, 1.7182819
  %v4086 = vmul.f32 %v4018, 1.7182819
  %v4087 = vmul.f32 %v4021, 1.7182819
  %v4088 = vmul.f32 %v4024, 1.7182819
  %v4089 = vmul.f32 %v4027, 1.7182819
  %v4090 = vmul.f32 %v4030, 1.7182819
  %v4091 = vmul.f32 %v4033, 1.7182819
  %v4092 = vmul.f32 %v4036, 1.7182819
  %v4093 = vmul.f32 %v4039, 1.7182819
  %v4094 = vmul.f32 %v4042, 1.7182819
  %v4095 = vmul.f32 %v4045, 1.7182819
  %v4096 = vmul.f32 %v4048, 1.7182819
  %v4097 = vmul.f32 %v4051, 1.7182819
  %v4098 = vmul.f32 %v4054, 1.7182819
  %v4099 = vmul.f32 %v4057, 1.7182819
  %v4100 = vmul.f32 %v4060, 1.7182819
  %v4101 = vmul.f32 %v4063, 1.7182819
  %v4102 = vmul.f32 %v4066, 1.7182819
  %v4103 = vmul.f32 %v4069, 1.7182819
  %v4104 = vmul.f32 %v4072, 1.7182819
  %v4105 = vadd.f32 %v4073, 8.0
  %v4106 = vadd.f32 %v4074, 8.0
  %v4107 = vadd.f32 %v4075, 8.0
  %v4108 = vadd.f32 %v4076, 8.0
  %v4109 = vadd.f32 %v4077, 8.0
  %v4110 = vadd.f32 %v4078, 8.0
  %v4111 = vadd.f32 %v4079, 8.0
  %v4112 = vadd.f32 %v4080, 8.0
  %v4113 = vadd.f32 %v4081, 8.0
  %v4114 = vadd.f32 %v4082, 8.0
  %v4115 = vadd.f32 %v4083, 8.0
  %v4116 = vadd.f32 %v4084, 8.0
  %v4117 = vadd.f32 %v4085, 8.0
  %v4118 = vadd.f32 %v4086, 8.0
  %v4119 = vadd.f32 %v4087, 8.0
  %v4120 = vadd.f32 %v4088, 8.0
  %v4121 = vadd.f32 %v4089, 8.0
  %v4122 = vadd.f32 %v4090, 8.0
  %v4123 = vadd.f32 %v4091, 8.0
  %v4124 = vadd.f32 %v4092, 8.0
  %v4125 = vadd.f32 %v4093, 8.0
  %v4126 = vadd.f32 %v4094, 8.0
  %v4127 = vadd.f32 %v4095, 8.0
  %v4128 = vadd.f32 %v4096, 8.0
  %v4129 = vadd.f32 %v4097, 8.0
  %v4130 = vadd.f32 %v4098, 8.0
  %v4131 = vadd.f32 %v4099, 8.0
  %v4132 = vadd.f32 %v4100, 8.0
  %v4133 = vadd.f32 %v4101, 8.0
  %v4134 = vadd.f32 %v4102, 8.0
  %v4135 = vadd.f32 %v4103, 8.0
  %v4136 = vadd.f32 %v4104, 8.0
  %v4137 = vrcp.pop %v4105
  %v4138 = vrcp.pop %v4106
  %v4139 = vrcp.pop %v4107
  %v4140 = vrcp.pop %v4108
  %v4141 = vrcp.pop %v4109
  %v4142 = vrcp.pop %v4110
  %v4143 = vrcp.pop %v4111
  %v4144 = vrcp.pop %v4112
  %v4145 = vrcp.pop %v4113
  %v4146 = vrcp.pop %v4114
  %v4147 = vrcp.pop %v4115
  %v4148 = vrcp.pop %v4116
  %v4149 = vrcp.pop %v4117
  %v4150 = vrcp.pop %v4118
  %v4151 = vrcp.pop %v4119
  %v4152 = vrcp.pop %v4120
  %v4153 = vrcp.pop %v4121
  %v4154 = vrcp.pop %v4122
  %v4155 = vrcp.pop %v4123
  %v4156 = vrcp.pop %v4124
  %v4157 = vrcp.pop %v4125
  %v4158 = vrcp.pop %v4126
  %v4159 = vrcp.pop %v4127
  %v4160 = vrcp.pop %v4128
  %v4161 = vrcp.pop %v4129
  %v4162 = vrcp.pop %v4130
  %v4163 = vrcp.pop %v4131
  %v4164 = vrcp.pop %v4132
  %v4165 = vrcp.pop %v4133
  %v4166 = vrcp.pop %v4134
  %v4167 = vrcp.pop %v4135
  %v4168 = vrcp.pop %v4136
  %v4169 = vmul.f32 %v3945, %v4137
  %v4170 = vmul.f32 %v3946, %v4138
  %v4171 = vmul.f32 %v3947, %v4139
  %v4172 = vmul.f32 %v3948, %v4140
  %v4173 = vmul.f32 %v3949, %v4141
  %v4174 = vmul.f32 %v3950, %v4142
  %v4175 = vmul.f32 %v3951, %v4143
  %v4176 = vmul.f32 %v3952, %v4144
  %v4177 = vmul.f32 %v3953, %v4145
  %v4178 = vmul.f32 %v3954, %v4146
  %v4179 = vmul.f32 %v3955, %v4147
  %v4180 = vmul.f32 %v3956, %v4148
  %v4181 = vmul.f32 %v3957, %v4149
  %v4182 = vmul.f32 %v3958, %v4150
  %v4183 = vmul.f32 %v3959, %v4151
  %v4184 = vmul.f32 %v3960, %v4152
  %v4185 = vmul.f32 %v3961, %v4153
  %v4186 = vmul.f32 %v3962, %v4154
  %v4187 = vmul.f32 %v3963, %v4155
  %v4188 = vmul.f32 %v3964, %v4156
  %v4189 = vmul.f32 %v3965, %v4157
  %v4190 = vmul.f32 %v3966, %v4158
  %v4191 = vmul.f32 %v3967, %v4159
  %v4192 = vmul.f32 %v3968, %v4160
  %v4193 = vmul.f32 %v3969, %v4161
  %v4194 = vmul.f32 %v3970, %v4162
  %v4195 = vmul.f32 %v3971, %v4163
  %v4196 = vmul.f32 %v3972, %v4164
  %v4197 = vmul.f32 %v3973, %v4165
  %v4198 = vmul.f32 %v3974, %v4166
  %v4199 = vmul.f32 %v3975, %v4167
  %v4200 = vmul.f32 %v3976, %v4168
  %v4201 = vpack.c.bf16 %v4169, %v4169
  %v4202 = vpack.c.bf16 %v4170, %v4170
  %v4203 = vpack.c.bf16 %v4171, %v4171
  %v4204 = vpack.c.bf16 %v4172, %v4172
  %v4205 = vpack.c.bf16 %v4173, %v4173
  %v4206 = vpack.c.bf16 %v4174, %v4174
  %v4207 = vpack.c.bf16 %v4175, %v4175
  %v4208 = vpack.c.bf16 %v4176, %v4176
  %v4209 = vpack.c.bf16 %v4177, %v4177
  %v4210 = vpack.c.bf16 %v4178, %v4178
  %v4211 = vpack.c.bf16 %v4179, %v4179
  %v4212 = vpack.c.bf16 %v4180, %v4180
  %v4213 = vpack.c.bf16 %v4181, %v4181
  %v4214 = vpack.c.bf16 %v4182, %v4182
  %v4215 = vpack.c.bf16 %v4183, %v4183
  %v4216 = vpack.c.bf16 %v4184, %v4184
  %v4217 = vpack.c.bf16 %v4185, %v4185
  %v4218 = vpack.c.bf16 %v4186, %v4186
  %v4219 = vpack.c.bf16 %v4187, %v4187
  %v4220 = vpack.c.bf16 %v4188, %v4188
  %v4221 = vpack.c.bf16 %v4189, %v4189
  %v4222 = vpack.c.bf16 %v4190, %v4190
  %v4223 = vpack.c.bf16 %v4191, %v4191
  %v4224 = vpack.c.bf16 %v4192, %v4192
  %v4225 = vpack.c.bf16 %v4193, %v4193
  %v4226 = vpack.c.bf16 %v4194, %v4194
  %v4227 = vpack.c.bf16 %v4195, %v4195
  %v4228 = vpack.c.bf16 %v4196, %v4196
  %v4229 = vpack.c.bf16 %v4197, %v4197
  %v4230 = vpack.c.bf16 %v4198, %v4198
  %v4231 = vpack.c.bf16 %v4199, %v4199
  %v4232 = vpack.c.bf16 %v4200, %v4200
  %v4234 = vunpack.c.l.b16 %v2953
  %v4235 = vpack.c.b16 %v4234, %v4234
  %4236 = vrot.lane.b32.xlu0 %v4235, 64
  %v4237 = vpop.permute.xlu0 %4236
  %v4239 = vsel %vm1413, %v4201, 0
  %v4242 = vsel %vm1678, %v4237, 0
  %4244 = vmatpush.bf16.msra.mxu0 0
  %4245 = vmatpush.bf16.msra.mxu0 0
  %4246 = vmatpush.bf16.msra.mxu0 0
  %4247 = vmatpush.bf16.msra.mxu0 0
  %4248 = vmatpush.bf16.msra.mxu0 0
  %4249 = vmatpush.bf16.msra.mxu0 0
  %4250 = vmatpush.bf16.msra.mxu0 0
  %4251 = vmatpush.bf16.msra.mxu0 %v4242
  %4252 = vmatmul.bf16.gmra.mxu0 %v4239
  %v4253 = vpop.f32.mrf.mxu0
  %v4254 = vadd.f32 0.0, %v4253
  %v4255 = vpop.f32.mrf.mxu0
  %4256 = vdwg.mxu0
  %v4258 = vunpack.c.l.b16 %v2954
  %v4259 = vpack.c.b16 %v4258, %v4258
  %4260 = vrot.lane.b32.xlu0 %v4259, 64
  %v4261 = vpop.permute.xlu0 %4260
  %v4263 = vsel %vm1413, %v4202, 0
  %v4266 = vsel %vm1678, %v4261, 0
  %4268 = vmatpush.bf16.msra.mxu0 0
  %4269 = vmatpush.bf16.msra.mxu0 0
  %4270 = vmatpush.bf16.msra.mxu0 0
  %4271 = vmatpush.bf16.msra.mxu0 0
  %4272 = vmatpush.bf16.msra.mxu0 0
  %4273 = vmatpush.bf16.msra.mxu0 0
  %4274 = vmatpush.bf16.msra.mxu0 0
  %4275 = vmatpush.bf16.msra.mxu0 %v4266
  %4276 = vmatmul.bf16.gmra.mxu0 %v4263
  %v4277 = vpop.f32.mrf.mxu0
  %v4278 = vadd.f32 0.0, %v4277
  %v4279 = vpop.f32.mrf.mxu0
  %4280 = vdwg.mxu0
  %v4282 = vunpack.c.l.b16 %v2955
  %v4283 = vpack.c.b16 %v4282, %v4282
  %4284 = vrot.lane.b32.xlu0 %v4283, 64
  %v4285 = vpop.permute.xlu0 %4284
  %v4287 = vsel %vm1413, %v4203, 0
  %v4290 = vsel %vm1678, %v4285, 0
  %4292 = vmatpush.bf16.msra.mxu0 0
  %4293 = vmatpush.bf16.msra.mxu0 0
  %4294 = vmatpush.bf16.msra.mxu0 0
  %4295 = vmatpush.bf16.msra.mxu0 0
  %4296 = vmatpush.bf16.msra.mxu0 0
  %4297 = vmatpush.bf16.msra.mxu0 0
  %4298 = vmatpush.bf16.msra.mxu0 0
  %4299 = vmatpush.bf16.msra.mxu0 %v4290
  %4300 = vmatmul.bf16.gmra.mxu0 %v4287
  %v4301 = vpop.f32.mrf.mxu0
  %v4302 = vadd.f32 0.0, %v4301
  %v4303 = vpop.f32.mrf.mxu0
  %4304 = vdwg.mxu0
  %v4306 = vunpack.c.l.b16 %v2956
  %v4307 = vpack.c.b16 %v4306, %v4306
  %4308 = vrot.lane.b32.xlu0 %v4307, 64
  %v4309 = vpop.permute.xlu0 %4308
  %v4311 = vsel %vm1413, %v4204, 0
  %v4314 = vsel %vm1678, %v4309, 0
  %4316 = vmatpush.bf16.msra.mxu0 0
  %4317 = vmatpush.bf16.msra.mxu0 0
  %4318 = vmatpush.bf16.msra.mxu0 0
  %4319 = vmatpush.bf16.msra.mxu0 0
  %4320 = vmatpush.bf16.msra.mxu0 0
  %4321 = vmatpush.bf16.msra.mxu0 0
  %4322 = vmatpush.bf16.msra.mxu0 0
  %4323 = vmatpush.bf16.msra.mxu0 %v4314
  %4324 = vmatmul.bf16.gmra.mxu0 %v4311
  %v4325 = vpop.f32.mrf.mxu0
  %v4326 = vadd.f32 0.0, %v4325
  %v4327 = vpop.f32.mrf.mxu0
  %4328 = vdwg.mxu0
  %v4330 = vunpack.c.l.b16 %v2957
  %v4331 = vpack.c.b16 %v4330, %v4330
  %4332 = vrot.lane.b32.xlu0 %v4331, 64
  %v4333 = vpop.permute.xlu0 %4332
  %v4335 = vsel %vm1413, %v4205, 0
  %v4338 = vsel %vm1678, %v4333, 0
  %4340 = vmatpush.bf16.msra.mxu0 0
  %4341 = vmatpush.bf16.msra.mxu0 0
  %4342 = vmatpush.bf16.msra.mxu0 0
  %4343 = vmatpush.bf16.msra.mxu0 0
  %4344 = vmatpush.bf16.msra.mxu0 0
  %4345 = vmatpush.bf16.msra.mxu0 0
  %4346 = vmatpush.bf16.msra.mxu0 0
  %4347 = vmatpush.bf16.msra.mxu0 %v4338
  %4348 = vmatmul.bf16.gmra.mxu0 %v4335
  %v4349 = vpop.f32.mrf.mxu0
  %v4350 = vadd.f32 0.0, %v4349
  %v4351 = vpop.f32.mrf.mxu0
  %4352 = vdwg.mxu0
  %v4354 = vunpack.c.l.b16 %v2958
  %v4355 = vpack.c.b16 %v4354, %v4354
  %4356 = vrot.lane.b32.xlu0 %v4355, 64
  %v4357 = vpop.permute.xlu0 %4356
  %v4359 = vsel %vm1413, %v4206, 0
  %v4362 = vsel %vm1678, %v4357, 0
  %4364 = vmatpush.bf16.msra.mxu0 0
  %4365 = vmatpush.bf16.msra.mxu0 0
  %4366 = vmatpush.bf16.msra.mxu0 0
  %4367 = vmatpush.bf16.msra.mxu0 0
  %4368 = vmatpush.bf16.msra.mxu0 0
  %4369 = vmatpush.bf16.msra.mxu0 0
  %4370 = vmatpush.bf16.msra.mxu0 0
  %4371 = vmatpush.bf16.msra.mxu0 %v4362
  %4372 = vmatmul.bf16.gmra.mxu0 %v4359
  %v4373 = vpop.f32.mrf.mxu0
  %v4374 = vadd.f32 0.0, %v4373
  %v4375 = vpop.f32.mrf.mxu0
  %4376 = vdwg.mxu0
  %v4378 = vunpack.c.l.b16 %v2959
  %v4379 = vpack.c.b16 %v4378, %v4378
  %4380 = vrot.lane.b32.xlu0 %v4379, 64
  %v4381 = vpop.permute.xlu0 %4380
  %v4383 = vsel %vm1413, %v4207, 0
  %v4386 = vsel %vm1678, %v4381, 0
  %4388 = vmatpush.bf16.msra.mxu0 0
  %4389 = vmatpush.bf16.msra.mxu0 0
  %4390 = vmatpush.bf16.msra.mxu0 0
  %4391 = vmatpush.bf16.msra.mxu0 0
  %4392 = vmatpush.bf16.msra.mxu0 0
  %4393 = vmatpush.bf16.msra.mxu0 0
  %4394 = vmatpush.bf16.msra.mxu0 0
  %4395 = vmatpush.bf16.msra.mxu0 %v4386
  %4396 = vmatmul.bf16.gmra.mxu0 %v4383
  %v4397 = vpop.f32.mrf.mxu0
  %v4398 = vadd.f32 0.0, %v4397
  %v4399 = vpop.f32.mrf.mxu0
  %4400 = vdwg.mxu0
  %v4402 = vunpack.c.l.b16 %v2960
  %v4403 = vpack.c.b16 %v4402, %v4402
  %4404 = vrot.lane.b32.xlu0 %v4403, 64
  %v4405 = vpop.permute.xlu0 %4404
  %v4407 = vsel %vm1413, %v4208, 0
  %v4410 = vsel %vm1678, %v4405, 0
  %4412 = vmatpush.bf16.msra.mxu0 0
  %4413 = vmatpush.bf16.msra.mxu0 0
  %4414 = vmatpush.bf16.msra.mxu0 0
  %4415 = vmatpush.bf16.msra.mxu0 0
  %4416 = vmatpush.bf16.msra.mxu0 0
  %4417 = vmatpush.bf16.msra.mxu0 0
  %4418 = vmatpush.bf16.msra.mxu0 0
  %4419 = vmatpush.bf16.msra.mxu0 %v4410
  %4420 = vmatmul.bf16.gmra.mxu0 %v4407
  %v4421 = vpop.f32.mrf.mxu0
  %v4422 = vadd.f32 0.0, %v4421
  %v4423 = vpop.f32.mrf.mxu0
  %4424 = vdwg.mxu0
  %v4426 = vunpack.c.l.b16 %v2961
  %v4427 = vpack.c.b16 %v4426, %v4426
  %4428 = vrot.lane.b32.xlu0 %v4427, 64
  %v4429 = vpop.permute.xlu0 %4428
  %v4431 = vsel %vm1413, %v4209, 0
  %v4434 = vsel %vm1678, %v4429, 0
  %4436 = vmatpush.bf16.msra.mxu0 0
  %4437 = vmatpush.bf16.msra.mxu0 0
  %4438 = vmatpush.bf16.msra.mxu0 0
  %4439 = vmatpush.bf16.msra.mxu0 0
  %4440 = vmatpush.bf16.msra.mxu0 0
  %4441 = vmatpush.bf16.msra.mxu0 0
  %4442 = vmatpush.bf16.msra.mxu0 0
  %4443 = vmatpush.bf16.msra.mxu0 %v4434
  %4444 = vmatmul.bf16.gmra.mxu0 %v4431
  %v4445 = vpop.f32.mrf.mxu0
  %v4446 = vadd.f32 0.0, %v4445
  %v4447 = vpop.f32.mrf.mxu0
  %4448 = vdwg.mxu0
  %v4450 = vunpack.c.l.b16 %v2962
  %v4451 = vpack.c.b16 %v4450, %v4450
  %4452 = vrot.lane.b32.xlu0 %v4451, 64
  %v4453 = vpop.permute.xlu0 %4452
  %v4455 = vsel %vm1413, %v4210, 0
  %v4458 = vsel %vm1678, %v4453, 0
  %4460 = vmatpush.bf16.msra.mxu0 0
  %4461 = vmatpush.bf16.msra.mxu0 0
  %4462 = vmatpush.bf16.msra.mxu0 0
  %4463 = vmatpush.bf16.msra.mxu0 0
  %4464 = vmatpush.bf16.msra.mxu0 0
  %4465 = vmatpush.bf16.msra.mxu0 0
  %4466 = vmatpush.bf16.msra.mxu0 0
  %4467 = vmatpush.bf16.msra.mxu0 %v4458
  %4468 = vmatmul.bf16.gmra.mxu0 %v4455
  %v4469 = vpop.f32.mrf.mxu0
  %v4470 = vadd.f32 0.0, %v4469
  %v4471 = vpop.f32.mrf.mxu0
  %4472 = vdwg.mxu0
  %v4474 = vunpack.c.l.b16 %v2963
  %v4475 = vpack.c.b16 %v4474, %v4474
  %4476 = vrot.lane.b32.xlu0 %v4475, 64
  %v4477 = vpop.permute.xlu0 %4476
  %v4479 = vsel %vm1413, %v4211, 0
  %v4482 = vsel %vm1678, %v4477, 0
  %4484 = vmatpush.bf16.msra.mxu0 0
  %4485 = vmatpush.bf16.msra.mxu0 0
  %4486 = vmatpush.bf16.msra.mxu0 0
  %4487 = vmatpush.bf16.msra.mxu0 0
  %4488 = vmatpush.bf16.msra.mxu0 0
  %4489 = vmatpush.bf16.msra.mxu0 0
  %4490 = vmatpush.bf16.msra.mxu0 0
  %4491 = vmatpush.bf16.msra.mxu0 %v4482
  %4492 = vmatmul.bf16.gmra.mxu0 %v4479
  %v4493 = vpop.f32.mrf.mxu0
  %v4494 = vadd.f32 0.0, %v4493
  %v4495 = vpop.f32.mrf.mxu0
  %4496 = vdwg.mxu0
  %v4498 = vunpack.c.l.b16 %v2964
  %v4499 = vpack.c.b16 %v4498, %v4498
  %4500 = vrot.lane.b32.xlu0 %v4499, 64
  %v4501 = vpop.permute.xlu0 %4500
  %v4503 = vsel %vm1413, %v4212, 0
  %v4506 = vsel %vm1678, %v4501, 0
  %4508 = vmatpush.bf16.msra.mxu0 0
  %4509 = vmatpush.bf16.msra.mxu0 0
  %4510 = vmatpush.bf16.msra.mxu0 0
  %4511 = vmatpush.bf16.msra.mxu0 0
  %4512 = vmatpush.bf16.msra.mxu0 0
  %4513 = vmatpush.bf16.msra.mxu0 0
  %4514 = vmatpush.bf16.msra.mxu0 0
  %4515 = vmatpush.bf16.msra.mxu0 %v4506
  %4516 = vmatmul.bf16.gmra.mxu0 %v4503
  %v4517 = vpop.f32.mrf.mxu0
  %v4518 = vadd.f32 0.0, %v4517
  %v4519 = vpop.f32.mrf.mxu0
  %4520 = vdwg.mxu0
  %v4522 = vunpack.c.l.b16 %v2965
  %v4523 = vpack.c.b16 %v4522, %v4522
  %4524 = vrot.lane.b32.xlu0 %v4523, 64
  %v4525 = vpop.permute.xlu0 %4524
  %v4527 = vsel %vm1413, %v4213, 0
  %v4530 = vsel %vm1678, %v4525, 0
  %4532 = vmatpush.bf16.msra.mxu0 0
  %4533 = vmatpush.bf16.msra.mxu0 0
  %4534 = vmatpush.bf16.msra.mxu0 0
  %4535 = vmatpush.bf16.msra.mxu0 0
  %4536 = vmatpush.bf16.msra.mxu0 0
  %4537 = vmatpush.bf16.msra.mxu0 0
  %4538 = vmatpush.bf16.msra.mxu0 0
  %4539 = vmatpush.bf16.msra.mxu0 %v4530
  %4540 = vmatmul.bf16.gmra.mxu0 %v4527
  %v4541 = vpop.f32.mrf.mxu0
  %v4542 = vadd.f32 0.0, %v4541
  %v4543 = vpop.f32.mrf.mxu0
  %4544 = vdwg.mxu0
  %v4546 = vunpack.c.l.b16 %v2966
  %v4547 = vpack.c.b16 %v4546, %v4546
  %4548 = vrot.lane.b32.xlu0 %v4547, 64
  %v4549 = vpop.permute.xlu0 %4548
  %v4551 = vsel %vm1413, %v4214, 0
  %v4554 = vsel %vm1678, %v4549, 0
  %4556 = vmatpush.bf16.msra.mxu0 0
  %4557 = vmatpush.bf16.msra.mxu0 0
  %4558 = vmatpush.bf16.msra.mxu0 0
  %4559 = vmatpush.bf16.msra.mxu0 0
  %4560 = vmatpush.bf16.msra.mxu0 0
  %4561 = vmatpush.bf16.msra.mxu0 0
  %4562 = vmatpush.bf16.msra.mxu0 0
  %4563 = vmatpush.bf16.msra.mxu0 %v4554
  %4564 = vmatmul.bf16.gmra.mxu0 %v4551
  %v4565 = vpop.f32.mrf.mxu0
  %v4566 = vadd.f32 0.0, %v4565
  %v4567 = vpop.f32.mrf.mxu0
  %4568 = vdwg.mxu0
  %v4570 = vunpack.c.l.b16 %v2967
  %v4571 = vpack.c.b16 %v4570, %v4570
  %4572 = vrot.lane.b32.xlu0 %v4571, 64
  %v4573 = vpop.permute.xlu0 %4572
  %v4575 = vsel %vm1413, %v4215, 0
  %v4578 = vsel %vm1678, %v4573, 0
  %4580 = vmatpush.bf16.msra.mxu0 0
  %4581 = vmatpush.bf16.msra.mxu0 0
  %4582 = vmatpush.bf16.msra.mxu0 0
  %4583 = vmatpush.bf16.msra.mxu0 0
  %4584 = vmatpush.bf16.msra.mxu0 0
  %4585 = vmatpush.bf16.msra.mxu0 0
  %4586 = vmatpush.bf16.msra.mxu0 0
  %4587 = vmatpush.bf16.msra.mxu0 %v4578
  %4588 = vmatmul.bf16.gmra.mxu0 %v4575
  %v4589 = vpop.f32.mrf.mxu0
  %v4590 = vadd.f32 0.0, %v4589
  %v4591 = vpop.f32.mrf.mxu0
  %4592 = vdwg.mxu0
  %v4594 = vunpack.c.l.b16 %v2968
  %v4595 = vpack.c.b16 %v4594, %v4594
  %4596 = vrot.lane.b32.xlu0 %v4595, 64
  %v4597 = vpop.permute.xlu0 %4596
  %v4599 = vsel %vm1413, %v4216, 0
  %v4602 = vsel %vm1678, %v4597, 0
  %4604 = vmatpush.bf16.msra.mxu0 0
  %4605 = vmatpush.bf16.msra.mxu0 0
  %4606 = vmatpush.bf16.msra.mxu0 0
  %4607 = vmatpush.bf16.msra.mxu0 0
  %4608 = vmatpush.bf16.msra.mxu0 0
  %4609 = vmatpush.bf16.msra.mxu0 0
  %4610 = vmatpush.bf16.msra.mxu0 0
  %4611 = vmatpush.bf16.msra.mxu0 %v4602
  %4612 = vmatmul.bf16.gmra.mxu0 %v4599
  %v4613 = vpop.f32.mrf.mxu0
  %v4614 = vadd.f32 0.0, %v4613
  %v4615 = vpop.f32.mrf.mxu0
  %4616 = vdwg.mxu0
  %v4618 = vunpack.c.l.b16 %v2969
  %v4619 = vpack.c.b16 %v4618, %v4618
  %4620 = vrot.lane.b32.xlu0 %v4619, 64
  %v4621 = vpop.permute.xlu0 %4620
  %v4623 = vsel %vm1413, %v4217, 0
  %v4626 = vsel %vm1678, %v4621, 0
  %4628 = vmatpush.bf16.msra.mxu0 0
  %4629 = vmatpush.bf16.msra.mxu0 0
  %4630 = vmatpush.bf16.msra.mxu0 0
  %4631 = vmatpush.bf16.msra.mxu0 0
  %4632 = vmatpush.bf16.msra.mxu0 0
  %4633 = vmatpush.bf16.msra.mxu0 0
  %4634 = vmatpush.bf16.msra.mxu0 0
  %4635 = vmatpush.bf16.msra.mxu0 %v4626
  %4636 = vmatmul.bf16.gmra.mxu0 %v4623
  %v4637 = vpop.f32.mrf.mxu0
  %v4638 = vadd.f32 0.0, %v4637
  %v4639 = vpop.f32.mrf.mxu0
  %4640 = vdwg.mxu0
  %v4642 = vunpack.c.l.b16 %v2970
  %v4643 = vpack.c.b16 %v4642, %v4642
  %4644 = vrot.lane.b32.xlu0 %v4643, 64
  %v4645 = vpop.permute.xlu0 %4644
  %v4647 = vsel %vm1413, %v4218, 0
  %v4650 = vsel %vm1678, %v4645, 0
  %4652 = vmatpush.bf16.msra.mxu0 0
  %4653 = vmatpush.bf16.msra.mxu0 0
  %4654 = vmatpush.bf16.msra.mxu0 0
  %4655 = vmatpush.bf16.msra.mxu0 0
  %4656 = vmatpush.bf16.msra.mxu0 0
  %4657 = vmatpush.bf16.msra.mxu0 0
  %4658 = vmatpush.bf16.msra.mxu0 0
  %4659 = vmatpush.bf16.msra.mxu0 %v4650
  %4660 = vmatmul.bf16.gmra.mxu0 %v4647
  %v4661 = vpop.f32.mrf.mxu0
  %v4662 = vadd.f32 0.0, %v4661
  %v4663 = vpop.f32.mrf.mxu0
  %4664 = vdwg.mxu0
  %v4666 = vunpack.c.l.b16 %v2971
  %v4667 = vpack.c.b16 %v4666, %v4666
  %4668 = vrot.lane.b32.xlu0 %v4667, 64
  %v4669 = vpop.permute.xlu0 %4668
  %v4671 = vsel %vm1413, %v4219, 0
  %v4674 = vsel %vm1678, %v4669, 0
  %4676 = vmatpush.bf16.msra.mxu0 0
  %4677 = vmatpush.bf16.msra.mxu0 0
  %4678 = vmatpush.bf16.msra.mxu0 0
  %4679 = vmatpush.bf16.msra.mxu0 0
  %4680 = vmatpush.bf16.msra.mxu0 0
  %4681 = vmatpush.bf16.msra.mxu0 0
  %4682 = vmatpush.bf16.msra.mxu0 0
  %4683 = vmatpush.bf16.msra.mxu0 %v4674
  %4684 = vmatmul.bf16.gmra.mxu0 %v4671
  %v4685 = vpop.f32.mrf.mxu0
  %v4686 = vadd.f32 0.0, %v4685
  %v4687 = vpop.f32.mrf.mxu0
  %4688 = vdwg.mxu0
  %v4690 = vunpack.c.l.b16 %v2972
  %v4691 = vpack.c.b16 %v4690, %v4690
  %4692 = vrot.lane.b32.xlu0 %v4691, 64
  %v4693 = vpop.permute.xlu0 %4692
  %v4695 = vsel %vm1413, %v4220, 0
  %v4698 = vsel %vm1678, %v4693, 0
  %4700 = vmatpush.bf16.msra.mxu0 0
  %4701 = vmatpush.bf16.msra.mxu0 0
  %4702 = vmatpush.bf16.msra.mxu0 0
  %4703 = vmatpush.bf16.msra.mxu0 0
  %4704 = vmatpush.bf16.msra.mxu0 0
  %4705 = vmatpush.bf16.msra.mxu0 0
  %4706 = vmatpush.bf16.msra.mxu0 0
  %4707 = vmatpush.bf16.msra.mxu0 %v4698
  %4708 = vmatmul.bf16.gmra.mxu0 %v4695
  %v4709 = vpop.f32.mrf.mxu0
  %v4710 = vadd.f32 0.0, %v4709
  %v4711 = vpop.f32.mrf.mxu0
  %4712 = vdwg.mxu0
  %v4714 = vunpack.c.l.b16 %v2973
  %v4715 = vpack.c.b16 %v4714, %v4714
  %4716 = vrot.lane.b32.xlu0 %v4715, 64
  %v4717 = vpop.permute.xlu0 %4716
  %v4719 = vsel %vm1413, %v4221, 0
  %v4722 = vsel %vm1678, %v4717, 0
  %4724 = vmatpush.bf16.msra.mxu0 0
  %4725 = vmatpush.bf16.msra.mxu0 0
  %4726 = vmatpush.bf16.msra.mxu0 0
  %4727 = vmatpush.bf16.msra.mxu0 0
  %4728 = vmatpush.bf16.msra.mxu0 0
  %4729 = vmatpush.bf16.msra.mxu0 0
  %4730 = vmatpush.bf16.msra.mxu0 0
  %4731 = vmatpush.bf16.msra.mxu0 %v4722
  %4732 = vmatmul.bf16.gmra.mxu0 %v4719
  %v4733 = vpop.f32.mrf.mxu0
  %v4734 = vadd.f32 0.0, %v4733
  %v4735 = vpop.f32.mrf.mxu0
  %4736 = vdwg.mxu0
  %v4738 = vunpack.c.l.b16 %v2974
  %v4739 = vpack.c.b16 %v4738, %v4738
  %4740 = vrot.lane.b32.xlu0 %v4739, 64
  %v4741 = vpop.permute.xlu0 %4740
  %v4743 = vsel %vm1413, %v4222, 0
  %v4746 = vsel %vm1678, %v4741, 0
  %4748 = vmatpush.bf16.msra.mxu0 0
  %4749 = vmatpush.bf16.msra.mxu0 0
  %4750 = vmatpush.bf16.msra.mxu0 0
  %4751 = vmatpush.bf16.msra.mxu0 0
  %4752 = vmatpush.bf16.msra.mxu0 0
  %4753 = vmatpush.bf16.msra.mxu0 0
  %4754 = vmatpush.bf16.msra.mxu0 0
  %4755 = vmatpush.bf16.msra.mxu0 %v4746
  %4756 = vmatmul.bf16.gmra.mxu0 %v4743
  %v4757 = vpop.f32.mrf.mxu0
  %v4758 = vadd.f32 0.0, %v4757
  %v4759 = vpop.f32.mrf.mxu0
  %4760 = vdwg.mxu0
  %v4762 = vunpack.c.l.b16 %v2975
  %v4763 = vpack.c.b16 %v4762, %v4762
  %4764 = vrot.lane.b32.xlu0 %v4763, 64
  %v4765 = vpop.permute.xlu0 %4764
  %v4767 = vsel %vm1413, %v4223, 0
  %v4770 = vsel %vm1678, %v4765, 0
  %4772 = vmatpush.bf16.msra.mxu0 0
  %4773 = vmatpush.bf16.msra.mxu0 0
  %4774 = vmatpush.bf16.msra.mxu0 0
  %4775 = vmatpush.bf16.msra.mxu0 0
  %4776 = vmatpush.bf16.msra.mxu0 0
  %4777 = vmatpush.bf16.msra.mxu0 0
  %4778 = vmatpush.bf16.msra.mxu0 0
  %4779 = vmatpush.bf16.msra.mxu0 %v4770
  %4780 = vmatmul.bf16.gmra.mxu0 %v4767
  %v4781 = vpop.f32.mrf.mxu0
  %v4782 = vadd.f32 0.0, %v4781
  %v4783 = vpop.f32.mrf.mxu0
  %4784 = vdwg.mxu0
  %v4786 = vunpack.c.l.b16 %v2976
  %v4787 = vpack.c.b16 %v4786, %v4786
  %4788 = vrot.lane.b32.xlu0 %v4787, 64
  %v4789 = vpop.permute.xlu0 %4788
  %v4791 = vsel %vm1413, %v4224, 0
  %v4794 = vsel %vm1678, %v4789, 0
  %4796 = vmatpush.bf16.msra.mxu0 0
  %4797 = vmatpush.bf16.msra.mxu0 0
  %4798 = vmatpush.bf16.msra.mxu0 0
  %4799 = vmatpush.bf16.msra.mxu0 0
  %4800 = vmatpush.bf16.msra.mxu0 0
  %4801 = vmatpush.bf16.msra.mxu0 0
  %4802 = vmatpush.bf16.msra.mxu0 0
  %4803 = vmatpush.bf16.msra.mxu0 %v4794
  %4804 = vmatmul.bf16.gmra.mxu0 %v4791
  %v4805 = vpop.f32.mrf.mxu0
  %v4806 = vadd.f32 0.0, %v4805
  %v4807 = vpop.f32.mrf.mxu0
  %4808 = vdwg.mxu0
  %v4810 = vunpack.c.l.b16 %v2977
  %v4811 = vpack.c.b16 %v4810, %v4810
  %4812 = vrot.lane.b32.xlu0 %v4811, 64
  %v4813 = vpop.permute.xlu0 %4812
  %v4815 = vsel %vm1413, %v4225, 0
  %v4818 = vsel %vm1678, %v4813, 0
  %4820 = vmatpush.bf16.msra.mxu0 0
  %4821 = vmatpush.bf16.msra.mxu0 0
  %4822 = vmatpush.bf16.msra.mxu0 0
  %4823 = vmatpush.bf16.msra.mxu0 0
  %4824 = vmatpush.bf16.msra.mxu0 0
  %4825 = vmatpush.bf16.msra.mxu0 0
  %4826 = vmatpush.bf16.msra.mxu0 0
  %4827 = vmatpush.bf16.msra.mxu0 %v4818
  %4828 = vmatmul.bf16.gmra.mxu0 %v4815
  %v4829 = vpop.f32.mrf.mxu0
  %v4830 = vadd.f32 0.0, %v4829
  %v4831 = vpop.f32.mrf.mxu0
  %4832 = vdwg.mxu0
  %v4834 = vunpack.c.l.b16 %v2978
  %v4835 = vpack.c.b16 %v4834, %v4834
  %4836 = vrot.lane.b32.xlu0 %v4835, 64
  %v4837 = vpop.permute.xlu0 %4836
  %v4839 = vsel %vm1413, %v4226, 0
  %v4842 = vsel %vm1678, %v4837, 0
  %4844 = vmatpush.bf16.msra.mxu0 0
  %4845 = vmatpush.bf16.msra.mxu0 0
  %4846 = vmatpush.bf16.msra.mxu0 0
  %4847 = vmatpush.bf16.msra.mxu0 0
  %4848 = vmatpush.bf16.msra.mxu0 0
  %4849 = vmatpush.bf16.msra.mxu0 0
  %4850 = vmatpush.bf16.msra.mxu0 0
  %4851 = vmatpush.bf16.msra.mxu0 %v4842
  %4852 = vmatmul.bf16.gmra.mxu0 %v4839
  %v4853 = vpop.f32.mrf.mxu0
  %v4854 = vadd.f32 0.0, %v4853
  %v4855 = vpop.f32.mrf.mxu0
  %4856 = vdwg.mxu0
  %v4858 = vunpack.c.l.b16 %v2979
  %v4859 = vpack.c.b16 %v4858, %v4858
  %4860 = vrot.lane.b32.xlu0 %v4859, 64
  %v4861 = vpop.permute.xlu0 %4860
  %v4863 = vsel %vm1413, %v4227, 0
  %v4866 = vsel %vm1678, %v4861, 0
  %4868 = vmatpush.bf16.msra.mxu0 0
  %4869 = vmatpush.bf16.msra.mxu0 0
  %4870 = vmatpush.bf16.msra.mxu0 0
  %4871 = vmatpush.bf16.msra.mxu0 0
  %4872 = vmatpush.bf16.msra.mxu0 0
  %4873 = vmatpush.bf16.msra.mxu0 0
  %4874 = vmatpush.bf16.msra.mxu0 0
  %4875 = vmatpush.bf16.msra.mxu0 %v4866
  %4876 = vmatmul.bf16.gmra.mxu0 %v4863
  %v4877 = vpop.f32.mrf.mxu0
  %v4878 = vadd.f32 0.0, %v4877
  %v4879 = vpop.f32.mrf.mxu0
  %4880 = vdwg.mxu0
  %v4882 = vunpack.c.l.b16 %v2980
  %v4883 = vpack.c.b16 %v4882, %v4882
  %4884 = vrot.lane.b32.xlu0 %v4883, 64
  %v4885 = vpop.permute.xlu0 %4884
  %v4887 = vsel %vm1413, %v4228, 0
  %v4890 = vsel %vm1678, %v4885, 0
  %4892 = vmatpush.bf16.msra.mxu0 0
  %4893 = vmatpush.bf16.msra.mxu0 0
  %4894 = vmatpush.bf16.msra.mxu0 0
  %4895 = vmatpush.bf16.msra.mxu0 0
  %4896 = vmatpush.bf16.msra.mxu0 0
  %4897 = vmatpush.bf16.msra.mxu0 0
  %4898 = vmatpush.bf16.msra.mxu0 0
  %4899 = vmatpush.bf16.msra.mxu0 %v4890
  %4900 = vmatmul.bf16.gmra.mxu0 %v4887
  %v4901 = vpop.f32.mrf.mxu0
  %v4902 = vadd.f32 0.0, %v4901
  %v4903 = vpop.f32.mrf.mxu0
  %4904 = vdwg.mxu0
  %v4906 = vunpack.c.l.b16 %v2981
  %v4907 = vpack.c.b16 %v4906, %v4906
  %4908 = vrot.lane.b32.xlu0 %v4907, 64
  %v4909 = vpop.permute.xlu0 %4908
  %v4911 = vsel %vm1413, %v4229, 0
  %v4914 = vsel %vm1678, %v4909, 0
  %4916 = vmatpush.bf16.msra.mxu0 0
  %4917 = vmatpush.bf16.msra.mxu0 0
  %4918 = vmatpush.bf16.msra.mxu0 0
  %4919 = vmatpush.bf16.msra.mxu0 0
  %4920 = vmatpush.bf16.msra.mxu0 0
  %4921 = vmatpush.bf16.msra.mxu0 0
  %4922 = vmatpush.bf16.msra.mxu0 0
  %4923 = vmatpush.bf16.msra.mxu0 %v4914
  %4924 = vmatmul.bf16.gmra.mxu0 %v4911
  %v4925 = vpop.f32.mrf.mxu0
  %v4926 = vadd.f32 0.0, %v4925
  %v4927 = vpop.f32.mrf.mxu0
  %4928 = vdwg.mxu0
  %v4930 = vunpack.c.l.b16 %v2982
  %v4931 = vpack.c.b16 %v4930, %v4930
  %4932 = vrot.lane.b32.xlu0 %v4931, 64
  %v4933 = vpop.permute.xlu0 %4932
  %v4935 = vsel %vm1413, %v4230, 0
  %v4938 = vsel %vm1678, %v4933, 0
  %4940 = vmatpush.bf16.msra.mxu0 0
  %4941 = vmatpush.bf16.msra.mxu0 0
  %4942 = vmatpush.bf16.msra.mxu0 0
  %4943 = vmatpush.bf16.msra.mxu0 0
  %4944 = vmatpush.bf16.msra.mxu0 0
  %4945 = vmatpush.bf16.msra.mxu0 0
  %4946 = vmatpush.bf16.msra.mxu0 0
  %4947 = vmatpush.bf16.msra.mxu0 %v4938
  %4948 = vmatmul.bf16.gmra.mxu0 %v4935
  %v4949 = vpop.f32.mrf.mxu0
  %v4950 = vadd.f32 0.0, %v4949
  %v4951 = vpop.f32.mrf.mxu0
  %4952 = vdwg.mxu0
  %v4954 = vunpack.c.l.b16 %v2983
  %v4955 = vpack.c.b16 %v4954, %v4954
  %4956 = vrot.lane.b32.xlu0 %v4955, 64
  %v4957 = vpop.permute.xlu0 %4956
  %v4959 = vsel %vm1413, %v4231, 0
  %v4962 = vsel %vm1678, %v4957, 0
  %4964 = vmatpush.bf16.msra.mxu0 0
  %4965 = vmatpush.bf16.msra.mxu0 0
  %4966 = vmatpush.bf16.msra.mxu0 0
  %4967 = vmatpush.bf16.msra.mxu0 0
  %4968 = vmatpush.bf16.msra.mxu0 0
  %4969 = vmatpush.bf16.msra.mxu0 0
  %4970 = vmatpush.bf16.msra.mxu0 0
  %4971 = vmatpush.bf16.msra.mxu0 %v4962
  %4972 = vmatmul.bf16.gmra.mxu0 %v4959
  %v4973 = vpop.f32.mrf.mxu0
  %v4974 = vadd.f32 0.0, %v4973
  %v4975 = vpop.f32.mrf.mxu0
  %4976 = vdwg.mxu0
  %v4978 = vunpack.c.l.b16 %v2984
  %v4979 = vpack.c.b16 %v4978, %v4978
  %4980 = vrot.lane.b32.xlu0 %v4979, 64
  %v4981 = vpop.permute.xlu0 %4980
  %v4983 = vsel %vm1413, %v4232, 0
  %v4986 = vsel %vm1678, %v4981, 0
  %4988 = vmatpush.bf16.msra.mxu0 0
  %4989 = vmatpush.bf16.msra.mxu0 0
  %4990 = vmatpush.bf16.msra.mxu0 0
  %4991 = vmatpush.bf16.msra.mxu0 0
  %4992 = vmatpush.bf16.msra.mxu0 0
  %4993 = vmatpush.bf16.msra.mxu0 0
  %4994 = vmatpush.bf16.msra.mxu0 0
  %4995 = vmatpush.bf16.msra.mxu0 %v4986
  %4996 = vmatmul.bf16.gmra.mxu0 %v4983
  %v4997 = vpop.f32.mrf.mxu0
  %v4998 = vadd.f32 0.0, %v4997
  %v4999 = vpop.f32.mrf.mxu0
  %5000 = vdwg.mxu0
  %v5001 = vadd.f32 %v4254, 0.0
  %v5002 = vadd.f32 %v4278, 0.0
  %v5003 = vadd.f32 %v5001, %v4302
  %v5004 = vadd.f32 %v5002, %v4326
  %v5005 = vadd.f32 %v5003, %v4350
  %v5006 = vadd.f32 %v5004, %v4374
  %v5007 = vadd.f32 %v5005, %v4398
  %v5008 = vadd.f32 %v5006, %v4422
  %v5009 = vadd.f32 %v5007, %v4446
  %v5010 = vadd.f32 %v5008, %v4470
  %v5011 = vadd.f32 %v5009, %v4494
  %v5012 = vadd.f32 %v5010, %v4518
  %v5013 = vadd.f32 %v5011, %v4542
  %v5014 = vadd.f32 %v5012, %v4566
  %v5015 = vadd.f32 %v5013, %v4590
  %v5016 = vadd.f32 %v5014, %v4614
  %v5017 = vadd.f32 %v5015, %v4638
  %v5018 = vadd.f32 %v5016, %v4662
  %v5019 = vadd.f32 %v5017, %v4686
  %v5020 = vadd.f32 %v5018, %v4710
  %v5021 = vadd.f32 %v5019, %v4734
  %v5022 = vadd.f32 %v5020, %v4758
  %v5023 = vadd.f32 %v5021, %v4782
  %v5024 = vadd.f32 %v5022, %v4806
  %v5025 = vadd.f32 %v5023, %v4830
  %v5026 = vadd.f32 %v5024, %v4854
  %v5027 = vadd.f32 %v5025, %v4878
  %v5028 = vadd.f32 %v5026, %v4902
  %v5029 = vadd.f32 %v5027, %v4926
  %v5030 = vadd.f32 %v5028, %v4950
  %v5031 = vadd.f32 %v5029, %v4974
  %v5032 = vadd.f32 %v5030, %v4998
  %v5033 = vmul.f32 %v5031, 0.25
  %v5034 = vmul.f32 %v5032, 0.25
  %v5035 = vadd.f32 %v2725, %v5033
  %v5036 = vadd.f32 %v2726, %v5034
  %v5037 = vld [vmem:[%s6 + $0x1] sm:$0x1]
  %v5038 = vld [vmem:[%s7 + $0x1] sm:$0x1]
  %v5039 = vsel %vm74, %v5035, 0.0
  %5040 = vadd.xlane.f32.xlu0 %v5039
  %v5041 = vpop.xlane.xlu0 %5040
  %v5042 = vsel %vm74, %v5036, 0.0
  %5043 = vadd.xlane.f32.xlu0 %v5042
  %v5044 = vpop.xlane.xlu0 %5043
  %v5045 = vmul.f32 %v5041, %v87
  %v5046 = vmul.f32 %v5044, %v87
  %v5047 = vsub.f32 %v5035, %v5045
  %v5048 = vsub.f32 %v5036, %v5046
  %v5049 = vmul.f32 %v5047, %v5047
  %v5050 = vmul.f32 %v5048, %v5048
  %v5051 = vsel %vm74, %v5049, 0.0
  %5052 = vadd.xlane.f32.xlu0 %v5051
  %v5053 = vpop.xlane.xlu0 %5052
  %v5054 = vsel %vm74, %v5050, 0.0
  %5055 = vadd.xlane.f32.xlu0 %v5054
  %v5056 = vpop.xlane.xlu0 %5055
  %v5057 = vmul.f32 %v5053, %v87
  %v5058 = vmul.f32 %v5056, %v87
  %v5059 = vadd.f32 %v5057, 1e-05
  %v5060 = vadd.f32 %v5058, 1e-05
  %v5061 = vrsqrt.pop %v5059
  %v5062 = vmul.f32 %v5061, %v5059
  %v5063 = vmul.f32 %v5062, %v5061
  %v5064 = vmul.f32 0.5, %v5063
  %v5065 = vsub.f32 1.5, %v5064
  %v5066 = vmul.f32 %v5061, %v5065
  %vm5067 = vweird.f32 %v5059
  %vm5068 = vweird.f32 %v5061
  %vm5069 = vmor %vm5067, %vm5068
  %v5070 = vsel %vm5069, %v5061, %v5066
  %v5071 = vrsqrt.pop %v5060
  %v5072 = vmul.f32 %v5071, %v5060
  %v5073 = vmul.f32 %v5072, %v5071
  %v5074 = vmul.f32 0.5, %v5073
  %v5075 = vsub.f32 1.5, %v5074
  %v5076 = vmul.f32 %v5071, %v5075
  %vm5077 = vweird.f32 %v5060
  %vm5078 = vweird.f32 %v5071
  %vm5079 = vmor %vm5077, %vm5078
  %v5080 = vsel %vm5079, %v5071, %v5076
  %v5081 = vmul.f32 %v5047, %v5070
  %v5082 = vmul.f32 %v5048, %v5080
  %v5083 = vperm.slane %v5037, 0
  %v5084 = vmul.f32 %v5081, %v5083
  %v5085 = vmul.f32 %v5082, %v5083
  %v5086 = vperm.slane %v5038, 0
  %v5087 = vadd.f32 %v5084, %v5086
  %v5088 = vadd.f32 %v5085, %v5086
  %s5089 = scalar_lea.vmem %s8, 32
  %v5090 = vld [vmem:[%s5089] sm:$0xff]
  %v5091 = vld [vmem:[%s5089 + $0x8] sm:$0xff]
  %v5092 = vld [vmem:[%s5089 + $0x10] sm:$0xff]
  %v5093 = vld [vmem:[%s5089 + $0x18] sm:$0xff]
  %v5094 = vld [vmem:[%s9 + $0x1] sm:$0x1]
  %v5095 = vperm.slane %v5094, 0
  %v5097 = vsel %vm74, %v5087, 0
  %v5100 = vsel %vm74, %v5088, 0
  %5102 = vmatpush.msra.mxu0 0.0
  %5103 = vmatpush.msra.mxu0 0.0
  %5104 = vmatpush.msra.mxu0 0.0
  %5105 = vmatpush.msra.mxu0 0.0
  %5106 = vmatpush.msra.mxu0 0.0
  %5107 = vmatpush.msra.mxu0 0.0
  %5108 = vmatpush.msra.mxu0 0.0
  %5109 = vmatpush.msra.mxu0 0.0
  %5110 = vmatpush.msra.mxu0 0.0
  %5111 = vmatpush.msra.mxu0 0.0
  %5112 = vmatpush.msra.mxu0 0.0
  %5113 = vmatpush.msra.mxu0 0.0
  %5114 = vmatpush.msra.mxu0 %v5093
  %5115 = vmatpush.msra.mxu0 %v5092
  %5116 = vmatpush.msra.mxu0 %v5091
  %5117 = vmatpush.msra.mxu0 %v5090
  %5118 = vmatmul.f32.gmra.mxu0 %v5097
  %v5119 = vpop.f32.mrf.mxu0
  %v5120 = vadd.f32 %v5095, %v5119
  %5121 = vmatmul.f32.gmra.mxu0 %v5100
  %v5122 = vpop.f32.mrf.mxu0
  %v5123 = vadd.f32 %v5095, %v5122
  %5124 = vdwg.mxu0
  %vm5125 = vcmp.ge.f32.partialorder %v5120, 2.0
  %vm5126 = vcmp.ge.f32.partialorder %v5123, 2.0
  %v5127 = vsel %vm5125, 1, 0
  %v5128 = vsel %vm5126, 1, 0
  %v5129 = vcvt.s32.f32 %v5127
  %v5130 = vcvt.s32.f32 %v5128
  %vm5131 = vcmp.ge.f32.partialorder %v5120, 1.3333334
  %vm5132 = vcmp.ge.f32.partialorder %v5123, 1.3333334
  %v5133 = vsel %vm5131, 1, 0
  %v5134 = vsel %vm5132, 1, 0
  %v5135 = vcvt.s32.f32 %v5133
  %v5136 = vcvt.s32.f32 %v5134
  %vm5137 = vcmp.ge.f32.partialorder %v5120, 1.1428572
  %vm5138 = vcmp.ge.f32.partialorder %v5123, 1.1428572
  %v5139 = vsel %vm5137, 1, 0
  %v5140 = vsel %vm5138, 1, 0
  %v5141 = vcvt.s32.f32 %v5139
  %v5142 = vcvt.s32.f32 %v5140
  %vm5143 = vcmp.ge.f32.partialorder %v5120, 1.0666667
  %vm5144 = vcmp.ge.f32.partialorder %v5123, 1.0666667
  %v5145 = vsel %vm5143, 1, 0
  %v5146 = vsel %vm5144, 1, 0
  %v5147 = vcvt.s32.f32 %v5145
  %v5148 = vcvt.s32.f32 %v5146
  %v5149 = vsub.f32 %v5135, %v5129
  %v5150 = vsub.f32 %v5136, %v5130
  %v5151 = vsub.f32 %v5141, %v5135
  %v5152 = vsub.f32 %v5142, %v5136
  %v5153 = vsub.f32 %v5147, %v5141
  %v5154 = vsub.f32 %v5148, %v5142
  %v5155 = vadd.f32 %v5129, %v5149
  %v5156 = vadd.f32 %v5130, %v5150
  %v5157 = vadd.f32 %v5129, %v5151
  %v5158 = vadd.f32 %v5130, %v5152
  %v5159 = vadd.f32 %v5155, %v5153
  %v5160 = vadd.f32 %v5156, %v5154
  %v5161 = vpack.c.bf16 %v5130, %v5129
  %v5162 = vpack.c.bf16 %v5156, %v5155
  %v5163 = vpack.c.bf16 %v5158, %v5157
  %v5164 = vpack.c.bf16 %v5160, %v5159
  %s5165 = scalar_lea.vmem %s10, 128
  %v5166 = vld [vmem:[%s5165] sm:$0xff]
  %v5167 = vld [vmem:[%s5165 + $0x8] sm:$0xff]
  %v5168 = vld [vmem:[%s5165 + $0x10] sm:$0xff]
  %v5169 = vld [vmem:[%s5165 + $0x18] sm:$0xff]
  %v5170 = vld [vmem:[%s5165 + $0x20] sm:$0xff]
  %v5171 = vld [vmem:[%s5165 + $0x28] sm:$0xff]
  %v5172 = vld [vmem:[%s5165 + $0x30] sm:$0xff]
  %v5173 = vld [vmem:[%s5165 + $0x38] sm:$0xff]
  %v5174 = vld [vmem:[%s5165 + $0x40] sm:$0xff]
  %v5175 = vld [vmem:[%s5165 + $0x48] sm:$0xff]
  %v5176 = vld [vmem:[%s5165 + $0x50] sm:$0xff]
  %v5177 = vld [vmem:[%s5165 + $0x58] sm:$0xff]
  %v5178 = vld [vmem:[%s5165 + $0x60] sm:$0xff]
  %v5179 = vld [vmem:[%s5165 + $0x68] sm:$0xff]
  %v5180 = vld [vmem:[%s5165 + $0x70] sm:$0xff]
  %v5181 = vld [vmem:[%s5165 + $0x78] sm:$0xff]
  %v5182 = vpack.c.bf16 %v5167, %v5166
  %v5183 = vpack.c.bf16 %v5169, %v5168
  %v5184 = vpack.c.bf16 %v5171, %v5170
  %v5185 = vpack.c.bf16 %v5173, %v5172
  %v5186 = vpack.c.bf16 %v5175, %v5174
  %v5187 = vpack.c.bf16 %v5177, %v5176
  %v5188 = vpack.c.bf16 %v5179, %v5178
  %v5189 = vpack.c.bf16 %v5181, %v5180
  %v5190 = vld [vmem:[%s11 + $0x1] sm:$0x1]
  %v5191 = vperm.slane %v5190, 0
  %5192 = vmatpush.bf16.msra.mxu0 %v5189
  %5193 = vmatpush.bf16.msra.mxu0 %v5188
  %5194 = vmatpush.bf16.msra.mxu0 %v5187
  %5195 = vmatpush.bf16.msra.mxu0 %v5186
  %5196 = vmatpush.bf16.msra.mxu0 %v5185
  %5197 = vmatpush.bf16.msra.mxu0 %v5184
  %5198 = vmatpush.bf16.msra.mxu0 %v5183
  %5199 = vmatpush.bf16.msra.mxu0 %v5182
  %5200 = vmatmul.bf16.gmra.mxu0 %v5161
  %v5201 = vpop.f32.mrf.mxu0
  %v5202 = vadd.f32 %v5191, %v5201
  %v5203 = vpop.f32.mrf.mxu0
  %v5204 = vadd.f32 %v5191, %v5203
  %5205 = vmatmul.bf16.gmra.mxu0 %v5162
  %v5206 = vpop.f32.mrf.mxu0
  %v5207 = vadd.f32 %v5191, %v5206
  %v5208 = vpop.f32.mrf.mxu0
  %v5209 = vadd.f32 %v5191, %v5208
  %5210 = vmatmul.bf16.gmra.mxu0 %v5163
  %v5211 = vpop.f32.mrf.mxu0
  %v5212 = vadd.f32 %v5191, %v5211
  %v5213 = vpop.f32.mrf.mxu0
  %v5214 = vadd.f32 %v5191, %v5213
  %5215 = vmatmul.bf16.gmra.mxu0 %v5164
  %v5216 = vpop.f32.mrf.mxu0
  %v5217 = vadd.f32 %v5191, %v5216
  %v5218 = vpop.f32.mrf.mxu0
  %v5219 = vadd.f32 %v5191, %v5218
  %5220 = vdwg.mxu0
  %v5221 = vmul.f32 %v5202, 0.5
  %v5222 = vmul.f32 %v5204, 0.5
  %v5223 = vadd.f32 %v5221, 0.0
  %v5224 = vadd.f32 %v5222, 0.0
  %vm5225 = vcmp.ge.f32.partialorder %v5223, 1.0
  %vm5226 = vcmp.ge.f32.partialorder %v5224, 1.0
  %v5227 = vsel %vm5225, 1, 0
  %v5228 = vsel %vm5226, 1, 0
  %v5229 = vcvt.s32.f32 %v5227
  %v5230 = vcvt.s32.f32 %v5228
  %v5231 = vsub.f32 1.0, %v5229
  %v5232 = vsub.f32 1.0, %v5230
  %v5233 = vmul.f32 %v5223, %v5231
  %v5234 = vmul.f32 %v5224, %v5232
  %v5235 = vadd.f32 %v5229, 0.0
  %v5236 = vadd.f32 %v5230, 0.0
  %v5237 = vsub.f32 %v5207, %v5233
  %v5238 = vsub.f32 %v5209, %v5234
  %v5239 = vmul.f32 %v5237, 0.5
  %v5240 = vmul.f32 %v5238, 0.5
  %v5241 = vadd.f32 %v5233, %v5239
  %v5242 = vadd.f32 %v5234, %v5240
  %vm5243 = vcmp.ge.f32.partialorder %v5241, 1.0
  %vm5244 = vcmp.ge.f32.partialorder %v5242, 1.0
  %v5245 = vsel %vm5243, 1, 0
  %v5246 = vsel %vm5244, 1, 0
  %v5247 = vcvt.s32.f32 %v5245
  %v5248 = vcvt.s32.f32 %v5246
  %v5249 = vsub.f32 1.0, %v5247
  %v5250 = vsub.f32 1.0, %v5248
  %v5251 = vmul.f32 %v5241, %v5249
  %v5252 = vmul.f32 %v5242, %v5250
  %v5253 = vadd.f32 %v5235, %v5247
  %v5254 = vadd.f32 %v5236, %v5248
  %v5255 = vsub.f32 %v5212, %v5251
  %v5256 = vsub.f32 %v5214, %v5252
  %v5257 = vmul.f32 %v5255, 0.5
  %v5258 = vmul.f32 %v5256, 0.5
  %v5259 = vadd.f32 %v5251, %v5257
  %v5260 = vadd.f32 %v5252, %v5258
  %vm5261 = vcmp.ge.f32.partialorder %v5259, 1.0
  %vm5262 = vcmp.ge.f32.partialorder %v5260, 1.0
  %v5263 = vsel %vm5261, 1, 0
  %v5264 = vsel %vm5262, 1, 0
  %v5265 = vcvt.s32.f32 %v5263
  %v5266 = vcvt.s32.f32 %v5264
  %v5267 = vsub.f32 1.0, %v5265
  %v5268 = vsub.f32 1.0, %v5266
  %v5269 = vmul.f32 %v5259, %v5267
  %v5270 = vmul.f32 %v5260, %v5268
  %v5271 = vadd.f32 %v5253, %v5265
  %v5272 = vadd.f32 %v5254, %v5266
  %v5273 = vsub.f32 %v5217, %v5269
  %v5274 = vsub.f32 %v5219, %v5270
  %v5275 = vmul.f32 %v5273, 0.5
  %v5276 = vmul.f32 %v5274, 0.5
  %v5277 = vadd.f32 %v5269, %v5275
  %v5278 = vadd.f32 %v5270, %v5276
  %vm5279 = vcmp.ge.f32.partialorder %v5277, 1.0
  %vm5280 = vcmp.ge.f32.partialorder %v5278, 1.0
  %v5281 = vsel %vm5279, 1, 0
  %v5282 = vsel %vm5280, 1, 0
  %v5283 = vcvt.s32.f32 %v5281
  %v5284 = vcvt.s32.f32 %v5282
  %v5285 = vadd.f32 %v5271, %v5283
  %v5286 = vadd.f32 %v5272, %v5284
  %v5287 = vmul.f32 %v5285, 0.25
  %v5288 = vmul.f32 %v5286, 0.25
  %v5289 = vadd.f32 %v5035, %v5287
  %v5290 = vadd.f32 %v5036, %v5288
  %v5291 = vld [vmem:[%s12] sm:$0xff]
  %v5292 = vld [vmem:[%s12 + $0x8] sm:$0xff]
  %v5293 = vld [vmem:[%s12 + $0x10] sm:$0xff]
  %v5294 = vld [vmem:[%s12 + $0x18] sm:$0xff]
  %v5295 = vld [vmem:[%s13] sm:$0x1]
  %v5297 = vperm.slane %v5295, 0
  %v5300 = vsel %vm74, %v5289, 0
  %v5303 = vsel %vm74, %v5290, 0
  %5305 = vmatpush.msra.mxu0 0.0
  %5306 = vmatpush.msra.mxu0 0.0
  %5307 = vmatpush.msra.mxu0 0.0
  %5308 = vmatpush.msra.mxu0 0.0
  %5309 = vmatpush.msra.mxu0 0.0
  %5310 = vmatpush.msra.mxu0 0.0
  %5311 = vmatpush.msra.mxu0 0.0
  %5312 = vmatpush.msra.mxu0 0.0
  %5313 = vmatpush.msra.mxu0 0.0
  %5314 = vmatpush.msra.mxu0 0.0
  %5315 = vmatpush.msra.mxu0 0.0
  %5316 = vmatpush.msra.mxu0 0.0
  %5317 = vmatpush.msra.mxu0 %v5294
  %5318 = vmatpush.msra.mxu0 %v5293
  %5319 = vmatpush.msra.mxu0 %v5292
  %5320 = vmatpush.msra.mxu0 %v5291
  %5321 = vmatmul.f32.gmra.mxu0 %v5300
  %v5322 = vpop.f32.mrf.mxu0
  %v5323 = vadd.f32 %v5297, %v5322
  %5324 = vmatmul.f32.gmra.mxu0 %v5303
  %v5325 = vpop.f32.mrf.mxu0
  %v5326 = vadd.f32 %v5297, %v5325
  %5327 = vdwg.mxu0
  %5328 = vst [vmem:[%s14] sm:$0xff] %v5323
  %5329 = vst [vmem:[%s14 + $0x8] sm:$0xff] %v5326
  // Predicated region
  $region58: #{forward.1} parent=0 // pred_check
    _
  $region59: #{forward.1} parent=0 // pred_check_branch
    %5331 = sbr.rel (0) target = $region61
  $region60: #{forward.1} parent=0 // pred_region
    _
  $region61: #{forward.1} parent=0 // pred_fallthru
    _
  // Predicated region
  $region62: #{forward.1} parent=0 // pred_check
    _
  $region63: #{forward.1} parent=0 // pred_check_branch
    %5333 = sbr.rel (0) target = $region65
  $region64: #{forward.1} parent=0 // pred_region
    _
  $region65: #{forward.1} parent=0 // pred_fallthru
    _

</llo_original>
